<compile_context>
chip_gen: v5e
topology: v5e:2x2
jax: 0.10.0
libtpu: 0.0.40
codegen_flags: <defaults>
</compile_context>

<pallas_src>
import numpy as np
import jax
import jax.numpy as jnp
from jax import lax
from jax.experimental import pallas as pl
from jax.experimental.pallas import tpu as pltpu


# ----------------------------- fixed geometry ------------------------------
K = 3
H0 = W0 = 32                       # input spatial (implied by fc1 = 16*6*6)
HC1 = WC1 = H0 - K + 1             # 30   conv1 output
HP1 = WP1 = HC1 // 2               # 15   pool1 output
HC2 = WC2 = HP1 - K + 1            # 13   conv2 output
HP2 = WP2 = HC2 // 2               # 6    pool2 output
C1, C2 = 6, 16
FC1_IN = C2 * HP2 * WP2            # 576
LANE = 128                         # padded fc width (lane-dense output)


# ------------------------------- the kernel --------------------------------
def _make_kernel(tb):
    def kernel(x_ref, band1_ref, cb1_ref, band2_ref, cb2_ref,
               lsel1_ref, rsel1_ref, lsel2_ref, rsel2_ref,
               w1_ref, fb1_ref, w2_ref, fb2_ref, w3_ref, fb3_ref,
               o_ref, feat_ref):
        f32 = jnp.float32

        # ---- conv1 -> relu -> pool1 -> conv2 -> relu -> pool2 (per sample) ----
        for b in range(tb):                                   # static unroll
            x = x_ref[b, 0]                                   # (32, 32)

            # conv1 as 3 banded matmuls: all 6 output channels along lanes.
            acc1 = jnp.zeros((HC1, C1 * WC1), f32)            # (30, 180)
            for ky in range(K):
                acc1 = acc1 + jnp.dot(x[ky:ky + HC1, :], band1_ref[ky],
                                      preferred_element_type=f32)
            r1 = jnp.maximum(acc1 + cb1_ref[...], 0.0)        # bias + ReLU

            # 2x2/stride-2 max-pool: adjacent max + 0/1 selection matmuls.
            t = jnp.maximum(r1[:-1, :], r1[1:, :])            # (29, 180)
            t = jnp.dot(lsel1_ref[...], t, preferred_element_type=f32)   # (15, 180)
            t = jnp.maximum(t[:, :-1], t[:, 1:])              # (15, 179)
            p1 = jnp.dot(t, rsel1_ref[...], preferred_element_type=f32)  # (15, 90)

            # conv2 as 3 banded matmuls (input-channel sum folded into the band).
            acc2 = jnp.zeros((HC2, C2 * WC2), f32)            # (13, 208)
            for ky in range(K):
                acc2 = acc2 + jnp.dot(p1[ky:ky + HC2, :], band2_ref[ky],
                                      preferred_element_type=f32)
            r2 = jnp.maximum(acc2 + cb2_ref[...], 0.0)

            t = jnp.maximum(r2[:-1, :], r2[1:, :])            # (12, 208)
            t = jnp.dot(lsel2_ref[...], t, preferred_element_type=f32)   # (6, 208)
            t = jnp.maximum(t[:, :-1], t[:, 1:])              # (6, 207)
            p2 = jnp.dot(t, rsel2_ref[...], preferred_element_type=f32)  # (6, 96)

            # Stash pooled rows: feat[h, b, c*6+w] = pool2[c, h, w]
            for h in range(HP2):
                feat_ref[h, b:b + 1, :] = p2[h:h + 1, :]

        # ---- fused MLP head over the whole tile (128-lane padded) ----
        h1 = jnp.zeros((tb, LANE), f32)
        for h in range(HP2):                                  # 6 (TB,96)x(96,128)
            h1 = h1 + jnp.dot(feat_ref[h], w1_ref[h], preferred_element_type=f32)
        h1 = jnp.maximum(h1 + fb1_ref[...], 0.0)
        h2 = jnp.maximum(jnp.dot(h1, w2_ref[...], preferred_element_type=f32)
                         + fb2_ref[...], 0.0)
        o_ref[...] = (jnp.dot(h2, w3_ref[...], preferred_element_type=f32)
                      + fb3_ref[...])
    return kernel


# ------------------------------ forward pass -------------------------------
def net_forward(x, pp, tile_b=8):
    assert tile_b % 8 == 0, "tile_b must be a multiple of 8 (sublane alignment)"
    n = x.shape[0]
    npad = ((n + tile_b - 1) // tile_b) * tile_b
    if npad != n:
        x = jnp.pad(x, ((0, npad - n), (0, 0), (0, 0), (0, 0)))

    names = ["band1", "cb1", "band2", "cb2", "lsel1", "rsel1", "lsel2", "rsel2",
             "w1p", "fb1", "w2p", "fb2", "w3p", "fb3"]
    weights = [pp[k] for k in names]

    def _const_spec(a):
        nd = a.ndim
        return pl.BlockSpec(a.shape, lambda i, nd=nd: (0,) * nd)

    out = pl.pallas_call(
        _make_kernel(tile_b),
        out_shape=jax.ShapeDtypeStruct((npad, LANE), jnp.float32),
        grid=(npad // tile_b,),
        in_specs=[pl.BlockSpec((tile_b, 1, H0, W0), lambda i: (i, 0, 0, 0))]
                + [_const_spec(w) for w in weights],
        out_specs=pl.BlockSpec((tile_b, LANE), lambda i: (i, 0)),
        scratch_shapes=[pltpu.VMEM((HP2, tile_b, C2 * WP2), jnp.float32)],
        compiler_params=pltpu.CompilerParams(
            dimension_semantics=("parallel",)),
    )(x, *weights)
    return out[:n, :10]


# --------------------- parameter packing (host side, once) ------------------
def pack_params(p):
    f32 = np.float32
    w1 = np.asarray(p["conv1_w"], f32)     # (6, 1, 3, 3)
    b1 = np.asarray(p["conv1_b"], f32)     # (6,)
    w2 = np.asarray(p["conv2_w"], f32)     # (16, 6, 3, 3)
    b2 = np.asarray(p["conv2_b"], f32)     # (16,)
    fw1 = np.asarray(p["fc1_w"], f32)      # (120, 576)
    fb1 = np.asarray(p["fc1_b"], f32)
    fw2 = np.asarray(p["fc2_w"], f32)      # (84, 120)
    fb2 = np.asarray(p["fc2_b"], f32)
    fw3 = np.asarray(p["fc3_w"], f32)      # (10, 84)
    fb3 = np.asarray(p["fc3_b"], f32)

    def band(wk, win, wout):
        # wk: (cout, cin, K).  band[ci*win + xo + kx, co*wout + xo] = wk[co,ci,kx]
        cout, cin, k = wk.shape
        m = np.zeros((cin * win, cout * wout), f32)
        for co in range(cout):
            for ci in range(cin):
                for xo in range(wout):
                    for kx in range(k):
                        m[ci * win + xo + kx, co * wout + xo] = wk[co, ci, kx]
        return m

    band1 = np.stack([band(w1[:, :, ky, :], W0, WC1) for ky in range(K)])    # (3, 32, 180)
    band2 = np.stack([band(w2[:, :, ky, :], WP1, WC2) for ky in range(K)])   # (3, 90, 208)
    cb1 = np.repeat(b1, WC1)[None, :]                                        # (1, 180)
    cb2 = np.repeat(b2, WC2)[None, :]                                        # (1, 208)

    def row_sel(nout, nin):
        m = np.zeros((nout, nin), f32)
        m[np.arange(nout), 2 * np.arange(nout)] = 1.0
        return m

    def col_sel(nin, cout, win, wout):
        m = np.zeros((nin, cout * wout), f32)
        for co in range(cout):
            for xo in range(wout):
                m[co * win + 2 * xo, co * wout + xo] = 1.0
        return m

    lsel1 = row_sel(HP1, HC1 - 1)                    # (15, 29)
    rsel1 = col_sel(C1 * WC1 - 1, C1, WC1, WP1)      # (179, 90)
    lsel2 = row_sel(HP2, HC2 - 1)                    # (6, 12)
    rsel2 = col_sel(C2 * WC2 - 1, C2, WC2, WP2)      # (207, 96)

    # fc1 rearranged so that feat[h, c*6+w] contracts correctly:
    # w1p[h, c*6+w, j] = fc1_w[j, c*36 + h*6 + w]   (absorbs the NCHW flatten)
    w1p = fw1.reshape(120, C2, HP2, WP2).transpose(2, 1, 3, 0).reshape(HP2, C2 * WP2, 120)
    w1p = np.pad(w1p, ((0, 0), (0, 0), (0, LANE - 120)))
    fcb1 = np.zeros((1, LANE), f32); fcb1[0, :120] = fb1
    w2p = np.zeros((LANE, LANE), f32); w2p[:120, :84] = fw2.T
    fcb2 = np.zeros((1, LANE), f32); fcb2[0, :84] = fb2
    w3p = np.zeros((LANE, LANE), f32); w3p[:84, :10] = fw3.T
    fcb3 = np.zeros((1, LANE), f32); fcb3[0, :10] = fb3

    pk = dict(band1=band1, cb1=cb1, band2=band2, cb2=cb2,
              lsel1=lsel1, rsel1=rsel1, lsel2=lsel2, rsel2=rsel2,
              w1p=w1p, fb1=fcb1, w2p=w2p, fb2=fcb2, w3p=w3p, fb3=fcb3)
    return {k: jnp.asarray(v, jnp.float32) for k, v in pk.items()}


# ------------------- deterministic init + pure-JAX reference ----------------
def init_params(key):
    ks = jax.random.split(key, 10)

    def w(k, shape, scale=0.1):
        return (scale * jax.random.normal(k, shape)).astype(jnp.float32)

    return {
        "conv1_w": w(ks[0], (6, 1, 3, 3)),
        "conv1_b": w(ks[1], (6,)),
        "conv2_w": w(ks[2], (16, 6, 3, 3)),
        "conv2_b": w(ks[3], (16,)),
        "fc1_w": w(ks[4], (120, 16 * 6 * 6)),
        "fc1_b": w(ks[5], (120,)),
        "fc2_w": w(ks[6], (84, 120)),
        "fc2_b": w(ks[7], (84,)),
        "fc3_w": w(ks[8], (10, 84)),
        "fc3_b": w(ks[9], (10,)),
    }


def reference_forward(x, p):
    dn = ('NCHW', 'OIHW', 'NCHW')
    y = lax.conv_general_dilated(x, p["conv1_w"], (1, 1), 'VALID', dimension_numbers=dn)
    y = jnp.maximum(y + p["conv1_b"][None, :, None, None], 0.0)
    y = lax.reduce_window(y, -jnp.inf, lax.max, (1, 1, 2, 2), (1, 1, 2, 2), 'VALID')
    y = lax.conv_general_dilated(y, p["conv2_w"], (1, 1), 'VALID', dimension_numbers=dn)
    y = jnp.maximum(y + p["conv2_b"][None, :, None, None], 0.0)
    y = lax.reduce_window(y, -jnp.inf, lax.max, (1, 1, 2, 2), (1, 1, 2, 2), 'VALID')
    f = y.reshape(y.shape[0], -1)
    h = jnp.maximum(f @ p["fc1_w"].T + p["fc1_b"], 0.0)
    h = jnp.maximum(h @ p["fc2_w"].T + p["fc2_b"], 0.0)
    return h @ p["fc3_w"].T + p["fc3_b"]


if __name__ == "__main__":
    key = jax.random.PRNGKey(0)
    kx, kp = jax.random.split(key)
    params = init_params(kp)
    packed = pack_params(params)            # packed once, reused every forward
    # Net.forward implies 32x32 single-channel inputs (fc1 expects 16*6*6).
    x = jax.random.normal(kx, (16, 1, 32, 32), dtype=jnp.float32)

    fwd = jax.jit(net_forward)
    out = jax.block_until_ready(fwd(x, packed))

    ref = reference_forward(x, params)
    assert out.shape == (16, 10)
    assert bool(jnp.allclose(out, ref, rtol=5e-2, atol=5e-2))
    print("KERNEL_OK")
</pallas_src>

<mosaic_0001>
module attributes {stable_mosaic.version = 11 : i64} {
  func.func @kernel(%arg0: i32, %arg1: memref<8x1x32x32xf32, #tpu.memory_space<vmem>>, %arg2: memref<3x32x180xf32, #tpu.memory_space<vmem>>, %arg3: memref<1x180xf32, #tpu.memory_space<vmem>>, %arg4: memref<3x90x208xf32, #tpu.memory_space<vmem>>, %arg5: memref<1x208xf32, #tpu.memory_space<vmem>>, %arg6: memref<15x29xf32, #tpu.memory_space<vmem>>, %arg7: memref<179x90xf32, #tpu.memory_space<vmem>>, %arg8: memref<6x12xf32, #tpu.memory_space<vmem>>, %arg9: memref<207x96xf32, #tpu.memory_space<vmem>>, %arg10: memref<6x96x128xf32, #tpu.memory_space<vmem>>, %arg11: memref<1x128xf32, #tpu.memory_space<vmem>>, %arg12: memref<128x128xf32, #tpu.memory_space<vmem>>, %arg13: memref<1x128xf32, #tpu.memory_space<vmem>>, %arg14: memref<128x128xf32, #tpu.memory_space<vmem>>, %arg15: memref<1x128xf32, #tpu.memory_space<vmem>>, %arg16: memref<8x128xf32, #tpu.memory_space<vmem>>, %arg17: memref<6x8x96xf32, #tpu.memory_space<vmem>>) attributes {dimension_semantics = [#tpu.dimension_semantics<parallel>], iteration_bounds = array<i64: 2>, scalar_prefetch = 0 : i64, scratch_operands = 1 : i64, tpu.core_type = #tpu.core_type<tc>, window_params = [{transform_indices = @transform_0, window_bounds = array<i64: 8, 1, 32, 32>}, {pipeline_mode = #tpu.pipeline_mode<synchronous>, transform_indices = @transform_1, window_bounds = array<i64: 3, 32, 180>}, {pipeline_mode = #tpu.pipeline_mode<synchronous>, transform_indices = @transform_2, window_bounds = array<i64: 1, 180>}, {pipeline_mode = #tpu.pipeline_mode<synchronous>, transform_indices = @transform_3, window_bounds = array<i64: 3, 90, 208>}, {pipeline_mode = #tpu.pipeline_mode<synchronous>, transform_indices = @transform_4, window_bounds = array<i64: 1, 208>}, {pipeline_mode = #tpu.pipeline_mode<synchronous>, transform_indices = @transform_5, window_bounds = array<i64: 15, 29>}, {pipeline_mode = #tpu.pipeline_mode<synchronous>, transform_indices = @transform_6, window_bounds = array<i64: 179, 90>}, {pipeline_mode = #tpu.pipeline_mode<synchronous>, transform_indices = @transform_7, window_bounds = array<i64: 6, 12>}, {pipeline_mode = #tpu.pipeline_mode<synchronous>, transform_indices = @transform_8, window_bounds = array<i64: 207, 96>}, {pipeline_mode = #tpu.pipeline_mode<synchronous>, transform_indices = @transform_9, window_bounds = array<i64: 6, 96, 128>}, {pipeline_mode = #tpu.pipeline_mode<synchronous>, transform_indices = @transform_10, window_bounds = array<i64: 1, 128>}, {pipeline_mode = #tpu.pipeline_mode<synchronous>, transform_indices = @transform_11, window_bounds = array<i64: 128, 128>}, {pipeline_mode = #tpu.pipeline_mode<synchronous>, transform_indices = @transform_12, window_bounds = array<i64: 1, 128>}, {pipeline_mode = #tpu.pipeline_mode<synchronous>, transform_indices = @transform_13, window_bounds = array<i64: 128, 128>}, {pipeline_mode = #tpu.pipeline_mode<synchronous>, transform_indices = @transform_14, window_bounds = array<i64: 1, 128>}, {transform_indices = @transform_15, window_bounds = array<i64: 8, 128>}]} {
    %c0 = arith.constant 0 : index
    %c0_0 = arith.constant 0 : index
    %c0_1 = arith.constant 0 : index
    %c0_2 = arith.constant 0 : index
    %0 = vector.load %arg1[%c0, %c0_0, %c0_1, %c0_2] : memref<8x1x32x32xf32, #tpu.memory_space<vmem>>, vector<1x1x32x32xf32>
    %1 = vector.shape_cast %0 : vector<1x1x32x32xf32> to vector<32x32xf32>
    %cst = arith.constant 0.000000e+00 : f32
    %2 = vector.broadcast %cst : f32 to vector<30x180xf32>
    %3 = vector.extract_strided_slice %1 {offsets = [0, 0], sizes = [30, 32], strides = [1, 1]} : vector<32x32xf32> to vector<30x32xf32>
    %c0_3 = arith.constant 0 : index
    %c0_4 = arith.constant 0 : index
    %c0_5 = arith.constant 0 : index
    %4 = vector.load %arg2[%c0_3, %c0_4, %c0_5] : memref<3x32x180xf32, #tpu.memory_space<vmem>>, vector<1x32x180xf32>
    %5 = vector.shape_cast %4 : vector<1x32x180xf32> to vector<32x180xf32>
    %cst_6 = arith.constant dense<0.000000e+00> : vector<30x180xf32>
    %6 = tpu.matmul %3, %5, %cst_6 {dimension_numbers = #tpu.dot_dimension_numbers<[1], [0], [0], [1], [0, 0, 1, 1], [], []>} : vector<30x32xf32>, vector<32x180xf32>, vector<30x180xf32> -> vector<30x180xf32>
    %7 = arith.addf %2, %6 : vector<30x180xf32>
    %8 = vector.extract_strided_slice %1 {offsets = [1, 0], sizes = [30, 32], strides = [1, 1]} : vector<32x32xf32> to vector<30x32xf32>
    %c1 = arith.constant 1 : index
    %c0_7 = arith.constant 0 : index
    %c0_8 = arith.constant 0 : index
    %9 = vector.load %arg2[%c1, %c0_7, %c0_8] : memref<3x32x180xf32, #tpu.memory_space<vmem>>, vector<1x32x180xf32>
    %10 = vector.shape_cast %9 : vector<1x32x180xf32> to vector<32x180xf32>
    %cst_9 = arith.constant dense<0.000000e+00> : vector<30x180xf32>
    %11 = tpu.matmul %8, %10, %cst_9 {dimension_numbers = #tpu.dot_dimension_numbers<[1], [0], [0], [1], [0, 0, 1, 1], [], []>} : vector<30x32xf32>, vector<32x180xf32>, vector<30x180xf32> -> vector<30x180xf32>
    %12 = arith.addf %7, %11 : vector<30x180xf32>
    %13 = vector.extract_strided_slice %1 {offsets = [2, 0], sizes = [30, 32], strides = [1, 1]} : vector<32x32xf32> to vector<30x32xf32>
    %c2 = arith.constant 2 : index
    %c0_10 = arith.constant 0 : index
    %c0_11 = arith.constant 0 : index
    %14 = vector.load %arg2[%c2, %c0_10, %c0_11] : memref<3x32x180xf32, #tpu.memory_space<vmem>>, vector<1x32x180xf32>
    %15 = vector.shape_cast %14 : vector<1x32x180xf32> to vector<32x180xf32>
    %cst_12 = arith.constant dense<0.000000e+00> : vector<30x180xf32>
    %16 = tpu.matmul %13, %15, %cst_12 {dimension_numbers = #tpu.dot_dimension_numbers<[1], [0], [0], [1], [0, 0, 1, 1], [], []>} : vector<30x32xf32>, vector<32x180xf32>, vector<30x180xf32> -> vector<30x180xf32>
    %17 = arith.addf %12, %16 : vector<30x180xf32>
    %c0_13 = arith.constant 0 : index
    %c0_14 = arith.constant 0 : index
    %18 = vector.load %arg3[%c0_13, %c0_14] : memref<1x180xf32, #tpu.memory_space<vmem>>, vector<1x180xf32>
    %19 = vector.broadcast %18 : vector<1x180xf32> to vector<30x180xf32>
    %20 = arith.addf %17, %19 : vector<30x180xf32>
    %cst_15 = arith.constant 0.000000e+00 : f32
    %21 = vector.broadcast %cst_15 : f32 to vector<30x180xf32>
    %22 = arith.maximumf %20, %21 : vector<30x180xf32>
    %23 = vector.extract_strided_slice %22 {offsets = [0, 0], sizes = [29, 180], strides = [1, 1]} : vector<30x180xf32> to vector<29x180xf32>
    %24 = vector.extract_strided_slice %22 {offsets = [1, 0], sizes = [29, 180], strides = [1, 1]} : vector<30x180xf32> to vector<29x180xf32>
    %25 = arith.maximumf %23, %24 : vector<29x180xf32>
    %c0_16 = arith.constant 0 : index
    %c0_17 = arith.constant 0 : index
    %26 = vector.load %arg6[%c0_16, %c0_17] : memref<15x29xf32, #tpu.memory_space<vmem>>, vector<15x29xf32>
    %cst_18 = arith.constant dense<0.000000e+00> : vector<15x180xf32>
    %27 = tpu.matmul %26, %25, %cst_18 {dimension_numbers = #tpu.dot_dimension_numbers<[1], [0], [0], [1], [0, 0, 1, 1], [], []>} : vector<15x29xf32>, vector<29x180xf32>, vector<15x180xf32> -> vector<15x180xf32>
    %28 = vector.extract_strided_slice %27 {offsets = [0, 0], sizes = [15, 179], strides = [1, 1]} : vector<15x180xf32> to vector<15x179xf32>
    %29 = vector.extract_strided_slice %27 {offsets = [0, 1], sizes = [15, 179], strides = [1, 1]} : vector<15x180xf32> to vector<15x179xf32>
    %30 = arith.maximumf %28, %29 : vector<15x179xf32>
    %c0_19 = arith.constant 0 : index
    %c0_20 = arith.constant 0 : index
    %31 = vector.load %arg7[%c0_19, %c0_20] : memref<179x90xf32, #tpu.memory_space<vmem>>, vector<179x90xf32>
    %cst_21 = arith.constant dense<0.000000e+00> : vector<15x90xf32>
    %32 = tpu.matmul %30, %31, %cst_21 {dimension_numbers = #tpu.dot_dimension_numbers<[1], [0], [0], [1], [0, 0, 1, 1], [], []>} : vector<15x179xf32>, vector<179x90xf32>, vector<15x90xf32> -> vector<15x90xf32>
    %cst_22 = arith.constant 0.000000e+00 : f32
    %33 = vector.broadcast %cst_22 : f32 to vector<13x208xf32>
    %34 = vector.extract_strided_slice %32 {offsets = [0, 0], sizes = [13, 90], strides = [1, 1]} : vector<15x90xf32> to vector<13x90xf32>
    %c0_23 = arith.constant 0 : index
    %c0_24 = arith.constant 0 : index
    %c0_25 = arith.constant 0 : index
    %35 = vector.load %arg4[%c0_23, %c0_24, %c0_25] : memref<3x90x208xf32, #tpu.memory_space<vmem>>, vector<1x90x208xf32>
    %36 = vector.shape_cast %35 : vector<1x90x208xf32> to vector<90x208xf32>
    %cst_26 = arith.constant dense<0.000000e+00> : vector<13x208xf32>
    %37 = tpu.matmul %34, %36, %cst_26 {dimension_numbers = #tpu.dot_dimension_numbers<[1], [0], [0], [1], [0, 0, 1, 1], [], []>} : vector<13x90xf32>, vector<90x208xf32>, vector<13x208xf32> -> vector<13x208xf32>
    %38 = arith.addf %33, %37 : vector<13x208xf32>
    %39 = vector.extract_strided_slice %32 {offsets = [1, 0], sizes = [13, 90], strides = [1, 1]} : vector<15x90xf32> to vector<13x90xf32>
    %c1_27 = arith.constant 1 : index
    %c0_28 = arith.constant 0 : index
    %c0_29 = arith.constant 0 : index
    %40 = vector.load %arg4[%c1_27, %c0_28, %c0_29] : memref<3x90x208xf32, #tpu.memory_space<vmem>>, vector<1x90x208xf32>
    %41 = vector.shape_cast %40 : vector<1x90x208xf32> to vector<90x208xf32>
    %cst_30 = arith.constant dense<0.000000e+00> : vector<13x208xf32>
    %42 = tpu.matmul %39, %41, %cst_30 {dimension_numbers = #tpu.dot_dimension_numbers<[1], [0], [0], [1], [0, 0, 1, 1], [], []>} : vector<13x90xf32>, vector<90x208xf32>, vector<13x208xf32> -> vector<13x208xf32>
    %43 = arith.addf %38, %42 : vector<13x208xf32>
    %44 = vector.extract_strided_slice %32 {offsets = [2, 0], sizes = [13, 90], strides = [1, 1]} : vector<15x90xf32> to vector<13x90xf32>
    %c2_31 = arith.constant 2 : index
    %c0_32 = arith.constant 0 : index
    %c0_33 = arith.constant 0 : index
    %45 = vector.load %arg4[%c2_31, %c0_32, %c0_33] : memref<3x90x208xf32, #tpu.memory_space<vmem>>, vector<1x90x208xf32>
    %46 = vector.shape_cast %45 : vector<1x90x208xf32> to vector<90x208xf32>
    %cst_34 = arith.constant dense<0.000000e+00> : vector<13x208xf32>
    %47 = tpu.matmul %44, %46, %cst_34 {dimension_numbers = #tpu.dot_dimension_numbers<[1], [0], [0], [1], [0, 0, 1, 1], [], []>} : vector<13x90xf32>, vector<90x208xf32>, vector<13x208xf32> -> vector<13x208xf32>
    %48 = arith.addf %43, %47 : vector<13x208xf32>
    %c0_35 = arith.constant 0 : index
    %c0_36 = arith.constant 0 : index
    %49 = vector.load %arg5[%c0_35, %c0_36] : memref<1x208xf32, #tpu.memory_space<vmem>>, vector<1x208xf32>
    %50 = vector.broadcast %49 : vector<1x208xf32> to vector<13x208xf32>
    %51 = arith.addf %48, %50 : vector<13x208xf32>
    %cst_37 = arith.constant 0.000000e+00 : f32
    %52 = vector.broadcast %cst_37 : f32 to vector<13x208xf32>
    %53 = arith.maximumf %51, %52 : vector<13x208xf32>
    %54 = vector.extract_strided_slice %53 {offsets = [0, 0], sizes = [12, 208], strides = [1, 1]} : vector<13x208xf32> to vector<12x208xf32>
    %55 = vector.extract_strided_slice %53 {offsets = [1, 0], sizes = [12, 208], strides = [1, 1]} : vector<13x208xf32> to vector<12x208xf32>
    %56 = arith.maximumf %54, %55 : vector<12x208xf32>
    %c0_38 = arith.constant 0 : index
    %c0_39 = arith.constant 0 : index
    %57 = vector.load %arg8[%c0_38, %c0_39] : memref<6x12xf32, #tpu.memory_space<vmem>>, vector<6x12xf32>
    %cst_40 = arith.constant dense<0.000000e+00> : vector<6x208xf32>
    %58 = tpu.matmul %57, %56, %cst_40 {dimension_numbers = #tpu.dot_dimension_numbers<[1], [0], [0], [1], [0, 0, 1, 1], [], []>} : vector<6x12xf32>, vector<12x208xf32>, vector<6x208xf32> -> vector<6x208xf32>
    %59 = vector.extract_strided_slice %58 {offsets = [0, 0], sizes = [6, 207], strides = [1, 1]} : vector<6x208xf32> to vector<6x207xf32>
    %60 = vector.extract_strided_slice %58 {offsets = [0, 1], sizes = [6, 207], strides = [1, 1]} : vector<6x208xf32> to vector<6x207xf32>
    %61 = arith.maximumf %59, %60 : vector<6x207xf32>
    %c0_41 = arith.constant 0 : index
    %c0_42 = arith.constant 0 : index
    %62 = vector.load %arg9[%c0_41, %c0_42] : memref<207x96xf32, #tpu.memory_space<vmem>>, vector<207x96xf32>
    %cst_43 = arith.constant dense<0.000000e+00> : vector<6x96xf32>
    %63 = tpu.matmul %61, %62, %cst_43 {dimension_numbers = #tpu.dot_dimension_numbers<[1], [0], [0], [1], [0, 0, 1, 1], [], []>} : vector<6x207xf32>, vector<207x96xf32>, vector<6x96xf32> -> vector<6x96xf32>
    %64 = vector.extract_strided_slice %63 {offsets = [0, 0], sizes = [1, 96], strides = [1, 1]} : vector<6x96xf32> to vector<1x96xf32>
    %c0_44 = arith.constant 0 : index
    %c0_45 = arith.constant 0 : index
    %c0_46 = arith.constant 0 : index
    %65 = vector.load %arg17[%c0_44, %c0_45, %c0_46] : memref<6x8x96xf32, #tpu.memory_space<vmem>>, vector<1x1x96xf32>
    %66 = vector.shape_cast %65 : vector<1x1x96xf32> to vector<1x96xf32>
    %67 = vector.shape_cast %64 : vector<1x96xf32> to vector<1x1x96xf32>
    tpu.vector_store %arg17[%c0_44, %c0_45, %c0_46], %67 {strides = array<i32>} : memref<6x8x96xf32, #tpu.memory_space<vmem>>, vector<1x1x96xf32>,
    %68 = vector.extract_strided_slice %63 {offsets = [1, 0], sizes = [1, 96], strides = [1, 1]} : vector<6x96xf32> to vector<1x96xf32>
    %c1_47 = arith.constant 1 : index
    %c0_48 = arith.constant 0 : index
    %c0_49 = arith.constant 0 : index
    %69 = vector.load %arg17[%c1_47, %c0_48, %c0_49] : memref<6x8x96xf32, #tpu.memory_space<vmem>>, vector<1x1x96xf32>
    %70 = vector.shape_cast %69 : vector<1x1x96xf32> to vector<1x96xf32>
    %71 = vector.shape_cast %68 : vector<1x96xf32> to vector<1x1x96xf32>
    tpu.vector_store %arg17[%c1_47, %c0_48, %c0_49], %71 {strides = array<i32>} : memref<6x8x96xf32, #tpu.memory_space<vmem>>, vector<1x1x96xf32>,
    %72 = vector.extract_strided_slice %63 {offsets = [2, 0], sizes = [1, 96], strides = [1, 1]} : vector<6x96xf32> to vector<1x96xf32>
    %c2_50 = arith.constant 2 : index
    %c0_51 = arith.constant 0 : index
    %c0_52 = arith.constant 0 : index
    %73 = vector.load %arg17[%c2_50, %c0_51, %c0_52] : memref<6x8x96xf32, #tpu.memory_space<vmem>>, vector<1x1x96xf32>
    %74 = vector.shape_cast %73 : vector<1x1x96xf32> to vector<1x96xf32>
    %75 = vector.shape_cast %72 : vector<1x96xf32> to vector<1x1x96xf32>
    tpu.vector_store %arg17[%c2_50, %c0_51, %c0_52], %75 {strides = array<i32>} : memref<6x8x96xf32, #tpu.memory_space<vmem>>, vector<1x1x96xf32>,
    %76 = vector.extract_strided_slice %63 {offsets = [3, 0], sizes = [1, 96], strides = [1, 1]} : vector<6x96xf32> to vector<1x96xf32>
    %c3 = arith.constant 3 : index
    %c0_53 = arith.constant 0 : index
    %c0_54 = arith.constant 0 : index
    %77 = vector.load %arg17[%c3, %c0_53, %c0_54] : memref<6x8x96xf32, #tpu.memory_space<vmem>>, vector<1x1x96xf32>
    %78 = vector.shape_cast %77 : vector<1x1x96xf32> to vector<1x96xf32>
    %79 = vector.shape_cast %76 : vector<1x96xf32> to vector<1x1x96xf32>
    tpu.vector_store %arg17[%c3, %c0_53, %c0_54], %79 {strides = array<i32>} : memref<6x8x96xf32, #tpu.memory_space<vmem>>, vector<1x1x96xf32>,
    %80 = vector.extract_strided_slice %63 {offsets = [4, 0], sizes = [1, 96], strides = [1, 1]} : vector<6x96xf32> to vector<1x96xf32>
    %c4 = arith.constant 4 : index
    %c0_55 = arith.constant 0 : index
    %c0_56 = arith.constant 0 : index
    %81 = vector.load %arg17[%c4, %c0_55, %c0_56] : memref<6x8x96xf32, #tpu.memory_space<vmem>>, vector<1x1x96xf32>
    %82 = vector.shape_cast %81 : vector<1x1x96xf32> to vector<1x96xf32>
    %83 = vector.shape_cast %80 : vector<1x96xf32> to vector<1x1x96xf32>
    tpu.vector_store %arg17[%c4, %c0_55, %c0_56], %83 {strides = array<i32>} : memref<6x8x96xf32, #tpu.memory_space<vmem>>, vector<1x1x96xf32>,
    %84 = vector.extract_strided_slice %63 {offsets = [5, 0], sizes = [1, 96], strides = [1, 1]} : vector<6x96xf32> to vector<1x96xf32>
    %c5 = arith.constant 5 : index
    %c0_57 = arith.constant 0 : index
    %c0_58 = arith.constant 0 : index
    %85 = vector.load %arg17[%c5, %c0_57, %c0_58] : memref<6x8x96xf32, #tpu.memory_space<vmem>>, vector<1x1x96xf32>
    %86 = vector.shape_cast %85 : vector<1x1x96xf32> to vector<1x96xf32>
    %87 = vector.shape_cast %84 : vector<1x96xf32> to vector<1x1x96xf32>
    tpu.vector_store %arg17[%c5, %c0_57, %c0_58], %87 {strides = array<i32>} : memref<6x8x96xf32, #tpu.memory_space<vmem>>, vector<1x1x96xf32>,
    %c1_59 = arith.constant 1 : index
    %c0_60 = arith.constant 0 : index
    %c0_61 = arith.constant 0 : index
    %c0_62 = arith.constant 0 : index
    %88 = vector.load %arg1[%c1_59, %c0_60, %c0_61, %c0_62] : memref<8x1x32x32xf32, #tpu.memory_space<vmem>>, vector<1x1x32x32xf32>
    %89 = vector.shape_cast %88 : vector<1x1x32x32xf32> to vector<32x32xf32>
    %cst_63 = arith.constant 0.000000e+00 : f32
    %90 = vector.broadcast %cst_63 : f32 to vector<30x180xf32>
    %91 = vector.extract_strided_slice %89 {offsets = [0, 0], sizes = [30, 32], strides = [1, 1]} : vector<32x32xf32> to vector<30x32xf32>
    %c0_64 = arith.constant 0 : index
    %c0_65 = arith.constant 0 : index
    %c0_66 = arith.constant 0 : index
    %92 = vector.load %arg2[%c0_64, %c0_65, %c0_66] : memref<3x32x180xf32, #tpu.memory_space<vmem>>, vector<1x32x180xf32>
    %93 = vector.shape_cast %92 : vector<1x32x180xf32> to vector<32x180xf32>
    %cst_67 = arith.constant dense<0.000000e+00> : vector<30x180xf32>
    %94 = tpu.matmul %91, %93, %cst_67 {dimension_numbers = #tpu.dot_dimension_numbers<[1], [0], [0], [1], [0, 0, 1, 1], [], []>} : vector<30x32xf32>, vector<32x180xf32>, vector<30x180xf32> -> vector<30x180xf32>
    %95 = arith.addf %90, %94 : vector<30x180xf32>
    %96 = vector.extract_strided_slice %89 {offsets = [1, 0], sizes = [30, 32], strides = [1, 1]} : vector<32x32xf32> to vector<30x32xf32>
    %c1_68 = arith.constant 1 : index
    %c0_69 = arith.constant 0 : index
    %c0_70 = arith.constant 0 : index
    %97 = vector.load %arg2[%c1_68, %c0_69, %c0_70] : memref<3x32x180xf32, #tpu.memory_space<vmem>>, vector<1x32x180xf32>
    %98 = vector.shape_cast %97 : vector<1x32x180xf32> to vector<32x180xf32>
    %cst_71 = arith.constant dense<0.000000e+00> : vector<30x180xf32>
    %99 = tpu.matmul %96, %98, %cst_71 {dimension_numbers = #tpu.dot_dimension_numbers<[1], [0], [0], [1], [0, 0, 1, 1], [], []>} : vector<30x32xf32>, vector<32x180xf32>, vector<30x180xf32> -> vector<30x180xf32>
    %100 = arith.addf %95, %99 : vector<30x180xf32>
    %101 = vector.extract_strided_slice %89 {offsets = [2, 0], sizes = [30, 32], strides = [1, 1]} : vector<32x32xf32> to vector<30x32xf32>
    %c2_72 = arith.constant 2 : index
    %c0_73 = arith.constant 0 : index
    %c0_74 = arith.constant 0 : index
    %102 = vector.load %arg2[%c2_72, %c0_73, %c0_74] : memref<3x32x180xf32, #tpu.memory_space<vmem>>, vector<1x32x180xf32>
    %103 = vector.shape_cast %102 : vector<1x32x180xf32> to vector<32x180xf32>
    %cst_75 = arith.constant dense<0.000000e+00> : vector<30x180xf32>
    %104 = tpu.matmul %101, %103, %cst_75 {dimension_numbers = #tpu.dot_dimension_numbers<[1], [0], [0], [1], [0, 0, 1, 1], [], []>} : vector<30x32xf32>, vector<32x180xf32>, vector<30x180xf32> -> vector<30x180xf32>
    %105 = arith.addf %100, %104 : vector<30x180xf32>
    %c0_76 = arith.constant 0 : index
    %c0_77 = arith.constant 0 : index
    %106 = vector.load %arg3[%c0_76, %c0_77] : memref<1x180xf32, #tpu.memory_space<vmem>>, vector<1x180xf32>
    %107 = vector.broadcast %106 : vector<1x180xf32> to vector<30x180xf32>
    %108 = arith.addf %105, %107 : vector<30x180xf32>
    %cst_78 = arith.constant 0.000000e+00 : f32
    %109 = vector.broadcast %cst_78 : f32 to vector<30x180xf32>
    %110 = arith.maximumf %108, %109 : vector<30x180xf32>
    %111 = vector.extract_strided_slice %110 {offsets = [0, 0], sizes = [29, 180], strides = [1, 1]} : vector<30x180xf32> to vector<29x180xf32>
    %112 = vector.extract_strided_slice %110 {offsets = [1, 0], sizes = [29, 180], strides = [1, 1]} : vector<30x180xf32> to vector<29x180xf32>
    %113 = arith.maximumf %111, %112 : vector<29x180xf32>
    %c0_79 = arith.constant 0 : index
    %c0_80 = arith.constant 0 : index
    %114 = vector.load %arg6[%c0_79, %c0_80] : memref<15x29xf32, #tpu.memory_space<vmem>>, vector<15x29xf32>
    %cst_81 = arith.constant dense<0.000000e+00> : vector<15x180xf32>
    %115 = tpu.matmul %114, %113, %cst_81 {dimension_numbers = #tpu.dot_dimension_numbers<[1], [0], [0], [1], [0, 0, 1, 1], [], []>} : vector<15x29xf32>, vector<29x180xf32>, vector<15x180xf32> -> vector<15x180xf32>
    %116 = vector.extract_strided_slice %115 {offsets = [0, 0], sizes = [15, 179], strides = [1, 1]} : vector<15x180xf32> to vector<15x179xf32>
    %117 = vector.extract_strided_slice %115 {offsets = [0, 1], sizes = [15, 179], strides = [1, 1]} : vector<15x180xf32> to vector<15x179xf32>
    %118 = arith.maximumf %116, %117 : vector<15x179xf32>
    %c0_82 = arith.constant 0 : index
    %c0_83 = arith.constant 0 : index
    %119 = vector.load %arg7[%c0_82, %c0_83] : memref<179x90xf32, #tpu.memory_space<vmem>>, vector<179x90xf32>
    %cst_84 = arith.constant dense<0.000000e+00> : vector<15x90xf32>
    %120 = tpu.matmul %118, %119, %cst_84 {dimension_numbers = #tpu.dot_dimension_numbers<[1], [0], [0], [1], [0, 0, 1, 1], [], []>} : vector<15x179xf32>, vector<179x90xf32>, vector<15x90xf32> -> vector<15x90xf32>
    %cst_85 = arith.constant 0.000000e+00 : f32
    %121 = vector.broadcast %cst_85 : f32 to vector<13x208xf32>
    %122 = vector.extract_strided_slice %120 {offsets = [0, 0], sizes = [13, 90], strides = [1, 1]} : vector<15x90xf32> to vector<13x90xf32>
    %c0_86 = arith.constant 0 : index
    %c0_87 = arith.constant 0 : index
    %c0_88 = arith.constant 0 : index
    %123 = vector.load %arg4[%c0_86, %c0_87, %c0_88] : memref<3x90x208xf32, #tpu.memory_space<vmem>>, vector<1x90x208xf32>
    %124 = vector.shape_cast %123 : vector<1x90x208xf32> to vector<90x208xf32>
    %cst_89 = arith.constant dense<0.000000e+00> : vector<13x208xf32>
    %125 = tpu.matmul %122, %124, %cst_89 {dimension_numbers = #tpu.dot_dimension_numbers<[1], [0], [0], [1], [0, 0, 1, 1], [], []>} : vector<13x90xf32>, vector<90x208xf32>, vector<13x208xf32> -> vector<13x208xf32>
    %126 = arith.addf %121, %125 : vector<13x208xf32>
    %127 = vector.extract_strided_slice %120 {offsets = [1, 0], sizes = [13, 90], strides = [1, 1]} : vector<15x90xf32> to vector<13x90xf32>
    %c1_90 = arith.constant 1 : index
    %c0_91 = arith.constant 0 : index
    %c0_92 = arith.constant 0 : index
    %128 = vector.load %arg4[%c1_90, %c0_91, %c0_92] : memref<3x90x208xf32, #tpu.memory_space<vmem>>, vector<1x90x208xf32>
    %129 = vector.shape_cast %128 : vector<1x90x208xf32> to vector<90x208xf32>
    %cst_93 = arith.constant dense<0.000000e+00> : vector<13x208xf32>
    %130 = tpu.matmul %127, %129, %cst_93 {dimension_numbers = #tpu.dot_dimension_numbers<[1], [0], [0], [1], [0, 0, 1, 1], [], []>} : vector<13x90xf32>, vector<90x208xf32>, vector<13x208xf32> -> vector<13x208xf32>
    %131 = arith.addf %126, %130 : vector<13x208xf32>
    %132 = vector.extract_strided_slice %120 {offsets = [2, 0], sizes = [13, 90], strides = [1, 1]} : vector<15x90xf32> to vector<13x90xf32>
    %c2_94 = arith.constant 2 : index
    %c0_95 = arith.constant 0 : index
    %c0_96 = arith.constant 0 : index
    %133 = vector.load %arg4[%c2_94, %c0_95, %c0_96] : memref<3x90x208xf32, #tpu.memory_space<vmem>>, vector<1x90x208xf32>
    %134 = vector.shape_cast %133 : vector<1x90x208xf32> to vector<90x208xf32>
    %cst_97 = arith.constant dense<0.000000e+00> : vector<13x208xf32>
    %135 = tpu.matmul %132, %134, %cst_97 {dimension_numbers = #tpu.dot_dimension_numbers<[1], [0], [0], [1], [0, 0, 1, 1], [], []>} : vector<13x90xf32>, vector<90x208xf32>, vector<13x208xf32> -> vector<13x208xf32>
    %136 = arith.addf %131, %135 : vector<13x208xf32>
    %c0_98 = arith.constant 0 : index
    %c0_99 = arith.constant 0 : index
    %137 = vector.load %arg5[%c0_98, %c0_99] : memref<1x208xf32, #tpu.memory_space<vmem>>, vector<1x208xf32>
    %138 = vector.broadcast %137 : vector<1x208xf32> to vector<13x208xf32>
    %139 = arith.addf %136, %138 : vector<13x208xf32>
    %cst_100 = arith.constant 0.000000e+00 : f32
    %140 = vector.broadcast %cst_100 : f32 to vector<13x208xf32>
    %141 = arith.maximumf %139, %140 : vector<13x208xf32>
    %142 = vector.extract_strided_slice %141 {offsets = [0, 0], sizes = [12, 208], strides = [1, 1]} : vector<13x208xf32> to vector<12x208xf32>
    %143 = vector.extract_strided_slice %141 {offsets = [1, 0], sizes = [12, 208], strides = [1, 1]} : vector<13x208xf32> to vector<12x208xf32>
    %144 = arith.maximumf %142, %143 : vector<12x208xf32>
    %c0_101 = arith.constant 0 : index
    %c0_102 = arith.constant 0 : index
    %145 = vector.load %arg8[%c0_101, %c0_102] : memref<6x12xf32, #tpu.memory_space<vmem>>, vector<6x12xf32>
    %cst_103 = arith.constant dense<0.000000e+00> : vector<6x208xf32>
    %146 = tpu.matmul %145, %144, %cst_103 {dimension_numbers = #tpu.dot_dimension_numbers<[1], [0], [0], [1], [0, 0, 1, 1], [], []>} : vector<6x12xf32>, vector<12x208xf32>, vector<6x208xf32> -> vector<6x208xf32>
    %147 = vector.extract_strided_slice %146 {offsets = [0, 0], sizes = [6, 207], strides = [1, 1]} : vector<6x208xf32> to vector<6x207xf32>
    %148 = vector.extract_strided_slice %146 {offsets = [0, 1], sizes = [6, 207], strides = [1, 1]} : vector<6x208xf32> to vector<6x207xf32>
    %149 = arith.maximumf %147, %148 : vector<6x207xf32>
    %c0_104 = arith.constant 0 : index
    %c0_105 = arith.constant 0 : index
    %150 = vector.load %arg9[%c0_104, %c0_105] : memref<207x96xf32, #tpu.memory_space<vmem>>, vector<207x96xf32>
    %cst_106 = arith.constant dense<0.000000e+00> : vector<6x96xf32>
    %151 = tpu.matmul %149, %150, %cst_106 {dimension_numbers = #tpu.dot_dimension_numbers<[1], [0], [0], [1], [0, 0, 1, 1], [], []>} : vector<6x207xf32>, vector<207x96xf32>, vector<6x96xf32> -> vector<6x96xf32>
    %152 = vector.extract_strided_slice %151 {offsets = [0, 0], sizes = [1, 96], strides = [1, 1]} : vector<6x96xf32> to vector<1x96xf32>
    %c0_107 = arith.constant 0 : index
    %c1_108 = arith.constant 1 : index
    %c0_109 = arith.constant 0 : index
    %153 = vector.load %arg17[%c0_107, %c1_108, %c0_109] : memref<6x8x96xf32, #tpu.memory_space<vmem>>, vector<1x1x96xf32>
    %154 = vector.shape_cast %153 : vector<1x1x96xf32> to vector<1x96xf32>
    %155 = vector.shape_cast %152 : vector<1x96xf32> to vector<1x1x96xf32>
    tpu.vector_store %arg17[%c0_107, %c1_108, %c0_109], %155 {strides = array<i32>} : memref<6x8x96xf32, #tpu.memory_space<vmem>>, vector<1x1x96xf32>,
    %156 = vector.extract_strided_slice %151 {offsets = [1, 0], sizes = [1, 96], strides = [1, 1]} : vector<6x96xf32> to vector<1x96xf32>
    %c1_110 = arith.constant 1 : index
    %c1_111 = arith.constant 1 : index
    %c0_112 = arith.constant 0 : index
    %157 = vector.load %arg17[%c1_110, %c1_111, %c0_112] : memref<6x8x96xf32, #tpu.memory_space<vmem>>, vector<1x1x96xf32>
    %158 = vector.shape_cast %157 : vector<1x1x96xf32> to vector<1x96xf32>
    %159 = vector.shape_cast %156 : vector<1x96xf32> to vector<1x1x96xf32>
    tpu.vector_store %arg17[%c1_110, %c1_111, %c0_112], %159 {strides = array<i32>} : memref<6x8x96xf32, #tpu.memory_space<vmem>>, vector<1x1x96xf32>,
    %160 = vector.extract_strided_slice %151 {offsets = [2, 0], sizes = [1, 96], strides = [1, 1]} : vector<6x96xf32> to vector<1x96xf32>
    %c2_113 = arith.constant 2 : index
    %c1_114 = arith.constant 1 : index
    %c0_115 = arith.constant 0 : index
    %161 = vector.load %arg17[%c2_113, %c1_114, %c0_115] : memref<6x8x96xf32, #tpu.memory_space<vmem>>, vector<1x1x96xf32>
    %162 = vector.shape_cast %161 : vector<1x1x96xf32> to vector<1x96xf32>
    %163 = vector.shape_cast %160 : vector<1x96xf32> to vector<1x1x96xf32>
    tpu.vector_store %arg17[%c2_113, %c1_114, %c0_115], %163 {strides = array<i32>} : memref<6x8x96xf32, #tpu.memory_space<vmem>>, vector<1x1x96xf32>,
    %164 = vector.extract_strided_slice %151 {offsets = [3, 0], sizes = [1, 96], strides = [1, 1]} : vector<6x96xf32> to vector<1x96xf32>
    %c3_116 = arith.constant 3 : index
    %c1_117 = arith.constant 1 : index
    %c0_118 = arith.constant 0 : index
    %165 = vector.load %arg17[%c3_116, %c1_117, %c0_118] : memref<6x8x96xf32, #tpu.memory_space<vmem>>, vector<1x1x96xf32>
    %166 = vector.shape_cast %165 : vector<1x1x96xf32> to vector<1x96xf32>
    %167 = vector.shape_cast %164 : vector<1x96xf32> to vector<1x1x96xf32>
    tpu.vector_store %arg17[%c3_116, %c1_117, %c0_118], %167 {strides = array<i32>} : memref<6x8x96xf32, #tpu.memory_space<vmem>>, vector<1x1x96xf32>,
    %168 = vector.extract_strided_slice %151 {offsets = [4, 0], sizes = [1, 96], strides = [1, 1]} : vector<6x96xf32> to vector<1x96xf32>
    %c4_119 = arith.constant 4 : index
    %c1_120 = arith.constant 1 : index
    %c0_121 = arith.constant 0 : index
    %169 = vector.load %arg17[%c4_119, %c1_120, %c0_121] : memref<6x8x96xf32, #tpu.memory_space<vmem>>, vector<1x1x96xf32>
    %170 = vector.shape_cast %169 : vector<1x1x96xf32> to vector<1x96xf32>
    %171 = vector.shape_cast %168 : vector<1x96xf32> to vector<1x1x96xf32>
    tpu.vector_store %arg17[%c4_119, %c1_120, %c0_121], %171 {strides = array<i32>} : memref<6x8x96xf32, #tpu.memory_space<vmem>>, vector<1x1x96xf32>,
    %172 = vector.extract_strided_slice %151 {offsets = [5, 0], sizes = [1, 96], strides = [1, 1]} : vector<6x96xf32> to vector<1x96xf32>
    %c5_122 = arith.constant 5 : index
    %c1_123 = arith.constant 1 : index
    %c0_124 = arith.constant 0 : index
    %173 = vector.load %arg17[%c5_122, %c1_123, %c0_124] : memref<6x8x96xf32, #tpu.memory_space<vmem>>, vector<1x1x96xf32>
    %174 = vector.shape_cast %173 : vector<1x1x96xf32> to vector<1x96xf32>
    %175 = vector.shape_cast %172 : vector<1x96xf32> to vector<1x1x96xf32>
    tpu.vector_store %arg17[%c5_122, %c1_123, %c0_124], %175 {strides = array<i32>} : memref<6x8x96xf32, #tpu.memory_space<vmem>>, vector<1x1x96xf32>,
    %c2_125 = arith.constant 2 : index
    %c0_126 = arith.constant 0 : index
    %c0_127 = arith.constant 0 : index
    %c0_128 = arith.constant 0 : index
    %176 = vector.load %arg1[%c2_125, %c0_126, %c0_127, %c0_128] : memref<8x1x32x32xf32, #tpu.memory_space<vmem>>, vector<1x1x32x32xf32>
    %177 = vector.shape_cast %176 : vector<1x1x32x32xf32> to vector<32x32xf32>
    %cst_129 = arith.constant 0.000000e+00 : f32
    %178 = vector.broadcast %cst_129 : f32 to vector<30x180xf32>
    %179 = vector.extract_strided_slice %177 {offsets = [0, 0], sizes = [30, 32], strides = [1, 1]} : vector<32x32xf32> to vector<30x32xf32>
    %c0_130 = arith.constant 0 : index
    %c0_131 = arith.constant 0 : index
    %c0_132 = arith.constant 0 : index
    %180 = vector.load %arg2[%c0_130, %c0_131, %c0_132] : memref<3x32x180xf32, #tpu.memory_space<vmem>>, vector<1x32x180xf32>
    %181 = vector.shape_cast %180 : vector<1x32x180xf32> to vector<32x180xf32>
    %cst_133 = arith.constant dense<0.000000e+00> : vector<30x180xf32>
    %182 = tpu.matmul %179, %181, %cst_133 {dimension_numbers = #tpu.dot_dimension_numbers<[1], [0], [0], [1], [0, 0, 1, 1], [], []>} : vector<30x32xf32>, vector<32x180xf32>, vector<30x180xf32> -> vector<30x180xf32>
    %183 = arith.addf %178, %182 : vector<30x180xf32>
    %184 = vector.extract_strided_slice %177 {offsets = [1, 0], sizes = [30, 32], strides = [1, 1]} : vector<32x32xf32> to vector<30x32xf32>
    %c1_134 = arith.constant 1 : index
    %c0_135 = arith.constant 0 : index
    %c0_136 = arith.constant 0 : index
    %185 = vector.load %arg2[%c1_134, %c0_135, %c0_136] : memref<3x32x180xf32, #tpu.memory_space<vmem>>, vector<1x32x180xf32>
    %186 = vector.shape_cast %185 : vector<1x32x180xf32> to vector<32x180xf32>
    %cst_137 = arith.constant dense<0.000000e+00> : vector<30x180xf32>
    %187 = tpu.matmul %184, %186, %cst_137 {dimension_numbers = #tpu.dot_dimension_numbers<[1], [0], [0], [1], [0, 0, 1, 1], [], []>} : vector<30x32xf32>, vector<32x180xf32>, vector<30x180xf32> -> vector<30x180xf32>
    %188 = arith.addf %183, %187 : vector<30x180xf32>
    %189 = vector.extract_strided_slice %177 {offsets = [2, 0], sizes = [30, 32], strides = [1, 1]} : vector<32x32xf32> to vector<30x32xf32>
    %c2_138 = arith.constant 2 : index
    %c0_139 = arith.constant 0 : index
    %c0_140 = arith.constant 0 : index
    %190 = vector.load %arg2[%c2_138, %c0_139, %c0_140] : memref<3x32x180xf32, #tpu.memory_space<vmem>>, vector<1x32x180xf32>
    %191 = vector.shape_cast %190 : vector<1x32x180xf32> to vector<32x180xf32>
    %cst_141 = arith.constant dense<0.000000e+00> : vector<30x180xf32>
    %192 = tpu.matmul %189, %191, %cst_141 {dimension_numbers = #tpu.dot_dimension_numbers<[1], [0], [0], [1], [0, 0, 1, 1], [], []>} : vector<30x32xf32>, vector<32x180xf32>, vector<30x180xf32> -> vector<30x180xf32>
    %193 = arith.addf %188, %192 : vector<30x180xf32>
    %c0_142 = arith.constant 0 : index
    %c0_143 = arith.constant 0 : index
    %194 = vector.load %arg3[%c0_142, %c0_143] : memref<1x180xf32, #tpu.memory_space<vmem>>, vector<1x180xf32>
    %195 = vector.broadcast %194 : vector<1x180xf32> to vector<30x180xf32>
    %196 = arith.addf %193, %195 : vector<30x180xf32>
    %cst_144 = arith.constant 0.000000e+00 : f32
    %197 = vector.broadcast %cst_144 : f32 to vector<30x180xf32>
    %198 = arith.maximumf %196, %197 : vector<30x180xf32>
    %199 = vector.extract_strided_slice %198 {offsets = [0, 0], sizes = [29, 180], strides = [1, 1]} : vector<30x180xf32> to vector<29x180xf32>
    %200 = vector.extract_strided_slice %198 {offsets = [1, 0], sizes = [29, 180], strides = [1, 1]} : vector<30x180xf32> to vector<29x180xf32>
    %201 = arith.maximumf %199, %200 : vector<29x180xf32>
    %c0_145 = arith.constant 0 : index
    %c0_146 = arith.constant 0 : index
    %202 = vector.load %arg6[%c0_145, %c0_146] : memref<15x29xf32, #tpu.memory_space<vmem>>, vector<15x29xf32>
    %cst_147 = arith.constant dense<0.000000e+00> : vector<15x180xf32>
    %203 = tpu.matmul %202, %201, %cst_147 {dimension_numbers = #tpu.dot_dimension_numbers<[1], [0], [0], [1], [0, 0, 1, 1], [], []>} : vector<15x29xf32>, vector<29x180xf32>, vector<15x180xf32> -> vector<15x180xf32>
    %204 = vector.extract_strided_slice %203 {offsets = [0, 0], sizes = [15, 179], strides = [1, 1]} : vector<15x180xf32> to vector<15x179xf32>
    %205 = vector.extract_strided_slice %203 {offsets = [0, 1], sizes = [15, 179], strides = [1, 1]} : vector<15x180xf32> to vector<15x179xf32>
    %206 = arith.maximumf %204, %205 : vector<15x179xf32>
    %c0_148 = arith.constant 0 : index
    %c0_149 = arith.constant 0 : index
    %207 = vector.load %arg7[%c0_148, %c0_149] : memref<179x90xf32, #tpu.memory_space<vmem>>, vector<179x90xf32>
    %cst_150 = arith.constant dense<0.000000e+00> : vector<15x90xf32>
    %208 = tpu.matmul %206, %207, %cst_150 {dimension_numbers = #tpu.dot_dimension_numbers<[1], [0], [0], [1], [0, 0, 1, 1], [], []>} : vector<15x179xf32>, vector<179x90xf32>, vector<15x90xf32> -> vector<15x90xf32>
    %cst_151 = arith.constant 0.000000e+00 : f32
    %209 = vector.broadcast %cst_151 : f32 to vector<13x208xf32>
    %210 = vector.extract_strided_slice %208 {offsets = [0, 0], sizes = [13, 90], strides = [1, 1]} : vector<15x90xf32> to vector<13x90xf32>
    %c0_152 = arith.constant 0 : index
    %c0_153 = arith.constant 0 : index
    %c0_154 = arith.constant 0 : index
    %211 = vector.load %arg4[%c0_152, %c0_153, %c0_154] : memref<3x90x208xf32, #tpu.memory_space<vmem>>, vector<1x90x208xf32>
    %212 = vector.shape_cast %211 : vector<1x90x208xf32> to vector<90x208xf32>
    %cst_155 = arith.constant dense<0.000000e+00> : vector<13x208xf32>
    %213 = tpu.matmul %210, %212, %cst_155 {dimension_numbers = #tpu.dot_dimension_numbers<[1], [0], [0], [1], [0, 0, 1, 1], [], []>} : vector<13x90xf32>, vector<90x208xf32>, vector<13x208xf32> -> vector<13x208xf32>
    %214 = arith.addf %209, %213 : vector<13x208xf32>
    %215 = vector.extract_strided_slice %208 {offsets = [1, 0], sizes = [13, 90], strides = [1, 1]} : vector<15x90xf32> to vector<13x90xf32>
    %c1_156 = arith.constant 1 : index
    %c0_157 = arith.constant 0 : index
    %c0_158 = arith.constant 0 : index
    %216 = vector.load %arg4[%c1_156, %c0_157, %c0_158] : memref<3x90x208xf32, #tpu.memory_space<vmem>>, vector<1x90x208xf32>
    %217 = vector.shape_cast %216 : vector<1x90x208xf32> to vector<90x208xf32>
    %cst_159 = arith.constant dense<0.000000e+00> : vector<13x208xf32>
    %218 = tpu.matmul %215, %217, %cst_159 {dimension_numbers = #tpu.dot_dimension_numbers<[1], [0], [0], [1], [0, 0, 1, 1], [], []>} : vector<13x90xf32>, vector<90x208xf32>, vector<13x208xf32> -> vector<13x208xf32>
    %219 = arith.addf %214, %218 : vector<13x208xf32>
    %220 = vector.extract_strided_slice %208 {offsets = [2, 0], sizes = [13, 90], strides = [1, 1]} : vector<15x90xf32> to vector<13x90xf32>
    %c2_160 = arith.constant 2 : index
    %c0_161 = arith.constant 0 : index
    %c0_162 = arith.constant 0 : index
    %221 = vector.load %arg4[%c2_160, %c0_161, %c0_162] : memref<3x90x208xf32, #tpu.memory_space<vmem>>, vector<1x90x208xf32>
    %222 = vector.shape_cast %221 : vector<1x90x208xf32> to vector<90x208xf32>
    %cst_163 = arith.constant dense<0.000000e+00> : vector<13x208xf32>
    %223 = tpu.matmul %220, %222, %cst_163 {dimension_numbers = #tpu.dot_dimension_numbers<[1], [0], [0], [1], [0, 0, 1, 1], [], []>} : vector<13x90xf32>, vector<90x208xf32>, vector<13x208xf32> -> vector<13x208xf32>
    %224 = arith.addf %219, %223 : vector<13x208xf32>
    %c0_164 = arith.constant 0 : index
    %c0_165 = arith.constant 0 : index
    %225 = vector.load %arg5[%c0_164, %c0_165] : memref<1x208xf32, #tpu.memory_space<vmem>>, vector<1x208xf32>
    %226 = vector.broadcast %225 : vector<1x208xf32> to vector<13x208xf32>
    %227 = arith.addf %224, %226 : vector<13x208xf32>
    %cst_166 = arith.constant 0.000000e+00 : f32
    %228 = vector.broadcast %cst_166 : f32 to vector<13x208xf32>
    %229 = arith.maximumf %227, %228 : vector<13x208xf32>
    %230 = vector.extract_strided_slice %229 {offsets = [0, 0], sizes = [12, 208], strides = [1, 1]} : vector<13x208xf32> to vector<12x208xf32>
    %231 = vector.extract_strided_slice %229 {offsets = [1, 0], sizes = [12, 208], strides = [1, 1]} : vector<13x208xf32> to vector<12x208xf32>
    %232 = arith.maximumf %230, %231 : vector<12x208xf32>
    %c0_167 = arith.constant 0 : index
    %c0_168 = arith.constant 0 : index
    %233 = vector.load %arg8[%c0_167, %c0_168] : memref<6x12xf32, #tpu.memory_space<vmem>>, vector<6x12xf32>
    %cst_169 = arith.constant dense<0.000000e+00> : vector<6x208xf32>
    %234 = tpu.matmul %233, %232, %cst_169 {dimension_numbers = #tpu.dot_dimension_numbers<[1], [0], [0], [1], [0, 0, 1, 1], [], []>} : vector<6x12xf32>, vector<12x208xf32>, vector<6x208xf32> -> vector<6x208xf32>
    %235 = vector.extract_strided_slice %234 {offsets = [0, 0], sizes = [6, 207], strides = [1, 1]} : vector<6x208xf32> to vector<6x207xf32>
    %236 = vector.extract_strided_slice %234 {offsets = [0, 1], sizes = [6, 207], strides = [1, 1]} : vector<6x208xf32> to vector<6x207xf32>
    %237 = arith.maximumf %235, %236 : vector<6x207xf32>
    %c0_170 = arith.constant 0 : index
    %c0_171 = arith.constant 0 : index
    %238 = vector.load %arg9[%c0_170, %c0_171] : memref<207x96xf32, #tpu.memory_space<vmem>>, vector<207x96xf32>
    %cst_172 = arith.constant dense<0.000000e+00> : vector<6x96xf32>
    %239 = tpu.matmul %237, %238, %cst_172 {dimension_numbers = #tpu.dot_dimension_numbers<[1], [0], [0], [1], [0, 0, 1, 1], [], []>} : vector<6x207xf32>, vector<207x96xf32>, vector<6x96xf32> -> vector<6x96xf32>
    %240 = vector.extract_strided_slice %239 {offsets = [0, 0], sizes = [1, 96], strides = [1, 1]} : vector<6x96xf32> to vector<1x96xf32>
    %c0_173 = arith.constant 0 : index
    %c2_174 = arith.constant 2 : index
    %c0_175 = arith.constant 0 : index
    %241 = vector.load %arg17[%c0_173, %c2_174, %c0_175] : memref<6x8x96xf32, #tpu.memory_space<vmem>>, vector<1x1x96xf32>
    %242 = vector.shape_cast %241 : vector<1x1x96xf32> to vector<1x96xf32>
    %243 = vector.shape_cast %240 : vector<1x96xf32> to vector<1x1x96xf32>
    tpu.vector_store %arg17[%c0_173, %c2_174, %c0_175], %243 {strides = array<i32>} : memref<6x8x96xf32, #tpu.memory_space<vmem>>, vector<1x1x96xf32>,
    %244 = vector.extract_strided_slice %239 {offsets = [1, 0], sizes = [1, 96], strides = [1, 1]} : vector<6x96xf32> to vector<1x96xf32>
    %c1_176 = arith.constant 1 : index
    %c2_177 = arith.constant 2 : index
    %c0_178 = arith.constant 0 : index
    %245 = vector.load %arg17[%c1_176, %c2_177, %c0_178] : memref<6x8x96xf32, #tpu.memory_space<vmem>>, vector<1x1x96xf32>
    %246 = vector.shape_cast %245 : vector<1x1x96xf32> to vector<1x96xf32>
    %247 = vector.shape_cast %244 : vector<1x96xf32> to vector<1x1x96xf32>
    tpu.vector_store %arg17[%c1_176, %c2_177, %c0_178], %247 {strides = array<i32>} : memref<6x8x96xf32, #tpu.memory_space<vmem>>, vector<1x1x96xf32>,
    %248 = vector.extract_strided_slice %239 {offsets = [2, 0], sizes = [1, 96], strides = [1, 1]} : vector<6x96xf32> to vector<1x96xf32>
    %c2_179 = arith.constant 2 : index
    %c2_180 = arith.constant 2 : index
    %c0_181 = arith.constant 0 : index
    %249 = vector.load %arg17[%c2_179, %c2_180, %c0_181] : memref<6x8x96xf32, #tpu.memory_space<vmem>>, vector<1x1x96xf32>
    %250 = vector.shape_cast %249 : vector<1x1x96xf32> to vector<1x96xf32>
    %251 = vector.shape_cast %248 : vector<1x96xf32> to vector<1x1x96xf32>
    tpu.vector_store %arg17[%c2_179, %c2_180, %c0_181], %251 {strides = array<i32>} : memref<6x8x96xf32, #tpu.memory_space<vmem>>, vector<1x1x96xf32>,
    %252 = vector.extract_strided_slice %239 {offsets = [3, 0], sizes = [1, 96], strides = [1, 1]} : vector<6x96xf32> to vector<1x96xf32>
    %c3_182 = arith.constant 3 : index
    %c2_183 = arith.constant 2 : index
    %c0_184 = arith.constant 0 : index
    %253 = vector.load %arg17[%c3_182, %c2_183, %c0_184] : memref<6x8x96xf32, #tpu.memory_space<vmem>>, vector<1x1x96xf32>
    %254 = vector.shape_cast %253 : vector<1x1x96xf32> to vector<1x96xf32>
    %255 = vector.shape_cast %252 : vector<1x96xf32> to vector<1x1x96xf32>
    tpu.vector_store %arg17[%c3_182, %c2_183, %c0_184], %255 {strides = array<i32>} : memref<6x8x96xf32, #tpu.memory_space<vmem>>, vector<1x1x96xf32>,
    %256 = vector.extract_strided_slice %239 {offsets = [4, 0], sizes = [1, 96], strides = [1, 1]} : vector<6x96xf32> to vector<1x96xf32>
    %c4_185 = arith.constant 4 : index
    %c2_186 = arith.constant 2 : index
    %c0_187 = arith.constant 0 : index
    %257 = vector.load %arg17[%c4_185, %c2_186, %c0_187] : memref<6x8x96xf32, #tpu.memory_space<vmem>>, vector<1x1x96xf32>
    %258 = vector.shape_cast %257 : vector<1x1x96xf32> to vector<1x96xf32>
    %259 = vector.shape_cast %256 : vector<1x96xf32> to vector<1x1x96xf32>
    tpu.vector_store %arg17[%c4_185, %c2_186, %c0_187], %259 {strides = array<i32>} : memref<6x8x96xf32, #tpu.memory_space<vmem>>, vector<1x1x96xf32>,
    %260 = vector.extract_strided_slice %239 {offsets = [5, 0], sizes = [1, 96], strides = [1, 1]} : vector<6x96xf32> to vector<1x96xf32>
    %c5_188 = arith.constant 5 : index
    %c2_189 = arith.constant 2 : index
    %c0_190 = arith.constant 0 : index
    %261 = vector.load %arg17[%c5_188, %c2_189, %c0_190] : memref<6x8x96xf32, #tpu.memory_space<vmem>>, vector<1x1x96xf32>
    %262 = vector.shape_cast %261 : vector<1x1x96xf32> to vector<1x96xf32>
    %263 = vector.shape_cast %260 : vector<1x96xf32> to vector<1x1x96xf32>
    tpu.vector_store %arg17[%c5_188, %c2_189, %c0_190], %263 {strides = array<i32>} : memref<6x8x96xf32, #tpu.memory_space<vmem>>, vector<1x1x96xf32>,
    %c3_191 = arith.constant 3 : index
    %c0_192 = arith.constant 0 : index
    %c0_193 = arith.constant 0 : index
    %c0_194 = arith.constant 0 : index
    %264 = vector.load %arg1[%c3_191, %c0_192, %c0_193, %c0_194] : memref<8x1x32x32xf32, #tpu.memory_space<vmem>>, vector<1x1x32x32xf32>
    %265 = vector.shape_cast %264 : vector<1x1x32x32xf32> to vector<32x32xf32>
    %cst_195 = arith.constant 0.000000e+00 : f32
    %266 = vector.broadcast %cst_195 : f32 to vector<30x180xf32>
    %267 = vector.extract_strided_slice %265 {offsets = [0, 0], sizes = [30, 32], strides = [1, 1]} : vector<32x32xf32> to vector<30x32xf32>
    %c0_196 = arith.constant 0 : index
    %c0_197 = arith.constant 0 : index
    %c0_198 = arith.constant 0 : index
    %268 = vector.load %arg2[%c0_196, %c0_197, %c0_198] : memref<3x32x180xf32, #tpu.memory_space<vmem>>, vector<1x32x180xf32>
    %269 = vector.shape_cast %268 : vector<1x32x180xf32> to vector<32x180xf32>
    %cst_199 = arith.constant dense<0.000000e+00> : vector<30x180xf32>
    %270 = tpu.matmul %267, %269, %cst_199 {dimension_numbers = #tpu.dot_dimension_numbers<[1], [0], [0], [1], [0, 0, 1, 1], [], []>} : vector<30x32xf32>, vector<32x180xf32>, vector<30x180xf32> -> vector<30x180xf32>
    %271 = arith.addf %266, %270 : vector<30x180xf32>
    %272 = vector.extract_strided_slice %265 {offsets = [1, 0], sizes = [30, 32], strides = [1, 1]} : vector<32x32xf32> to vector<30x32xf32>
    %c1_200 = arith.constant 1 : index
    %c0_201 = arith.constant 0 : index
    %c0_202 = arith.constant 0 : index
    %273 = vector.load %arg2[%c1_200, %c0_201, %c0_202] : memref<3x32x180xf32, #tpu.memory_space<vmem>>, vector<1x32x180xf32>
    %274 = vector.shape_cast %273 : vector<1x32x180xf32> to vector<32x180xf32>
    %cst_203 = arith.constant dense<0.000000e+00> : vector<30x180xf32>
    %275 = tpu.matmul %272, %274, %cst_203 {dimension_numbers = #tpu.dot_dimension_numbers<[1], [0], [0], [1], [0, 0, 1, 1], [], []>} : vector<30x32xf32>, vector<32x180xf32>, vector<30x180xf32> -> vector<30x180xf32>
    %276 = arith.addf %271, %275 : vector<30x180xf32>
    %277 = vector.extract_strided_slice %265 {offsets = [2, 0], sizes = [30, 32], strides = [1, 1]} : vector<32x32xf32> to vector<30x32xf32>
    %c2_204 = arith.constant 2 : index
    %c0_205 = arith.constant 0 : index
    %c0_206 = arith.constant 0 : index
    %278 = vector.load %arg2[%c2_204, %c0_205, %c0_206] : memref<3x32x180xf32, #tpu.memory_space<vmem>>, vector<1x32x180xf32>
    %279 = vector.shape_cast %278 : vector<1x32x180xf32> to vector<32x180xf32>
    %cst_207 = arith.constant dense<0.000000e+00> : vector<30x180xf32>
    %280 = tpu.matmul %277, %279, %cst_207 {dimension_numbers = #tpu.dot_dimension_numbers<[1], [0], [0], [1], [0, 0, 1, 1], [], []>} : vector<30x32xf32>, vector<32x180xf32>, vector<30x180xf32> -> vector<30x180xf32>
    %281 = arith.addf %276, %280 : vector<30x180xf32>
    %c0_208 = arith.constant 0 : index
    %c0_209 = arith.constant 0 : index
    %282 = vector.load %arg3[%c0_208, %c0_209] : memref<1x180xf32, #tpu.memory_space<vmem>>, vector<1x180xf32>
    %283 = vector.broadcast %282 : vector<1x180xf32> to vector<30x180xf32>
    %284 = arith.addf %281, %283 : vector<30x180xf32>
    %cst_210 = arith.constant 0.000000e+00 : f32
    %285 = vector.broadcast %cst_210 : f32 to vector<30x180xf32>
    %286 = arith.maximumf %284, %285 : vector<30x180xf32>
    %287 = vector.extract_strided_slice %286 {offsets = [0, 0], sizes = [29, 180], strides = [1, 1]} : vector<30x180xf32> to vector<29x180xf32>
    %288 = vector.extract_strided_slice %286 {offsets = [1, 0], sizes = [29, 180], strides = [1, 1]} : vector<30x180xf32> to vector<29x180xf32>
    %289 = arith.maximumf %287, %288 : vector<29x180xf32>
    %c0_211 = arith.constant 0 : index
    %c0_212 = arith.constant 0 : index
    %290 = vector.load %arg6[%c0_211, %c0_212] : memref<15x29xf32, #tpu.memory_space<vmem>>, vector<15x29xf32>
    %cst_213 = arith.constant dense<0.000000e+00> : vector<15x180xf32>
    %291 = tpu.matmul %290, %289, %cst_213 {dimension_numbers = #tpu.dot_dimension_numbers<[1], [0], [0], [1], [0, 0, 1, 1], [], []>} : vector<15x29xf32>, vector<29x180xf32>, vector<15x180xf32> -> vector<15x180xf32>
    %292 = vector.extract_strided_slice %291 {offsets = [0, 0], sizes = [15, 179], strides = [1, 1]} : vector<15x180xf32> to vector<15x179xf32>
    %293 = vector.extract_strided_slice %291 {offsets = [0, 1], sizes = [15, 179], strides = [1, 1]} : vector<15x180xf32> to vector<15x179xf32>
    %294 = arith.maximumf %292, %293 : vector<15x179xf32>
    %c0_214 = arith.constant 0 : index
    %c0_215 = arith.constant 0 : index
    %295 = vector.load %arg7[%c0_214, %c0_215] : memref<179x90xf32, #tpu.memory_space<vmem>>, vector<179x90xf32>
    %cst_216 = arith.constant dense<0.000000e+00> : vector<15x90xf32>
    %296 = tpu.matmul %294, %295, %cst_216 {dimension_numbers = #tpu.dot_dimension_numbers<[1], [0], [0], [1], [0, 0, 1, 1], [], []>} : vector<15x179xf32>, vector<179x90xf32>, vector<15x90xf32> -> vector<15x90xf32>
    %cst_217 = arith.constant 0.000000e+00 : f32
    %297 = vector.broadcast %cst_217 : f32 to vector<13x208xf32>
    %298 = vector.extract_strided_slice %296 {offsets = [0, 0], sizes = [13, 90], strides = [1, 1]} : vector<15x90xf32> to vector<13x90xf32>
    %c0_218 = arith.constant 0 : index
    %c0_219 = arith.constant 0 : index
    %c0_220 = arith.constant 0 : index
    %299 = vector.load %arg4[%c0_218, %c0_219, %c0_220] : memref<3x90x208xf32, #tpu.memory_space<vmem>>, vector<1x90x208xf32>
    %300 = vector.shape_cast %299 : vector<1x90x208xf32> to vector<90x208xf32>
    %cst_221 = arith.constant dense<0.000000e+00> : vector<13x208xf32>
    %301 = tpu.matmul %298, %300, %cst_221 {dimension_numbers = #tpu.dot_dimension_numbers<[1], [0], [0], [1], [0, 0, 1, 1], [], []>} : vector<13x90xf32>, vector<90x208xf32>, vector<13x208xf32> -> vector<13x208xf32>
    %302 = arith.addf %297, %301 : vector<13x208xf32>
    %303 = vector.extract_strided_slice %296 {offsets = [1, 0], sizes = [13, 90], strides = [1, 1]} : vector<15x90xf32> to vector<13x90xf32>
    %c1_222 = arith.constant 1 : index
    %c0_223 = arith.constant 0 : index
    %c0_224 = arith.constant 0 : index
    %304 = vector.load %arg4[%c1_222, %c0_223, %c0_224] : memref<3x90x208xf32, #tpu.memory_space<vmem>>, vector<1x90x208xf32>
    %305 = vector.shape_cast %304 : vector<1x90x208xf32> to vector<90x208xf32>
    %cst_225 = arith.constant dense<0.000000e+00> : vector<13x208xf32>
    %306 = tpu.matmul %303, %305, %cst_225 {dimension_numbers = #tpu.dot_dimension_numbers<[1], [0], [0], [1], [0, 0, 1, 1], [], []>} : vector<13x90xf32>, vector<90x208xf32>, vector<13x208xf32> -> vector<13x208xf32>
    %307 = arith.addf %302, %306 : vector<13x208xf32>
    %308 = vector.extract_strided_slice %296 {offsets = [2, 0], sizes = [13, 90], strides = [1, 1]} : vector<15x90xf32> to vector<13x90xf32>
    %c2_226 = arith.constant 2 : index
    %c0_227 = arith.constant 0 : index
    %c0_228 = arith.constant 0 : index
    %309 = vector.load %arg4[%c2_226, %c0_227, %c0_228] : memref<3x90x208xf32, #tpu.memory_space<vmem>>, vector<1x90x208xf32>
    %310 = vector.shape_cast %309 : vector<1x90x208xf32> to vector<90x208xf32>
    %cst_229 = arith.constant dense<0.000000e+00> : vector<13x208xf32>
    %311 = tpu.matmul %308, %310, %cst_229 {dimension_numbers = #tpu.dot_dimension_numbers<[1], [0], [0], [1], [0, 0, 1, 1], [], []>} : vector<13x90xf32>, vector<90x208xf32>, vector<13x208xf32> -> vector<13x208xf32>
    %312 = arith.addf %307, %311 : vector<13x208xf32>
    %c0_230 = arith.constant 0 : index
    %c0_231 = arith.constant 0 : index
    %313 = vector.load %arg5[%c0_230, %c0_231] : memref<1x208xf32, #tpu.memory_space<vmem>>, vector<1x208xf32>
    %314 = vector.broadcast %313 : vector<1x208xf32> to vector<13x208xf32>
    %315 = arith.addf %312, %314 : vector<13x208xf32>
    %cst_232 = arith.constant 0.000000e+00 : f32
    %316 = vector.broadcast %cst_232 : f32 to vector<13x208xf32>
    %317 = arith.maximumf %315, %316 : vector<13x208xf32>
    %318 = vector.extract_strided_slice %317 {offsets = [0, 0], sizes = [12, 208], strides = [1, 1]} : vector<13x208xf32> to vector<12x208xf32>
    %319 = vector.extract_strided_slice %317 {offsets = [1, 0], sizes = [12, 208], strides = [1, 1]} : vector<13x208xf32> to vector<12x208xf32>
    %320 = arith.maximumf %318, %319 : vector<12x208xf32>
    %c0_233 = arith.constant 0 : index
    %c0_234 = arith.constant 0 : index
    %321 = vector.load %arg8[%c0_233, %c0_234] : memref<6x12xf32, #tpu.memory_space<vmem>>, vector<6x12xf32>
    %cst_235 = arith.constant dense<0.000000e+00> : vector<6x208xf32>
    %322 = tpu.matmul %321, %320, %cst_235 {dimension_numbers = #tpu.dot_dimension_numbers<[1], [0], [0], [1], [0, 0, 1, 1], [], []>} : vector<6x12xf32>, vector<12x208xf32>, vector<6x208xf32> -> vector<6x208xf32>
    %323 = vector.extract_strided_slice %322 {offsets = [0, 0], sizes = [6, 207], strides = [1, 1]} : vector<6x208xf32> to vector<6x207xf32>
    %324 = vector.extract_strided_slice %322 {offsets = [0, 1], sizes = [6, 207], strides = [1, 1]} : vector<6x208xf32> to vector<6x207xf32>
    %325 = arith.maximumf %323, %324 : vector<6x207xf32>
    %c0_236 = arith.constant 0 : index
    %c0_237 = arith.constant 0 : index
    %326 = vector.load %arg9[%c0_236, %c0_237] : memref<207x96xf32, #tpu.memory_space<vmem>>, vector<207x96xf32>
    %cst_238 = arith.constant dense<0.000000e+00> : vector<6x96xf32>
    %327 = tpu.matmul %325, %326, %cst_238 {dimension_numbers = #tpu.dot_dimension_numbers<[1], [0], [0], [1], [0, 0, 1, 1], [], []>} : vector<6x207xf32>, vector<207x96xf32>, vector<6x96xf32> -> vector<6x96xf32>
    %328 = vector.extract_strided_slice %327 {offsets = [0, 0], sizes = [1, 96], strides = [1, 1]} : vector<6x96xf32> to vector<1x96xf32>
    %c0_239 = arith.constant 0 : index
    %c3_240 = arith.constant 3 : index
    %c0_241 = arith.constant 0 : index
    %329 = vector.load %arg17[%c0_239, %c3_240, %c0_241] : memref<6x8x96xf32, #tpu.memory_space<vmem>>, vector<1x1x96xf32>
    %330 = vector.shape_cast %329 : vector<1x1x96xf32> to vector<1x96xf32>
    %331 = vector.shape_cast %328 : vector<1x96xf32> to vector<1x1x96xf32>
    tpu.vector_store %arg17[%c0_239, %c3_240, %c0_241], %331 {strides = array<i32>} : memref<6x8x96xf32, #tpu.memory_space<vmem>>, vector<1x1x96xf32>,
    %332 = vector.extract_strided_slice %327 {offsets = [1, 0], sizes = [1, 96], strides = [1, 1]} : vector<6x96xf32> to vector<1x96xf32>
    %c1_242 = arith.constant 1 : index
    %c3_243 = arith.constant 3 : index
    %c0_244 = arith.constant 0 : index
    %333 = vector.load %arg17[%c1_242, %c3_243, %c0_244] : memref<6x8x96xf32, #tpu.memory_space<vmem>>, vector<1x1x96xf32>
    %334 = vector.shape_cast %333 : vector<1x1x96xf32> to vector<1x96xf32>
    %335 = vector.shape_cast %332 : vector<1x96xf32> to vector<1x1x96xf32>
    tpu.vector_store %arg17[%c1_242, %c3_243, %c0_244], %335 {strides = array<i32>} : memref<6x8x96xf32, #tpu.memory_space<vmem>>, vector<1x1x96xf32>,
    %336 = vector.extract_strided_slice %327 {offsets = [2, 0], sizes = [1, 96], strides = [1, 1]} : vector<6x96xf32> to vector<1x96xf32>
    %c2_245 = arith.constant 2 : index
    %c3_246 = arith.constant 3 : index
    %c0_247 = arith.constant 0 : index
    %337 = vector.load %arg17[%c2_245, %c3_246, %c0_247] : memref<6x8x96xf32, #tpu.memory_space<vmem>>, vector<1x1x96xf32>
    %338 = vector.shape_cast %337 : vector<1x1x96xf32> to vector<1x96xf32>
    %339 = vector.shape_cast %336 : vector<1x96xf32> to vector<1x1x96xf32>
    tpu.vector_store %arg17[%c2_245, %c3_246, %c0_247], %339 {strides = array<i32>} : memref<6x8x96xf32, #tpu.memory_space<vmem>>, vector<1x1x96xf32>,
    %340 = vector.extract_strided_slice %327 {offsets = [3, 0], sizes = [1, 96], strides = [1, 1]} : vector<6x96xf32> to vector<1x96xf32>
    %c3_248 = arith.constant 3 : index
    %c3_249 = arith.constant 3 : index
    %c0_250 = arith.constant 0 : index
    %341 = vector.load %arg17[%c3_248, %c3_249, %c0_250] : memref<6x8x96xf32, #tpu.memory_space<vmem>>, vector<1x1x96xf32>
    %342 = vector.shape_cast %341 : vector<1x1x96xf32> to vector<1x96xf32>
    %343 = vector.shape_cast %340 : vector<1x96xf32> to vector<1x1x96xf32>
    tpu.vector_store %arg17[%c3_248, %c3_249, %c0_250], %343 {strides = array<i32>} : memref<6x8x96xf32, #tpu.memory_space<vmem>>, vector<1x1x96xf32>,
    %344 = vector.extract_strided_slice %327 {offsets = [4, 0], sizes = [1, 96], strides = [1, 1]} : vector<6x96xf32> to vector<1x96xf32>
    %c4_251 = arith.constant 4 : index
    %c3_252 = arith.constant 3 : index
    %c0_253 = arith.constant 0 : index
    %345 = vector.load %arg17[%c4_251, %c3_252, %c0_253] : memref<6x8x96xf32, #tpu.memory_space<vmem>>, vector<1x1x96xf32>
    %346 = vector.shape_cast %345 : vector<1x1x96xf32> to vector<1x96xf32>
    %347 = vector.shape_cast %344 : vector<1x96xf32> to vector<1x1x96xf32>
    tpu.vector_store %arg17[%c4_251, %c3_252, %c0_253], %347 {strides = array<i32>} : memref<6x8x96xf32, #tpu.memory_space<vmem>>, vector<1x1x96xf32>,
    %348 = vector.extract_strided_slice %327 {offsets = [5, 0], sizes = [1, 96], strides = [1, 1]} : vector<6x96xf32> to vector<1x96xf32>
    %c5_254 = arith.constant 5 : index
    %c3_255 = arith.constant 3 : index
    %c0_256 = arith.constant 0 : index
    %349 = vector.load %arg17[%c5_254, %c3_255, %c0_256] : memref<6x8x96xf32, #tpu.memory_space<vmem>>, vector<1x1x96xf32>
    %350 = vector.shape_cast %349 : vector<1x1x96xf32> to vector<1x96xf32>
    %351 = vector.shape_cast %348 : vector<1x96xf32> to vector<1x1x96xf32>
    tpu.vector_store %arg17[%c5_254, %c3_255, %c0_256], %351 {strides = array<i32>} : memref<6x8x96xf32, #tpu.memory_space<vmem>>, vector<1x1x96xf32>,
    %c4_257 = arith.constant 4 : index
    %c0_258 = arith.constant 0 : index
    %c0_259 = arith.constant 0 : index
    %c0_260 = arith.constant 0 : index
    %352 = vector.load %arg1[%c4_257, %c0_258, %c0_259, %c0_260] : memref<8x1x32x32xf32, #tpu.memory_space<vmem>>, vector<1x1x32x32xf32>
    %353 = vector.shape_cast %352 : vector<1x1x32x32xf32> to vector<32x32xf32>
    %cst_261 = arith.constant 0.000000e+00 : f32
    %354 = vector.broadcast %cst_261 : f32 to vector<30x180xf32>
    %355 = vector.extract_strided_slice %353 {offsets = [0, 0], sizes = [30, 32], strides = [1, 1]} : vector<32x32xf32> to vector<30x32xf32>
    %c0_262 = arith.constant 0 : index
    %c0_263 = arith.constant 0 : index
    %c0_264 = arith.constant 0 : index
    %356 = vector.load %arg2[%c0_262, %c0_263, %c0_264] : memref<3x32x180xf32, #tpu.memory_space<vmem>>, vector<1x32x180xf32>
    %357 = vector.shape_cast %356 : vector<1x32x180xf32> to vector<32x180xf32>
    %cst_265 = arith.constant dense<0.000000e+00> : vector<30x180xf32>
    %358 = tpu.matmul %355, %357, %cst_265 {dimension_numbers = #tpu.dot_dimension_numbers<[1], [0], [0], [1], [0, 0, 1, 1], [], []>} : vector<30x32xf32>, vector<32x180xf32>, vector<30x180xf32> -> vector<30x180xf32>
    %359 = arith.addf %354, %358 : vector<30x180xf32>
    %360 = vector.extract_strided_slice %353 {offsets = [1, 0], sizes = [30, 32], strides = [1, 1]} : vector<32x32xf32> to vector<30x32xf32>
    %c1_266 = arith.constant 1 : index
    %c0_267 = arith.constant 0 : index
    %c0_268 = arith.constant 0 : index
    %361 = vector.load %arg2[%c1_266, %c0_267, %c0_268] : memref<3x32x180xf32, #tpu.memory_space<vmem>>, vector<1x32x180xf32>
    %362 = vector.shape_cast %361 : vector<1x32x180xf32> to vector<32x180xf32>
    %cst_269 = arith.constant dense<0.000000e+00> : vector<30x180xf32>
    %363 = tpu.matmul %360, %362, %cst_269 {dimension_numbers = #tpu.dot_dimension_numbers<[1], [0], [0], [1], [0, 0, 1, 1], [], []>} : vector<30x32xf32>, vector<32x180xf32>, vector<30x180xf32> -> vector<30x180xf32>
    %364 = arith.addf %359, %363 : vector<30x180xf32>
    %365 = vector.extract_strided_slice %353 {offsets = [2, 0], sizes = [30, 32], strides = [1, 1]} : vector<32x32xf32> to vector<30x32xf32>
    %c2_270 = arith.constant 2 : index
    %c0_271 = arith.constant 0 : index
    %c0_272 = arith.constant 0 : index
    %366 = vector.load %arg2[%c2_270, %c0_271, %c0_272] : memref<3x32x180xf32, #tpu.memory_space<vmem>>, vector<1x32x180xf32>
    %367 = vector.shape_cast %366 : vector<1x32x180xf32> to vector<32x180xf32>
    %cst_273 = arith.constant dense<0.000000e+00> : vector<30x180xf32>
    %368 = tpu.matmul %365, %367, %cst_273 {dimension_numbers = #tpu.dot_dimension_numbers<[1], [0], [0], [1], [0, 0, 1, 1], [], []>} : vector<30x32xf32>, vector<32x180xf32>, vector<30x180xf32> -> vector<30x180xf32>
    %369 = arith.addf %364, %368 : vector<30x180xf32>
    %c0_274 = arith.constant 0 : index
    %c0_275 = arith.constant 0 : index
    %370 = vector.load %arg3[%c0_274, %c0_275] : memref<1x180xf32, #tpu.memory_space<vmem>>, vector<1x180xf32>
    %371 = vector.broadcast %370 : vector<1x180xf32> to vector<30x180xf32>
    %372 = arith.addf %369, %371 : vector<30x180xf32>
    %cst_276 = arith.constant 0.000000e+00 : f32
    %373 = vector.broadcast %cst_276 : f32 to vector<30x180xf32>
    %374 = arith.maximumf %372, %373 : vector<30x180xf32>
    %375 = vector.extract_strided_slice %374 {offsets = [0, 0], sizes = [29, 180], strides = [1, 1]} : vector<30x180xf32> to vector<29x180xf32>
    %376 = vector.extract_strided_slice %374 {offsets = [1, 0], sizes = [29, 180], strides = [1, 1]} : vector<30x180xf32> to vector<29x180xf32>
    %377 = arith.maximumf %375, %376 : vector<29x180xf32>
    %c0_277 = arith.constant 0 : index
    %c0_278 = arith.constant 0 : index
    %378 = vector.load %arg6[%c0_277, %c0_278] : memref<15x29xf32, #tpu.memory_space<vmem>>, vector<15x29xf32>
    %cst_279 = arith.constant dense<0.000000e+00> : vector<15x180xf32>
    %379 = tpu.matmul %378, %377, %cst_279 {dimension_numbers = #tpu.dot_dimension_numbers<[1], [0], [0], [1], [0, 0, 1, 1], [], []>} : vector<15x29xf32>, vector<29x180xf32>, vector<15x180xf32> -> vector<15x180xf32>
    %380 = vector.extract_strided_slice %379 {offsets = [0, 0], sizes = [15, 179], strides = [1, 1]} : vector<15x180xf32> to vector<15x179xf32>
    %381 = vector.extract_strided_slice %379 {offsets = [0, 1], sizes = [15, 179], strides = [1, 1]} : vector<15x180xf32> to vector<15x179xf32>
    %382 = arith.maximumf %380, %381 : vector<15x179xf32>
    %c0_280 = arith.constant 0 : index
    %c0_281 = arith.constant 0 : index
    %383 = vector.load %arg7[%c0_280, %c0_281] : memref<179x90xf32, #tpu.memory_space<vmem>>, vector<179x90xf32>
    %cst_282 = arith.constant dense<0.000000e+00> : vector<15x90xf32>
    %384 = tpu.matmul %382, %383, %cst_282 {dimension_numbers = #tpu.dot_dimension_numbers<[1], [0], [0], [1], [0, 0, 1, 1], [], []>} : vector<15x179xf32>, vector<179x90xf32>, vector<15x90xf32> -> vector<15x90xf32>
    %cst_283 = arith.constant 0.000000e+00 : f32
    %385 = vector.broadcast %cst_283 : f32 to vector<13x208xf32>
    %386 = vector.extract_strided_slice %384 {offsets = [0, 0], sizes = [13, 90], strides = [1, 1]} : vector<15x90xf32> to vector<13x90xf32>
    %c0_284 = arith.constant 0 : index
    %c0_285 = arith.constant 0 : index
    %c0_286 = arith.constant 0 : index
    %387 = vector.load %arg4[%c0_284, %c0_285, %c0_286] : memref<3x90x208xf32, #tpu.memory_space<vmem>>, vector<1x90x208xf32>
    %388 = vector.shape_cast %387 : vector<1x90x208xf32> to vector<90x208xf32>
    %cst_287 = arith.constant dense<0.000000e+00> : vector<13x208xf32>
    %389 = tpu.matmul %386, %388, %cst_287 {dimension_numbers = #tpu.dot_dimension_numbers<[1], [0], [0], [1], [0, 0, 1, 1], [], []>} : vector<13x90xf32>, vector<90x208xf32>, vector<13x208xf32> -> vector<13x208xf32>
    %390 = arith.addf %385, %389 : vector<13x208xf32>
    %391 = vector.extract_strided_slice %384 {offsets = [1, 0], sizes = [13, 90], strides = [1, 1]} : vector<15x90xf32> to vector<13x90xf32>
    %c1_288 = arith.constant 1 : index
    %c0_289 = arith.constant 0 : index
    %c0_290 = arith.constant 0 : index
    %392 = vector.load %arg4[%c1_288, %c0_289, %c0_290] : memref<3x90x208xf32, #tpu.memory_space<vmem>>, vector<1x90x208xf32>
    %393 = vector.shape_cast %392 : vector<1x90x208xf32> to vector<90x208xf32>
    %cst_291 = arith.constant dense<0.000000e+00> : vector<13x208xf32>
    %394 = tpu.matmul %391, %393, %cst_291 {dimension_numbers = #tpu.dot_dimension_numbers<[1], [0], [0], [1], [0, 0, 1, 1], [], []>} : vector<13x90xf32>, vector<90x208xf32>, vector<13x208xf32> -> vector<13x208xf32>
    %395 = arith.addf %390, %394 : vector<13x208xf32>
    %396 = vector.extract_strided_slice %384 {offsets = [2, 0], sizes = [13, 90], strides = [1, 1]} : vector<15x90xf32> to vector<13x90xf32>
    %c2_292 = arith.constant 2 : index
    %c0_293 = arith.constant 0 : index
    %c0_294 = arith.constant 0 : index
    %397 = vector.load %arg4[%c2_292, %c0_293, %c0_294] : memref<3x90x208xf32, #tpu.memory_space<vmem>>, vector<1x90x208xf32>
    %398 = vector.shape_cast %397 : vector<1x90x208xf32> to vector<90x208xf32>
    %cst_295 = arith.constant dense<0.000000e+00> : vector<13x208xf32>
    %399 = tpu.matmul %396, %398, %cst_295 {dimension_numbers = #tpu.dot_dimension_numbers<[1], [0], [0], [1], [0, 0, 1, 1], [], []>} : vector<13x90xf32>, vector<90x208xf32>, vector<13x208xf32> -> vector<13x208xf32>
    %400 = arith.addf %395, %399 : vector<13x208xf32>
    %c0_296 = arith.constant 0 : index
    %c0_297 = arith.constant 0 : index
    %401 = vector.load %arg5[%c0_296, %c0_297] : memref<1x208xf32, #tpu.memory_space<vmem>>, vector<1x208xf32>
    %402 = vector.broadcast %401 : vector<1x208xf32> to vector<13x208xf32>
    %403 = arith.addf %400, %402 : vector<13x208xf32>
    %cst_298 = arith.constant 0.000000e+00 : f32
    %404 = vector.broadcast %cst_298 : f32 to vector<13x208xf32>
    %405 = arith.maximumf %403, %404 : vector<13x208xf32>
    %406 = vector.extract_strided_slice %405 {offsets = [0, 0], sizes = [12, 208], strides = [1, 1]} : vector<13x208xf32> to vector<12x208xf32>
    %407 = vector.extract_strided_slice %405 {offsets = [1, 0], sizes = [12, 208], strides = [1, 1]} : vector<13x208xf32> to vector<12x208xf32>
    %408 = arith.maximumf %406, %407 : vector<12x208xf32>
    %c0_299 = arith.constant 0 : index
    %c0_300 = arith.constant 0 : index
    %409 = vector.load %arg8[%c0_299, %c0_300] : memref<6x12xf32, #tpu.memory_space<vmem>>, vector<6x12xf32>
    %cst_301 = arith.constant dense<0.000000e+00> : vector<6x208xf32>
    %410 = tpu.matmul %409, %408, %cst_301 {dimension_numbers = #tpu.dot_dimension_numbers<[1], [0], [0], [1], [0, 0, 1, 1], [], []>} : vector<6x12xf32>, vector<12x208xf32>, vector<6x208xf32> -> vector<6x208xf32>
    %411 = vector.extract_strided_slice %410 {offsets = [0, 0], sizes = [6, 207], strides = [1, 1]} : vector<6x208xf32> to vector<6x207xf32>
    %412 = vector.extract_strided_slice %410 {offsets = [0, 1], sizes = [6, 207], strides = [1, 1]} : vector<6x208xf32> to vector<6x207xf32>
    %413 = arith.maximumf %411, %412 : vector<6x207xf32>
    %c0_302 = arith.constant 0 : index
    %c0_303 = arith.constant 0 : index
    %414 = vector.load %arg9[%c0_302, %c0_303] : memref<207x96xf32, #tpu.memory_space<vmem>>, vector<207x96xf32>
    %cst_304 = arith.constant dense<0.000000e+00> : vector<6x96xf32>
    %415 = tpu.matmul %413, %414, %cst_304 {dimension_numbers = #tpu.dot_dimension_numbers<[1], [0], [0], [1], [0, 0, 1, 1], [], []>} : vector<6x207xf32>, vector<207x96xf32>, vector<6x96xf32> -> vector<6x96xf32>
    %416 = vector.extract_strided_slice %415 {offsets = [0, 0], sizes = [1, 96], strides = [1, 1]} : vector<6x96xf32> to vector<1x96xf32>
    %c0_305 = arith.constant 0 : index
    %c4_306 = arith.constant 4 : index
    %c0_307 = arith.constant 0 : index
    %417 = vector.load %arg17[%c0_305, %c4_306, %c0_307] : memref<6x8x96xf32, #tpu.memory_space<vmem>>, vector<1x1x96xf32>
    %418 = vector.shape_cast %417 : vector<1x1x96xf32> to vector<1x96xf32>
    %419 = vector.shape_cast %416 : vector<1x96xf32> to vector<1x1x96xf32>
    tpu.vector_store %arg17[%c0_305, %c4_306, %c0_307], %419 {strides = array<i32>} : memref<6x8x96xf32, #tpu.memory_space<vmem>>, vector<1x1x96xf32>,
    %420 = vector.extract_strided_slice %415 {offsets = [1, 0], sizes = [1, 96], strides = [1, 1]} : vector<6x96xf32> to vector<1x96xf32>
    %c1_308 = arith.constant 1 : index
    %c4_309 = arith.constant 4 : index
    %c0_310 = arith.constant 0 : index
    %421 = vector.load %arg17[%c1_308, %c4_309, %c0_310] : memref<6x8x96xf32, #tpu.memory_space<vmem>>, vector<1x1x96xf32>
    %422 = vector.shape_cast %421 : vector<1x1x96xf32> to vector<1x96xf32>
    %423 = vector.shape_cast %420 : vector<1x96xf32> to vector<1x1x96xf32>
    tpu.vector_store %arg17[%c1_308, %c4_309, %c0_310], %423 {strides = array<i32>} : memref<6x8x96xf32, #tpu.memory_space<vmem>>, vector<1x1x96xf32>,
    %424 = vector.extract_strided_slice %415 {offsets = [2, 0], sizes = [1, 96], strides = [1, 1]} : vector<6x96xf32> to vector<1x96xf32>
    %c2_311 = arith.constant 2 : index
    %c4_312 = arith.constant 4 : index
    %c0_313 = arith.constant 0 : index
    %425 = vector.load %arg17[%c2_311, %c4_312, %c0_313] : memref<6x8x96xf32, #tpu.memory_space<vmem>>, vector<1x1x96xf32>
    %426 = vector.shape_cast %425 : vector<1x1x96xf32> to vector<1x96xf32>
    %427 = vector.shape_cast %424 : vector<1x96xf32> to vector<1x1x96xf32>
    tpu.vector_store %arg17[%c2_311, %c4_312, %c0_313], %427 {strides = array<i32>} : memref<6x8x96xf32, #tpu.memory_space<vmem>>, vector<1x1x96xf32>,
    %428 = vector.extract_strided_slice %415 {offsets = [3, 0], sizes = [1, 96], strides = [1, 1]} : vector<6x96xf32> to vector<1x96xf32>
    %c3_314 = arith.constant 3 : index
    %c4_315 = arith.constant 4 : index
    %c0_316 = arith.constant 0 : index
    %429 = vector.load %arg17[%c3_314, %c4_315, %c0_316] : memref<6x8x96xf32, #tpu.memory_space<vmem>>, vector<1x1x96xf32>
    %430 = vector.shape_cast %429 : vector<1x1x96xf32> to vector<1x96xf32>
    %431 = vector.shape_cast %428 : vector<1x96xf32> to vector<1x1x96xf32>
    tpu.vector_store %arg17[%c3_314, %c4_315, %c0_316], %431 {strides = array<i32>} : memref<6x8x96xf32, #tpu.memory_space<vmem>>, vector<1x1x96xf32>,
    %432 = vector.extract_strided_slice %415 {offsets = [4, 0], sizes = [1, 96], strides = [1, 1]} : vector<6x96xf32> to vector<1x96xf32>
    %c4_317 = arith.constant 4 : index
    %c4_318 = arith.constant 4 : index
    %c0_319 = arith.constant 0 : index
    %433 = vector.load %arg17[%c4_317, %c4_318, %c0_319] : memref<6x8x96xf32, #tpu.memory_space<vmem>>, vector<1x1x96xf32>
    %434 = vector.shape_cast %433 : vector<1x1x96xf32> to vector<1x96xf32>
    %435 = vector.shape_cast %432 : vector<1x96xf32> to vector<1x1x96xf32>
    tpu.vector_store %arg17[%c4_317, %c4_318, %c0_319], %435 {strides = array<i32>} : memref<6x8x96xf32, #tpu.memory_space<vmem>>, vector<1x1x96xf32>,
    %436 = vector.extract_strided_slice %415 {offsets = [5, 0], sizes = [1, 96], strides = [1, 1]} : vector<6x96xf32> to vector<1x96xf32>
    %c5_320 = arith.constant 5 : index
    %c4_321 = arith.constant 4 : index
    %c0_322 = arith.constant 0 : index
    %437 = vector.load %arg17[%c5_320, %c4_321, %c0_322] : memref<6x8x96xf32, #tpu.memory_space<vmem>>, vector<1x1x96xf32>
    %438 = vector.shape_cast %437 : vector<1x1x96xf32> to vector<1x96xf32>
    %439 = vector.shape_cast %436 : vector<1x96xf32> to vector<1x1x96xf32>
    tpu.vector_store %arg17[%c5_320, %c4_321, %c0_322], %439 {strides = array<i32>} : memref<6x8x96xf32, #tpu.memory_space<vmem>>, vector<1x1x96xf32>,
    %c5_323 = arith.constant 5 : index
    %c0_324 = arith.constant 0 : index
    %c0_325 = arith.constant 0 : index
    %c0_326 = arith.constant 0 : index
    %440 = vector.load %arg1[%c5_323, %c0_324, %c0_325, %c0_326] : memref<8x1x32x32xf32, #tpu.memory_space<vmem>>, vector<1x1x32x32xf32>
    %441 = vector.shape_cast %440 : vector<1x1x32x32xf32> to vector<32x32xf32>
    %cst_327 = arith.constant 0.000000e+00 : f32
    %442 = vector.broadcast %cst_327 : f32 to vector<30x180xf32>
    %443 = vector.extract_strided_slice %441 {offsets = [0, 0], sizes = [30, 32], strides = [1, 1]} : vector<32x32xf32> to vector<30x32xf32>
    %c0_328 = arith.constant 0 : index
    %c0_329 = arith.constant 0 : index
    %c0_330 = arith.constant 0 : index
    %444 = vector.load %arg2[%c0_328, %c0_329, %c0_330] : memref<3x32x180xf32, #tpu.memory_space<vmem>>, vector<1x32x180xf32>
    %445 = vector.shape_cast %444 : vector<1x32x180xf32> to vector<32x180xf32>
    %cst_331 = arith.constant dense<0.000000e+00> : vector<30x180xf32>
    %446 = tpu.matmul %443, %445, %cst_331 {dimension_numbers = #tpu.dot_dimension_numbers<[1], [0], [0], [1], [0, 0, 1, 1], [], []>} : vector<30x32xf32>, vector<32x180xf32>, vector<30x180xf32> -> vector<30x180xf32>
    %447 = arith.addf %442, %446 : vector<30x180xf32>
    %448 = vector.extract_strided_slice %441 {offsets = [1, 0], sizes = [30, 32], strides = [1, 1]} : vector<32x32xf32> to vector<30x32xf32>
    %c1_332 = arith.constant 1 : index
    %c0_333 = arith.constant 0 : index
    %c0_334 = arith.constant 0 : index
    %449 = vector.load %arg2[%c1_332, %c0_333, %c0_334] : memref<3x32x180xf32, #tpu.memory_space<vmem>>, vector<1x32x180xf32>
    %450 = vector.shape_cast %449 : vector<1x32x180xf32> to vector<32x180xf32>
    %cst_335 = arith.constant dense<0.000000e+00> : vector<30x180xf32>
    %451 = tpu.matmul %448, %450, %cst_335 {dimension_numbers = #tpu.dot_dimension_numbers<[1], [0], [0], [1], [0, 0, 1, 1], [], []>} : vector<30x32xf32>, vector<32x180xf32>, vector<30x180xf32> -> vector<30x180xf32>
    %452 = arith.addf %447, %451 : vector<30x180xf32>
    %453 = vector.extract_strided_slice %441 {offsets = [2, 0], sizes = [30, 32], strides = [1, 1]} : vector<32x32xf32> to vector<30x32xf32>
    %c2_336 = arith.constant 2 : index
    %c0_337 = arith.constant 0 : index
    %c0_338 = arith.constant 0 : index
    %454 = vector.load %arg2[%c2_336, %c0_337, %c0_338] : memref<3x32x180xf32, #tpu.memory_space<vmem>>, vector<1x32x180xf32>
    %455 = vector.shape_cast %454 : vector<1x32x180xf32> to vector<32x180xf32>
    %cst_339 = arith.constant dense<0.000000e+00> : vector<30x180xf32>
    %456 = tpu.matmul %453, %455, %cst_339 {dimension_numbers = #tpu.dot_dimension_numbers<[1], [0], [0], [1], [0, 0, 1, 1], [], []>} : vector<30x32xf32>, vector<32x180xf32>, vector<30x180xf32> -> vector<30x180xf32>
    %457 = arith.addf %452, %456 : vector<30x180xf32>
    %c0_340 = arith.constant 0 : index
    %c0_341 = arith.constant 0 : index
    %458 = vector.load %arg3[%c0_340, %c0_341] : memref<1x180xf32, #tpu.memory_space<vmem>>, vector<1x180xf32>
    %459 = vector.broadcast %458 : vector<1x180xf32> to vector<30x180xf32>
    %460 = arith.addf %457, %459 : vector<30x180xf32>
    %cst_342 = arith.constant 0.000000e+00 : f32
    %461 = vector.broadcast %cst_342 : f32 to vector<30x180xf32>
    %462 = arith.maximumf %460, %461 : vector<30x180xf32>
    %463 = vector.extract_strided_slice %462 {offsets = [0, 0], sizes = [29, 180], strides = [1, 1]} : vector<30x180xf32> to vector<29x180xf32>
    %464 = vector.extract_strided_slice %462 {offsets = [1, 0], sizes = [29, 180], strides = [1, 1]} : vector<30x180xf32> to vector<29x180xf32>
    %465 = arith.maximumf %463, %464 : vector<29x180xf32>
    %c0_343 = arith.constant 0 : index
    %c0_344 = arith.constant 0 : index
    %466 = vector.load %arg6[%c0_343, %c0_344] : memref<15x29xf32, #tpu.memory_space<vmem>>, vector<15x29xf32>
    %cst_345 = arith.constant dense<0.000000e+00> : vector<15x180xf32>
    %467 = tpu.matmul %466, %465, %cst_345 {dimension_numbers = #tpu.dot_dimension_numbers<[1], [0], [0], [1], [0, 0, 1, 1], [], []>} : vector<15x29xf32>, vector<29x180xf32>, vector<15x180xf32> -> vector<15x180xf32>
    %468 = vector.extract_strided_slice %467 {offsets = [0, 0], sizes = [15, 179], strides = [1, 1]} : vector<15x180xf32> to vector<15x179xf32>
    %469 = vector.extract_strided_slice %467 {offsets = [0, 1], sizes = [15, 179], strides = [1, 1]} : vector<15x180xf32> to vector<15x179xf32>
    %470 = arith.maximumf %468, %469 : vector<15x179xf32>
    %c0_346 = arith.constant 0 : index
    %c0_347 = arith.constant 0 : index
    %471 = vector.load %arg7[%c0_346, %c0_347] : memref<179x90xf32, #tpu.memory_space<vmem>>, vector<179x90xf32>
    %cst_348 = arith.constant dense<0.000000e+00> : vector<15x90xf32>
    %472 = tpu.matmul %470, %471, %cst_348 {dimension_numbers = #tpu.dot_dimension_numbers<[1], [0], [0], [1], [0, 0, 1, 1], [], []>} : vector<15x179xf32>, vector<179x90xf32>, vector<15x90xf32> -> vector<15x90xf32>
    %cst_349 = arith.constant 0.000000e+00 : f32
    %473 = vector.broadcast %cst_349 : f32 to vector<13x208xf32>
    %474 = vector.extract_strided_slice %472 {offsets = [0, 0], sizes = [13, 90], strides = [1, 1]} : vector<15x90xf32> to vector<13x90xf32>
    %c0_350 = arith.constant 0 : index
    %c0_351 = arith.constant 0 : index
    %c0_352 = arith.constant 0 : index
    %475 = vector.load %arg4[%c0_350, %c0_351, %c0_352] : memref<3x90x208xf32, #tpu.memory_space<vmem>>, vector<1x90x208xf32>
    %476 = vector.shape_cast %475 : vector<1x90x208xf32> to vector<90x208xf32>
    %cst_353 = arith.constant dense<0.000000e+00> : vector<13x208xf32>
    %477 = tpu.matmul %474, %476, %cst_353 {dimension_numbers = #tpu.dot_dimension_numbers<[1], [0], [0], [1], [0, 0, 1, 1], [], []>} : vector<13x90xf32>, vector<90x208xf32>, vector<13x208xf32> -> vector<13x208xf32>
    %478 = arith.addf %473, %477 : vector<13x208xf32>
    %479 = vector.extract_strided_slice %472 {offsets = [1, 0], sizes = [13, 90], strides = [1, 1]} : vector<15x90xf32> to vector<13x90xf32>
    %c1_354 = arith.constant 1 : index
    %c0_355 = arith.constant 0 : index
    %c0_356 = arith.constant 0 : index
    %480 = vector.load %arg4[%c1_354, %c0_355, %c0_356] : memref<3x90x208xf32, #tpu.memory_space<vmem>>, vector<1x90x208xf32>
    %481 = vector.shape_cast %480 : vector<1x90x208xf32> to vector<90x208xf32>
    %cst_357 = arith.constant dense<0.000000e+00> : vector<13x208xf32>
    %482 = tpu.matmul %479, %481, %cst_357 {dimension_numbers = #tpu.dot_dimension_numbers<[1], [0], [0], [1], [0, 0, 1, 1], [], []>} : vector<13x90xf32>, vector<90x208xf32>, vector<13x208xf32> -> vector<13x208xf32>
    %483 = arith.addf %478, %482 : vector<13x208xf32>
    %484 = vector.extract_strided_slice %472 {offsets = [2, 0], sizes = [13, 90], strides = [1, 1]} : vector<15x90xf32> to vector<13x90xf32>
    %c2_358 = arith.constant 2 : index
    %c0_359 = arith.constant 0 : index
    %c0_360 = arith.constant 0 : index
    %485 = vector.load %arg4[%c2_358, %c0_359, %c0_360] : memref<3x90x208xf32, #tpu.memory_space<vmem>>, vector<1x90x208xf32>
    %486 = vector.shape_cast %485 : vector<1x90x208xf32> to vector<90x208xf32>
    %cst_361 = arith.constant dense<0.000000e+00> : vector<13x208xf32>
    %487 = tpu.matmul %484, %486, %cst_361 {dimension_numbers = #tpu.dot_dimension_numbers<[1], [0], [0], [1], [0, 0, 1, 1], [], []>} : vector<13x90xf32>, vector<90x208xf32>, vector<13x208xf32> -> vector<13x208xf32>
    %488 = arith.addf %483, %487 : vector<13x208xf32>
    %c0_362 = arith.constant 0 : index
    %c0_363 = arith.constant 0 : index
    %489 = vector.load %arg5[%c0_362, %c0_363] : memref<1x208xf32, #tpu.memory_space<vmem>>, vector<1x208xf32>
    %490 = vector.broadcast %489 : vector<1x208xf32> to vector<13x208xf32>
    %491 = arith.addf %488, %490 : vector<13x208xf32>
    %cst_364 = arith.constant 0.000000e+00 : f32
    %492 = vector.broadcast %cst_364 : f32 to vector<13x208xf32>
    %493 = arith.maximumf %491, %492 : vector<13x208xf32>
    %494 = vector.extract_strided_slice %493 {offsets = [0, 0], sizes = [12, 208], strides = [1, 1]} : vector<13x208xf32> to vector<12x208xf32>
    %495 = vector.extract_strided_slice %493 {offsets = [1, 0], sizes = [12, 208], strides = [1, 1]} : vector<13x208xf32> to vector<12x208xf32>
    %496 = arith.maximumf %494, %495 : vector<12x208xf32>
    %c0_365 = arith.constant 0 : index
    %c0_366 = arith.constant 0 : index
    %497 = vector.load %arg8[%c0_365, %c0_366] : memref<6x12xf32, #tpu.memory_space<vmem>>, vector<6x12xf32>
    %cst_367 = arith.constant dense<0.000000e+00> : vector<6x208xf32>
    %498 = tpu.matmul %497, %496, %cst_367 {dimension_numbers = #tpu.dot_dimension_numbers<[1], [0], [0], [1], [0, 0, 1, 1], [], []>} : vector<6x12xf32>, vector<12x208xf32>, vector<6x208xf32> -> vector<6x208xf32>
    %499 = vector.extract_strided_slice %498 {offsets = [0, 0], sizes = [6, 207], strides = [1, 1]} : vector<6x208xf32> to vector<6x207xf32>
    %500 = vector.extract_strided_slice %498 {offsets = [0, 1], sizes = [6, 207], strides = [1, 1]} : vector<6x208xf32> to vector<6x207xf32>
    %501 = arith.maximumf %499, %500 : vector<6x207xf32>
    %c0_368 = arith.constant 0 : index
    %c0_369 = arith.constant 0 : index
    %502 = vector.load %arg9[%c0_368, %c0_369] : memref<207x96xf32, #tpu.memory_space<vmem>>, vector<207x96xf32>
    %cst_370 = arith.constant dense<0.000000e+00> : vector<6x96xf32>
    %503 = tpu.matmul %501, %502, %cst_370 {dimension_numbers = #tpu.dot_dimension_numbers<[1], [0], [0], [1], [0, 0, 1, 1], [], []>} : vector<6x207xf32>, vector<207x96xf32>, vector<6x96xf32> -> vector<6x96xf32>
    %504 = vector.extract_strided_slice %503 {offsets = [0, 0], sizes = [1, 96], strides = [1, 1]} : vector<6x96xf32> to vector<1x96xf32>
    %c0_371 = arith.constant 0 : index
    %c5_372 = arith.constant 5 : index
    %c0_373 = arith.constant 0 : index
    %505 = vector.load %arg17[%c0_371, %c5_372, %c0_373] : memref<6x8x96xf32, #tpu.memory_space<vmem>>, vector<1x1x96xf32>
    %506 = vector.shape_cast %505 : vector<1x1x96xf32> to vector<1x96xf32>
    %507 = vector.shape_cast %504 : vector<1x96xf32> to vector<1x1x96xf32>
    tpu.vector_store %arg17[%c0_371, %c5_372, %c0_373], %507 {strides = array<i32>} : memref<6x8x96xf32, #tpu.memory_space<vmem>>, vector<1x1x96xf32>,
    %508 = vector.extract_strided_slice %503 {offsets = [1, 0], sizes = [1, 96], strides = [1, 1]} : vector<6x96xf32> to vector<1x96xf32>
    %c1_374 = arith.constant 1 : index
    %c5_375 = arith.constant 5 : index
    %c0_376 = arith.constant 0 : index
    %509 = vector.load %arg17[%c1_374, %c5_375, %c0_376] : memref<6x8x96xf32, #tpu.memory_space<vmem>>, vector<1x1x96xf32>
    %510 = vector.shape_cast %509 : vector<1x1x96xf32> to vector<1x96xf32>
    %511 = vector.shape_cast %508 : vector<1x96xf32> to vector<1x1x96xf32>
    tpu.vector_store %arg17[%c1_374, %c5_375, %c0_376], %511 {strides = array<i32>} : memref<6x8x96xf32, #tpu.memory_space<vmem>>, vector<1x1x96xf32>,
    %512 = vector.extract_strided_slice %503 {offsets = [2, 0], sizes = [1, 96], strides = [1, 1]} : vector<6x96xf32> to vector<1x96xf32>
    %c2_377 = arith.constant 2 : index
    %c5_378 = arith.constant 5 : index
    %c0_379 = arith.constant 0 : index
    %513 = vector.load %arg17[%c2_377, %c5_378, %c0_379] : memref<6x8x96xf32, #tpu.memory_space<vmem>>, vector<1x1x96xf32>
    %514 = vector.shape_cast %513 : vector<1x1x96xf32> to vector<1x96xf32>
    %515 = vector.shape_cast %512 : vector<1x96xf32> to vector<1x1x96xf32>
    tpu.vector_store %arg17[%c2_377, %c5_378, %c0_379], %515 {strides = array<i32>} : memref<6x8x96xf32, #tpu.memory_space<vmem>>, vector<1x1x96xf32>,
    %516 = vector.extract_strided_slice %503 {offsets = [3, 0], sizes = [1, 96], strides = [1, 1]} : vector<6x96xf32> to vector<1x96xf32>
    %c3_380 = arith.constant 3 : index
    %c5_381 = arith.constant 5 : index
    %c0_382 = arith.constant 0 : index
    %517 = vector.load %arg17[%c3_380, %c5_381, %c0_382] : memref<6x8x96xf32, #tpu.memory_space<vmem>>, vector<1x1x96xf32>
    %518 = vector.shape_cast %517 : vector<1x1x96xf32> to vector<1x96xf32>
    %519 = vector.shape_cast %516 : vector<1x96xf32> to vector<1x1x96xf32>
    tpu.vector_store %arg17[%c3_380, %c5_381, %c0_382], %519 {strides = array<i32>} : memref<6x8x96xf32, #tpu.memory_space<vmem>>, vector<1x1x96xf32>,
    %520 = vector.extract_strided_slice %503 {offsets = [4, 0], sizes = [1, 96], strides = [1, 1]} : vector<6x96xf32> to vector<1x96xf32>
    %c4_383 = arith.constant 4 : index
    %c5_384 = arith.constant 5 : index
    %c0_385 = arith.constant 0 : index
    %521 = vector.load %arg17[%c4_383, %c5_384, %c0_385] : memref<6x8x96xf32, #tpu.memory_space<vmem>>, vector<1x1x96xf32>
    %522 = vector.shape_cast %521 : vector<1x1x96xf32> to vector<1x96xf32>
    %523 = vector.shape_cast %520 : vector<1x96xf32> to vector<1x1x96xf32>
    tpu.vector_store %arg17[%c4_383, %c5_384, %c0_385], %523 {strides = array<i32>} : memref<6x8x96xf32, #tpu.memory_space<vmem>>, vector<1x1x96xf32>,
    %524 = vector.extract_strided_slice %503 {offsets = [5, 0], sizes = [1, 96], strides = [1, 1]} : vector<6x96xf32> to vector<1x96xf32>
    %c5_386 = arith.constant 5 : index
    %c5_387 = arith.constant 5 : index
    %c0_388 = arith.constant 0 : index
    %525 = vector.load %arg17[%c5_386, %c5_387, %c0_388] : memref<6x8x96xf32, #tpu.memory_space<vmem>>, vector<1x1x96xf32>
    %526 = vector.shape_cast %525 : vector<1x1x96xf32> to vector<1x96xf32>
    %527 = vector.shape_cast %524 : vector<1x96xf32> to vector<1x1x96xf32>
    tpu.vector_store %arg17[%c5_386, %c5_387, %c0_388], %527 {strides = array<i32>} : memref<6x8x96xf32, #tpu.memory_space<vmem>>, vector<1x1x96xf32>,
    %c6 = arith.constant 6 : index
    %c0_389 = arith.constant 0 : index
    %c0_390 = arith.constant 0 : index
    %c0_391 = arith.constant 0 : index
    %528 = vector.load %arg1[%c6, %c0_389, %c0_390, %c0_391] : memref<8x1x32x32xf32, #tpu.memory_space<vmem>>, vector<1x1x32x32xf32>
    %529 = vector.shape_cast %528 : vector<1x1x32x32xf32> to vector<32x32xf32>
    %cst_392 = arith.constant 0.000000e+00 : f32
    %530 = vector.broadcast %cst_392 : f32 to vector<30x180xf32>
    %531 = vector.extract_strided_slice %529 {offsets = [0, 0], sizes = [30, 32], strides = [1, 1]} : vector<32x32xf32> to vector<30x32xf32>
    %c0_393 = arith.constant 0 : index
    %c0_394 = arith.constant 0 : index
    %c0_395 = arith.constant 0 : index
    %532 = vector.load %arg2[%c0_393, %c0_394, %c0_395] : memref<3x32x180xf32, #tpu.memory_space<vmem>>, vector<1x32x180xf32>
    %533 = vector.shape_cast %532 : vector<1x32x180xf32> to vector<32x180xf32>
    %cst_396 = arith.constant dense<0.000000e+00> : vector<30x180xf32>
    %534 = tpu.matmul %531, %533, %cst_396 {dimension_numbers = #tpu.dot_dimension_numbers<[1], [0], [0], [1], [0, 0, 1, 1], [], []>} : vector<30x32xf32>, vector<32x180xf32>, vector<30x180xf32> -> vector<30x180xf32>
    %535 = arith.addf %530, %534 : vector<30x180xf32>
    %536 = vector.extract_strided_slice %529 {offsets = [1, 0], sizes = [30, 32], strides = [1, 1]} : vector<32x32xf32> to vector<30x32xf32>
    %c1_397 = arith.constant 1 : index
    %c0_398 = arith.constant 0 : index
    %c0_399 = arith.constant 0 : index
    %537 = vector.load %arg2[%c1_397, %c0_398, %c0_399] : memref<3x32x180xf32, #tpu.memory_space<vmem>>, vector<1x32x180xf32>
    %538 = vector.shape_cast %537 : vector<1x32x180xf32> to vector<32x180xf32>
    %cst_400 = arith.constant dense<0.000000e+00> : vector<30x180xf32>
    %539 = tpu.matmul %536, %538, %cst_400 {dimension_numbers = #tpu.dot_dimension_numbers<[1], [0], [0], [1], [0, 0, 1, 1], [], []>} : vector<30x32xf32>, vector<32x180xf32>, vector<30x180xf32> -> vector<30x180xf32>
    %540 = arith.addf %535, %539 : vector<30x180xf32>
    %541 = vector.extract_strided_slice %529 {offsets = [2, 0], sizes = [30, 32], strides = [1, 1]} : vector<32x32xf32> to vector<30x32xf32>
    %c2_401 = arith.constant 2 : index
    %c0_402 = arith.constant 0 : index
    %c0_403 = arith.constant 0 : index
    %542 = vector.load %arg2[%c2_401, %c0_402, %c0_403] : memref<3x32x180xf32, #tpu.memory_space<vmem>>, vector<1x32x180xf32>
    %543 = vector.shape_cast %542 : vector<1x32x180xf32> to vector<32x180xf32>
    %cst_404 = arith.constant dense<0.000000e+00> : vector<30x180xf32>
    %544 = tpu.matmul %541, %543, %cst_404 {dimension_numbers = #tpu.dot_dimension_numbers<[1], [0], [0], [1], [0, 0, 1, 1], [], []>} : vector<30x32xf32>, vector<32x180xf32>, vector<30x180xf32> -> vector<30x180xf32>
    %545 = arith.addf %540, %544 : vector<30x180xf32>
    %c0_405 = arith.constant 0 : index
    %c0_406 = arith.constant 0 : index
    %546 = vector.load %arg3[%c0_405, %c0_406] : memref<1x180xf32, #tpu.memory_space<vmem>>, vector<1x180xf32>
    %547 = vector.broadcast %546 : vector<1x180xf32> to vector<30x180xf32>
    %548 = arith.addf %545, %547 : vector<30x180xf32>
    %cst_407 = arith.constant 0.000000e+00 : f32
    %549 = vector.broadcast %cst_407 : f32 to vector<30x180xf32>
    %550 = arith.maximumf %548, %549 : vector<30x180xf32>
    %551 = vector.extract_strided_slice %550 {offsets = [0, 0], sizes = [29, 180], strides = [1, 1]} : vector<30x180xf32> to vector<29x180xf32>
    %552 = vector.extract_strided_slice %550 {offsets = [1, 0], sizes = [29, 180], strides = [1, 1]} : vector<30x180xf32> to vector<29x180xf32>
    %553 = arith.maximumf %551, %552 : vector<29x180xf32>
    %c0_408 = arith.constant 0 : index
    %c0_409 = arith.constant 0 : index
    %554 = vector.load %arg6[%c0_408, %c0_409] : memref<15x29xf32, #tpu.memory_space<vmem>>, vector<15x29xf32>
    %cst_410 = arith.constant dense<0.000000e+00> : vector<15x180xf32>
    %555 = tpu.matmul %554, %553, %cst_410 {dimension_numbers = #tpu.dot_dimension_numbers<[1], [0], [0], [1], [0, 0, 1, 1], [], []>} : vector<15x29xf32>, vector<29x180xf32>, vector<15x180xf32> -> vector<15x180xf32>
    %556 = vector.extract_strided_slice %555 {offsets = [0, 0], sizes = [15, 179], strides = [1, 1]} : vector<15x180xf32> to vector<15x179xf32>
    %557 = vector.extract_strided_slice %555 {offsets = [0, 1], sizes = [15, 179], strides = [1, 1]} : vector<15x180xf32> to vector<15x179xf32>
    %558 = arith.maximumf %556, %557 : vector<15x179xf32>
    %c0_411 = arith.constant 0 : index
    %c0_412 = arith.constant 0 : index
    %559 = vector.load %arg7[%c0_411, %c0_412] : memref<179x90xf32, #tpu.memory_space<vmem>>, vector<179x90xf32>
    %cst_413 = arith.constant dense<0.000000e+00> : vector<15x90xf32>
    %560 = tpu.matmul %558, %559, %cst_413 {dimension_numbers = #tpu.dot_dimension_numbers<[1], [0], [0], [1], [0, 0, 1, 1], [], []>} : vector<15x179xf32>, vector<179x90xf32>, vector<15x90xf32> -> vector<15x90xf32>
    %cst_414 = arith.constant 0.000000e+00 : f32
    %561 = vector.broadcast %cst_414 : f32 to vector<13x208xf32>
    %562 = vector.extract_strided_slice %560 {offsets = [0, 0], sizes = [13, 90], strides = [1, 1]} : vector<15x90xf32> to vector<13x90xf32>
    %c0_415 = arith.constant 0 : index
    %c0_416 = arith.constant 0 : index
    %c0_417 = arith.constant 0 : index
    %563 = vector.load %arg4[%c0_415, %c0_416, %c0_417] : memref<3x90x208xf32, #tpu.memory_space<vmem>>, vector<1x90x208xf32>
    %564 = vector.shape_cast %563 : vector<1x90x208xf32> to vector<90x208xf32>
    %cst_418 = arith.constant dense<0.000000e+00> : vector<13x208xf32>
    %565 = tpu.matmul %562, %564, %cst_418 {dimension_numbers = #tpu.dot_dimension_numbers<[1], [0], [0], [1], [0, 0, 1, 1], [], []>} : vector<13x90xf32>, vector<90x208xf32>, vector<13x208xf32> -> vector<13x208xf32>
    %566 = arith.addf %561, %565 : vector<13x208xf32>
    %567 = vector.extract_strided_slice %560 {offsets = [1, 0], sizes = [13, 90], strides = [1, 1]} : vector<15x90xf32> to vector<13x90xf32>
    %c1_419 = arith.constant 1 : index
    %c0_420 = arith.constant 0 : index
    %c0_421 = arith.constant 0 : index
    %568 = vector.load %arg4[%c1_419, %c0_420, %c0_421] : memref<3x90x208xf32, #tpu.memory_space<vmem>>, vector<1x90x208xf32>
    %569 = vector.shape_cast %568 : vector<1x90x208xf32> to vector<90x208xf32>
    %cst_422 = arith.constant dense<0.000000e+00> : vector<13x208xf32>
    %570 = tpu.matmul %567, %569, %cst_422 {dimension_numbers = #tpu.dot_dimension_numbers<[1], [0], [0], [1], [0, 0, 1, 1], [], []>} : vector<13x90xf32>, vector<90x208xf32>, vector<13x208xf32> -> vector<13x208xf32>
    %571 = arith.addf %566, %570 : vector<13x208xf32>
    %572 = vector.extract_strided_slice %560 {offsets = [2, 0], sizes = [13, 90], strides = [1, 1]} : vector<15x90xf32> to vector<13x90xf32>
    %c2_423 = arith.constant 2 : index
    %c0_424 = arith.constant 0 : index
    %c0_425 = arith.constant 0 : index
    %573 = vector.load %arg4[%c2_423, %c0_424, %c0_425] : memref<3x90x208xf32, #tpu.memory_space<vmem>>, vector<1x90x208xf32>
    %574 = vector.shape_cast %573 : vector<1x90x208xf32> to vector<90x208xf32>
    %cst_426 = arith.constant dense<0.000000e+00> : vector<13x208xf32>
    %575 = tpu.matmul %572, %574, %cst_426 {dimension_numbers = #tpu.dot_dimension_numbers<[1], [0], [0], [1], [0, 0, 1, 1], [], []>} : vector<13x90xf32>, vector<90x208xf32>, vector<13x208xf32> -> vector<13x208xf32>
    %576 = arith.addf %571, %575 : vector<13x208xf32>
    %c0_427 = arith.constant 0 : index
    %c0_428 = arith.constant 0 : index
    %577 = vector.load %arg5[%c0_427, %c0_428] : memref<1x208xf32, #tpu.memory_space<vmem>>, vector<1x208xf32>
    %578 = vector.broadcast %577 : vector<1x208xf32> to vector<13x208xf32>
    %579 = arith.addf %576, %578 : vector<13x208xf32>
    %cst_429 = arith.constant 0.000000e+00 : f32
    %580 = vector.broadcast %cst_429 : f32 to vector<13x208xf32>
    %581 = arith.maximumf %579, %580 : vector<13x208xf32>
    %582 = vector.extract_strided_slice %581 {offsets = [0, 0], sizes = [12, 208], strides = [1, 1]} : vector<13x208xf32> to vector<12x208xf32>
    %583 = vector.extract_strided_slice %581 {offsets = [1, 0], sizes = [12, 208], strides = [1, 1]} : vector<13x208xf32> to vector<12x208xf32>
    %584 = arith.maximumf %582, %583 : vector<12x208xf32>
    %c0_430 = arith.constant 0 : index
    %c0_431 = arith.constant 0 : index
    %585 = vector.load %arg8[%c0_430, %c0_431] : memref<6x12xf32, #tpu.memory_space<vmem>>, vector<6x12xf32>
    %cst_432 = arith.constant dense<0.000000e+00> : vector<6x208xf32>
    %586 = tpu.matmul %585, %584, %cst_432 {dimension_numbers = #tpu.dot_dimension_numbers<[1], [0], [0], [1], [0, 0, 1, 1], [], []>} : vector<6x12xf32>, vector<12x208xf32>, vector<6x208xf32> -> vector<6x208xf32>
    %587 = vector.extract_strided_slice %586 {offsets = [0, 0], sizes = [6, 207], strides = [1, 1]} : vector<6x208xf32> to vector<6x207xf32>
    %588 = vector.extract_strided_slice %586 {offsets = [0, 1], sizes = [6, 207], strides = [1, 1]} : vector<6x208xf32> to vector<6x207xf32>
    %589 = arith.maximumf %587, %588 : vector<6x207xf32>
    %c0_433 = arith.constant 0 : index
    %c0_434 = arith.constant 0 : index
    %590 = vector.load %arg9[%c0_433, %c0_434] : memref<207x96xf32, #tpu.memory_space<vmem>>, vector<207x96xf32>
    %cst_435 = arith.constant dense<0.000000e+00> : vector<6x96xf32>
    %591 = tpu.matmul %589, %590, %cst_435 {dimension_numbers = #tpu.dot_dimension_numbers<[1], [0], [0], [1], [0, 0, 1, 1], [], []>} : vector<6x207xf32>, vector<207x96xf32>, vector<6x96xf32> -> vector<6x96xf32>
    %592 = vector.extract_strided_slice %591 {offsets = [0, 0], sizes = [1, 96], strides = [1, 1]} : vector<6x96xf32> to vector<1x96xf32>
    %c0_436 = arith.constant 0 : index
    %c6_437 = arith.constant 6 : index
    %c0_438 = arith.constant 0 : index
    %593 = vector.load %arg17[%c0_436, %c6_437, %c0_438] : memref<6x8x96xf32, #tpu.memory_space<vmem>>, vector<1x1x96xf32>
    %594 = vector.shape_cast %593 : vector<1x1x96xf32> to vector<1x96xf32>
    %595 = vector.shape_cast %592 : vector<1x96xf32> to vector<1x1x96xf32>
    tpu.vector_store %arg17[%c0_436, %c6_437, %c0_438], %595 {strides = array<i32>} : memref<6x8x96xf32, #tpu.memory_space<vmem>>, vector<1x1x96xf32>,
    %596 = vector.extract_strided_slice %591 {offsets = [1, 0], sizes = [1, 96], strides = [1, 1]} : vector<6x96xf32> to vector<1x96xf32>
    %c1_439 = arith.constant 1 : index
    %c6_440 = arith.constant 6 : index
    %c0_441 = arith.constant 0 : index
    %597 = vector.load %arg17[%c1_439, %c6_440, %c0_441] : memref<6x8x96xf32, #tpu.memory_space<vmem>>, vector<1x1x96xf32>
    %598 = vector.shape_cast %597 : vector<1x1x96xf32> to vector<1x96xf32>
    %599 = vector.shape_cast %596 : vector<1x96xf32> to vector<1x1x96xf32>
    tpu.vector_store %arg17[%c1_439, %c6_440, %c0_441], %599 {strides = array<i32>} : memref<6x8x96xf32, #tpu.memory_space<vmem>>, vector<1x1x96xf32>,
    %600 = vector.extract_strided_slice %591 {offsets = [2, 0], sizes = [1, 96], strides = [1, 1]} : vector<6x96xf32> to vector<1x96xf32>
    %c2_442 = arith.constant 2 : index
    %c6_443 = arith.constant 6 : index
    %c0_444 = arith.constant 0 : index
    %601 = vector.load %arg17[%c2_442, %c6_443, %c0_444] : memref<6x8x96xf32, #tpu.memory_space<vmem>>, vector<1x1x96xf32>
    %602 = vector.shape_cast %601 : vector<1x1x96xf32> to vector<1x96xf32>
    %603 = vector.shape_cast %600 : vector<1x96xf32> to vector<1x1x96xf32>
    tpu.vector_store %arg17[%c2_442, %c6_443, %c0_444], %603 {strides = array<i32>} : memref<6x8x96xf32, #tpu.memory_space<vmem>>, vector<1x1x96xf32>,
    %604 = vector.extract_strided_slice %591 {offsets = [3, 0], sizes = [1, 96], strides = [1, 1]} : vector<6x96xf32> to vector<1x96xf32>
    %c3_445 = arith.constant 3 : index
    %c6_446 = arith.constant 6 : index
    %c0_447 = arith.constant 0 : index
    %605 = vector.load %arg17[%c3_445, %c6_446, %c0_447] : memref<6x8x96xf32, #tpu.memory_space<vmem>>, vector<1x1x96xf32>
    %606 = vector.shape_cast %605 : vector<1x1x96xf32> to vector<1x96xf32>
    %607 = vector.shape_cast %604 : vector<1x96xf32> to vector<1x1x96xf32>
    tpu.vector_store %arg17[%c3_445, %c6_446, %c0_447], %607 {strides = array<i32>} : memref<6x8x96xf32, #tpu.memory_space<vmem>>, vector<1x1x96xf32>,
    %608 = vector.extract_strided_slice %591 {offsets = [4, 0], sizes = [1, 96], strides = [1, 1]} : vector<6x96xf32> to vector<1x96xf32>
    %c4_448 = arith.constant 4 : index
    %c6_449 = arith.constant 6 : index
    %c0_450 = arith.constant 0 : index
    %609 = vector.load %arg17[%c4_448, %c6_449, %c0_450] : memref<6x8x96xf32, #tpu.memory_space<vmem>>, vector<1x1x96xf32>
    %610 = vector.shape_cast %609 : vector<1x1x96xf32> to vector<1x96xf32>
    %611 = vector.shape_cast %608 : vector<1x96xf32> to vector<1x1x96xf32>
    tpu.vector_store %arg17[%c4_448, %c6_449, %c0_450], %611 {strides = array<i32>} : memref<6x8x96xf32, #tpu.memory_space<vmem>>, vector<1x1x96xf32>,
    %612 = vector.extract_strided_slice %591 {offsets = [5, 0], sizes = [1, 96], strides = [1, 1]} : vector<6x96xf32> to vector<1x96xf32>
    %c5_451 = arith.constant 5 : index
    %c6_452 = arith.constant 6 : index
    %c0_453 = arith.constant 0 : index
    %613 = vector.load %arg17[%c5_451, %c6_452, %c0_453] : memref<6x8x96xf32, #tpu.memory_space<vmem>>, vector<1x1x96xf32>
    %614 = vector.shape_cast %613 : vector<1x1x96xf32> to vector<1x96xf32>
    %615 = vector.shape_cast %612 : vector<1x96xf32> to vector<1x1x96xf32>
    tpu.vector_store %arg17[%c5_451, %c6_452, %c0_453], %615 {strides = array<i32>} : memref<6x8x96xf32, #tpu.memory_space<vmem>>, vector<1x1x96xf32>,
    %c7 = arith.constant 7 : index
    %c0_454 = arith.constant 0 : index
    %c0_455 = arith.constant 0 : index
    %c0_456 = arith.constant 0 : index
    %616 = vector.load %arg1[%c7, %c0_454, %c0_455, %c0_456] : memref<8x1x32x32xf32, #tpu.memory_space<vmem>>, vector<1x1x32x32xf32>
    %617 = vector.shape_cast %616 : vector<1x1x32x32xf32> to vector<32x32xf32>
    %cst_457 = arith.constant 0.000000e+00 : f32
    %618 = vector.broadcast %cst_457 : f32 to vector<30x180xf32>
    %619 = vector.extract_strided_slice %617 {offsets = [0, 0], sizes = [30, 32], strides = [1, 1]} : vector<32x32xf32> to vector<30x32xf32>
    %c0_458 = arith.constant 0 : index
    %c0_459 = arith.constant 0 : index
    %c0_460 = arith.constant 0 : index
    %620 = vector.load %arg2[%c0_458, %c0_459, %c0_460] : memref<3x32x180xf32, #tpu.memory_space<vmem>>, vector<1x32x180xf32>
    %621 = vector.shape_cast %620 : vector<1x32x180xf32> to vector<32x180xf32>
    %cst_461 = arith.constant dense<0.000000e+00> : vector<30x180xf32>
    %622 = tpu.matmul %619, %621, %cst_461 {dimension_numbers = #tpu.dot_dimension_numbers<[1], [0], [0], [1], [0, 0, 1, 1], [], []>} : vector<30x32xf32>, vector<32x180xf32>, vector<30x180xf32> -> vector<30x180xf32>
    %623 = arith.addf %618, %622 : vector<30x180xf32>
    %624 = vector.extract_strided_slice %617 {offsets = [1, 0], sizes = [30, 32], strides = [1, 1]} : vector<32x32xf32> to vector<30x32xf32>
    %c1_462 = arith.constant 1 : index
    %c0_463 = arith.constant 0 : index
    %c0_464 = arith.constant 0 : index
    %625 = vector.load %arg2[%c1_462, %c0_463, %c0_464] : memref<3x32x180xf32, #tpu.memory_space<vmem>>, vector<1x32x180xf32>
    %626 = vector.shape_cast %625 : vector<1x32x180xf32> to vector<32x180xf32>
    %cst_465 = arith.constant dense<0.000000e+00> : vector<30x180xf32>
    %627 = tpu.matmul %624, %626, %cst_465 {dimension_numbers = #tpu.dot_dimension_numbers<[1], [0], [0], [1], [0, 0, 1, 1], [], []>} : vector<30x32xf32>, vector<32x180xf32>, vector<30x180xf32> -> vector<30x180xf32>
    %628 = arith.addf %623, %627 : vector<30x180xf32>
    %629 = vector.extract_strided_slice %617 {offsets = [2, 0], sizes = [30, 32], strides = [1, 1]} : vector<32x32xf32> to vector<30x32xf32>
    %c2_466 = arith.constant 2 : index
    %c0_467 = arith.constant 0 : index
    %c0_468 = arith.constant 0 : index
    %630 = vector.load %arg2[%c2_466, %c0_467, %c0_468] : memref<3x32x180xf32, #tpu.memory_space<vmem>>, vector<1x32x180xf32>
    %631 = vector.shape_cast %630 : vector<1x32x180xf32> to vector<32x180xf32>
    %cst_469 = arith.constant dense<0.000000e+00> : vector<30x180xf32>
    %632 = tpu.matmul %629, %631, %cst_469 {dimension_numbers = #tpu.dot_dimension_numbers<[1], [0], [0], [1], [0, 0, 1, 1], [], []>} : vector<30x32xf32>, vector<32x180xf32>, vector<30x180xf32> -> vector<30x180xf32>
    %633 = arith.addf %628, %632 : vector<30x180xf32>
    %c0_470 = arith.constant 0 : index
    %c0_471 = arith.constant 0 : index
    %634 = vector.load %arg3[%c0_470, %c0_471] : memref<1x180xf32, #tpu.memory_space<vmem>>, vector<1x180xf32>
    %635 = vector.broadcast %634 : vector<1x180xf32> to vector<30x180xf32>
    %636 = arith.addf %633, %635 : vector<30x180xf32>
    %cst_472 = arith.constant 0.000000e+00 : f32
    %637 = vector.broadcast %cst_472 : f32 to vector<30x180xf32>
    %638 = arith.maximumf %636, %637 : vector<30x180xf32>
    %639 = vector.extract_strided_slice %638 {offsets = [0, 0], sizes = [29, 180], strides = [1, 1]} : vector<30x180xf32> to vector<29x180xf32>
    %640 = vector.extract_strided_slice %638 {offsets = [1, 0], sizes = [29, 180], strides = [1, 1]} : vector<30x180xf32> to vector<29x180xf32>
    %641 = arith.maximumf %639, %640 : vector<29x180xf32>
    %c0_473 = arith.constant 0 : index
    %c0_474 = arith.constant 0 : index
    %642 = vector.load %arg6[%c0_473, %c0_474] : memref<15x29xf32, #tpu.memory_space<vmem>>, vector<15x29xf32>
    %cst_475 = arith.constant dense<0.000000e+00> : vector<15x180xf32>
    %643 = tpu.matmul %642, %641, %cst_475 {dimension_numbers = #tpu.dot_dimension_numbers<[1], [0], [0], [1], [0, 0, 1, 1], [], []>} : vector<15x29xf32>, vector<29x180xf32>, vector<15x180xf32> -> vector<15x180xf32>
    %644 = vector.extract_strided_slice %643 {offsets = [0, 0], sizes = [15, 179], strides = [1, 1]} : vector<15x180xf32> to vector<15x179xf32>
    %645 = vector.extract_strided_slice %643 {offsets = [0, 1], sizes = [15, 179], strides = [1, 1]} : vector<15x180xf32> to vector<15x179xf32>
    %646 = arith.maximumf %644, %645 : vector<15x179xf32>
    %c0_476 = arith.constant 0 : index
    %c0_477 = arith.constant 0 : index
    %647 = vector.load %arg7[%c0_476, %c0_477] : memref<179x90xf32, #tpu.memory_space<vmem>>, vector<179x90xf32>
    %cst_478 = arith.constant dense<0.000000e+00> : vector<15x90xf32>
    %648 = tpu.matmul %646, %647, %cst_478 {dimension_numbers = #tpu.dot_dimension_numbers<[1], [0], [0], [1], [0, 0, 1, 1], [], []>} : vector<15x179xf32>, vector<179x90xf32>, vector<15x90xf32> -> vector<15x90xf32>
    %cst_479 = arith.constant 0.000000e+00 : f32
    %649 = vector.broadcast %cst_479 : f32 to vector<13x208xf32>
    %650 = vector.extract_strided_slice %648 {offsets = [0, 0], sizes = [13, 90], strides = [1, 1]} : vector<15x90xf32> to vector<13x90xf32>
    %c0_480 = arith.constant 0 : index
    %c0_481 = arith.constant 0 : index
    %c0_482 = arith.constant 0 : index
    %651 = vector.load %arg4[%c0_480, %c0_481, %c0_482] : memref<3x90x208xf32, #tpu.memory_space<vmem>>, vector<1x90x208xf32>
    %652 = vector.shape_cast %651 : vector<1x90x208xf32> to vector<90x208xf32>
    %cst_483 = arith.constant dense<0.000000e+00> : vector<13x208xf32>
    %653 = tpu.matmul %650, %652, %cst_483 {dimension_numbers = #tpu.dot_dimension_numbers<[1], [0], [0], [1], [0, 0, 1, 1], [], []>} : vector<13x90xf32>, vector<90x208xf32>, vector<13x208xf32> -> vector<13x208xf32>
    %654 = arith.addf %649, %653 : vector<13x208xf32>
    %655 = vector.extract_strided_slice %648 {offsets = [1, 0], sizes = [13, 90], strides = [1, 1]} : vector<15x90xf32> to vector<13x90xf32>
    %c1_484 = arith.constant 1 : index
    %c0_485 = arith.constant 0 : index
    %c0_486 = arith.constant 0 : index
    %656 = vector.load %arg4[%c1_484, %c0_485, %c0_486] : memref<3x90x208xf32, #tpu.memory_space<vmem>>, vector<1x90x208xf32>
    %657 = vector.shape_cast %656 : vector<1x90x208xf32> to vector<90x208xf32>
    %cst_487 = arith.constant dense<0.000000e+00> : vector<13x208xf32>
    %658 = tpu.matmul %655, %657, %cst_487 {dimension_numbers = #tpu.dot_dimension_numbers<[1], [0], [0], [1], [0, 0, 1, 1], [], []>} : vector<13x90xf32>, vector<90x208xf32>, vector<13x208xf32> -> vector<13x208xf32>
    %659 = arith.addf %654, %658 : vector<13x208xf32>
    %660 = vector.extract_strided_slice %648 {offsets = [2, 0], sizes = [13, 90], strides = [1, 1]} : vector<15x90xf32> to vector<13x90xf32>
    %c2_488 = arith.constant 2 : index
    %c0_489 = arith.constant 0 : index
    %c0_490 = arith.constant 0 : index
    %661 = vector.load %arg4[%c2_488, %c0_489, %c0_490] : memref<3x90x208xf32, #tpu.memory_space<vmem>>, vector<1x90x208xf32>
    %662 = vector.shape_cast %661 : vector<1x90x208xf32> to vector<90x208xf32>
    %cst_491 = arith.constant dense<0.000000e+00> : vector<13x208xf32>
    %663 = tpu.matmul %660, %662, %cst_491 {dimension_numbers = #tpu.dot_dimension_numbers<[1], [0], [0], [1], [0, 0, 1, 1], [], []>} : vector<13x90xf32>, vector<90x208xf32>, vector<13x208xf32> -> vector<13x208xf32>
    %664 = arith.addf %659, %663 : vector<13x208xf32>
    %c0_492 = arith.constant 0 : index
    %c0_493 = arith.constant 0 : index
    %665 = vector.load %arg5[%c0_492, %c0_493] : memref<1x208xf32, #tpu.memory_space<vmem>>, vector<1x208xf32>
    %666 = vector.broadcast %665 : vector<1x208xf32> to vector<13x208xf32>
    %667 = arith.addf %664, %666 : vector<13x208xf32>
    %cst_494 = arith.constant 0.000000e+00 : f32
    %668 = vector.broadcast %cst_494 : f32 to vector<13x208xf32>
    %669 = arith.maximumf %667, %668 : vector<13x208xf32>
    %670 = vector.extract_strided_slice %669 {offsets = [0, 0], sizes = [12, 208], strides = [1, 1]} : vector<13x208xf32> to vector<12x208xf32>
    %671 = vector.extract_strided_slice %669 {offsets = [1, 0], sizes = [12, 208], strides = [1, 1]} : vector<13x208xf32> to vector<12x208xf32>
    %672 = arith.maximumf %670, %671 : vector<12x208xf32>
    %c0_495 = arith.constant 0 : index
    %c0_496 = arith.constant 0 : index
    %673 = vector.load %arg8[%c0_495, %c0_496] : memref<6x12xf32, #tpu.memory_space<vmem>>, vector<6x12xf32>
    %cst_497 = arith.constant dense<0.000000e+00> : vector<6x208xf32>
    %674 = tpu.matmul %673, %672, %cst_497 {dimension_numbers = #tpu.dot_dimension_numbers<[1], [0], [0], [1], [0, 0, 1, 1], [], []>} : vector<6x12xf32>, vector<12x208xf32>, vector<6x208xf32> -> vector<6x208xf32>
    %675 = vector.extract_strided_slice %674 {offsets = [0, 0], sizes = [6, 207], strides = [1, 1]} : vector<6x208xf32> to vector<6x207xf32>
    %676 = vector.extract_strided_slice %674 {offsets = [0, 1], sizes = [6, 207], strides = [1, 1]} : vector<6x208xf32> to vector<6x207xf32>
    %677 = arith.maximumf %675, %676 : vector<6x207xf32>
    %c0_498 = arith.constant 0 : index
    %c0_499 = arith.constant 0 : index
    %678 = vector.load %arg9[%c0_498, %c0_499] : memref<207x96xf32, #tpu.memory_space<vmem>>, vector<207x96xf32>
    %cst_500 = arith.constant dense<0.000000e+00> : vector<6x96xf32>
    %679 = tpu.matmul %677, %678, %cst_500 {dimension_numbers = #tpu.dot_dimension_numbers<[1], [0], [0], [1], [0, 0, 1, 1], [], []>} : vector<6x207xf32>, vector<207x96xf32>, vector<6x96xf32> -> vector<6x96xf32>
    %680 = vector.extract_strided_slice %679 {offsets = [0, 0], sizes = [1, 96], strides = [1, 1]} : vector<6x96xf32> to vector<1x96xf32>
    %c0_501 = arith.constant 0 : index
    %c7_502 = arith.constant 7 : index
    %c0_503 = arith.constant 0 : index
    %681 = vector.load %arg17[%c0_501, %c7_502, %c0_503] : memref<6x8x96xf32, #tpu.memory_space<vmem>>, vector<1x1x96xf32>
    %682 = vector.shape_cast %681 : vector<1x1x96xf32> to vector<1x96xf32>
    %683 = vector.shape_cast %680 : vector<1x96xf32> to vector<1x1x96xf32>
    tpu.vector_store %arg17[%c0_501, %c7_502, %c0_503], %683 {strides = array<i32>} : memref<6x8x96xf32, #tpu.memory_space<vmem>>, vector<1x1x96xf32>,
    %684 = vector.extract_strided_slice %679 {offsets = [1, 0], sizes = [1, 96], strides = [1, 1]} : vector<6x96xf32> to vector<1x96xf32>
    %c1_504 = arith.constant 1 : index
    %c7_505 = arith.constant 7 : index
    %c0_506 = arith.constant 0 : index
    %685 = vector.load %arg17[%c1_504, %c7_505, %c0_506] : memref<6x8x96xf32, #tpu.memory_space<vmem>>, vector<1x1x96xf32>
    %686 = vector.shape_cast %685 : vector<1x1x96xf32> to vector<1x96xf32>
    %687 = vector.shape_cast %684 : vector<1x96xf32> to vector<1x1x96xf32>
    tpu.vector_store %arg17[%c1_504, %c7_505, %c0_506], %687 {strides = array<i32>} : memref<6x8x96xf32, #tpu.memory_space<vmem>>, vector<1x1x96xf32>,
    %688 = vector.extract_strided_slice %679 {offsets = [2, 0], sizes = [1, 96], strides = [1, 1]} : vector<6x96xf32> to vector<1x96xf32>
    %c2_507 = arith.constant 2 : index
    %c7_508 = arith.constant 7 : index
    %c0_509 = arith.constant 0 : index
    %689 = vector.load %arg17[%c2_507, %c7_508, %c0_509] : memref<6x8x96xf32, #tpu.memory_space<vmem>>, vector<1x1x96xf32>
    %690 = vector.shape_cast %689 : vector<1x1x96xf32> to vector<1x96xf32>
    %691 = vector.shape_cast %688 : vector<1x96xf32> to vector<1x1x96xf32>
    tpu.vector_store %arg17[%c2_507, %c7_508, %c0_509], %691 {strides = array<i32>} : memref<6x8x96xf32, #tpu.memory_space<vmem>>, vector<1x1x96xf32>,
    %692 = vector.extract_strided_slice %679 {offsets = [3, 0], sizes = [1, 96], strides = [1, 1]} : vector<6x96xf32> to vector<1x96xf32>
    %c3_510 = arith.constant 3 : index
    %c7_511 = arith.constant 7 : index
    %c0_512 = arith.constant 0 : index
    %693 = vector.load %arg17[%c3_510, %c7_511, %c0_512] : memref<6x8x96xf32, #tpu.memory_space<vmem>>, vector<1x1x96xf32>
    %694 = vector.shape_cast %693 : vector<1x1x96xf32> to vector<1x96xf32>
    %695 = vector.shape_cast %692 : vector<1x96xf32> to vector<1x1x96xf32>
    tpu.vector_store %arg17[%c3_510, %c7_511, %c0_512], %695 {strides = array<i32>} : memref<6x8x96xf32, #tpu.memory_space<vmem>>, vector<1x1x96xf32>,
    %696 = vector.extract_strided_slice %679 {offsets = [4, 0], sizes = [1, 96], strides = [1, 1]} : vector<6x96xf32> to vector<1x96xf32>
    %c4_513 = arith.constant 4 : index
    %c7_514 = arith.constant 7 : index
    %c0_515 = arith.constant 0 : index
    %697 = vector.load %arg17[%c4_513, %c7_514, %c0_515] : memref<6x8x96xf32, #tpu.memory_space<vmem>>, vector<1x1x96xf32>
    %698 = vector.shape_cast %697 : vector<1x1x96xf32> to vector<1x96xf32>
    %699 = vector.shape_cast %696 : vector<1x96xf32> to vector<1x1x96xf32>
    tpu.vector_store %arg17[%c4_513, %c7_514, %c0_515], %699 {strides = array<i32>} : memref<6x8x96xf32, #tpu.memory_space<vmem>>, vector<1x1x96xf32>,
    %700 = vector.extract_strided_slice %679 {offsets = [5, 0], sizes = [1, 96], strides = [1, 1]} : vector<6x96xf32> to vector<1x96xf32>
    %c5_516 = arith.constant 5 : index
    %c7_517 = arith.constant 7 : index
    %c0_518 = arith.constant 0 : index
    %701 = vector.load %arg17[%c5_516, %c7_517, %c0_518] : memref<6x8x96xf32, #tpu.memory_space<vmem>>, vector<1x1x96xf32>
    %702 = vector.shape_cast %701 : vector<1x1x96xf32> to vector<1x96xf32>
    %703 = vector.shape_cast %700 : vector<1x96xf32> to vector<1x1x96xf32>
    tpu.vector_store %arg17[%c5_516, %c7_517, %c0_518], %703 {strides = array<i32>} : memref<6x8x96xf32, #tpu.memory_space<vmem>>, vector<1x1x96xf32>,
    %cst_519 = arith.constant 0.000000e+00 : f32
    %704 = vector.broadcast %cst_519 : f32 to vector<8x128xf32>
    %c0_520 = arith.constant 0 : index
    %c0_521 = arith.constant 0 : index
    %c0_522 = arith.constant 0 : index
    %705 = vector.load %arg17[%c0_520, %c0_521, %c0_522] : memref<6x8x96xf32, #tpu.memory_space<vmem>>, vector<1x8x96xf32>
    %706 = vector.shape_cast %705 : vector<1x8x96xf32> to vector<8x96xf32>
    %c0_523 = arith.constant 0 : index
    %c0_524 = arith.constant 0 : index
    %c0_525 = arith.constant 0 : index
    %707 = vector.load %arg10[%c0_523, %c0_524, %c0_525] : memref<6x96x128xf32, #tpu.memory_space<vmem>>, vector<1x96x128xf32>
    %708 = vector.shape_cast %707 : vector<1x96x128xf32> to vector<96x128xf32>
    %cst_526 = arith.constant dense<0.000000e+00> : vector<8x128xf32>
    %709 = tpu.matmul %706, %708, %cst_526 {dimension_numbers = #tpu.dot_dimension_numbers<[1], [0], [0], [1], [0, 0, 1, 1], [], []>} : vector<8x96xf32>, vector<96x128xf32>, vector<8x128xf32> -> vector<8x128xf32>
    %710 = arith.addf %704, %709 : vector<8x128xf32>
    %c1_527 = arith.constant 1 : index
    %c0_528 = arith.constant 0 : index
    %c0_529 = arith.constant 0 : index
    %711 = vector.load %arg17[%c1_527, %c0_528, %c0_529] : memref<6x8x96xf32, #tpu.memory_space<vmem>>, vector<1x8x96xf32>
    %712 = vector.shape_cast %711 : vector<1x8x96xf32> to vector<8x96xf32>
    %c1_530 = arith.constant 1 : index
    %c0_531 = arith.constant 0 : index
    %c0_532 = arith.constant 0 : index
    %713 = vector.load %arg10[%c1_530, %c0_531, %c0_532] : memref<6x96x128xf32, #tpu.memory_space<vmem>>, vector<1x96x128xf32>
    %714 = vector.shape_cast %713 : vector<1x96x128xf32> to vector<96x128xf32>
    %cst_533 = arith.constant dense<0.000000e+00> : vector<8x128xf32>
    %715 = tpu.matmul %712, %714, %cst_533 {dimension_numbers = #tpu.dot_dimension_numbers<[1], [0], [0], [1], [0, 0, 1, 1], [], []>} : vector<8x96xf32>, vector<96x128xf32>, vector<8x128xf32> -> vector<8x128xf32>
    %716 = arith.addf %710, %715 : vector<8x128xf32>
    %c2_534 = arith.constant 2 : index
    %c0_535 = arith.constant 0 : index
    %c0_536 = arith.constant 0 : index
    %717 = vector.load %arg17[%c2_534, %c0_535, %c0_536] : memref<6x8x96xf32, #tpu.memory_space<vmem>>, vector<1x8x96xf32>
    %718 = vector.shape_cast %717 : vector<1x8x96xf32> to vector<8x96xf32>
    %c2_537 = arith.constant 2 : index
    %c0_538 = arith.constant 0 : index
    %c0_539 = arith.constant 0 : index
    %719 = vector.load %arg10[%c2_537, %c0_538, %c0_539] : memref<6x96x128xf32, #tpu.memory_space<vmem>>, vector<1x96x128xf32>
    %720 = vector.shape_cast %719 : vector<1x96x128xf32> to vector<96x128xf32>
    %cst_540 = arith.constant dense<0.000000e+00> : vector<8x128xf32>
    %721 = tpu.matmul %718, %720, %cst_540 {dimension_numbers = #tpu.dot_dimension_numbers<[1], [0], [0], [1], [0, 0, 1, 1], [], []>} : vector<8x96xf32>, vector<96x128xf32>, vector<8x128xf32> -> vector<8x128xf32>
    %722 = arith.addf %716, %721 : vector<8x128xf32>
    %c3_541 = arith.constant 3 : index
    %c0_542 = arith.constant 0 : index
    %c0_543 = arith.constant 0 : index
    %723 = vector.load %arg17[%c3_541, %c0_542, %c0_543] : memref<6x8x96xf32, #tpu.memory_space<vmem>>, vector<1x8x96xf32>
    %724 = vector.shape_cast %723 : vector<1x8x96xf32> to vector<8x96xf32>
    %c3_544 = arith.constant 3 : index
    %c0_545 = arith.constant 0 : index
    %c0_546 = arith.constant 0 : index
    %725 = vector.load %arg10[%c3_544, %c0_545, %c0_546] : memref<6x96x128xf32, #tpu.memory_space<vmem>>, vector<1x96x128xf32>
    %726 = vector.shape_cast %725 : vector<1x96x128xf32> to vector<96x128xf32>
    %cst_547 = arith.constant dense<0.000000e+00> : vector<8x128xf32>
    %727 = tpu.matmul %724, %726, %cst_547 {dimension_numbers = #tpu.dot_dimension_numbers<[1], [0], [0], [1], [0, 0, 1, 1], [], []>} : vector<8x96xf32>, vector<96x128xf32>, vector<8x128xf32> -> vector<8x128xf32>
    %728 = arith.addf %722, %727 : vector<8x128xf32>
    %c4_548 = arith.constant 4 : index
    %c0_549 = arith.constant 0 : index
    %c0_550 = arith.constant 0 : index
    %729 = vector.load %arg17[%c4_548, %c0_549, %c0_550] : memref<6x8x96xf32, #tpu.memory_space<vmem>>, vector<1x8x96xf32>
    %730 = vector.shape_cast %729 : vector<1x8x96xf32> to vector<8x96xf32>
    %c4_551 = arith.constant 4 : index
    %c0_552 = arith.constant 0 : index
    %c0_553 = arith.constant 0 : index
    %731 = vector.load %arg10[%c4_551, %c0_552, %c0_553] : memref<6x96x128xf32, #tpu.memory_space<vmem>>, vector<1x96x128xf32>
    %732 = vector.shape_cast %731 : vector<1x96x128xf32> to vector<96x128xf32>
    %cst_554 = arith.constant dense<0.000000e+00> : vector<8x128xf32>
    %733 = tpu.matmul %730, %732, %cst_554 {dimension_numbers = #tpu.dot_dimension_numbers<[1], [0], [0], [1], [0, 0, 1, 1], [], []>} : vector<8x96xf32>, vector<96x128xf32>, vector<8x128xf32> -> vector<8x128xf32>
    %734 = arith.addf %728, %733 : vector<8x128xf32>
    %c5_555 = arith.constant 5 : index
    %c0_556 = arith.constant 0 : index
    %c0_557 = arith.constant 0 : index
    %735 = vector.load %arg17[%c5_555, %c0_556, %c0_557] : memref<6x8x96xf32, #tpu.memory_space<vmem>>, vector<1x8x96xf32>
    %736 = vector.shape_cast %735 : vector<1x8x96xf32> to vector<8x96xf32>
    %c5_558 = arith.constant 5 : index
    %c0_559 = arith.constant 0 : index
    %c0_560 = arith.constant 0 : index
    %737 = vector.load %arg10[%c5_558, %c0_559, %c0_560] : memref<6x96x128xf32, #tpu.memory_space<vmem>>, vector<1x96x128xf32>
    %738 = vector.shape_cast %737 : vector<1x96x128xf32> to vector<96x128xf32>
    %cst_561 = arith.constant dense<0.000000e+00> : vector<8x128xf32>
    %739 = tpu.matmul %736, %738, %cst_561 {dimension_numbers = #tpu.dot_dimension_numbers<[1], [0], [0], [1], [0, 0, 1, 1], [], []>} : vector<8x96xf32>, vector<96x128xf32>, vector<8x128xf32> -> vector<8x128xf32>
    %740 = arith.addf %734, %739 : vector<8x128xf32>
    %c0_562 = arith.constant 0 : index
    %c0_563 = arith.constant 0 : index
    %741 = vector.load %arg11[%c0_562, %c0_563] : memref<1x128xf32, #tpu.memory_space<vmem>>, vector<1x128xf32>
    %742 = vector.broadcast %741 : vector<1x128xf32> to vector<8x128xf32>
    %743 = arith.addf %740, %742 : vector<8x128xf32>
    %cst_564 = arith.constant 0.000000e+00 : f32
    %744 = vector.broadcast %cst_564 : f32 to vector<8x128xf32>
    %745 = arith.maximumf %743, %744 : vector<8x128xf32>
    %c0_565 = arith.constant 0 : index
    %c0_566 = arith.constant 0 : index
    %746 = vector.load %arg12[%c0_565, %c0_566] : memref<128x128xf32, #tpu.memory_space<vmem>>, vector<128x128xf32>
    %cst_567 = arith.constant dense<0.000000e+00> : vector<8x128xf32>
    %747 = tpu.matmul %745, %746, %cst_567 {dimension_numbers = #tpu.dot_dimension_numbers<[1], [0], [0], [1], [0, 0, 1, 1], [], []>} : vector<8x128xf32>, vector<128x128xf32>, vector<8x128xf32> -> vector<8x128xf32>
    %c0_568 = arith.constant 0 : index
    %c0_569 = arith.constant 0 : index
    %748 = vector.load %arg13[%c0_568, %c0_569] : memref<1x128xf32, #tpu.memory_space<vmem>>, vector<1x128xf32>
    %749 = vector.broadcast %748 : vector<1x128xf32> to vector<8x128xf32>
    %750 = arith.addf %747, %749 : vector<8x128xf32>
    %cst_570 = arith.constant 0.000000e+00 : f32
    %751 = vector.broadcast %cst_570 : f32 to vector<8x128xf32>
    %752 = arith.maximumf %750, %751 : vector<8x128xf32>
    %c0_571 = arith.constant 0 : index
    %c0_572 = arith.constant 0 : index
    %753 = vector.load %arg14[%c0_571, %c0_572] : memref<128x128xf32, #tpu.memory_space<vmem>>, vector<128x128xf32>
    %cst_573 = arith.constant dense<0.000000e+00> : vector<8x128xf32>
    %754 = tpu.matmul %752, %753, %cst_573 {dimension_numbers = #tpu.dot_dimension_numbers<[1], [0], [0], [1], [0, 0, 1, 1], [], []>} : vector<8x128xf32>, vector<128x128xf32>, vector<8x128xf32> -> vector<8x128xf32>
    %c0_574 = arith.constant 0 : index
    %c0_575 = arith.constant 0 : index
    %755 = vector.load %arg15[%c0_574, %c0_575] : memref<1x128xf32, #tpu.memory_space<vmem>>, vector<1x128xf32>
    %756 = vector.broadcast %755 : vector<1x128xf32> to vector<8x128xf32>
    %757 = arith.addf %754, %756 : vector<8x128xf32>
    %c0_576 = arith.constant 0 : index
    %c0_577 = arith.constant 0 : index
    %758 = vector.load %arg16[%c0_576, %c0_577] : memref<8x128xf32, #tpu.memory_space<vmem>>, vector<8x128xf32>
    tpu.vector_store %arg16[%c0_576, %c0_577], %757 {strides = array<i32>} : memref<8x128xf32, #tpu.memory_space<vmem>>, vector<8x128xf32>,
    return
  }
  func.func @transform_0(%arg0: i32) -> (i32, i32, i32, i32) {
    %c0_i32 = arith.constant 0 : i32
    %c0_i32_0 = arith.constant 0 : i32
    %c0_i32_1 = arith.constant 0 : i32
    %c0_i32_2 = arith.constant 0 : i32
    return %arg0, %c0_i32, %c0_i32_0, %c0_i32_1 : i32, i32, i32, i32
  }
  func.func @transform_1(%arg0: i32) -> (i32, i32, i32) {
    %c0_i32 = arith.constant 0 : i32
    %c0_i32_0 = arith.constant 0 : i32
    %c0_i32_1 = arith.constant 0 : i32
    %c0_i32_2 = arith.constant 0 : i32
    return %c0_i32, %c0_i32_0, %c0_i32_1 : i32, i32, i32
  }
  func.func @transform_2(%arg0: i32) -> (i32, i32) {
    %c0_i32 = arith.constant 0 : i32
    %c0_i32_0 = arith.constant 0 : i32
    %c0_i32_1 = arith.constant 0 : i32
    return %c0_i32, %c0_i32_0 : i32, i32
  }
  func.func @transform_3(%arg0: i32) -> (i32, i32, i32) {
    %c0_i32 = arith.constant 0 : i32
    %c0_i32_0 = arith.constant 0 : i32
    %c0_i32_1 = arith.constant 0 : i32
    %c0_i32_2 = arith.constant 0 : i32
    return %c0_i32, %c0_i32_0, %c0_i32_1 : i32, i32, i32
  }
  func.func @transform_4(%arg0: i32) -> (i32, i32) {
    %c0_i32 = arith.constant 0 : i32
    %c0_i32_0 = arith.constant 0 : i32
    %c0_i32_1 = arith.constant 0 : i32
    return %c0_i32, %c0_i32_0 : i32, i32
  }
  func.func @transform_5(%arg0: i32) -> (i32, i32) {
    %c0_i32 = arith.constant 0 : i32
    %c0_i32_0 = arith.constant 0 : i32
    %c0_i32_1 = arith.constant 0 : i32
    return %c0_i32, %c0_i32_0 : i32, i32
  }
  func.func @transform_6(%arg0: i32) -> (i32, i32) {
    %c0_i32 = arith.constant 0 : i32
    %c0_i32_0 = arith.constant 0 : i32
    %c0_i32_1 = arith.constant 0 : i32
    return %c0_i32, %c0_i32_0 : i32, i32
  }
  func.func @transform_7(%arg0: i32) -> (i32, i32) {
    %c0_i32 = arith.constant 0 : i32
    %c0_i32_0 = arith.constant 0 : i32
    %c0_i32_1 = arith.constant 0 : i32
    return %c0_i32, %c0_i32_0 : i32, i32
  }
  func.func @transform_8(%arg0: i32) -> (i32, i32) {
    %c0_i32 = arith.constant 0 : i32
    %c0_i32_0 = arith.constant 0 : i32
    %c0_i32_1 = arith.constant 0 : i32
    return %c0_i32, %c0_i32_0 : i32, i32
  }
  func.func @transform_9(%arg0: i32) -> (i32, i32, i32) {
    %c0_i32 = arith.constant 0 : i32
    %c0_i32_0 = arith.constant 0 : i32
    %c0_i32_1 = arith.constant 0 : i32
    %c0_i32_2 = arith.constant 0 : i32
    return %c0_i32, %c0_i32_0, %c0_i32_1 : i32, i32, i32
  }
  func.func @transform_10(%arg0: i32) -> (i32, i32) {
    %c0_i32 = arith.constant 0 : i32
    %c0_i32_0 = arith.constant 0 : i32
    %c0_i32_1 = arith.constant 0 : i32
    return %c0_i32, %c0_i32_0 : i32, i32
  }
  func.func @transform_11(%arg0: i32) -> (i32, i32) {
    %c0_i32 = arith.constant 0 : i32
    %c0_i32_0 = arith.constant 0 : i32
    %c0_i32_1 = arith.constant 0 : i32
    return %c0_i32, %c0_i32_0 : i32, i32
  }
  func.func @transform_12(%arg0: i32) -> (i32, i32) {
    %c0_i32 = arith.constant 0 : i32
    %c0_i32_0 = arith.constant 0 : i32
    %c0_i32_1 = arith.constant 0 : i32
    return %c0_i32, %c0_i32_0 : i32, i32
  }
  func.func @transform_13(%arg0: i32) -> (i32, i32) {
    %c0_i32 = arith.constant 0 : i32
    %c0_i32_0 = arith.constant 0 : i32
    %c0_i32_1 = arith.constant 0 : i32
    return %c0_i32, %c0_i32_0 : i32, i32
  }
  func.func @transform_14(%arg0: i32) -> (i32, i32) {
    %c0_i32 = arith.constant 0 : i32
    %c0_i32_0 = arith.constant 0 : i32
    %c0_i32_1 = arith.constant 0 : i32
    return %c0_i32, %c0_i32_0 : i32, i32
  }
  func.func @transform_15(%arg0: i32) -> (i32, i32) {
    %c0_i32 = arith.constant 0 : i32
    %c0_i32_0 = arith.constant 0 : i32
    return %arg0, %c0_i32 : i32, i32
  }
}

</mosaic_0001>

<llo_original>
// kernel: net_forward.1
$region0: #{net_forward.1}
  #allocation0 [shape = 'u32[]', space=smem, size = 0x4, offset = 0x4, fixed_abs, tag = 'smem constant byte address 0x4 - core index']
  #allocation1 [shape = 'u32[72,128]{1,0:T(1,128)}', space=vmem, size = 0x9000, scoped, tag = 'internal scratch']
  #allocation2 [shape = 'f32[6,8,96]{2,1,0:T(8,128)}', space=vmem, size = 0x6000, scoped, tag = 'scratch operand']
  %s0 = inlined_call_operand.hbm [shape: f32[16,1,32,32], index: 0, kind: input, shape index: {}]
  %s1 = inlined_call_operand.vmem [shape: f32[3,32,180], index: 1, kind: input, shape index: {}]
  %s2 = inlined_call_operand.hbm [shape: f32[1,180], index: 2, kind: input, shape index: {}]
  %s3 = inlined_call_operand.hbm [shape: f32[3,90,208], index: 3, kind: input, shape index: {}]
  %s4 = inlined_call_operand.hbm [shape: f32[1,208], index: 4, kind: input, shape index: {}]
  %s5 = inlined_call_operand.vmem [shape: f32[15,29], index: 5, kind: input, shape index: {}]
  %s6 = inlined_call_operand.vmem [shape: f32[179,90], index: 6, kind: input, shape index: {}]
  %s7 = inlined_call_operand.vmem [shape: f32[6,12], index: 7, kind: input, shape index: {}]
  %s8 = inlined_call_operand.vmem [shape: f32[207,96], index: 8, kind: input, shape index: {}]
  %s9 = inlined_call_operand.hbm [shape: f32[6,96,128], index: 9, kind: input, shape index: {}]
  %s10 = inlined_call_operand.vmem [shape: f32[1,128], index: 10, kind: input, shape index: {}]
  %s11 = inlined_call_operand.hbm [shape: f32[128,128], index: 11, kind: input, shape index: {}]
  %s12 = inlined_call_operand.vmem [shape: f32[1,128], index: 12, kind: input, shape index: {}]
  %s13 = inlined_call_operand.hbm [shape: f32[128,128], index: 13, kind: input, shape index: {}]
  %s14 = inlined_call_operand.vmem [shape: f32[1,128], index: 14, kind: input, shape index: {}]
  %s15 = inlined_call_operand.hbm [shape: f32[16,128], index: 15, kind: output, shape index: {}]
  %s16 = sld [smem:[#allocation0]]
  $region121: #{net_forward.1} parent=0
    _
  %s18 = ssub.s32 1, %s16
  %s19 = scalar_select 0, %s18, %s16
  $region1: #{net_forward.1} parent=0
    #allocation3 [shape = 'u8[262144]{0}', space=vmem, size = 0x40000, scoped, tag = 'input window, operand 0']
    #allocation4 [shape = 's32[2]{0}', space=sflag, size = 0x8, scoped, tag = 'scoped memory for net_forward.1']
    #allocation5 [shape = 's32[2]{0}', space=sflag, size = 0x8, scoped, tag = 'scoped memory for net_forward.1']
    #allocation6 [shape = 'u8[1024]{0}', space=vmem, size = 0x400, scoped, tag = 'input window, operand 2, single buffered']
    #allocation7 [shape = 's32[1]{0}', space=sflag, size = 0x4, scoped, tag = 'scoped memory for net_forward.1']
    #allocation8 [shape = 'u8[294912]{0}', space=vmem, size = 0x48000, scoped, tag = 'input window, operand 3, single buffered']
    #allocation9 [shape = 'u8[1024]{0}', space=vmem, size = 0x400, scoped, tag = 'input window, operand 4, single buffered']
    #allocation10 [shape = 's32[1]{0}', space=sflag, size = 0x4, scoped, tag = 'scoped memory for net_forward.1']
    #allocation11 [shape = 'u8[294912]{0}', space=vmem, size = 0x48000, scoped, tag = 'input window, operand 9, single buffered']
    #allocation12 [shape = 'u8[65536]{0}', space=vmem, size = 0x10000, scoped, tag = 'input window, operand 11, single buffered']
    #allocation13 [shape = 's32[1]{0}', space=sflag, size = 0x4, scoped, tag = 'scoped memory for net_forward.1']
    #allocation14 [shape = 'u8[65536]{0}', space=vmem, size = 0x10000, scoped, tag = 'input window, operand 13, single buffered']
    #allocation15 [shape = 'u8[8192]{0}', space=vmem, size = 0x2000, scoped, tag = 'output window, operand 0']
    %20 = vsyncpa [#allocation4], 0
    %s21 = scalar_lea.sflag [#allocation4], 1
    %22 = vsyncpa %s21, 0
    %23 = vsyncpa [#allocation7], 0
    %24 = vsyncpa [#allocation10], 0
    %25 = vsyncpa [#allocation13], 0
    %26 = vsyncpa [#allocation5], 0
    %s27 = scalar_lea.sflag [#allocation5], 1
    %28 = vsyncpa %s27, 0
    loop: start=0, step=1, limit=4
    $region2: #{net_forward.1} parent=1 // loop_pre_header
      _
    $region3: #{net_forward.1} parent=1 // loop_header
      %s30 = sphi 0, %s34
      %p31 = scmp.ge.s32.totalorder %s30, 4
      %s40 = sphi 0, %s42
      %s43 = sphi 0, %s40
      %s44 = sphi 0, %s43
      %s60 = sphi 0, %s44
      %s64 = sphi 0, %s64
      %s66 = sphi 0, %s64
      %s67 = sphi 0, %s66
      %s81 = sphi 0, %s67
      %s85 = sphi 0, %s85
      %s87 = sphi 0, %s85
      %s88 = sphi 0, %s87
      %s102 = sphi 0, %s88
      %s106 = sphi 0, %s106
      %s108 = sphi 0, %s106
      %s109 = sphi 0, %s108
      %s123 = sphi 0, %s109
      %s127 = sphi 0, %s127
      %s129 = sphi 0, %s127
      %s130 = sphi 0, %s129
      %s144 = sphi 0, %s130
      %s148 = sphi 0, %s148
      %s150 = sphi 0, %s148
      %s151 = sphi 0, %s150
      %s165 = sphi 0, %s151
      %s169 = sphi 0, %s169
      %s171 = sphi 0, %s169
      %s172 = sphi 0, %s171
      %s186 = sphi 0, %s172
      %s190 = sphi 0, %s190
      %s192 = sphi 0, %s190
      %s193 = sphi 0, %s192
      %s207 = sphi 0, %s193
      %s211 = sphi 0, %s211
      %s213 = sphi 0, %s211
      %s214 = sphi 0, %s213
      %s228 = sphi 0, %s214
      %s232 = sphi 0, %s232
      %s234 = sphi 0, %s232
      %s235 = sphi 0, %s234
      %s249 = sphi 0, %s235
      %s253 = sphi 0, %s253
      %s255 = sphi 0, %s253
      %s256 = sphi 0, %s255
      %s270 = sphi 0, %s256
      %s274 = sphi 0, %s274
      %s276 = sphi 0, %s274
      %s277 = sphi 0, %s276
      %s291 = sphi 0, %s277
      %s295 = sphi 0, %s295
      %s297 = sphi 0, %s295
      %s298 = sphi 0, %s297
      %s312 = sphi 0, %s298
      %s316 = sphi 0, %s316
      %s318 = sphi 0, %s316
      %s319 = sphi 0, %s318
      %s333 = sphi 0, %s319
      %s337 = sphi 0, %s337
      %s339 = sphi 0, %s337
      %s340 = sphi 0, %s339
      %s354 = sphi 0, %s340
      %s360 = sphi 0, %s362
      %s363 = sphi 0, %s360
      %s364 = sphi 0, %s363
      %s380 = sphi 0, %s364
    $region4: #{net_forward.1} parent=1 // loop_header_branch
      %33 = sbr.rel (%p31) target = $region8
    $region5: #{net_forward.1} parent=1 // loop_body
      %s35 = ssub.s32 %s30, 1
      %s36 = ssub.s32 %s30, 2
      %s37 = sadd.s32 %s30, 1
      %s38 = ssub.s32 %s30, %s37
      %p39 = scmp.eq.s32.totalorder %s38, 0
      %s41 = sadd.s32 %s40, 1
      %s42 = scalar_select %p39, %s40, %s41
      %p45 = pneg %p39
      %p46 = scmp.eq.s32.totalorder %s30, 1
      %p47 = por %p45, %p46
      %p48 = scmp.ne.s32.totalorder %s40, %s43
      %p49 = scmp.eq.s32.totalorder %s30, 0
      %p50 = por %p48, %p49
      %p51 = scmp.ne.s32.totalorder %s40, %s43
      %p52 = scmp.eq.s32.totalorder %s35, 1
      %p53 = por %p51, %p52
      %p54 = scmp.ne.s32.totalorder %s43, %s44
      %p55 = scmp.eq.s32.totalorder %s35, 0
      %p56 = por %p54, %p55
      %p57 = scmp.ne.s32.totalorder %s43, %s44
      %p58 = scmp.eq.s32.totalorder %s36, 1
      %p59 = por %p57, %p58
      %p61 = scmp.ne.s32.totalorder %s44, %s60
      %p62 = scmp.eq.s32.totalorder %s36, 0
      %p63 = por %p61, %p62
      %s65 = sadd.s32 %s64, 1
      %p68 = scmp.eq.s32.totalorder %s30, 1
      %p69 = scmp.ne.s32.totalorder %s64, %s66
      %p70 = scmp.eq.s32.totalorder %s30, 0
      %p71 = por %p69, %p70
      %p72 = scmp.ne.s32.totalorder %s64, %s66
      %p73 = scmp.eq.s32.totalorder %s35, 1
      %p74 = por %p72, %p73
      %p75 = scmp.ne.s32.totalorder %s66, %s67
      %p76 = scmp.eq.s32.totalorder %s35, 0
      %p77 = por %p75, %p76
      %p78 = scmp.ne.s32.totalorder %s66, %s67
      %p79 = scmp.eq.s32.totalorder %s36, 1
      %p80 = por %p78, %p79
      %p82 = scmp.ne.s32.totalorder %s67, %s81
      %p83 = scmp.eq.s32.totalorder %s36, 0
      %p84 = por %p82, %p83
      %s86 = sadd.s32 %s85, 1
      %p89 = scmp.eq.s32.totalorder %s30, 1
      %p90 = scmp.ne.s32.totalorder %s85, %s87
      %p91 = scmp.eq.s32.totalorder %s30, 0
      %p92 = por %p90, %p91
      %p93 = scmp.ne.s32.totalorder %s85, %s87
      %p94 = scmp.eq.s32.totalorder %s35, 1
      %p95 = por %p93, %p94
      %p96 = scmp.ne.s32.totalorder %s87, %s88
      %p97 = scmp.eq.s32.totalorder %s35, 0
      %p98 = por %p96, %p97
      %p99 = scmp.ne.s32.totalorder %s87, %s88
      %p100 = scmp.eq.s32.totalorder %s36, 1
      %p101 = por %p99, %p100
      %p103 = scmp.ne.s32.totalorder %s88, %s102
      %p104 = scmp.eq.s32.totalorder %s36, 0
      %p105 = por %p103, %p104
      %s107 = sadd.s32 %s106, 1
      %p110 = scmp.eq.s32.totalorder %s30, 1
      %p111 = scmp.ne.s32.totalorder %s106, %s108
      %p112 = scmp.eq.s32.totalorder %s30, 0
      %p113 = por %p111, %p112
      %p114 = scmp.ne.s32.totalorder %s106, %s108
      %p115 = scmp.eq.s32.totalorder %s35, 1
      %p116 = por %p114, %p115
      %p117 = scmp.ne.s32.totalorder %s108, %s109
      %p118 = scmp.eq.s32.totalorder %s35, 0
      %p119 = por %p117, %p118
      %p120 = scmp.ne.s32.totalorder %s108, %s109
      %p121 = scmp.eq.s32.totalorder %s36, 1
      %p122 = por %p120, %p121
      %p124 = scmp.ne.s32.totalorder %s109, %s123
      %p125 = scmp.eq.s32.totalorder %s36, 0
      %p126 = por %p124, %p125
      %s128 = sadd.s32 %s127, 1
      %p131 = scmp.eq.s32.totalorder %s30, 1
      %p132 = scmp.ne.s32.totalorder %s127, %s129
      %p133 = scmp.eq.s32.totalorder %s30, 0
      %p134 = por %p132, %p133
      %p135 = scmp.ne.s32.totalorder %s127, %s129
      %p136 = scmp.eq.s32.totalorder %s35, 1
      %p137 = por %p135, %p136
      %p138 = scmp.ne.s32.totalorder %s129, %s130
      %p139 = scmp.eq.s32.totalorder %s35, 0
      %p140 = por %p138, %p139
      %p141 = scmp.ne.s32.totalorder %s129, %s130
      %p142 = scmp.eq.s32.totalorder %s36, 1
      %p143 = por %p141, %p142
      %p145 = scmp.ne.s32.totalorder %s130, %s144
      %p146 = scmp.eq.s32.totalorder %s36, 0
      %p147 = por %p145, %p146
      %s149 = sadd.s32 %s148, 1
      %p152 = scmp.eq.s32.totalorder %s30, 1
      %p153 = scmp.ne.s32.totalorder %s148, %s150
      %p154 = scmp.eq.s32.totalorder %s30, 0
      %p155 = por %p153, %p154
      %p156 = scmp.ne.s32.totalorder %s148, %s150
      %p157 = scmp.eq.s32.totalorder %s35, 1
      %p158 = por %p156, %p157
      %p159 = scmp.ne.s32.totalorder %s150, %s151
      %p160 = scmp.eq.s32.totalorder %s35, 0
      %p161 = por %p159, %p160
      %p162 = scmp.ne.s32.totalorder %s150, %s151
      %p163 = scmp.eq.s32.totalorder %s36, 1
      %p164 = por %p162, %p163
      %p166 = scmp.ne.s32.totalorder %s151, %s165
      %p167 = scmp.eq.s32.totalorder %s36, 0
      %p168 = por %p166, %p167
      %s170 = sadd.s32 %s169, 1
      %p173 = scmp.eq.s32.totalorder %s30, 1
      %p174 = scmp.ne.s32.totalorder %s169, %s171
      %p175 = scmp.eq.s32.totalorder %s30, 0
      %p176 = por %p174, %p175
      %p177 = scmp.ne.s32.totalorder %s169, %s171
      %p178 = scmp.eq.s32.totalorder %s35, 1
      %p179 = por %p177, %p178
      %p180 = scmp.ne.s32.totalorder %s171, %s172
      %p181 = scmp.eq.s32.totalorder %s35, 0
      %p182 = por %p180, %p181
      %p183 = scmp.ne.s32.totalorder %s171, %s172
      %p184 = scmp.eq.s32.totalorder %s36, 1
      %p185 = por %p183, %p184
      %p187 = scmp.ne.s32.totalorder %s172, %s186
      %p188 = scmp.eq.s32.totalorder %s36, 0
      %p189 = por %p187, %p188
      %s191 = sadd.s32 %s190, 1
      %p194 = scmp.eq.s32.totalorder %s30, 1
      %p195 = scmp.ne.s32.totalorder %s190, %s192
      %p196 = scmp.eq.s32.totalorder %s30, 0
      %p197 = por %p195, %p196
      %p198 = scmp.ne.s32.totalorder %s190, %s192
      %p199 = scmp.eq.s32.totalorder %s35, 1
      %p200 = por %p198, %p199
      %p201 = scmp.ne.s32.totalorder %s192, %s193
      %p202 = scmp.eq.s32.totalorder %s35, 0
      %p203 = por %p201, %p202
      %p204 = scmp.ne.s32.totalorder %s192, %s193
      %p205 = scmp.eq.s32.totalorder %s36, 1
      %p206 = por %p204, %p205
      %p208 = scmp.ne.s32.totalorder %s193, %s207
      %p209 = scmp.eq.s32.totalorder %s36, 0
      %p210 = por %p208, %p209
      %s212 = sadd.s32 %s211, 1
      %p215 = scmp.eq.s32.totalorder %s30, 1
      %p216 = scmp.ne.s32.totalorder %s211, %s213
      %p217 = scmp.eq.s32.totalorder %s30, 0
      %p218 = por %p216, %p217
      %p219 = scmp.ne.s32.totalorder %s211, %s213
      %p220 = scmp.eq.s32.totalorder %s35, 1
      %p221 = por %p219, %p220
      %p222 = scmp.ne.s32.totalorder %s213, %s214
      %p223 = scmp.eq.s32.totalorder %s35, 0
      %p224 = por %p222, %p223
      %p225 = scmp.ne.s32.totalorder %s213, %s214
      %p226 = scmp.eq.s32.totalorder %s36, 1
      %p227 = por %p225, %p226
      %p229 = scmp.ne.s32.totalorder %s214, %s228
      %p230 = scmp.eq.s32.totalorder %s36, 0
      %p231 = por %p229, %p230
      %s233 = sadd.s32 %s232, 1
      %p236 = scmp.eq.s32.totalorder %s30, 1
      %p237 = scmp.ne.s32.totalorder %s232, %s234
      %p238 = scmp.eq.s32.totalorder %s30, 0
      %p239 = por %p237, %p238
      %p240 = scmp.ne.s32.totalorder %s232, %s234
      %p241 = scmp.eq.s32.totalorder %s35, 1
      %p242 = por %p240, %p241
      %p243 = scmp.ne.s32.totalorder %s234, %s235
      %p244 = scmp.eq.s32.totalorder %s35, 0
      %p245 = por %p243, %p244
      %p246 = scmp.ne.s32.totalorder %s234, %s235
      %p247 = scmp.eq.s32.totalorder %s36, 1
      %p248 = por %p246, %p247
      %p250 = scmp.ne.s32.totalorder %s235, %s249
      %p251 = scmp.eq.s32.totalorder %s36, 0
      %p252 = por %p250, %p251
      %s254 = sadd.s32 %s253, 1
      %p257 = scmp.eq.s32.totalorder %s30, 1
      %p258 = scmp.ne.s32.totalorder %s253, %s255
      %p259 = scmp.eq.s32.totalorder %s30, 0
      %p260 = por %p258, %p259
      %p261 = scmp.ne.s32.totalorder %s253, %s255
      %p262 = scmp.eq.s32.totalorder %s35, 1
      %p263 = por %p261, %p262
      %p264 = scmp.ne.s32.totalorder %s255, %s256
      %p265 = scmp.eq.s32.totalorder %s35, 0
      %p266 = por %p264, %p265
      %p267 = scmp.ne.s32.totalorder %s255, %s256
      %p268 = scmp.eq.s32.totalorder %s36, 1
      %p269 = por %p267, %p268
      %p271 = scmp.ne.s32.totalorder %s256, %s270
      %p272 = scmp.eq.s32.totalorder %s36, 0
      %p273 = por %p271, %p272
      %s275 = sadd.s32 %s274, 1
      %p278 = scmp.eq.s32.totalorder %s30, 1
      %p279 = scmp.ne.s32.totalorder %s274, %s276
      %p280 = scmp.eq.s32.totalorder %s30, 0
      %p281 = por %p279, %p280
      %p282 = scmp.ne.s32.totalorder %s274, %s276
      %p283 = scmp.eq.s32.totalorder %s35, 1
      %p284 = por %p282, %p283
      %p285 = scmp.ne.s32.totalorder %s276, %s277
      %p286 = scmp.eq.s32.totalorder %s35, 0
      %p287 = por %p285, %p286
      %p288 = scmp.ne.s32.totalorder %s276, %s277
      %p289 = scmp.eq.s32.totalorder %s36, 1
      %p290 = por %p288, %p289
      %p292 = scmp.ne.s32.totalorder %s277, %s291
      %p293 = scmp.eq.s32.totalorder %s36, 0
      %p294 = por %p292, %p293
      %s296 = sadd.s32 %s295, 1
      %p299 = scmp.eq.s32.totalorder %s30, 1
      %p300 = scmp.ne.s32.totalorder %s295, %s297
      %p301 = scmp.eq.s32.totalorder %s30, 0
      %p302 = por %p300, %p301
      %p303 = scmp.ne.s32.totalorder %s295, %s297
      %p304 = scmp.eq.s32.totalorder %s35, 1
      %p305 = por %p303, %p304
      %p306 = scmp.ne.s32.totalorder %s297, %s298
      %p307 = scmp.eq.s32.totalorder %s35, 0
      %p308 = por %p306, %p307
      %p309 = scmp.ne.s32.totalorder %s297, %s298
      %p310 = scmp.eq.s32.totalorder %s36, 1
      %p311 = por %p309, %p310
      %p313 = scmp.ne.s32.totalorder %s298, %s312
      %p314 = scmp.eq.s32.totalorder %s36, 0
      %p315 = por %p313, %p314
      %s317 = sadd.s32 %s316, 1
      %p320 = scmp.eq.s32.totalorder %s30, 1
      %p321 = scmp.ne.s32.totalorder %s316, %s318
      %p322 = scmp.eq.s32.totalorder %s30, 0
      %p323 = por %p321, %p322
      %p324 = scmp.ne.s32.totalorder %s316, %s318
      %p325 = scmp.eq.s32.totalorder %s35, 1
      %p326 = por %p324, %p325
      %p327 = scmp.ne.s32.totalorder %s318, %s319
      %p328 = scmp.eq.s32.totalorder %s35, 0
      %p329 = por %p327, %p328
      %p330 = scmp.ne.s32.totalorder %s318, %s319
      %p331 = scmp.eq.s32.totalorder %s36, 1
      %p332 = por %p330, %p331
      %p334 = scmp.ne.s32.totalorder %s319, %s333
      %p335 = scmp.eq.s32.totalorder %s36, 0
      %p336 = por %p334, %p335
      %s338 = sadd.s32 %s337, 1
      %p341 = scmp.eq.s32.totalorder %s30, 1
      %p342 = scmp.ne.s32.totalorder %s337, %s339
      %p343 = scmp.eq.s32.totalorder %s30, 0
      %p344 = por %p342, %p343
      %p345 = scmp.ne.s32.totalorder %s337, %s339
      %p346 = scmp.eq.s32.totalorder %s35, 1
      %p347 = por %p345, %p346
      %p348 = scmp.ne.s32.totalorder %s339, %s340
      %p349 = scmp.eq.s32.totalorder %s35, 0
      %p350 = por %p348, %p349
      %p351 = scmp.ne.s32.totalorder %s339, %s340
      %p352 = scmp.eq.s32.totalorder %s36, 1
      %p353 = por %p351, %p352
      %p355 = scmp.ne.s32.totalorder %s340, %s354
      %p356 = scmp.eq.s32.totalorder %s36, 0
      %p357 = por %p355, %p356
      %s358 = ssub.s32 %s30, %s37
      %p359 = scmp.eq.s32.totalorder %s358, 0
      %s361 = sadd.s32 %s360, 1
      %s362 = scalar_select %p359, %s360, %s361
      %p365 = pneg %p359
      %p366 = scmp.eq.s32.totalorder %s30, 1
      %p367 = por %p365, %p366
      %p368 = scmp.ne.s32.totalorder %s360, %s363
      %p369 = scmp.eq.s32.totalorder %s30, 0
      %p370 = por %p368, %p369
      %p371 = scmp.ne.s32.totalorder %s360, %s363
      %p372 = scmp.eq.s32.totalorder %s35, 1
      %p373 = por %p371, %p372
      %p374 = scmp.ne.s32.totalorder %s363, %s364
      %p375 = scmp.eq.s32.totalorder %s35, 0
      %p376 = por %p374, %p375
      %p377 = scmp.ne.s32.totalorder %s363, %s364
      %p378 = scmp.eq.s32.totalorder %s36, 1
      %p379 = por %p377, %p378
      %p381 = scmp.ne.s32.totalorder %s364, %s380
      %p382 = scmp.eq.s32.totalorder %s36, 0
      %p383 = por %p381, %p382
      %p384 = scmp.le.s32.totalorder 1, %s30
      %p385 = scmp.lt.s32.totalorder %s30, 3
      %p386 = pnand %p384, %p385
      %p387 = pneg %p386
      // Predicated region
      $region9: #{net_forward.1} parent=5 // pred_check
        _
      $region10: #{net_forward.1} parent=5 // pred_check_branch
        %389 = sbr.rel (%p386) target = $region12
      $region11: #{net_forward.1} parent=5 // pred_region
        %s390 = ssub.s32 %s30, 1
        // Predicated region
        $region13: #{net_forward.1} parent=11 // pred_check
          %p391 = pneg %p77
        $region14: #{net_forward.1} parent=11 // pred_check_branch
          %393 = sbr.rel (%p391) target = $region16
        $region15: #{net_forward.1} parent=11 // pred_region
          _
        $region16: #{net_forward.1} parent=11 // pred_fallthru
          _
        // Predicated region
        $region17: #{net_forward.1} parent=11 // pred_check
          %p394 = pneg %p98
        $region18: #{net_forward.1} parent=11 // pred_check_branch
          %396 = sbr.rel (%p394) target = $region20
        $region19: #{net_forward.1} parent=11 // pred_region
          %398 = vsyncadd [#allocation7], 0
          %s400 = sshll.u32 %s2, 4
          %s401 = int_to_ptr.hbm [resolvable:$true] %s400
          %s402 = sshll.u32 [#allocation6], 4
          %s403 = int_to_ptr.vmem [resolvable:$true] %s402
          %405 = dma.hbm_to_vmem [thread:$0]  %s401, 32, %s403, [#allocation7]
        $region20: #{net_forward.1} parent=11 // pred_fallthru
          _
        // Predicated region
        $region21: #{net_forward.1} parent=11 // pred_check
          %p406 = pneg %p119
        $region22: #{net_forward.1} parent=11 // pred_check_branch
          %408 = sbr.rel (%p406) target = $region24
        $region23: #{net_forward.1} parent=11 // pred_region
          %410 = vsyncadd [#allocation7], 0
          %s411 = sshll.u32 %s3, 4
          %s412 = int_to_ptr.hbm [resolvable:$true] %s411
          %s413 = sshll.u32 [#allocation8], 4
          %s414 = int_to_ptr.vmem [resolvable:$true] %s413
          %419 = dma.hbm_to_vmem [thread:$0]  %s412, 9216, %s414, [#allocation7], 256, 256, 16
        $region24: #{net_forward.1} parent=11 // pred_fallthru
          _
        // Predicated region
        $region25: #{net_forward.1} parent=11 // pred_check
          %p420 = pneg %p140
        $region26: #{net_forward.1} parent=11 // pred_check_branch
          %422 = sbr.rel (%p420) target = $region28
        $region27: #{net_forward.1} parent=11 // pred_region
          %424 = vsyncadd [#allocation10], 0
          %s426 = sshll.u32 %s4, 4
          %s427 = int_to_ptr.hbm [resolvable:$true] %s426
          %s428 = sshll.u32 [#allocation9], 4
          %s429 = int_to_ptr.vmem [resolvable:$true] %s428
          %431 = dma.hbm_to_vmem [thread:$0]  %s427, 32, %s429, [#allocation10]
        $region28: #{net_forward.1} parent=11 // pred_fallthru
          _
        // Predicated region
        $region29: #{net_forward.1} parent=11 // pred_check
          %p432 = pneg %p161
        $region30: #{net_forward.1} parent=11 // pred_check_branch
          %434 = sbr.rel (%p432) target = $region32
        $region31: #{net_forward.1} parent=11 // pred_region
          _
        $region32: #{net_forward.1} parent=11 // pred_fallthru
          _
        // Predicated region
        $region33: #{net_forward.1} parent=11 // pred_check
          %p435 = pneg %p182
        $region34: #{net_forward.1} parent=11 // pred_check_branch
          %437 = sbr.rel (%p435) target = $region36
        $region35: #{net_forward.1} parent=11 // pred_region
          _
        $region36: #{net_forward.1} parent=11 // pred_fallthru
          _
        // Predicated region
        $region37: #{net_forward.1} parent=11 // pred_check
          %p438 = pneg %p203
        $region38: #{net_forward.1} parent=11 // pred_check_branch
          %440 = sbr.rel (%p438) target = $region40
        $region39: #{net_forward.1} parent=11 // pred_region
          _
        $region40: #{net_forward.1} parent=11 // pred_fallthru
          _
        // Predicated region
        $region41: #{net_forward.1} parent=11 // pred_check
          %p441 = pneg %p224
        $region42: #{net_forward.1} parent=11 // pred_check_branch
          %443 = sbr.rel (%p441) target = $region44
        $region43: #{net_forward.1} parent=11 // pred_region
          _
        $region44: #{net_forward.1} parent=11 // pred_fallthru
          _
        // Predicated region
        $region45: #{net_forward.1} parent=11 // pred_check
          %p444 = pneg %p245
        $region46: #{net_forward.1} parent=11 // pred_check_branch
          %446 = sbr.rel (%p444) target = $region48
        $region47: #{net_forward.1} parent=11 // pred_region
          %448 = vsyncadd [#allocation10], 0
          %s449 = sshll.u32 %s9, 4
          %s450 = int_to_ptr.hbm [resolvable:$true] %s449
          %s451 = sshll.u32 [#allocation11], 4
          %s452 = int_to_ptr.vmem [resolvable:$true] %s451
          %457 = dma.hbm_to_vmem [thread:$0]  %s450, 9216, %s452, [#allocation10], 128, 128, 8
        $region48: #{net_forward.1} parent=11 // pred_fallthru
          _
        // Predicated region
        $region49: #{net_forward.1} parent=11 // pred_check
          %p458 = pneg %p266
        $region50: #{net_forward.1} parent=11 // pred_check_branch
          %460 = sbr.rel (%p458) target = $region52
        $region51: #{net_forward.1} parent=11 // pred_region
          _
        $region52: #{net_forward.1} parent=11 // pred_fallthru
          _
        // Predicated region
        $region53: #{net_forward.1} parent=11 // pred_check
          %p461 = pneg %p287
        $region54: #{net_forward.1} parent=11 // pred_check_branch
          %463 = sbr.rel (%p461) target = $region56
        $region55: #{net_forward.1} parent=11 // pred_region
          %465 = vsyncadd [#allocation13], 0
          %s466 = sshll.u32 %s11, 4
          %s467 = int_to_ptr.hbm [resolvable:$true] %s466
          %s468 = sshll.u32 [#allocation12], 4
          %s469 = int_to_ptr.vmem [resolvable:$true] %s468
          %474 = dma.hbm_to_vmem [thread:$0]  %s467, 2048, %s469, [#allocation13], 128, 128, 8
        $region56: #{net_forward.1} parent=11 // pred_fallthru
          _
        // Predicated region
        $region57: #{net_forward.1} parent=11 // pred_check
          %p475 = pneg %p308
        $region58: #{net_forward.1} parent=11 // pred_check_branch
          %477 = sbr.rel (%p475) target = $region60
        $region59: #{net_forward.1} parent=11 // pred_region
          _
        $region60: #{net_forward.1} parent=11 // pred_fallthru
          _
        // Predicated region
        $region61: #{net_forward.1} parent=11 // pred_check
          %p478 = pneg %p329
        $region62: #{net_forward.1} parent=11 // pred_check_branch
          %480 = sbr.rel (%p478) target = $region64
        $region63: #{net_forward.1} parent=11 // pred_region
          %482 = vsyncadd [#allocation13], 0
          %s483 = sshll.u32 %s13, 4
          %s484 = int_to_ptr.hbm [resolvable:$true] %s483
          %s485 = sshll.u32 [#allocation14], 4
          %s486 = int_to_ptr.vmem [resolvable:$true] %s485
          %491 = dma.hbm_to_vmem [thread:$0]  %s484, 2048, %s486, [#allocation13], 128, 128, 8
        $region64: #{net_forward.1} parent=11 // pred_fallthru
          _
        // Predicated region
        $region65: #{net_forward.1} parent=11 // pred_check
          %p492 = pneg %p350
        $region66: #{net_forward.1} parent=11 // pred_check_branch
          %494 = sbr.rel (%p492) target = $region68
        $region67: #{net_forward.1} parent=11 // pred_region
          _
        $region68: #{net_forward.1} parent=11 // pred_fallthru
          _
      $region12: #{net_forward.1} parent=5 // pred_fallthru
        _
      %p495 = scmp.lt.s32.totalorder %s30, 2
      // Predicated region
      $region69: #{net_forward.1} parent=5 // pred_check
        %p496 = pneg %p495
      $region70: #{net_forward.1} parent=5 // pred_check_branch
        %498 = sbr.rel (%p496) target = $region72
      $region71: #{net_forward.1} parent=5 // pred_region
        // Predicated region
        $region73: #{net_forward.1} parent=71 // pred_check
          %p499 = pneg %p50
        $region74: #{net_forward.1} parent=71 // pred_check_branch
          %501 = sbr.rel (%p499) target = $region76
        $region75: #{net_forward.1} parent=71 // pred_region
          %s502 = sand.u32 %s40, 1
          %s503 = scalar_lea.sflag [#allocation4], %s502
          %s504 = sand.u32 %s40, 1
          %s505 = smul.addr %s504, 256
          %s506 = scalar_lea.vmem [#allocation3], %s505
          %s507 = smul.u32 8, %s30
          %509 = vsyncadd %s503, 0
          %s510 = smul.addr %s507, 4
          %s511 = smul.addr %s510, 8
          %s512 = scalar_lea.hbm %s0, %s511
          %s513 = sshll.u32 %s512, 4
          %s514 = int_to_ptr.hbm [resolvable:$true] %s513
          %s515 = sshll.u32 %s506, 4
          %s516 = int_to_ptr.vmem [resolvable:$true] %s515
          %521 = dma.hbm_to_vmem [thread:$0]  %s514, 4096, %s516, %s503, 128, 128, 8
        $region76: #{net_forward.1} parent=71 // pred_fallthru
          _
      $region72: #{net_forward.1} parent=5 // pred_fallthru
        _
      %p522 = scmp.le.s32.totalorder 1, %s30
      %p523 = scmp.lt.s32.totalorder %s30, 3
      %p524 = pnand %p522, %p523
      %p525 = pneg %p524
      // Predicated region
      $region77: #{net_forward.1} parent=5 // pred_check
        _
      $region78: #{net_forward.1} parent=5 // pred_check_branch
        %527 = sbr.rel (%p524) target = $region80
      $region79: #{net_forward.1} parent=5 // pred_region
        %s528 = ssub.s32 %s30, 1
        %s529 = sand.u32 %s43, 1
        %s530 = scalar_lea.sflag [#allocation4], %s529
        %s531 = sand.u32 %s43, 1
        %s532 = smul.addr %s531, 256
        %s533 = scalar_lea.vmem [#allocation3], %s532
        // Predicated region
        $region81: #{net_forward.1} parent=79 // pred_check
          %p534 = pneg %p56
        $region82: #{net_forward.1} parent=79 // pred_check_branch
          %536 = sbr.rel (%p534) target = $region84
        $region83: #{net_forward.1} parent=79 // pred_region
          %538 = dma.done %s530, 4096
        $region84: #{net_forward.1} parent=79 // pred_fallthru
          _
        // Predicated region
        $region85: #{net_forward.1} parent=79 // pred_check
          %p539 = pneg %p98
        $region86: #{net_forward.1} parent=79 // pred_check_branch
          %541 = sbr.rel (%p539) target = $region88
        $region87: #{net_forward.1} parent=79 // pred_region
          %543 = dma.done [#allocation7], 32
        $region88: #{net_forward.1} parent=79 // pred_fallthru
          _
        // Predicated region
        $region89: #{net_forward.1} parent=79 // pred_check
          %p544 = pneg %p119
        $region90: #{net_forward.1} parent=79 // pred_check_branch
          %546 = sbr.rel (%p544) target = $region92
        $region91: #{net_forward.1} parent=79 // pred_region
          %548 = dma.done [#allocation7], 9216
        $region92: #{net_forward.1} parent=79 // pred_fallthru
          _
        // Predicated region
        $region93: #{net_forward.1} parent=79 // pred_check
          %p549 = pneg %p140
        $region94: #{net_forward.1} parent=79 // pred_check_branch
          %551 = sbr.rel (%p549) target = $region96
        $region95: #{net_forward.1} parent=79 // pred_region
          %553 = dma.done [#allocation10], 32
        $region96: #{net_forward.1} parent=79 // pred_fallthru
          _
        // Predicated region
        $region97: #{net_forward.1} parent=79 // pred_check
          %p554 = pneg %p245
        $region98: #{net_forward.1} parent=79 // pred_check_branch
          %556 = sbr.rel (%p554) target = $region100
        $region99: #{net_forward.1} parent=79 // pred_region
          %558 = dma.done [#allocation10], 9216
        $region100: #{net_forward.1} parent=79 // pred_fallthru
          _
        // Predicated region
        $region101: #{net_forward.1} parent=79 // pred_check
          %p559 = pneg %p287
        $region102: #{net_forward.1} parent=79 // pred_check_branch
          %561 = sbr.rel (%p559) target = $region104
        $region103: #{net_forward.1} parent=79 // pred_region
          %563 = dma.done [#allocation13], 2048
        $region104: #{net_forward.1} parent=79 // pred_fallthru
          _
        // Predicated region
        $region105: #{net_forward.1} parent=79 // pred_check
          %p564 = pneg %p329
        $region106: #{net_forward.1} parent=79 // pred_check_branch
          %566 = sbr.rel (%p564) target = $region108
        $region107: #{net_forward.1} parent=79 // pred_region
          %568 = dma.done [#allocation13], 2048
        $region108: #{net_forward.1} parent=79 // pred_fallthru
          _
        %s569 = sand.u32 %s43, 1
        %s570 = scalar_lea.sflag [#allocation4], %s569
        %s571 = sand.u32 %s43, 1
        %s572 = smul.addr %s571, 256
        %s573 = scalar_lea.vmem [#allocation3], %s572
        %p574 = pneg %p56
        %p575 = pneg %p53
        %p576 = pneg %p77
        %p577 = pneg %p74
        %p578 = pneg %p98
        %p579 = pneg %p95
        %p580 = pneg %p119
        %p581 = pneg %p116
        %p582 = pneg %p140
        %p583 = pneg %p137
        %p584 = pneg %p161
        %p585 = pneg %p158
        %p586 = pneg %p182
        %p587 = pneg %p179
        %p588 = pneg %p203
        %p589 = pneg %p200
        %p590 = pneg %p224
        %p591 = pneg %p221
        %p592 = pneg %p245
        %p593 = pneg %p242
        %p594 = pneg %p266
        %p595 = pneg %p263
        %p596 = pneg %p287
        %p597 = pneg %p284
        %p598 = pneg %p308
        %p599 = pneg %p305
        %p600 = pneg %p329
        %p601 = pneg %p326
        %p602 = pneg %p350
        %p603 = pneg %p347
        %p604 = pneg %p376
        %p605 = pneg %p373
        %s606 = sand.u32 %s363, 1
        %s607 = scalar_lea.sflag [#allocation5], %s606
        %s608 = sand.u32 %s363, 1
        %s609 = smul.addr %s608, 8
        %s610 = scalar_lea.vmem [#allocation15], %s609
        %s611 = smul.u32 8, %s35
        %v612 = vld [vmem:[%s533] sm:$0xff]
        %v613 = vld [vmem:[%s533 + $0x8] sm:$0xff]
        %v614 = vld [vmem:[%s533 + $0x10] sm:$0xff]
        %v615 = vld [vmem:[%s533 + $0x18] sm:$0xff]
        %v616 = vld [vmem:[%s1] sm:$0xff]
        %v617 = vld [vmem:[%s1 + $0x8] sm:$0xff]
        %v618 = vld [vmem:[%s1 + $0x10] sm:$0xff]
        %v619 = vld [vmem:[%s1 + $0x18] sm:$0xff]
        %v620 = vld [vmem:[%s1 + $0x20] sm:$0xff]
        %v621 = vld [vmem:[%s1 + $0x28] sm:$0xff]
        %v622 = vld [vmem:[%s1 + $0x30] sm:$0xff]
        %v623 = vld [vmem:[%s1 + $0x38] sm:$0xff]
        %s624 = scalar_lea.vmem %s1, 64
        %v625 = vld [vmem:[%s624] sm:$0xff]
        %v626 = vld [vmem:[%s624 + $0x8] sm:$0xff]
        %v627 = vld [vmem:[%s624 + $0x10] sm:$0xff]
        %v628 = vld [vmem:[%s624 + $0x18] sm:$0xff]
        %v629 = vld [vmem:[%s624 + $0x20] sm:$0xff]
        %v630 = vld [vmem:[%s624 + $0x28] sm:$0xff]
        %v631 = vld [vmem:[%s624 + $0x30] sm:$0xff]
        %v632 = vld [vmem:[%s624 + $0x38] sm:$0xff]
        %vm637 = vcmask 1046528
        %v638 = vrot.slane %v612, 1
        %v639 = vrot.slane %v613, 1
        %v640 = vsel %vm637, %v638, %v639
        %v641 = vrot.slane %v614, 1
        %v642 = vsel %vm637, %v639, %v641
        %v643 = vrot.slane %v615, 1
        %v644 = vsel %vm637, %v641, %v643
        %vm645 = vcmask 261120
        %v646 = vsel %vm645, %v640, 0
        %v648 = vsel %vm645, %v642, 0
        %v650 = vsel %vm645, %v644, 0
        %v652 = vsel %vm645, %v643, 0
        %654 = vmatpush.msra.mxu0 0.0
        %655 = vmatpush.msra.mxu0 0.0
        %656 = vmatpush.msra.mxu0 0.0
        %657 = vmatpush.msra.mxu0 0.0
        %658 = vmatpush.msra.mxu0 0.0
        %659 = vmatpush.msra.mxu0 0.0
        %660 = vmatpush.msra.mxu0 0.0
        %661 = vmatpush.msra.mxu0 0.0
        %662 = vmatpush.msra.mxu0 0.0
        %663 = vmatpush.msra.mxu0 0.0
        %664 = vmatpush.msra.mxu0 0.0
        %665 = vmatpush.msra.mxu0 0.0
        %666 = vmatpush.msra.mxu0 %v631
        %667 = vmatpush.msra.mxu0 %v629
        %668 = vmatpush.msra.mxu0 %v627
        %669 = vmatpush.msra.mxu0 %v625
        %670 = vmatmul.f32.gmra.mxu0 %v646
        %v671 = vpop.f32.mrf.mxu0
        %v672 = vadd.f32 0.0, %v671
        %673 = vmatmul.f32.gmra.mxu0 %v648
        %v674 = vpop.f32.mrf.mxu0
        %v675 = vadd.f32 0.0, %v674
        %676 = vmatmul.f32.gmra.mxu0 %v650
        %v677 = vpop.f32.mrf.mxu0
        %v678 = vadd.f32 0.0, %v677
        %679 = vmatmul.f32.gmra.mxu0 %v652
        %v680 = vpop.f32.mrf.mxu0
        %v681 = vadd.f32 0.0, %v680
        %682 = vdwg.mxu0
        %683 = vmatpush.msra.mxu0 0.0
        %684 = vmatpush.msra.mxu0 0.0
        %685 = vmatpush.msra.mxu0 0.0
        %686 = vmatpush.msra.mxu0 0.0
        %687 = vmatpush.msra.mxu0 0.0
        %688 = vmatpush.msra.mxu0 0.0
        %689 = vmatpush.msra.mxu0 0.0
        %690 = vmatpush.msra.mxu0 0.0
        %691 = vmatpush.msra.mxu0 0.0
        %692 = vmatpush.msra.mxu0 0.0
        %693 = vmatpush.msra.mxu0 0.0
        %694 = vmatpush.msra.mxu0 0.0
        %695 = vmatpush.msra.mxu0 %v632
        %696 = vmatpush.msra.mxu0 %v630
        %697 = vmatpush.msra.mxu0 %v628
        %698 = vmatpush.msra.mxu0 %v626
        %699 = vmatmul.f32.gmra.mxu0 %v646
        %v700 = vpop.f32.mrf.mxu0
        %v701 = vadd.f32 0.0, %v700
        %702 = vmatmul.f32.gmra.mxu0 %v648
        %v703 = vpop.f32.mrf.mxu0
        %v704 = vadd.f32 0.0, %v703
        %705 = vmatmul.f32.gmra.mxu0 %v650
        %v706 = vpop.f32.mrf.mxu0
        %v707 = vadd.f32 0.0, %v706
        %708 = vmatmul.f32.gmra.mxu0 %v652
        %v709 = vpop.f32.mrf.mxu0
        %v710 = vadd.f32 0.0, %v709
        %711 = vdwg.mxu0
        %v712 = vsel %vm645, %v612, 0
        %v714 = vsel %vm645, %v613, 0
        %v716 = vsel %vm645, %v614, 0
        %v718 = vsel %vm645, %v615, 0
        %720 = vmatpush.msra.mxu0 0.0
        %721 = vmatpush.msra.mxu0 0.0
        %722 = vmatpush.msra.mxu0 0.0
        %723 = vmatpush.msra.mxu0 0.0
        %724 = vmatpush.msra.mxu0 0.0
        %725 = vmatpush.msra.mxu0 0.0
        %726 = vmatpush.msra.mxu0 0.0
        %727 = vmatpush.msra.mxu0 0.0
        %728 = vmatpush.msra.mxu0 0.0
        %729 = vmatpush.msra.mxu0 0.0
        %730 = vmatpush.msra.mxu0 0.0
        %731 = vmatpush.msra.mxu0 0.0
        %732 = vmatpush.msra.mxu0 %v622
        %733 = vmatpush.msra.mxu0 %v620
        %734 = vmatpush.msra.mxu0 %v618
        %735 = vmatpush.msra.mxu0 %v616
        %736 = vmatmul.f32.gmra.mxu0 %v712
        %v737 = vpop.f32.mrf.mxu0
        %v738 = vadd.f32 %v672, %v737
        %739 = vmatmul.f32.gmra.mxu0 %v714
        %v740 = vpop.f32.mrf.mxu0
        %v741 = vadd.f32 %v675, %v740
        %742 = vmatmul.f32.gmra.mxu0 %v716
        %v743 = vpop.f32.mrf.mxu0
        %v744 = vadd.f32 %v678, %v743
        %745 = vmatmul.f32.gmra.mxu0 %v718
        %v746 = vpop.f32.mrf.mxu0
        %v747 = vadd.f32 %v681, %v746
        %748 = vdwg.mxu0
        %749 = vmatpush.msra.mxu0 0.0
        %750 = vmatpush.msra.mxu0 0.0
        %751 = vmatpush.msra.mxu0 0.0
        %752 = vmatpush.msra.mxu0 0.0
        %753 = vmatpush.msra.mxu0 0.0
        %754 = vmatpush.msra.mxu0 0.0
        %755 = vmatpush.msra.mxu0 0.0
        %756 = vmatpush.msra.mxu0 0.0
        %757 = vmatpush.msra.mxu0 0.0
        %758 = vmatpush.msra.mxu0 0.0
        %759 = vmatpush.msra.mxu0 0.0
        %760 = vmatpush.msra.mxu0 0.0
        %761 = vmatpush.msra.mxu0 %v623
        %762 = vmatpush.msra.mxu0 %v621
        %763 = vmatpush.msra.mxu0 %v619
        %764 = vmatpush.msra.mxu0 %v617
        %765 = vmatmul.f32.gmra.mxu0 %v712
        %v766 = vpop.f32.mrf.mxu0
        %v767 = vadd.f32 %v701, %v766
        %768 = vmatmul.f32.gmra.mxu0 %v714
        %v769 = vpop.f32.mrf.mxu0
        %v770 = vadd.f32 %v704, %v769
        %771 = vmatmul.f32.gmra.mxu0 %v716
        %v772 = vpop.f32.mrf.mxu0
        %v773 = vadd.f32 %v707, %v772
        %774 = vmatmul.f32.gmra.mxu0 %v718
        %v775 = vpop.f32.mrf.mxu0
        %v776 = vadd.f32 %v710, %v775
        %777 = vdwg.mxu0
        %s778 = scalar_lea.vmem %s1, 128
        %v779 = vld [vmem:[%s778] sm:$0xff]
        %v780 = vld [vmem:[%s778 + $0x8] sm:$0xff]
        %v781 = vld [vmem:[%s778 + $0x10] sm:$0xff]
        %v782 = vld [vmem:[%s778 + $0x18] sm:$0xff]
        %v783 = vld [vmem:[%s778 + $0x20] sm:$0xff]
        %v784 = vld [vmem:[%s778 + $0x28] sm:$0xff]
        %v785 = vld [vmem:[%s778 + $0x30] sm:$0xff]
        %v786 = vld [vmem:[%s778 + $0x38] sm:$0xff]
        %vm787 = vcmask 1045504
        %v788 = vrot.slane %v612, 2
        %v789 = vrot.slane %v613, 2
        %v790 = vsel %vm787, %v788, %v789
        %v791 = vrot.slane %v614, 2
        %v792 = vsel %vm787, %v789, %v791
        %v793 = vrot.slane %v615, 2
        %v794 = vsel %vm787, %v791, %v793
        %v795 = vsel %vm645, %v790, 0
        %v797 = vsel %vm645, %v792, 0
        %v799 = vsel %vm645, %v794, 0
        %v801 = vsel %vm645, %v793, 0
        %803 = vmatpush.msra.mxu0 0.0
        %804 = vmatpush.msra.mxu0 0.0
        %805 = vmatpush.msra.mxu0 0.0
        %806 = vmatpush.msra.mxu0 0.0
        %807 = vmatpush.msra.mxu0 0.0
        %808 = vmatpush.msra.mxu0 0.0
        %809 = vmatpush.msra.mxu0 0.0
        %810 = vmatpush.msra.mxu0 0.0
        %811 = vmatpush.msra.mxu0 0.0
        %812 = vmatpush.msra.mxu0 0.0
        %813 = vmatpush.msra.mxu0 0.0
        %814 = vmatpush.msra.mxu0 0.0
        %815 = vmatpush.msra.mxu0 %v785
        %816 = vmatpush.msra.mxu0 %v783
        %817 = vmatpush.msra.mxu0 %v781
        %818 = vmatpush.msra.mxu0 %v779
        %819 = vmatmul.f32.gmra.mxu0 %v795
        %v820 = vpop.f32.mrf.mxu0
        %v821 = vadd.f32 0.0, %v820
        %822 = vmatmul.f32.gmra.mxu0 %v797
        %v823 = vpop.f32.mrf.mxu0
        %v824 = vadd.f32 0.0, %v823
        %825 = vmatmul.f32.gmra.mxu0 %v799
        %v826 = vpop.f32.mrf.mxu0
        %v827 = vadd.f32 0.0, %v826
        %828 = vmatmul.f32.gmra.mxu0 %v801
        %v829 = vpop.f32.mrf.mxu0
        %v830 = vadd.f32 0.0, %v829
        %831 = vdwg.mxu0
        %832 = vmatpush.msra.mxu0 0.0
        %833 = vmatpush.msra.mxu0 0.0
        %834 = vmatpush.msra.mxu0 0.0
        %835 = vmatpush.msra.mxu0 0.0
        %836 = vmatpush.msra.mxu0 0.0
        %837 = vmatpush.msra.mxu0 0.0
        %838 = vmatpush.msra.mxu0 0.0
        %839 = vmatpush.msra.mxu0 0.0
        %840 = vmatpush.msra.mxu0 0.0
        %841 = vmatpush.msra.mxu0 0.0
        %842 = vmatpush.msra.mxu0 0.0
        %843 = vmatpush.msra.mxu0 0.0
        %844 = vmatpush.msra.mxu0 %v786
        %845 = vmatpush.msra.mxu0 %v784
        %846 = vmatpush.msra.mxu0 %v782
        %847 = vmatpush.msra.mxu0 %v780
        %848 = vmatmul.f32.gmra.mxu0 %v795
        %v849 = vpop.f32.mrf.mxu0
        %v850 = vadd.f32 0.0, %v849
        %851 = vmatmul.f32.gmra.mxu0 %v797
        %v852 = vpop.f32.mrf.mxu0
        %v853 = vadd.f32 0.0, %v852
        %854 = vmatmul.f32.gmra.mxu0 %v799
        %v855 = vpop.f32.mrf.mxu0
        %v856 = vadd.f32 0.0, %v855
        %857 = vmatmul.f32.gmra.mxu0 %v801
        %v858 = vpop.f32.mrf.mxu0
        %v859 = vadd.f32 0.0, %v858
        %860 = vdwg.mxu0
        %v861 = vadd.f32 %v738, %v821
        %v862 = vadd.f32 %v767, %v850
        %v863 = vadd.f32 %v741, %v824
        %v864 = vadd.f32 %v770, %v853
        %v865 = vadd.f32 %v744, %v827
        %v866 = vadd.f32 %v773, %v856
        %v867 = vadd.f32 %v747, %v830
        %v868 = vadd.f32 %v776, %v859
        %v869 = vld [vmem:[#allocation6] sm:$0x3]
        %v871 = vperm.slane %v869, 0
        %v872 = vperm.slane %v869, 1
        %v875 = vadd.f32 %v861, %v871
        %v876 = vadd.f32 %v862, %v872
        %v877 = vadd.f32 %v863, %v871
        %v878 = vadd.f32 %v864, %v872
        %v879 = vadd.f32 %v865, %v871
        %v880 = vadd.f32 %v866, %v872
        %v881 = vadd.f32 %v867, %v871
        %v882 = vadd.f32 %v868, %v872
        %v883 = vmax.f32 %v875, 0.0
        %v884 = vmax.f32 %v876, 0.0
        %v885 = vmax.f32 %v877, 0.0
        %v886 = vmax.f32 %v878, 0.0
        %v887 = vmax.f32 %v879, 0.0
        %v888 = vmax.f32 %v880, 0.0
        %v889 = vmax.f32 %v881, 0.0
        %v890 = vmax.f32 %v882, 0.0
        %v899 = vrot.slane %v883, 1
        %v900 = vrot.slane %v885, 1
        %v901 = vsel %vm637, %v899, %v900
        %v902 = vrot.slane %v884, 1
        %v903 = vrot.slane %v886, 1
        %v904 = vsel %vm637, %v902, %v903
        %v905 = vrot.slane %v887, 1
        %v906 = vsel %vm637, %v900, %v905
        %v907 = vrot.slane %v888, 1
        %v908 = vsel %vm637, %v903, %v907
        %v909 = vrot.slane %v889, 1
        %v910 = vsel %vm637, %v905, %v909
        %v911 = vrot.slane %v890, 1
        %v912 = vsel %vm637, %v907, %v911
        %v921 = vmax.f32 %v883, %v901
        %v922 = vmax.f32 %v884, %v904
        %v923 = vmax.f32 %v885, %v906
        %v924 = vmax.f32 %v886, %v908
        %v925 = vmax.f32 %v887, %v910
        %v926 = vmax.f32 %v888, %v912
        %v927 = vmax.f32 %v889, %v909
        %v928 = vmax.f32 %v890, %v911
        %v929 = vld [vmem:[%s5] sm:$0xff]
        %v930 = vld [vmem:[%s5 + $0x8] sm:$0x7f]
        %vm931 = vcmask 236544
        %v933 = vsel %vm931, %v929, 0
        %v936 = vsel %vm931, %v930, 0
        %vm938 = vcmask 1044480
        %v940 = vsel %vm938, %v927, 0
        %v943 = vsel %vm938, %v928, 0
        %945 = vmatpush.msra.mxu0 0.0
        %946 = vmatpush.msra.mxu0 0.0
        %947 = vmatpush.msra.mxu0 0.0
        %948 = vmatpush.msra.mxu0 0.0
        %949 = vmatpush.msra.mxu0 0.0
        %950 = vmatpush.msra.mxu0 0.0
        %951 = vmatpush.msra.mxu0 0.0
        %952 = vmatpush.msra.mxu0 0.0
        %953 = vmatpush.msra.mxu0 0.0
        %954 = vmatpush.msra.mxu0 0.0
        %955 = vmatpush.msra.mxu0 0.0
        %956 = vmatpush.msra.mxu0 0.0
        %957 = vmatpush.msra.mxu0 %v940
        %958 = vmatpush.msra.mxu0 %v925
        %959 = vmatpush.msra.mxu0 %v923
        %960 = vmatpush.msra.mxu0 %v921
        %961 = vmatmul.f32.gmra.mxu0 %v933
        %v962 = vpop.f32.mrf.mxu0
        %v963 = vadd.f32 0.0, %v962
        %964 = vmatmul.f32.gmra.mxu0 %v936
        %v965 = vpop.f32.mrf.mxu0
        %v966 = vadd.f32 0.0, %v965
        %967 = vdwg.mxu0
        %968 = vmatpush.msra.mxu0 0.0
        %969 = vmatpush.msra.mxu0 0.0
        %970 = vmatpush.msra.mxu0 0.0
        %971 = vmatpush.msra.mxu0 0.0
        %972 = vmatpush.msra.mxu0 0.0
        %973 = vmatpush.msra.mxu0 0.0
        %974 = vmatpush.msra.mxu0 0.0
        %975 = vmatpush.msra.mxu0 0.0
        %976 = vmatpush.msra.mxu0 0.0
        %977 = vmatpush.msra.mxu0 0.0
        %978 = vmatpush.msra.mxu0 0.0
        %979 = vmatpush.msra.mxu0 0.0
        %980 = vmatpush.msra.mxu0 %v943
        %981 = vmatpush.msra.mxu0 %v926
        %982 = vmatpush.msra.mxu0 %v924
        %983 = vmatpush.msra.mxu0 %v922
        %984 = vmatmul.f32.gmra.mxu0 %v933
        %v985 = vpop.f32.mrf.mxu0
        %v986 = vadd.f32 0.0, %v985
        %987 = vmatmul.f32.gmra.mxu0 %v936
        %v988 = vpop.f32.mrf.mxu0
        %v989 = vadd.f32 0.0, %v988
        %990 = vdwg.mxu0
        %995 = vrot.lane.b32.xlu0 %v963, 127
        %v996 = vpop.permute.xlu0 %995
        %997 = vrot.lane.b32.xlu0 %v986, 127
        %v998 = vpop.permute.xlu0 %997
        %999 = vrot.lane.b32.xlu0 %v966, 127
        %v1000 = vpop.permute.xlu0 %999
        %1001 = vrot.lane.b32.xlu0 %v989, 127
        %v1002 = vpop.permute.xlu0 %1001
        %vm1003 = vcmask 1039360
        %v1004 = vsel %vm1003, %v996, %v998
        %v1005 = vsel %vm1003, %v1000, %v1002
        %v1010 = vmax.f32 %v963, %v1004
        %v1011 = vmax.f32 %v986, %v998
        %v1012 = vmax.f32 %v966, %v1005
        %v1013 = vmax.f32 %v989, %v1002
        %v1014 = vld [vmem:[%s6] sm:$0xff]
        %v1015 = vld [vmem:[%s6 + $0x8] sm:$0xff]
        %v1016 = vld [vmem:[%s6 + $0x10] sm:$0xff]
        %v1017 = vld [vmem:[%s6 + $0x18] sm:$0xff]
        %v1018 = vld [vmem:[%s6 + $0x20] sm:$0xff]
        %v1019 = vld [vmem:[%s6 + $0x28] sm:$0xff]
        %v1020 = vld [vmem:[%s6 + $0x30] sm:$0xff]
        %v1021 = vld [vmem:[%s6 + $0x38] sm:$0xff]
        %v1022 = vld [vmem:[%s6 + $0x40] sm:$0xff]
        %v1023 = vld [vmem:[%s6 + $0x48] sm:$0xff]
        %v1024 = vld [vmem:[%s6 + $0x50] sm:$0xff]
        %v1025 = vld [vmem:[%s6 + $0x58] sm:$0xff]
        %v1026 = vld [vmem:[%s6 + $0x60] sm:$0xff]
        %v1027 = vld [vmem:[%s6 + $0x68] sm:$0xff]
        %v1028 = vld [vmem:[%s6 + $0x70] sm:$0xff]
        %v1029 = vld [vmem:[%s6 + $0x78] sm:$0xff]
        %v1030 = vld [vmem:[%s6 + $0x80] sm:$0xff]
        %v1031 = vld [vmem:[%s6 + $0x88] sm:$0xff]
        %v1032 = vld [vmem:[%s6 + $0x90] sm:$0xff]
        %v1033 = vld [vmem:[%s6 + $0x98] sm:$0xff]
        %v1034 = vld [vmem:[%s6 + $0xa0] sm:$0xff]
        %v1035 = vld [vmem:[%s6 + $0xa8] sm:$0xff]
        %v1036 = vld [vmem:[%s6 + $0xb0] sm:$0x7]
        %vm1037 = vcmask 416768
        %v1039 = vsel %vm1037, %v1011, 0
        %v1042 = vsel %vm1037, %v1013, 0
        %vm1044 = vcmask 1042432
        %v1046 = vsel %vm1044, %v1036, 0
        %1048 = vmatpush.msra.mxu0 %v1029
        %1049 = vmatpush.msra.mxu0 %v1028
        %1050 = vmatpush.msra.mxu0 %v1027
        %1051 = vmatpush.msra.mxu0 %v1026
        %1052 = vmatpush.msra.mxu0 %v1025
        %1053 = vmatpush.msra.mxu0 %v1024
        %1054 = vmatpush.msra.mxu0 %v1023
        %1055 = vmatpush.msra.mxu0 %v1022
        %1056 = vmatpush.msra.mxu0 %v1021
        %1057 = vmatpush.msra.mxu0 %v1020
        %1058 = vmatpush.msra.mxu0 %v1019
        %1059 = vmatpush.msra.mxu0 %v1018
        %1060 = vmatpush.msra.mxu0 %v1017
        %1061 = vmatpush.msra.mxu0 %v1016
        %1062 = vmatpush.msra.mxu0 %v1015
        %1063 = vmatpush.msra.mxu0 %v1014
        %1064 = vmatmul.f32.gmra.mxu0 %v1010
        %v1065 = vpop.f32.mrf.mxu0
        %v1066 = vadd.f32 0.0, %v1065
        %1067 = vmatmul.f32.gmra.mxu0 %v1012
        %v1068 = vpop.f32.mrf.mxu0
        %v1069 = vadd.f32 0.0, %v1068
        %1070 = vdwg.mxu0
        %1071 = vmatpush.msra.mxu0 0.0
        %1072 = vmatpush.msra.mxu0 0.0
        %1073 = vmatpush.msra.mxu0 0.0
        %1074 = vmatpush.msra.mxu0 0.0
        %1075 = vmatpush.msra.mxu0 0.0
        %1076 = vmatpush.msra.mxu0 0.0
        %1077 = vmatpush.msra.mxu0 0.0
        %1078 = vmatpush.msra.mxu0 0.0
        %1079 = vmatpush.msra.mxu0 0.0
        %1080 = vmatpush.msra.mxu0 %v1046
        %1081 = vmatpush.msra.mxu0 %v1035
        %1082 = vmatpush.msra.mxu0 %v1034
        %1083 = vmatpush.msra.mxu0 %v1033
        %1084 = vmatpush.msra.mxu0 %v1032
        %1085 = vmatpush.msra.mxu0 %v1031
        %1086 = vmatpush.msra.mxu0 %v1030
        %1087 = vmatmul.f32.gmra.mxu0 %v1039
        %v1088 = vpop.f32.mrf.mxu0
        %v1089 = vadd.f32 %v1066, %v1088
        %1090 = vmatmul.f32.gmra.mxu0 %v1042
        %v1091 = vpop.f32.mrf.mxu0
        %v1092 = vadd.f32 %v1069, %v1091
        %1093 = vdwg.mxu0
        %v1094 = vld [vmem:[#allocation8] sm:$0xff]
        %v1095 = vld [vmem:[#allocation8 + $0x8] sm:$0xff]
        %v1096 = vld [vmem:[#allocation8 + $0x10] sm:$0xff]
        %v1097 = vld [vmem:[#allocation8 + $0x18] sm:$0xff]
        %v1098 = vld [vmem:[#allocation8 + $0x20] sm:$0xff]
        %v1099 = vld [vmem:[#allocation8 + $0x28] sm:$0xff]
        %v1100 = vld [vmem:[#allocation8 + $0x30] sm:$0xff]
        %v1101 = vld [vmem:[#allocation8 + $0x38] sm:$0xff]
        %v1102 = vld [vmem:[#allocation8 + $0x40] sm:$0xff]
        %v1103 = vld [vmem:[#allocation8 + $0x48] sm:$0xff]
        %v1104 = vld [vmem:[#allocation8 + $0x50] sm:$0xff]
        %v1105 = vld [vmem:[#allocation8 + $0x58] sm:$0xff]
        %v1106 = vld [vmem:[#allocation8 + $0x60] sm:$0xff]
        %v1107 = vld [vmem:[#allocation8 + $0x68] sm:$0xff]
        %v1108 = vld [vmem:[#allocation8 + $0x70] sm:$0xff]
        %v1109 = vld [vmem:[#allocation8 + $0x78] sm:$0xff]
        %v1110 = vld [vmem:[#allocation8 + $0x80] sm:$0xff]
        %v1111 = vld [vmem:[#allocation8 + $0x88] sm:$0xff]
        %v1112 = vld [vmem:[#allocation8 + $0x90] sm:$0xff]
        %v1113 = vld [vmem:[#allocation8 + $0x98] sm:$0xff]
        %v1114 = vld [vmem:[#allocation8 + $0xa0] sm:$0xff]
        %v1115 = vld [vmem:[#allocation8 + $0xa8] sm:$0xff]
        %v1116 = vld [vmem:[#allocation8 + $0xb0] sm:$0x3]
        %v1117 = vld [vmem:[#allocation8 + $0xb8] sm:$0x3]
        %s1118 = scalar_lea.vmem [#allocation8], 192
        %v1119 = vld [vmem:[%s1118] sm:$0xff]
        %v1120 = vld [vmem:[%s1118 + $0x8] sm:$0xff]
        %v1121 = vld [vmem:[%s1118 + $0x10] sm:$0xff]
        %v1122 = vld [vmem:[%s1118 + $0x18] sm:$0xff]
        %v1123 = vld [vmem:[%s1118 + $0x20] sm:$0xff]
        %v1124 = vld [vmem:[%s1118 + $0x28] sm:$0xff]
        %v1125 = vld [vmem:[%s1118 + $0x30] sm:$0xff]
        %v1126 = vld [vmem:[%s1118 + $0x38] sm:$0xff]
        %v1127 = vld [vmem:[%s1118 + $0x40] sm:$0xff]
        %v1128 = vld [vmem:[%s1118 + $0x48] sm:$0xff]
        %v1129 = vld [vmem:[%s1118 + $0x50] sm:$0xff]
        %v1130 = vld [vmem:[%s1118 + $0x58] sm:$0xff]
        %v1131 = vld [vmem:[%s1118 + $0x60] sm:$0xff]
        %v1132 = vld [vmem:[%s1118 + $0x68] sm:$0xff]
        %v1133 = vld [vmem:[%s1118 + $0x70] sm:$0xff]
        %v1134 = vld [vmem:[%s1118 + $0x78] sm:$0xff]
        %v1135 = vld [vmem:[%s1118 + $0x80] sm:$0xff]
        %v1136 = vld [vmem:[%s1118 + $0x88] sm:$0xff]
        %v1137 = vld [vmem:[%s1118 + $0x90] sm:$0xff]
        %v1138 = vld [vmem:[%s1118 + $0x98] sm:$0xff]
        %v1139 = vld [vmem:[%s1118 + $0xa0] sm:$0xff]
        %v1140 = vld [vmem:[%s1118 + $0xa8] sm:$0xff]
        %v1141 = vld [vmem:[%s1118 + $0xb0] sm:$0x3]
        %v1142 = vld [vmem:[%s1118 + $0xb8] sm:$0x3]
        %v1145 = vrot.slane %v1089, 1
        %v1146 = vrot.slane %v1092, 1
        %v1147 = vsel %vm637, %v1145, %v1146
        %vm1148 = vcmask 736256
        %v1149 = vsel %vm1148, %v1147, 0
        %v1151 = vsel %vm1148, %v1146, 0
        %vm1153 = vcmask 1041408
        %v1155 = vsel %vm1153, %v1141, 0
        %v1158 = vsel %vm1153, %v1142, 0
        %1160 = vmatpush.msra.mxu0 0.0
        %1161 = vmatpush.msra.mxu0 0.0
        %1162 = vmatpush.msra.mxu0 0.0
        %1163 = vmatpush.msra.mxu0 0.0
        %1164 = vmatpush.msra.mxu0 %v1155
        %1165 = vmatpush.msra.mxu0 %v1139
        %1166 = vmatpush.msra.mxu0 %v1137
        %1167 = vmatpush.msra.mxu0 %v1135
        %1168 = vmatpush.msra.mxu0 %v1133
        %1169 = vmatpush.msra.mxu0 %v1131
        %1170 = vmatpush.msra.mxu0 %v1129
        %1171 = vmatpush.msra.mxu0 %v1127
        %1172 = vmatpush.msra.mxu0 %v1125
        %1173 = vmatpush.msra.mxu0 %v1123
        %1174 = vmatpush.msra.mxu0 %v1121
        %1175 = vmatpush.msra.mxu0 %v1119
        %1176 = vmatmul.f32.gmra.mxu0 %v1149
        %v1177 = vpop.f32.mrf.mxu0
        %v1178 = vadd.f32 0.0, %v1177
        %1179 = vmatmul.f32.gmra.mxu0 %v1151
        %v1180 = vpop.f32.mrf.mxu0
        %v1181 = vadd.f32 0.0, %v1180
        %1182 = vdwg.mxu0
        %1183 = vmatpush.msra.mxu0 0.0
        %1184 = vmatpush.msra.mxu0 0.0
        %1185 = vmatpush.msra.mxu0 0.0
        %1186 = vmatpush.msra.mxu0 0.0
        %1187 = vmatpush.msra.mxu0 %v1158
        %1188 = vmatpush.msra.mxu0 %v1140
        %1189 = vmatpush.msra.mxu0 %v1138
        %1190 = vmatpush.msra.mxu0 %v1136
        %1191 = vmatpush.msra.mxu0 %v1134
        %1192 = vmatpush.msra.mxu0 %v1132
        %1193 = vmatpush.msra.mxu0 %v1130
        %1194 = vmatpush.msra.mxu0 %v1128
        %1195 = vmatpush.msra.mxu0 %v1126
        %1196 = vmatpush.msra.mxu0 %v1124
        %1197 = vmatpush.msra.mxu0 %v1122
        %1198 = vmatpush.msra.mxu0 %v1120
        %1199 = vmatmul.f32.gmra.mxu0 %v1149
        %v1200 = vpop.f32.mrf.mxu0
        %v1201 = vadd.f32 0.0, %v1200
        %1202 = vmatmul.f32.gmra.mxu0 %v1151
        %v1203 = vpop.f32.mrf.mxu0
        %v1204 = vadd.f32 0.0, %v1203
        %1205 = vdwg.mxu0
        %v1206 = vsel %vm1148, %v1089, 0
        %v1208 = vsel %vm1148, %v1092, 0
        %v1211 = vsel %vm1153, %v1116, 0
        %v1214 = vsel %vm1153, %v1117, 0
        %1216 = vmatpush.msra.mxu0 0.0
        %1217 = vmatpush.msra.mxu0 0.0
        %1218 = vmatpush.msra.mxu0 0.0
        %1219 = vmatpush.msra.mxu0 0.0
        %1220 = vmatpush.msra.mxu0 %v1211
        %1221 = vmatpush.msra.mxu0 %v1114
        %1222 = vmatpush.msra.mxu0 %v1112
        %1223 = vmatpush.msra.mxu0 %v1110
        %1224 = vmatpush.msra.mxu0 %v1108
        %1225 = vmatpush.msra.mxu0 %v1106
        %1226 = vmatpush.msra.mxu0 %v1104
        %1227 = vmatpush.msra.mxu0 %v1102
        %1228 = vmatpush.msra.mxu0 %v1100
        %1229 = vmatpush.msra.mxu0 %v1098
        %1230 = vmatpush.msra.mxu0 %v1096
        %1231 = vmatpush.msra.mxu0 %v1094
        %1232 = vmatmul.f32.gmra.mxu0 %v1206
        %v1233 = vpop.f32.mrf.mxu0
        %v1234 = vadd.f32 %v1178, %v1233
        %1235 = vmatmul.f32.gmra.mxu0 %v1208
        %v1236 = vpop.f32.mrf.mxu0
        %v1237 = vadd.f32 %v1181, %v1236
        %1238 = vdwg.mxu0
        %1239 = vmatpush.msra.mxu0 0.0
        %1240 = vmatpush.msra.mxu0 0.0
        %1241 = vmatpush.msra.mxu0 0.0
        %1242 = vmatpush.msra.mxu0 0.0
        %1243 = vmatpush.msra.mxu0 %v1214
        %1244 = vmatpush.msra.mxu0 %v1115
        %1245 = vmatpush.msra.mxu0 %v1113
        %1246 = vmatpush.msra.mxu0 %v1111
        %1247 = vmatpush.msra.mxu0 %v1109
        %1248 = vmatpush.msra.mxu0 %v1107
        %1249 = vmatpush.msra.mxu0 %v1105
        %1250 = vmatpush.msra.mxu0 %v1103
        %1251 = vmatpush.msra.mxu0 %v1101
        %1252 = vmatpush.msra.mxu0 %v1099
        %1253 = vmatpush.msra.mxu0 %v1097
        %1254 = vmatpush.msra.mxu0 %v1095
        %1255 = vmatmul.f32.gmra.mxu0 %v1206
        %v1256 = vpop.f32.mrf.mxu0
        %v1257 = vadd.f32 %v1201, %v1256
        %1258 = vmatmul.f32.gmra.mxu0 %v1208
        %v1259 = vpop.f32.mrf.mxu0
        %v1260 = vadd.f32 %v1204, %v1259
        %1261 = vdwg.mxu0
        %s1262 = scalar_lea.vmem [#allocation8], 384
        %v1263 = vld [vmem:[%s1262] sm:$0xff]
        %v1264 = vld [vmem:[%s1262 + $0x8] sm:$0xff]
        %v1265 = vld [vmem:[%s1262 + $0x10] sm:$0xff]
        %v1266 = vld [vmem:[%s1262 + $0x18] sm:$0xff]
        %v1267 = vld [vmem:[%s1262 + $0x20] sm:$0xff]
        %v1268 = vld [vmem:[%s1262 + $0x28] sm:$0xff]
        %v1269 = vld [vmem:[%s1262 + $0x30] sm:$0xff]
        %v1270 = vld [vmem:[%s1262 + $0x38] sm:$0xff]
        %v1271 = vld [vmem:[%s1262 + $0x40] sm:$0xff]
        %v1272 = vld [vmem:[%s1262 + $0x48] sm:$0xff]
        %v1273 = vld [vmem:[%s1262 + $0x50] sm:$0xff]
        %v1274 = vld [vmem:[%s1262 + $0x58] sm:$0xff]
        %v1275 = vld [vmem:[%s1262 + $0x60] sm:$0xff]
        %v1276 = vld [vmem:[%s1262 + $0x68] sm:$0xff]
        %v1277 = vld [vmem:[%s1262 + $0x70] sm:$0xff]
        %v1278 = vld [vmem:[%s1262 + $0x78] sm:$0xff]
        %v1279 = vld [vmem:[%s1262 + $0x80] sm:$0xff]
        %v1280 = vld [vmem:[%s1262 + $0x88] sm:$0xff]
        %v1281 = vld [vmem:[%s1262 + $0x90] sm:$0xff]
        %v1282 = vld [vmem:[%s1262 + $0x98] sm:$0xff]
        %v1283 = vld [vmem:[%s1262 + $0xa0] sm:$0xff]
        %v1284 = vld [vmem:[%s1262 + $0xa8] sm:$0xff]
        %v1285 = vld [vmem:[%s1262 + $0xb0] sm:$0x3]
        %v1286 = vld [vmem:[%s1262 + $0xb8] sm:$0x3]
        %v1287 = vrot.slane %v1089, 2
        %v1288 = vrot.slane %v1092, 2
        %v1289 = vsel %vm787, %v1287, %v1288
        %v1290 = vsel %vm1148, %v1289, 0
        %v1292 = vsel %vm1148, %v1288, 0
        %v1295 = vsel %vm1153, %v1285, 0
        %v1298 = vsel %vm1153, %v1286, 0
        %1300 = vmatpush.msra.mxu0 0.0
        %1301 = vmatpush.msra.mxu0 0.0
        %1302 = vmatpush.msra.mxu0 0.0
        %1303 = vmatpush.msra.mxu0 0.0
        %1304 = vmatpush.msra.mxu0 %v1295
        %1305 = vmatpush.msra.mxu0 %v1283
        %1306 = vmatpush.msra.mxu0 %v1281
        %1307 = vmatpush.msra.mxu0 %v1279
        %1308 = vmatpush.msra.mxu0 %v1277
        %1309 = vmatpush.msra.mxu0 %v1275
        %1310 = vmatpush.msra.mxu0 %v1273
        %1311 = vmatpush.msra.mxu0 %v1271
        %1312 = vmatpush.msra.mxu0 %v1269
        %1313 = vmatpush.msra.mxu0 %v1267
        %1314 = vmatpush.msra.mxu0 %v1265
        %1315 = vmatpush.msra.mxu0 %v1263
        %1316 = vmatmul.f32.gmra.mxu0 %v1290
        %v1317 = vpop.f32.mrf.mxu0
        %v1318 = vadd.f32 0.0, %v1317
        %1319 = vmatmul.f32.gmra.mxu0 %v1292
        %v1320 = vpop.f32.mrf.mxu0
        %v1321 = vadd.f32 0.0, %v1320
        %1322 = vdwg.mxu0
        %1323 = vmatpush.msra.mxu0 0.0
        %1324 = vmatpush.msra.mxu0 0.0
        %1325 = vmatpush.msra.mxu0 0.0
        %1326 = vmatpush.msra.mxu0 0.0
        %1327 = vmatpush.msra.mxu0 %v1298
        %1328 = vmatpush.msra.mxu0 %v1284
        %1329 = vmatpush.msra.mxu0 %v1282
        %1330 = vmatpush.msra.mxu0 %v1280
        %1331 = vmatpush.msra.mxu0 %v1278
        %1332 = vmatpush.msra.mxu0 %v1276
        %1333 = vmatpush.msra.mxu0 %v1274
        %1334 = vmatpush.msra.mxu0 %v1272
        %1335 = vmatpush.msra.mxu0 %v1270
        %1336 = vmatpush.msra.mxu0 %v1268
        %1337 = vmatpush.msra.mxu0 %v1266
        %1338 = vmatpush.msra.mxu0 %v1264
        %1339 = vmatmul.f32.gmra.mxu0 %v1290
        %v1340 = vpop.f32.mrf.mxu0
        %v1341 = vadd.f32 0.0, %v1340
        %1342 = vmatmul.f32.gmra.mxu0 %v1292
        %v1343 = vpop.f32.mrf.mxu0
        %v1344 = vadd.f32 0.0, %v1343
        %1345 = vdwg.mxu0
        %v1346 = vadd.f32 %v1234, %v1318
        %v1347 = vadd.f32 %v1257, %v1341
        %v1348 = vadd.f32 %v1237, %v1321
        %v1349 = vadd.f32 %v1260, %v1344
        %v1350 = vld [vmem:[#allocation9] sm:$0x3]
        %v1352 = vperm.slane %v1350, 0
        %v1353 = vperm.slane %v1350, 1
        %v1356 = vadd.f32 %v1346, %v1352
        %v1357 = vadd.f32 %v1347, %v1353
        %v1358 = vadd.f32 %v1348, %v1352
        %v1359 = vadd.f32 %v1349, %v1353
        %v1360 = vmax.f32 %v1356, 0.0
        %v1361 = vmax.f32 %v1357, 0.0
        %v1362 = vmax.f32 %v1358, 0.0
        %v1363 = vmax.f32 %v1359, 0.0
        %v1368 = vrot.slane %v1360, 1
        %v1369 = vrot.slane %v1362, 1
        %v1370 = vsel %vm637, %v1368, %v1369
        %v1371 = vrot.slane %v1361, 1
        %v1372 = vrot.slane %v1363, 1
        %v1373 = vsel %vm637, %v1371, %v1372
        %v1378 = vmax.f32 %v1360, %v1370
        %v1379 = vmax.f32 %v1361, %v1373
        %v1380 = vmax.f32 %v1362, %v1369
        %v1381 = vmax.f32 %v1363, %v1372
        %v1382 = vld [vmem:[%s7] sm:$0x3f]
        %vm1383 = vcmask 97280
        %v1385 = vsel %vm1383, %v1382, 0
        %vm1387 = vcmask 1043456
        %v1389 = vsel %vm1387, %v1380, 0
        %v1392 = vsel %vm1387, %v1381, 0
        %1394 = vmatpush.msra.mxu0 0.0
        %1395 = vmatpush.msra.mxu0 0.0
        %1396 = vmatpush.msra.mxu0 0.0
        %1397 = vmatpush.msra.mxu0 0.0
        %1398 = vmatpush.msra.mxu0 0.0
        %1399 = vmatpush.msra.mxu0 0.0
        %1400 = vmatpush.msra.mxu0 0.0
        %1401 = vmatpush.msra.mxu0 0.0
        %1402 = vmatpush.msra.mxu0 0.0
        %1403 = vmatpush.msra.mxu0 0.0
        %1404 = vmatpush.msra.mxu0 0.0
        %1405 = vmatpush.msra.mxu0 0.0
        %1406 = vmatpush.msra.mxu0 0.0
        %1407 = vmatpush.msra.mxu0 0.0
        %1408 = vmatpush.msra.mxu0 %v1389
        %1409 = vmatpush.msra.mxu0 %v1378
        %1410 = vmatmul.f32.gmra.mxu0 %v1385
        %v1411 = vpop.f32.mrf.mxu0
        %v1412 = vadd.f32 0.0, %v1411
        %1413 = vdwg.mxu0
        %1414 = vmatpush.msra.mxu0 0.0
        %1415 = vmatpush.msra.mxu0 0.0
        %1416 = vmatpush.msra.mxu0 0.0
        %1417 = vmatpush.msra.mxu0 0.0
        %1418 = vmatpush.msra.mxu0 0.0
        %1419 = vmatpush.msra.mxu0 0.0
        %1420 = vmatpush.msra.mxu0 0.0
        %1421 = vmatpush.msra.mxu0 0.0
        %1422 = vmatpush.msra.mxu0 0.0
        %1423 = vmatpush.msra.mxu0 0.0
        %1424 = vmatpush.msra.mxu0 0.0
        %1425 = vmatpush.msra.mxu0 0.0
        %1426 = vmatpush.msra.mxu0 0.0
        %1427 = vmatpush.msra.mxu0 0.0
        %1428 = vmatpush.msra.mxu0 %v1392
        %1429 = vmatpush.msra.mxu0 %v1379
        %1430 = vmatmul.f32.gmra.mxu0 %v1385
        %v1431 = vpop.f32.mrf.mxu0
        %v1432 = vadd.f32 0.0, %v1431
        %1433 = vdwg.mxu0
        %1436 = vrot.lane.b32.xlu0 %v1412, 127
        %v1437 = vpop.permute.xlu0 %1436
        %1438 = vrot.lane.b32.xlu0 %v1432, 127
        %v1439 = vpop.permute.xlu0 %1438
        %v1440 = vsel %vm1003, %v1437, %v1439
        %v1443 = vmax.f32 %v1412, %v1440
        %v1444 = vmax.f32 %v1432, %v1439
        %v1445 = vld [vmem:[%s8] sm:$0xff]
        %v1446 = vld [vmem:[%s8 + $0x8] sm:$0xff]
        %v1447 = vld [vmem:[%s8 + $0x10] sm:$0xff]
        %v1448 = vld [vmem:[%s8 + $0x18] sm:$0xff]
        %v1449 = vld [vmem:[%s8 + $0x20] sm:$0xff]
        %v1450 = vld [vmem:[%s8 + $0x28] sm:$0xff]
        %v1451 = vld [vmem:[%s8 + $0x30] sm:$0xff]
        %v1452 = vld [vmem:[%s8 + $0x38] sm:$0xff]
        %v1453 = vld [vmem:[%s8 + $0x40] sm:$0xff]
        %v1454 = vld [vmem:[%s8 + $0x48] sm:$0xff]
        %v1455 = vld [vmem:[%s8 + $0x50] sm:$0xff]
        %v1456 = vld [vmem:[%s8 + $0x58] sm:$0xff]
        %v1457 = vld [vmem:[%s8 + $0x60] sm:$0xff]
        %v1458 = vld [vmem:[%s8 + $0x68] sm:$0xff]
        %v1459 = vld [vmem:[%s8 + $0x70] sm:$0xff]
        %v1460 = vld [vmem:[%s8 + $0x78] sm:$0xff]
        %v1461 = vld [vmem:[%s8 + $0x80] sm:$0xff]
        %v1462 = vld [vmem:[%s8 + $0x88] sm:$0xff]
        %v1463 = vld [vmem:[%s8 + $0x90] sm:$0xff]
        %v1464 = vld [vmem:[%s8 + $0x98] sm:$0xff]
        %v1465 = vld [vmem:[%s8 + $0xa0] sm:$0xff]
        %v1466 = vld [vmem:[%s8 + $0xa8] sm:$0xff]
        %v1467 = vld [vmem:[%s8 + $0xb0] sm:$0xff]
        %v1468 = vld [vmem:[%s8 + $0xb8] sm:$0xff]
        %v1469 = vld [vmem:[%s8 + $0xc0] sm:$0xff]
        %v1470 = vld [vmem:[%s8 + $0xc8] sm:$0x7f]
        %vm1471 = vcmask 646144
        %v1473 = vsel %vm1471, %v1444, 0
        %v1476 = vsel %vm637, %v1470, 0
        %1478 = vmatpush.msra.mxu0 %v1460
        %1479 = vmatpush.msra.mxu0 %v1459
        %1480 = vmatpush.msra.mxu0 %v1458
        %1481 = vmatpush.msra.mxu0 %v1457
        %1482 = vmatpush.msra.mxu0 %v1456
        %1483 = vmatpush.msra.mxu0 %v1455
        %1484 = vmatpush.msra.mxu0 %v1454
        %1485 = vmatpush.msra.mxu0 %v1453
        %1486 = vmatpush.msra.mxu0 %v1452
        %1487 = vmatpush.msra.mxu0 %v1451
        %1488 = vmatpush.msra.mxu0 %v1450
        %1489 = vmatpush.msra.mxu0 %v1449
        %1490 = vmatpush.msra.mxu0 %v1448
        %1491 = vmatpush.msra.mxu0 %v1447
        %1492 = vmatpush.msra.mxu0 %v1446
        %1493 = vmatpush.msra.mxu0 %v1445
        %1494 = vmatmul.f32.gmra.mxu0 %v1443
        %v1495 = vpop.f32.mrf.mxu0
        %v1496 = vadd.f32 0.0, %v1495
        %1497 = vdwg.mxu0
        %1498 = vmatpush.msra.mxu0 0.0
        %1499 = vmatpush.msra.mxu0 0.0
        %1500 = vmatpush.msra.mxu0 0.0
        %1501 = vmatpush.msra.mxu0 0.0
        %1502 = vmatpush.msra.mxu0 0.0
        %1503 = vmatpush.msra.mxu0 0.0
        %1504 = vmatpush.msra.mxu0 %v1476
        %1505 = vmatpush.msra.mxu0 %v1469
        %1506 = vmatpush.msra.mxu0 %v1468
        %1507 = vmatpush.msra.mxu0 %v1467
        %1508 = vmatpush.msra.mxu0 %v1466
        %1509 = vmatpush.msra.mxu0 %v1465
        %1510 = vmatpush.msra.mxu0 %v1464
        %1511 = vmatpush.msra.mxu0 %v1463
        %1512 = vmatpush.msra.mxu0 %v1462
        %1513 = vmatpush.msra.mxu0 %v1461
        %1514 = vmatmul.f32.gmra.mxu0 %v1473
        %v1515 = vpop.f32.mrf.mxu0
        %v1516 = vadd.f32 %v1496, %v1515
        %1517 = vdwg.mxu0
        %vm1518 = vcmask 778240
        %1519 = vst.msk [vmem:[#allocation2] sm:$0x1] %vm1518, %v1516
        %s1520 = scalar_lea.vmem [#allocation2], 8
        %vm1521 = vcmask 779265
        %1522 = vst.msk [vmem:[%s1520 - $0x1] sm:$0x2] %vm1521, %v1516
        %s1523 = scalar_lea.vmem [#allocation2], 16
        %vm1524 = vcmask 780290
        %1525 = vst.msk [vmem:[%s1523 - $0x2] sm:$0x4] %vm1524, %v1516
        %s1526 = scalar_lea.vmem [#allocation2], 24
        %vm1527 = vcmask 781315
        %1528 = vst.msk [vmem:[%s1526 - $0x3] sm:$0x8] %vm1527, %v1516
        %s1529 = scalar_lea.vmem [#allocation2], 32
        %vm1530 = vcmask 782340
        %1531 = vst.msk [vmem:[%s1529 - $0x4] sm:$0x10] %vm1530, %v1516
        %s1532 = scalar_lea.vmem [#allocation2], 40
        %vm1533 = vcmask 783365
        %1534 = vst.msk [vmem:[%s1532 - $0x5] sm:$0x20] %vm1533, %v1516
        %s1535 = scalar_lea.vmem %s533, 32 [#allocation3]
        %v1536 = vld [vmem:[%s1535] sm:$0xff]
        %v1537 = vld [vmem:[%s1535 + $0x8] sm:$0xff]
        %v1538 = vld [vmem:[%s1535 + $0x10] sm:$0xff]
        %v1539 = vld [vmem:[%s1535 + $0x18] sm:$0xff]
        %v1540 = vld [vmem:[%s1] sm:$0xff]
        %v1541 = vld [vmem:[%s1 + $0x8] sm:$0xff]
        %v1542 = vld [vmem:[%s1 + $0x10] sm:$0xff]
        %v1543 = vld [vmem:[%s1 + $0x18] sm:$0xff]
        %v1544 = vld [vmem:[%s1 + $0x20] sm:$0xff]
        %v1545 = vld [vmem:[%s1 + $0x28] sm:$0xff]
        %v1546 = vld [vmem:[%s1 + $0x30] sm:$0xff]
        %v1547 = vld [vmem:[%s1 + $0x38] sm:$0xff]
        %v1548 = vld [vmem:[%s624] sm:$0xff]
        %v1549 = vld [vmem:[%s624 + $0x8] sm:$0xff]
        %v1550 = vld [vmem:[%s624 + $0x10] sm:$0xff]
        %v1551 = vld [vmem:[%s624 + $0x18] sm:$0xff]
        %v1552 = vld [vmem:[%s624 + $0x20] sm:$0xff]
        %v1553 = vld [vmem:[%s624 + $0x28] sm:$0xff]
        %v1554 = vld [vmem:[%s624 + $0x30] sm:$0xff]
        %v1555 = vld [vmem:[%s624 + $0x38] sm:$0xff]
        %v1560 = vrot.slane %v1536, 1
        %v1561 = vrot.slane %v1537, 1
        %v1562 = vsel %vm637, %v1560, %v1561
        %v1563 = vrot.slane %v1538, 1
        %v1564 = vsel %vm637, %v1561, %v1563
        %v1565 = vrot.slane %v1539, 1
        %v1566 = vsel %vm637, %v1563, %v1565
        %v1567 = vsel %vm645, %v1562, 0
        %v1569 = vsel %vm645, %v1564, 0
        %v1571 = vsel %vm645, %v1566, 0
        %v1573 = vsel %vm645, %v1565, 0
        %1575 = vmatpush.msra.mxu0 0.0
        %1576 = vmatpush.msra.mxu0 0.0
        %1577 = vmatpush.msra.mxu0 0.0
        %1578 = vmatpush.msra.mxu0 0.0
        %1579 = vmatpush.msra.mxu0 0.0
        %1580 = vmatpush.msra.mxu0 0.0
        %1581 = vmatpush.msra.mxu0 0.0
        %1582 = vmatpush.msra.mxu0 0.0
        %1583 = vmatpush.msra.mxu0 0.0
        %1584 = vmatpush.msra.mxu0 0.0
        %1585 = vmatpush.msra.mxu0 0.0
        %1586 = vmatpush.msra.mxu0 0.0
        %1587 = vmatpush.msra.mxu0 %v1554
        %1588 = vmatpush.msra.mxu0 %v1552
        %1589 = vmatpush.msra.mxu0 %v1550
        %1590 = vmatpush.msra.mxu0 %v1548
        %1591 = vmatmul.f32.gmra.mxu0 %v1567
        %v1592 = vpop.f32.mrf.mxu0
        %v1593 = vadd.f32 0.0, %v1592
        %1594 = vmatmul.f32.gmra.mxu0 %v1569
        %v1595 = vpop.f32.mrf.mxu0
        %v1596 = vadd.f32 0.0, %v1595
        %1597 = vmatmul.f32.gmra.mxu0 %v1571
        %v1598 = vpop.f32.mrf.mxu0
        %v1599 = vadd.f32 0.0, %v1598
        %1600 = vmatmul.f32.gmra.mxu0 %v1573
        %v1601 = vpop.f32.mrf.mxu0
        %v1602 = vadd.f32 0.0, %v1601
        %1603 = vdwg.mxu0
        %1604 = vmatpush.msra.mxu0 0.0
        %1605 = vmatpush.msra.mxu0 0.0
        %1606 = vmatpush.msra.mxu0 0.0
        %1607 = vmatpush.msra.mxu0 0.0
        %1608 = vmatpush.msra.mxu0 0.0
        %1609 = vmatpush.msra.mxu0 0.0
        %1610 = vmatpush.msra.mxu0 0.0
        %1611 = vmatpush.msra.mxu0 0.0
        %1612 = vmatpush.msra.mxu0 0.0
        %1613 = vmatpush.msra.mxu0 0.0
        %1614 = vmatpush.msra.mxu0 0.0
        %1615 = vmatpush.msra.mxu0 0.0
        %1616 = vmatpush.msra.mxu0 %v1555
        %1617 = vmatpush.msra.mxu0 %v1553
        %1618 = vmatpush.msra.mxu0 %v1551
        %1619 = vmatpush.msra.mxu0 %v1549
        %1620 = vmatmul.f32.gmra.mxu0 %v1567
        %v1621 = vpop.f32.mrf.mxu0
        %v1622 = vadd.f32 0.0, %v1621
        %1623 = vmatmul.f32.gmra.mxu0 %v1569
        %v1624 = vpop.f32.mrf.mxu0
        %v1625 = vadd.f32 0.0, %v1624
        %1626 = vmatmul.f32.gmra.mxu0 %v1571
        %v1627 = vpop.f32.mrf.mxu0
        %v1628 = vadd.f32 0.0, %v1627
        %1629 = vmatmul.f32.gmra.mxu0 %v1573
        %v1630 = vpop.f32.mrf.mxu0
        %v1631 = vadd.f32 0.0, %v1630
        %1632 = vdwg.mxu0
        %v1633 = vsel %vm645, %v1536, 0
        %v1635 = vsel %vm645, %v1537, 0
        %v1637 = vsel %vm645, %v1538, 0
        %v1639 = vsel %vm645, %v1539, 0
        %1641 = vmatpush.msra.mxu0 0.0
        %1642 = vmatpush.msra.mxu0 0.0
        %1643 = vmatpush.msra.mxu0 0.0
        %1644 = vmatpush.msra.mxu0 0.0
        %1645 = vmatpush.msra.mxu0 0.0
        %1646 = vmatpush.msra.mxu0 0.0
        %1647 = vmatpush.msra.mxu0 0.0
        %1648 = vmatpush.msra.mxu0 0.0
        %1649 = vmatpush.msra.mxu0 0.0
        %1650 = vmatpush.msra.mxu0 0.0
        %1651 = vmatpush.msra.mxu0 0.0
        %1652 = vmatpush.msra.mxu0 0.0
        %1653 = vmatpush.msra.mxu0 %v1546
        %1654 = vmatpush.msra.mxu0 %v1544
        %1655 = vmatpush.msra.mxu0 %v1542
        %1656 = vmatpush.msra.mxu0 %v1540
        %1657 = vmatmul.f32.gmra.mxu0 %v1633
        %v1658 = vpop.f32.mrf.mxu0
        %v1659 = vadd.f32 %v1593, %v1658
        %1660 = vmatmul.f32.gmra.mxu0 %v1635
        %v1661 = vpop.f32.mrf.mxu0
        %v1662 = vadd.f32 %v1596, %v1661
        %1663 = vmatmul.f32.gmra.mxu0 %v1637
        %v1664 = vpop.f32.mrf.mxu0
        %v1665 = vadd.f32 %v1599, %v1664
        %1666 = vmatmul.f32.gmra.mxu0 %v1639
        %v1667 = vpop.f32.mrf.mxu0
        %v1668 = vadd.f32 %v1602, %v1667
        %1669 = vdwg.mxu0
        %1670 = vmatpush.msra.mxu0 0.0
        %1671 = vmatpush.msra.mxu0 0.0
        %1672 = vmatpush.msra.mxu0 0.0
        %1673 = vmatpush.msra.mxu0 0.0
        %1674 = vmatpush.msra.mxu0 0.0
        %1675 = vmatpush.msra.mxu0 0.0
        %1676 = vmatpush.msra.mxu0 0.0
        %1677 = vmatpush.msra.mxu0 0.0
        %1678 = vmatpush.msra.mxu0 0.0
        %1679 = vmatpush.msra.mxu0 0.0
        %1680 = vmatpush.msra.mxu0 0.0
        %1681 = vmatpush.msra.mxu0 0.0
        %1682 = vmatpush.msra.mxu0 %v1547
        %1683 = vmatpush.msra.mxu0 %v1545
        %1684 = vmatpush.msra.mxu0 %v1543
        %1685 = vmatpush.msra.mxu0 %v1541
        %1686 = vmatmul.f32.gmra.mxu0 %v1633
        %v1687 = vpop.f32.mrf.mxu0
        %v1688 = vadd.f32 %v1622, %v1687
        %1689 = vmatmul.f32.gmra.mxu0 %v1635
        %v1690 = vpop.f32.mrf.mxu0
        %v1691 = vadd.f32 %v1625, %v1690
        %1692 = vmatmul.f32.gmra.mxu0 %v1637
        %v1693 = vpop.f32.mrf.mxu0
        %v1694 = vadd.f32 %v1628, %v1693
        %1695 = vmatmul.f32.gmra.mxu0 %v1639
        %v1696 = vpop.f32.mrf.mxu0
        %v1697 = vadd.f32 %v1631, %v1696
        %1698 = vdwg.mxu0
        %v1699 = vld [vmem:[%s778] sm:$0xff]
        %v1700 = vld [vmem:[%s778 + $0x8] sm:$0xff]
        %v1701 = vld [vmem:[%s778 + $0x10] sm:$0xff]
        %v1702 = vld [vmem:[%s778 + $0x18] sm:$0xff]
        %v1703 = vld [vmem:[%s778 + $0x20] sm:$0xff]
        %v1704 = vld [vmem:[%s778 + $0x28] sm:$0xff]
        %v1705 = vld [vmem:[%s778 + $0x30] sm:$0xff]
        %v1706 = vld [vmem:[%s778 + $0x38] sm:$0xff]
        %v1707 = vrot.slane %v1536, 2
        %v1708 = vrot.slane %v1537, 2
        %v1709 = vsel %vm787, %v1707, %v1708
        %v1710 = vrot.slane %v1538, 2
        %v1711 = vsel %vm787, %v1708, %v1710
        %v1712 = vrot.slane %v1539, 2
        %v1713 = vsel %vm787, %v1710, %v1712
        %v1714 = vsel %vm645, %v1709, 0
        %v1716 = vsel %vm645, %v1711, 0
        %v1718 = vsel %vm645, %v1713, 0
        %v1720 = vsel %vm645, %v1712, 0
        %1722 = vmatpush.msra.mxu0 0.0
        %1723 = vmatpush.msra.mxu0 0.0
        %1724 = vmatpush.msra.mxu0 0.0
        %1725 = vmatpush.msra.mxu0 0.0
        %1726 = vmatpush.msra.mxu0 0.0
        %1727 = vmatpush.msra.mxu0 0.0
        %1728 = vmatpush.msra.mxu0 0.0
        %1729 = vmatpush.msra.mxu0 0.0
        %1730 = vmatpush.msra.mxu0 0.0
        %1731 = vmatpush.msra.mxu0 0.0
        %1732 = vmatpush.msra.mxu0 0.0
        %1733 = vmatpush.msra.mxu0 0.0
        %1734 = vmatpush.msra.mxu0 %v1705
        %1735 = vmatpush.msra.mxu0 %v1703
        %1736 = vmatpush.msra.mxu0 %v1701
        %1737 = vmatpush.msra.mxu0 %v1699
        %1738 = vmatmul.f32.gmra.mxu0 %v1714
        %v1739 = vpop.f32.mrf.mxu0
        %v1740 = vadd.f32 0.0, %v1739
        %1741 = vmatmul.f32.gmra.mxu0 %v1716
        %v1742 = vpop.f32.mrf.mxu0
        %v1743 = vadd.f32 0.0, %v1742
        %1744 = vmatmul.f32.gmra.mxu0 %v1718
        %v1745 = vpop.f32.mrf.mxu0
        %v1746 = vadd.f32 0.0, %v1745
        %1747 = vmatmul.f32.gmra.mxu0 %v1720
        %v1748 = vpop.f32.mrf.mxu0
        %v1749 = vadd.f32 0.0, %v1748
        %1750 = vdwg.mxu0
        %1751 = vmatpush.msra.mxu0 0.0
        %1752 = vmatpush.msra.mxu0 0.0
        %1753 = vmatpush.msra.mxu0 0.0
        %1754 = vmatpush.msra.mxu0 0.0
        %1755 = vmatpush.msra.mxu0 0.0
        %1756 = vmatpush.msra.mxu0 0.0
        %1757 = vmatpush.msra.mxu0 0.0
        %1758 = vmatpush.msra.mxu0 0.0
        %1759 = vmatpush.msra.mxu0 0.0
        %1760 = vmatpush.msra.mxu0 0.0
        %1761 = vmatpush.msra.mxu0 0.0
        %1762 = vmatpush.msra.mxu0 0.0
        %1763 = vmatpush.msra.mxu0 %v1706
        %1764 = vmatpush.msra.mxu0 %v1704
        %1765 = vmatpush.msra.mxu0 %v1702
        %1766 = vmatpush.msra.mxu0 %v1700
        %1767 = vmatmul.f32.gmra.mxu0 %v1714
        %v1768 = vpop.f32.mrf.mxu0
        %v1769 = vadd.f32 0.0, %v1768
        %1770 = vmatmul.f32.gmra.mxu0 %v1716
        %v1771 = vpop.f32.mrf.mxu0
        %v1772 = vadd.f32 0.0, %v1771
        %1773 = vmatmul.f32.gmra.mxu0 %v1718
        %v1774 = vpop.f32.mrf.mxu0
        %v1775 = vadd.f32 0.0, %v1774
        %1776 = vmatmul.f32.gmra.mxu0 %v1720
        %v1777 = vpop.f32.mrf.mxu0
        %v1778 = vadd.f32 0.0, %v1777
        %1779 = vdwg.mxu0
        %v1780 = vadd.f32 %v1659, %v1740
        %v1781 = vadd.f32 %v1688, %v1769
        %v1782 = vadd.f32 %v1662, %v1743
        %v1783 = vadd.f32 %v1691, %v1772
        %v1784 = vadd.f32 %v1665, %v1746
        %v1785 = vadd.f32 %v1694, %v1775
        %v1786 = vadd.f32 %v1668, %v1749
        %v1787 = vadd.f32 %v1697, %v1778
        %v1788 = vld [vmem:[#allocation6] sm:$0x3]
        %v1790 = vperm.slane %v1788, 0
        %v1791 = vperm.slane %v1788, 1
        %v1794 = vadd.f32 %v1780, %v1790
        %v1795 = vadd.f32 %v1781, %v1791
        %v1796 = vadd.f32 %v1782, %v1790
        %v1797 = vadd.f32 %v1783, %v1791
        %v1798 = vadd.f32 %v1784, %v1790
        %v1799 = vadd.f32 %v1785, %v1791
        %v1800 = vadd.f32 %v1786, %v1790
        %v1801 = vadd.f32 %v1787, %v1791
        %v1802 = vmax.f32 %v1794, 0.0
        %v1803 = vmax.f32 %v1795, 0.0
        %v1804 = vmax.f32 %v1796, 0.0
        %v1805 = vmax.f32 %v1797, 0.0
        %v1806 = vmax.f32 %v1798, 0.0
        %v1807 = vmax.f32 %v1799, 0.0
        %v1808 = vmax.f32 %v1800, 0.0
        %v1809 = vmax.f32 %v1801, 0.0
        %v1818 = vrot.slane %v1802, 1
        %v1819 = vrot.slane %v1804, 1
        %v1820 = vsel %vm637, %v1818, %v1819
        %v1821 = vrot.slane %v1803, 1
        %v1822 = vrot.slane %v1805, 1
        %v1823 = vsel %vm637, %v1821, %v1822
        %v1824 = vrot.slane %v1806, 1
        %v1825 = vsel %vm637, %v1819, %v1824
        %v1826 = vrot.slane %v1807, 1
        %v1827 = vsel %vm637, %v1822, %v1826
        %v1828 = vrot.slane %v1808, 1
        %v1829 = vsel %vm637, %v1824, %v1828
        %v1830 = vrot.slane %v1809, 1
        %v1831 = vsel %vm637, %v1826, %v1830
        %v1840 = vmax.f32 %v1802, %v1820
        %v1841 = vmax.f32 %v1803, %v1823
        %v1842 = vmax.f32 %v1804, %v1825
        %v1843 = vmax.f32 %v1805, %v1827
        %v1844 = vmax.f32 %v1806, %v1829
        %v1845 = vmax.f32 %v1807, %v1831
        %v1846 = vmax.f32 %v1808, %v1828
        %v1847 = vmax.f32 %v1809, %v1830
        %v1848 = vld [vmem:[%s5] sm:$0xff]
        %v1849 = vld [vmem:[%s5 + $0x8] sm:$0x7f]
        %v1851 = vsel %vm931, %v1848, 0
        %v1854 = vsel %vm931, %v1849, 0
        %v1857 = vsel %vm938, %v1846, 0
        %v1860 = vsel %vm938, %v1847, 0
        %1862 = vmatpush.msra.mxu0 0.0
        %1863 = vmatpush.msra.mxu0 0.0
        %1864 = vmatpush.msra.mxu0 0.0
        %1865 = vmatpush.msra.mxu0 0.0
        %1866 = vmatpush.msra.mxu0 0.0
        %1867 = vmatpush.msra.mxu0 0.0
        %1868 = vmatpush.msra.mxu0 0.0
        %1869 = vmatpush.msra.mxu0 0.0
        %1870 = vmatpush.msra.mxu0 0.0
        %1871 = vmatpush.msra.mxu0 0.0
        %1872 = vmatpush.msra.mxu0 0.0
        %1873 = vmatpush.msra.mxu0 0.0
        %1874 = vmatpush.msra.mxu0 %v1857
        %1875 = vmatpush.msra.mxu0 %v1844
        %1876 = vmatpush.msra.mxu0 %v1842
        %1877 = vmatpush.msra.mxu0 %v1840
        %1878 = vmatmul.f32.gmra.mxu0 %v1851
        %v1879 = vpop.f32.mrf.mxu0
        %v1880 = vadd.f32 0.0, %v1879
        %1881 = vmatmul.f32.gmra.mxu0 %v1854
        %v1882 = vpop.f32.mrf.mxu0
        %v1883 = vadd.f32 0.0, %v1882
        %1884 = vdwg.mxu0
        %1885 = vmatpush.msra.mxu0 0.0
        %1886 = vmatpush.msra.mxu0 0.0
        %1887 = vmatpush.msra.mxu0 0.0
        %1888 = vmatpush.msra.mxu0 0.0
        %1889 = vmatpush.msra.mxu0 0.0
        %1890 = vmatpush.msra.mxu0 0.0
        %1891 = vmatpush.msra.mxu0 0.0
        %1892 = vmatpush.msra.mxu0 0.0
        %1893 = vmatpush.msra.mxu0 0.0
        %1894 = vmatpush.msra.mxu0 0.0
        %1895 = vmatpush.msra.mxu0 0.0
        %1896 = vmatpush.msra.mxu0 0.0
        %1897 = vmatpush.msra.mxu0 %v1860
        %1898 = vmatpush.msra.mxu0 %v1845
        %1899 = vmatpush.msra.mxu0 %v1843
        %1900 = vmatpush.msra.mxu0 %v1841
        %1901 = vmatmul.f32.gmra.mxu0 %v1851
        %v1902 = vpop.f32.mrf.mxu0
        %v1903 = vadd.f32 0.0, %v1902
        %1904 = vmatmul.f32.gmra.mxu0 %v1854
        %v1905 = vpop.f32.mrf.mxu0
        %v1906 = vadd.f32 0.0, %v1905
        %1907 = vdwg.mxu0
        %1912 = vrot.lane.b32.xlu0 %v1880, 127
        %v1913 = vpop.permute.xlu0 %1912
        %1914 = vrot.lane.b32.xlu0 %v1903, 127
        %v1915 = vpop.permute.xlu0 %1914
        %1916 = vrot.lane.b32.xlu0 %v1883, 127
        %v1917 = vpop.permute.xlu0 %1916
        %1918 = vrot.lane.b32.xlu0 %v1906, 127
        %v1919 = vpop.permute.xlu0 %1918
        %v1920 = vsel %vm1003, %v1913, %v1915
        %v1921 = vsel %vm1003, %v1917, %v1919
        %v1926 = vmax.f32 %v1880, %v1920
        %v1927 = vmax.f32 %v1903, %v1915
        %v1928 = vmax.f32 %v1883, %v1921
        %v1929 = vmax.f32 %v1906, %v1919
        %v1930 = vld [vmem:[%s6] sm:$0xff]
        %v1931 = vld [vmem:[%s6 + $0x8] sm:$0xff]
        %v1932 = vld [vmem:[%s6 + $0x10] sm:$0xff]
        %v1933 = vld [vmem:[%s6 + $0x18] sm:$0xff]
        %v1934 = vld [vmem:[%s6 + $0x20] sm:$0xff]
        %v1935 = vld [vmem:[%s6 + $0x28] sm:$0xff]
        %v1936 = vld [vmem:[%s6 + $0x30] sm:$0xff]
        %v1937 = vld [vmem:[%s6 + $0x38] sm:$0xff]
        %v1938 = vld [vmem:[%s6 + $0x40] sm:$0xff]
        %v1939 = vld [vmem:[%s6 + $0x48] sm:$0xff]
        %v1940 = vld [vmem:[%s6 + $0x50] sm:$0xff]
        %v1941 = vld [vmem:[%s6 + $0x58] sm:$0xff]
        %v1942 = vld [vmem:[%s6 + $0x60] sm:$0xff]
        %v1943 = vld [vmem:[%s6 + $0x68] sm:$0xff]
        %v1944 = vld [vmem:[%s6 + $0x70] sm:$0xff]
        %v1945 = vld [vmem:[%s6 + $0x78] sm:$0xff]
        %v1946 = vld [vmem:[%s6 + $0x80] sm:$0xff]
        %v1947 = vld [vmem:[%s6 + $0x88] sm:$0xff]
        %v1948 = vld [vmem:[%s6 + $0x90] sm:$0xff]
        %v1949 = vld [vmem:[%s6 + $0x98] sm:$0xff]
        %v1950 = vld [vmem:[%s6 + $0xa0] sm:$0xff]
        %v1951 = vld [vmem:[%s6 + $0xa8] sm:$0xff]
        %v1952 = vld [vmem:[%s6 + $0xb0] sm:$0x7]
        %v1954 = vsel %vm1037, %v1927, 0
        %v1957 = vsel %vm1037, %v1929, 0
        %v1960 = vsel %vm1044, %v1952, 0
        %1962 = vmatpush.msra.mxu0 %v1945
        %1963 = vmatpush.msra.mxu0 %v1944
        %1964 = vmatpush.msra.mxu0 %v1943
        %1965 = vmatpush.msra.mxu0 %v1942
        %1966 = vmatpush.msra.mxu0 %v1941
        %1967 = vmatpush.msra.mxu0 %v1940
        %1968 = vmatpush.msra.mxu0 %v1939
        %1969 = vmatpush.msra.mxu0 %v1938
        %1970 = vmatpush.msra.mxu0 %v1937
        %1971 = vmatpush.msra.mxu0 %v1936
        %1972 = vmatpush.msra.mxu0 %v1935
        %1973 = vmatpush.msra.mxu0 %v1934
        %1974 = vmatpush.msra.mxu0 %v1933
        %1975 = vmatpush.msra.mxu0 %v1932
        %1976 = vmatpush.msra.mxu0 %v1931
        %1977 = vmatpush.msra.mxu0 %v1930
        %1978 = vmatmul.f32.gmra.mxu0 %v1926
        %v1979 = vpop.f32.mrf.mxu0
        %v1980 = vadd.f32 0.0, %v1979
        %1981 = vmatmul.f32.gmra.mxu0 %v1928
        %v1982 = vpop.f32.mrf.mxu0
        %v1983 = vadd.f32 0.0, %v1982
        %1984 = vdwg.mxu0
        %1985 = vmatpush.msra.mxu0 0.0
        %1986 = vmatpush.msra.mxu0 0.0
        %1987 = vmatpush.msra.mxu0 0.0
        %1988 = vmatpush.msra.mxu0 0.0
        %1989 = vmatpush.msra.mxu0 0.0
        %1990 = vmatpush.msra.mxu0 0.0
        %1991 = vmatpush.msra.mxu0 0.0
        %1992 = vmatpush.msra.mxu0 0.0
        %1993 = vmatpush.msra.mxu0 0.0
        %1994 = vmatpush.msra.mxu0 %v1960
        %1995 = vmatpush.msra.mxu0 %v1951
        %1996 = vmatpush.msra.mxu0 %v1950
        %1997 = vmatpush.msra.mxu0 %v1949
        %1998 = vmatpush.msra.mxu0 %v1948
        %1999 = vmatpush.msra.mxu0 %v1947
        %2000 = vmatpush.msra.mxu0 %v1946
        %2001 = vmatmul.f32.gmra.mxu0 %v1954
        %v2002 = vpop.f32.mrf.mxu0
        %v2003 = vadd.f32 %v1980, %v2002
        %2004 = vmatmul.f32.gmra.mxu0 %v1957
        %v2005 = vpop.f32.mrf.mxu0
        %v2006 = vadd.f32 %v1983, %v2005
        %2007 = vdwg.mxu0
        %v2008 = vld [vmem:[#allocation8] sm:$0xff]
        %v2009 = vld [vmem:[#allocation8 + $0x8] sm:$0xff]
        %v2010 = vld [vmem:[#allocation8 + $0x10] sm:$0xff]
        %v2011 = vld [vmem:[#allocation8 + $0x18] sm:$0xff]
        %v2012 = vld [vmem:[#allocation8 + $0x20] sm:$0xff]
        %v2013 = vld [vmem:[#allocation8 + $0x28] sm:$0xff]
        %v2014 = vld [vmem:[#allocation8 + $0x30] sm:$0xff]
        %v2015 = vld [vmem:[#allocation8 + $0x38] sm:$0xff]
        %v2016 = vld [vmem:[#allocation8 + $0x40] sm:$0xff]
        %v2017 = vld [vmem:[#allocation8 + $0x48] sm:$0xff]
        %v2018 = vld [vmem:[#allocation8 + $0x50] sm:$0xff]
        %v2019 = vld [vmem:[#allocation8 + $0x58] sm:$0xff]
        %v2020 = vld [vmem:[#allocation8 + $0x60] sm:$0xff]
        %v2021 = vld [vmem:[#allocation8 + $0x68] sm:$0xff]
        %v2022 = vld [vmem:[#allocation8 + $0x70] sm:$0xff]
        %v2023 = vld [vmem:[#allocation8 + $0x78] sm:$0xff]
        %v2024 = vld [vmem:[#allocation8 + $0x80] sm:$0xff]
        %v2025 = vld [vmem:[#allocation8 + $0x88] sm:$0xff]
        %v2026 = vld [vmem:[#allocation8 + $0x90] sm:$0xff]
        %v2027 = vld [vmem:[#allocation8 + $0x98] sm:$0xff]
        %v2028 = vld [vmem:[#allocation8 + $0xa0] sm:$0xff]
        %v2029 = vld [vmem:[#allocation8 + $0xa8] sm:$0xff]
        %v2030 = vld [vmem:[#allocation8 + $0xb0] sm:$0x3]
        %v2031 = vld [vmem:[#allocation8 + $0xb8] sm:$0x3]
        %v2032 = vld [vmem:[%s1118] sm:$0xff]
        %v2033 = vld [vmem:[%s1118 + $0x8] sm:$0xff]
        %v2034 = vld [vmem:[%s1118 + $0x10] sm:$0xff]
        %v2035 = vld [vmem:[%s1118 + $0x18] sm:$0xff]
        %v2036 = vld [vmem:[%s1118 + $0x20] sm:$0xff]
        %v2037 = vld [vmem:[%s1118 + $0x28] sm:$0xff]
        %v2038 = vld [vmem:[%s1118 + $0x30] sm:$0xff]
        %v2039 = vld [vmem:[%s1118 + $0x38] sm:$0xff]
        %v2040 = vld [vmem:[%s1118 + $0x40] sm:$0xff]
        %v2041 = vld [vmem:[%s1118 + $0x48] sm:$0xff]
        %v2042 = vld [vmem:[%s1118 + $0x50] sm:$0xff]
        %v2043 = vld [vmem:[%s1118 + $0x58] sm:$0xff]
        %v2044 = vld [vmem:[%s1118 + $0x60] sm:$0xff]
        %v2045 = vld [vmem:[%s1118 + $0x68] sm:$0xff]
        %v2046 = vld [vmem:[%s1118 + $0x70] sm:$0xff]
        %v2047 = vld [vmem:[%s1118 + $0x78] sm:$0xff]
        %v2048 = vld [vmem:[%s1118 + $0x80] sm:$0xff]
        %v2049 = vld [vmem:[%s1118 + $0x88] sm:$0xff]
        %v2050 = vld [vmem:[%s1118 + $0x90] sm:$0xff]
        %v2051 = vld [vmem:[%s1118 + $0x98] sm:$0xff]
        %v2052 = vld [vmem:[%s1118 + $0xa0] sm:$0xff]
        %v2053 = vld [vmem:[%s1118 + $0xa8] sm:$0xff]
        %v2054 = vld [vmem:[%s1118 + $0xb0] sm:$0x3]
        %v2055 = vld [vmem:[%s1118 + $0xb8] sm:$0x3]
        %v2058 = vrot.slane %v2003, 1
        %v2059 = vrot.slane %v2006, 1
        %v2060 = vsel %vm637, %v2058, %v2059
        %v2061 = vsel %vm1148, %v2060, 0
        %v2063 = vsel %vm1148, %v2059, 0
        %v2066 = vsel %vm1153, %v2054, 0
        %v2069 = vsel %vm1153, %v2055, 0
        %2071 = vmatpush.msra.mxu0 0.0
        %2072 = vmatpush.msra.mxu0 0.0
        %2073 = vmatpush.msra.mxu0 0.0
        %2074 = vmatpush.msra.mxu0 0.0
        %2075 = vmatpush.msra.mxu0 %v2066
        %2076 = vmatpush.msra.mxu0 %v2052
        %2077 = vmatpush.msra.mxu0 %v2050
        %2078 = vmatpush.msra.mxu0 %v2048
        %2079 = vmatpush.msra.mxu0 %v2046
        %2080 = vmatpush.msra.mxu0 %v2044
        %2081 = vmatpush.msra.mxu0 %v2042
        %2082 = vmatpush.msra.mxu0 %v2040
        %2083 = vmatpush.msra.mxu0 %v2038
        %2084 = vmatpush.msra.mxu0 %v2036
        %2085 = vmatpush.msra.mxu0 %v2034
        %2086 = vmatpush.msra.mxu0 %v2032
        %2087 = vmatmul.f32.gmra.mxu0 %v2061
        %v2088 = vpop.f32.mrf.mxu0
        %v2089 = vadd.f32 0.0, %v2088
        %2090 = vmatmul.f32.gmra.mxu0 %v2063
        %v2091 = vpop.f32.mrf.mxu0
        %v2092 = vadd.f32 0.0, %v2091
        %2093 = vdwg.mxu0
        %2094 = vmatpush.msra.mxu0 0.0
        %2095 = vmatpush.msra.mxu0 0.0
        %2096 = vmatpush.msra.mxu0 0.0
        %2097 = vmatpush.msra.mxu0 0.0
        %2098 = vmatpush.msra.mxu0 %v2069
        %2099 = vmatpush.msra.mxu0 %v2053
        %2100 = vmatpush.msra.mxu0 %v2051
        %2101 = vmatpush.msra.mxu0 %v2049
        %2102 = vmatpush.msra.mxu0 %v2047
        %2103 = vmatpush.msra.mxu0 %v2045
        %2104 = vmatpush.msra.mxu0 %v2043
        %2105 = vmatpush.msra.mxu0 %v2041
        %2106 = vmatpush.msra.mxu0 %v2039
        %2107 = vmatpush.msra.mxu0 %v2037
        %2108 = vmatpush.msra.mxu0 %v2035
        %2109 = vmatpush.msra.mxu0 %v2033
        %2110 = vmatmul.f32.gmra.mxu0 %v2061
        %v2111 = vpop.f32.mrf.mxu0
        %v2112 = vadd.f32 0.0, %v2111
        %2113 = vmatmul.f32.gmra.mxu0 %v2063
        %v2114 = vpop.f32.mrf.mxu0
        %v2115 = vadd.f32 0.0, %v2114
        %2116 = vdwg.mxu0
        %v2117 = vsel %vm1148, %v2003, 0
        %v2119 = vsel %vm1148, %v2006, 0
        %v2122 = vsel %vm1153, %v2030, 0
        %v2125 = vsel %vm1153, %v2031, 0
        %2127 = vmatpush.msra.mxu0 0.0
        %2128 = vmatpush.msra.mxu0 0.0
        %2129 = vmatpush.msra.mxu0 0.0
        %2130 = vmatpush.msra.mxu0 0.0
        %2131 = vmatpush.msra.mxu0 %v2122
        %2132 = vmatpush.msra.mxu0 %v2028
        %2133 = vmatpush.msra.mxu0 %v2026
        %2134 = vmatpush.msra.mxu0 %v2024
        %2135 = vmatpush.msra.mxu0 %v2022
        %2136 = vmatpush.msra.mxu0 %v2020
        %2137 = vmatpush.msra.mxu0 %v2018
        %2138 = vmatpush.msra.mxu0 %v2016
        %2139 = vmatpush.msra.mxu0 %v2014
        %2140 = vmatpush.msra.mxu0 %v2012
        %2141 = vmatpush.msra.mxu0 %v2010
        %2142 = vmatpush.msra.mxu0 %v2008
        %2143 = vmatmul.f32.gmra.mxu0 %v2117
        %v2144 = vpop.f32.mrf.mxu0
        %v2145 = vadd.f32 %v2089, %v2144
        %2146 = vmatmul.f32.gmra.mxu0 %v2119
        %v2147 = vpop.f32.mrf.mxu0
        %v2148 = vadd.f32 %v2092, %v2147
        %2149 = vdwg.mxu0
        %2150 = vmatpush.msra.mxu0 0.0
        %2151 = vmatpush.msra.mxu0 0.0
        %2152 = vmatpush.msra.mxu0 0.0
        %2153 = vmatpush.msra.mxu0 0.0
        %2154 = vmatpush.msra.mxu0 %v2125
        %2155 = vmatpush.msra.mxu0 %v2029
        %2156 = vmatpush.msra.mxu0 %v2027
        %2157 = vmatpush.msra.mxu0 %v2025
        %2158 = vmatpush.msra.mxu0 %v2023
        %2159 = vmatpush.msra.mxu0 %v2021
        %2160 = vmatpush.msra.mxu0 %v2019
        %2161 = vmatpush.msra.mxu0 %v2017
        %2162 = vmatpush.msra.mxu0 %v2015
        %2163 = vmatpush.msra.mxu0 %v2013
        %2164 = vmatpush.msra.mxu0 %v2011
        %2165 = vmatpush.msra.mxu0 %v2009
        %2166 = vmatmul.f32.gmra.mxu0 %v2117
        %v2167 = vpop.f32.mrf.mxu0
        %v2168 = vadd.f32 %v2112, %v2167
        %2169 = vmatmul.f32.gmra.mxu0 %v2119
        %v2170 = vpop.f32.mrf.mxu0
        %v2171 = vadd.f32 %v2115, %v2170
        %2172 = vdwg.mxu0
        %v2173 = vld [vmem:[%s1262] sm:$0xff]
        %v2174 = vld [vmem:[%s1262 + $0x8] sm:$0xff]
        %v2175 = vld [vmem:[%s1262 + $0x10] sm:$0xff]
        %v2176 = vld [vmem:[%s1262 + $0x18] sm:$0xff]
        %v2177 = vld [vmem:[%s1262 + $0x20] sm:$0xff]
        %v2178 = vld [vmem:[%s1262 + $0x28] sm:$0xff]
        %v2179 = vld [vmem:[%s1262 + $0x30] sm:$0xff]
        %v2180 = vld [vmem:[%s1262 + $0x38] sm:$0xff]
        %v2181 = vld [vmem:[%s1262 + $0x40] sm:$0xff]
        %v2182 = vld [vmem:[%s1262 + $0x48] sm:$0xff]
        %v2183 = vld [vmem:[%s1262 + $0x50] sm:$0xff]
        %v2184 = vld [vmem:[%s1262 + $0x58] sm:$0xff]
        %v2185 = vld [vmem:[%s1262 + $0x60] sm:$0xff]
        %v2186 = vld [vmem:[%s1262 + $0x68] sm:$0xff]
        %v2187 = vld [vmem:[%s1262 + $0x70] sm:$0xff]
        %v2188 = vld [vmem:[%s1262 + $0x78] sm:$0xff]
        %v2189 = vld [vmem:[%s1262 + $0x80] sm:$0xff]
        %v2190 = vld [vmem:[%s1262 + $0x88] sm:$0xff]
        %v2191 = vld [vmem:[%s1262 + $0x90] sm:$0xff]
        %v2192 = vld [vmem:[%s1262 + $0x98] sm:$0xff]
        %v2193 = vld [vmem:[%s1262 + $0xa0] sm:$0xff]
        %v2194 = vld [vmem:[%s1262 + $0xa8] sm:$0xff]
        %v2195 = vld [vmem:[%s1262 + $0xb0] sm:$0x3]
        %v2196 = vld [vmem:[%s1262 + $0xb8] sm:$0x3]
        %v2197 = vrot.slane %v2003, 2
        %v2198 = vrot.slane %v2006, 2
        %v2199 = vsel %vm787, %v2197, %v2198
        %v2200 = vsel %vm1148, %v2199, 0
        %v2202 = vsel %vm1148, %v2198, 0
        %v2205 = vsel %vm1153, %v2195, 0
        %v2208 = vsel %vm1153, %v2196, 0
        %2210 = vmatpush.msra.mxu0 0.0
        %2211 = vmatpush.msra.mxu0 0.0
        %2212 = vmatpush.msra.mxu0 0.0
        %2213 = vmatpush.msra.mxu0 0.0
        %2214 = vmatpush.msra.mxu0 %v2205
        %2215 = vmatpush.msra.mxu0 %v2193
        %2216 = vmatpush.msra.mxu0 %v2191
        %2217 = vmatpush.msra.mxu0 %v2189
        %2218 = vmatpush.msra.mxu0 %v2187
        %2219 = vmatpush.msra.mxu0 %v2185
        %2220 = vmatpush.msra.mxu0 %v2183
        %2221 = vmatpush.msra.mxu0 %v2181
        %2222 = vmatpush.msra.mxu0 %v2179
        %2223 = vmatpush.msra.mxu0 %v2177
        %2224 = vmatpush.msra.mxu0 %v2175
        %2225 = vmatpush.msra.mxu0 %v2173
        %2226 = vmatmul.f32.gmra.mxu0 %v2200
        %v2227 = vpop.f32.mrf.mxu0
        %v2228 = vadd.f32 0.0, %v2227
        %2229 = vmatmul.f32.gmra.mxu0 %v2202
        %v2230 = vpop.f32.mrf.mxu0
        %v2231 = vadd.f32 0.0, %v2230
        %2232 = vdwg.mxu0
        %2233 = vmatpush.msra.mxu0 0.0
        %2234 = vmatpush.msra.mxu0 0.0
        %2235 = vmatpush.msra.mxu0 0.0
        %2236 = vmatpush.msra.mxu0 0.0
        %2237 = vmatpush.msra.mxu0 %v2208
        %2238 = vmatpush.msra.mxu0 %v2194
        %2239 = vmatpush.msra.mxu0 %v2192
        %2240 = vmatpush.msra.mxu0 %v2190
        %2241 = vmatpush.msra.mxu0 %v2188
        %2242 = vmatpush.msra.mxu0 %v2186
        %2243 = vmatpush.msra.mxu0 %v2184
        %2244 = vmatpush.msra.mxu0 %v2182
        %2245 = vmatpush.msra.mxu0 %v2180
        %2246 = vmatpush.msra.mxu0 %v2178
        %2247 = vmatpush.msra.mxu0 %v2176
        %2248 = vmatpush.msra.mxu0 %v2174
        %2249 = vmatmul.f32.gmra.mxu0 %v2200
        %v2250 = vpop.f32.mrf.mxu0
        %v2251 = vadd.f32 0.0, %v2250
        %2252 = vmatmul.f32.gmra.mxu0 %v2202
        %v2253 = vpop.f32.mrf.mxu0
        %v2254 = vadd.f32 0.0, %v2253
        %2255 = vdwg.mxu0
        %v2256 = vadd.f32 %v2145, %v2228
        %v2257 = vadd.f32 %v2168, %v2251
        %v2258 = vadd.f32 %v2148, %v2231
        %v2259 = vadd.f32 %v2171, %v2254
        %v2260 = vld [vmem:[#allocation9] sm:$0x3]
        %v2262 = vperm.slane %v2260, 0
        %v2263 = vperm.slane %v2260, 1
        %v2266 = vadd.f32 %v2256, %v2262
        %v2267 = vadd.f32 %v2257, %v2263
        %v2268 = vadd.f32 %v2258, %v2262
        %v2269 = vadd.f32 %v2259, %v2263
        %v2270 = vmax.f32 %v2266, 0.0
        %v2271 = vmax.f32 %v2267, 0.0
        %v2272 = vmax.f32 %v2268, 0.0
        %v2273 = vmax.f32 %v2269, 0.0
        %v2278 = vrot.slane %v2270, 1
        %v2279 = vrot.slane %v2272, 1
        %v2280 = vsel %vm637, %v2278, %v2279
        %v2281 = vrot.slane %v2271, 1
        %v2282 = vrot.slane %v2273, 1
        %v2283 = vsel %vm637, %v2281, %v2282
        %v2288 = vmax.f32 %v2270, %v2280
        %v2289 = vmax.f32 %v2271, %v2283
        %v2290 = vmax.f32 %v2272, %v2279
        %v2291 = vmax.f32 %v2273, %v2282
        %v2292 = vld [vmem:[%s7] sm:$0x3f]
        %v2294 = vsel %vm1383, %v2292, 0
        %v2297 = vsel %vm1387, %v2290, 0
        %v2300 = vsel %vm1387, %v2291, 0
        %2302 = vmatpush.msra.mxu0 0.0
        %2303 = vmatpush.msra.mxu0 0.0
        %2304 = vmatpush.msra.mxu0 0.0
        %2305 = vmatpush.msra.mxu0 0.0
        %2306 = vmatpush.msra.mxu0 0.0
        %2307 = vmatpush.msra.mxu0 0.0
        %2308 = vmatpush.msra.mxu0 0.0
        %2309 = vmatpush.msra.mxu0 0.0
        %2310 = vmatpush.msra.mxu0 0.0
        %2311 = vmatpush.msra.mxu0 0.0
        %2312 = vmatpush.msra.mxu0 0.0
        %2313 = vmatpush.msra.mxu0 0.0
        %2314 = vmatpush.msra.mxu0 0.0
        %2315 = vmatpush.msra.mxu0 0.0
        %2316 = vmatpush.msra.mxu0 %v2297
        %2317 = vmatpush.msra.mxu0 %v2288
        %2318 = vmatmul.f32.gmra.mxu0 %v2294
        %v2319 = vpop.f32.mrf.mxu0
        %v2320 = vadd.f32 0.0, %v2319
        %2321 = vdwg.mxu0
        %2322 = vmatpush.msra.mxu0 0.0
        %2323 = vmatpush.msra.mxu0 0.0
        %2324 = vmatpush.msra.mxu0 0.0
        %2325 = vmatpush.msra.mxu0 0.0
        %2326 = vmatpush.msra.mxu0 0.0
        %2327 = vmatpush.msra.mxu0 0.0
        %2328 = vmatpush.msra.mxu0 0.0
        %2329 = vmatpush.msra.mxu0 0.0
        %2330 = vmatpush.msra.mxu0 0.0
        %2331 = vmatpush.msra.mxu0 0.0
        %2332 = vmatpush.msra.mxu0 0.0
        %2333 = vmatpush.msra.mxu0 0.0
        %2334 = vmatpush.msra.mxu0 0.0
        %2335 = vmatpush.msra.mxu0 0.0
        %2336 = vmatpush.msra.mxu0 %v2300
        %2337 = vmatpush.msra.mxu0 %v2289
        %2338 = vmatmul.f32.gmra.mxu0 %v2294
        %v2339 = vpop.f32.mrf.mxu0
        %v2340 = vadd.f32 0.0, %v2339
        %2341 = vdwg.mxu0
        %2344 = vrot.lane.b32.xlu0 %v2320, 127
        %v2345 = vpop.permute.xlu0 %2344
        %2346 = vrot.lane.b32.xlu0 %v2340, 127
        %v2347 = vpop.permute.xlu0 %2346
        %v2348 = vsel %vm1003, %v2345, %v2347
        %v2351 = vmax.f32 %v2320, %v2348
        %v2352 = vmax.f32 %v2340, %v2347
        %v2353 = vld [vmem:[%s8] sm:$0xff]
        %v2354 = vld [vmem:[%s8 + $0x8] sm:$0xff]
        %v2355 = vld [vmem:[%s8 + $0x10] sm:$0xff]
        %v2356 = vld [vmem:[%s8 + $0x18] sm:$0xff]
        %v2357 = vld [vmem:[%s8 + $0x20] sm:$0xff]
        %v2358 = vld [vmem:[%s8 + $0x28] sm:$0xff]
        %v2359 = vld [vmem:[%s8 + $0x30] sm:$0xff]
        %v2360 = vld [vmem:[%s8 + $0x38] sm:$0xff]
        %v2361 = vld [vmem:[%s8 + $0x40] sm:$0xff]
        %v2362 = vld [vmem:[%s8 + $0x48] sm:$0xff]
        %v2363 = vld [vmem:[%s8 + $0x50] sm:$0xff]
        %v2364 = vld [vmem:[%s8 + $0x58] sm:$0xff]
        %v2365 = vld [vmem:[%s8 + $0x60] sm:$0xff]
        %v2366 = vld [vmem:[%s8 + $0x68] sm:$0xff]
        %v2367 = vld [vmem:[%s8 + $0x70] sm:$0xff]
        %v2368 = vld [vmem:[%s8 + $0x78] sm:$0xff]
        %v2369 = vld [vmem:[%s8 + $0x80] sm:$0xff]
        %v2370 = vld [vmem:[%s8 + $0x88] sm:$0xff]
        %v2371 = vld [vmem:[%s8 + $0x90] sm:$0xff]
        %v2372 = vld [vmem:[%s8 + $0x98] sm:$0xff]
        %v2373 = vld [vmem:[%s8 + $0xa0] sm:$0xff]
        %v2374 = vld [vmem:[%s8 + $0xa8] sm:$0xff]
        %v2375 = vld [vmem:[%s8 + $0xb0] sm:$0xff]
        %v2376 = vld [vmem:[%s8 + $0xb8] sm:$0xff]
        %v2377 = vld [vmem:[%s8 + $0xc0] sm:$0xff]
        %v2378 = vld [vmem:[%s8 + $0xc8] sm:$0x7f]
        %v2380 = vsel %vm1471, %v2352, 0
        %v2383 = vsel %vm637, %v2378, 0
        %2385 = vmatpush.msra.mxu0 %v2368
        %2386 = vmatpush.msra.mxu0 %v2367
        %2387 = vmatpush.msra.mxu0 %v2366
        %2388 = vmatpush.msra.mxu0 %v2365
        %2389 = vmatpush.msra.mxu0 %v2364
        %2390 = vmatpush.msra.mxu0 %v2363
        %2391 = vmatpush.msra.mxu0 %v2362
        %2392 = vmatpush.msra.mxu0 %v2361
        %2393 = vmatpush.msra.mxu0 %v2360
        %2394 = vmatpush.msra.mxu0 %v2359
        %2395 = vmatpush.msra.mxu0 %v2358
        %2396 = vmatpush.msra.mxu0 %v2357
        %2397 = vmatpush.msra.mxu0 %v2356
        %2398 = vmatpush.msra.mxu0 %v2355
        %2399 = vmatpush.msra.mxu0 %v2354
        %2400 = vmatpush.msra.mxu0 %v2353
        %2401 = vmatmul.f32.gmra.mxu0 %v2351
        %v2402 = vpop.f32.mrf.mxu0
        %v2403 = vadd.f32 0.0, %v2402
        %2404 = vdwg.mxu0
        %2405 = vmatpush.msra.mxu0 0.0
        %2406 = vmatpush.msra.mxu0 0.0
        %2407 = vmatpush.msra.mxu0 0.0
        %2408 = vmatpush.msra.mxu0 0.0
        %2409 = vmatpush.msra.mxu0 0.0
        %2410 = vmatpush.msra.mxu0 0.0
        %2411 = vmatpush.msra.mxu0 %v2383
        %2412 = vmatpush.msra.mxu0 %v2377
        %2413 = vmatpush.msra.mxu0 %v2376
        %2414 = vmatpush.msra.mxu0 %v2375
        %2415 = vmatpush.msra.mxu0 %v2374
        %2416 = vmatpush.msra.mxu0 %v2373
        %2417 = vmatpush.msra.mxu0 %v2372
        %2418 = vmatpush.msra.mxu0 %v2371
        %2419 = vmatpush.msra.mxu0 %v2370
        %2420 = vmatpush.msra.mxu0 %v2369
        %2421 = vmatmul.f32.gmra.mxu0 %v2380
        %v2422 = vpop.f32.mrf.mxu0
        %v2423 = vadd.f32 %v2403, %v2422
        %2424 = vdwg.mxu0
        %2425 = vst.msk [vmem:[#allocation2 + $0x1] sm:$0x1] %vm1518, %v2423
        %2426 = vst.msk [vmem:[%s1520] sm:$0x2] %vm1521, %v2423
        %2427 = vst.msk [vmem:[%s1523 - $0x1] sm:$0x4] %vm1524, %v2423
        %2428 = vst.msk [vmem:[%s1526 - $0x2] sm:$0x8] %vm1527, %v2423
        %2429 = vst.msk [vmem:[%s1529 - $0x3] sm:$0x10] %vm1530, %v2423
        %2430 = vst.msk [vmem:[%s1532 - $0x4] sm:$0x20] %vm1533, %v2423
        %s2431 = scalar_lea.vmem %s533, 64 [#allocation3]
        %v2432 = vld [vmem:[%s2431] sm:$0xff]
        %v2433 = vld [vmem:[%s2431 + $0x8] sm:$0xff]
        %v2434 = vld [vmem:[%s2431 + $0x10] sm:$0xff]
        %v2435 = vld [vmem:[%s2431 + $0x18] sm:$0xff]
        %v2436 = vld [vmem:[%s1] sm:$0xff]
        %v2437 = vld [vmem:[%s1 + $0x8] sm:$0xff]
        %v2438 = vld [vmem:[%s1 + $0x10] sm:$0xff]
        %v2439 = vld [vmem:[%s1 + $0x18] sm:$0xff]
        %v2440 = vld [vmem:[%s1 + $0x20] sm:$0xff]
        %v2441 = vld [vmem:[%s1 + $0x28] sm:$0xff]
        %v2442 = vld [vmem:[%s1 + $0x30] sm:$0xff]
        %v2443 = vld [vmem:[%s1 + $0x38] sm:$0xff]
        %v2444 = vld [vmem:[%s624] sm:$0xff]
        %v2445 = vld [vmem:[%s624 + $0x8] sm:$0xff]
        %v2446 = vld [vmem:[%s624 + $0x10] sm:$0xff]
        %v2447 = vld [vmem:[%s624 + $0x18] sm:$0xff]
        %v2448 = vld [vmem:[%s624 + $0x20] sm:$0xff]
        %v2449 = vld [vmem:[%s624 + $0x28] sm:$0xff]
        %v2450 = vld [vmem:[%s624 + $0x30] sm:$0xff]
        %v2451 = vld [vmem:[%s624 + $0x38] sm:$0xff]
        %v2456 = vrot.slane %v2432, 1
        %v2457 = vrot.slane %v2433, 1
        %v2458 = vsel %vm637, %v2456, %v2457
        %v2459 = vrot.slane %v2434, 1
        %v2460 = vsel %vm637, %v2457, %v2459
        %v2461 = vrot.slane %v2435, 1
        %v2462 = vsel %vm637, %v2459, %v2461
        %v2463 = vsel %vm645, %v2458, 0
        %v2465 = vsel %vm645, %v2460, 0
        %v2467 = vsel %vm645, %v2462, 0
        %v2469 = vsel %vm645, %v2461, 0
        %2471 = vmatpush.msra.mxu0 0.0
        %2472 = vmatpush.msra.mxu0 0.0
        %2473 = vmatpush.msra.mxu0 0.0
        %2474 = vmatpush.msra.mxu0 0.0
        %2475 = vmatpush.msra.mxu0 0.0
        %2476 = vmatpush.msra.mxu0 0.0
        %2477 = vmatpush.msra.mxu0 0.0
        %2478 = vmatpush.msra.mxu0 0.0
        %2479 = vmatpush.msra.mxu0 0.0
        %2480 = vmatpush.msra.mxu0 0.0
        %2481 = vmatpush.msra.mxu0 0.0
        %2482 = vmatpush.msra.mxu0 0.0
        %2483 = vmatpush.msra.mxu0 %v2450
        %2484 = vmatpush.msra.mxu0 %v2448
        %2485 = vmatpush.msra.mxu0 %v2446
        %2486 = vmatpush.msra.mxu0 %v2444
        %2487 = vmatmul.f32.gmra.mxu0 %v2463
        %v2488 = vpop.f32.mrf.mxu0
        %v2489 = vadd.f32 0.0, %v2488
        %2490 = vmatmul.f32.gmra.mxu0 %v2465
        %v2491 = vpop.f32.mrf.mxu0
        %v2492 = vadd.f32 0.0, %v2491
        %2493 = vmatmul.f32.gmra.mxu0 %v2467
        %v2494 = vpop.f32.mrf.mxu0
        %v2495 = vadd.f32 0.0, %v2494
        %2496 = vmatmul.f32.gmra.mxu0 %v2469
        %v2497 = vpop.f32.mrf.mxu0
        %v2498 = vadd.f32 0.0, %v2497
        %2499 = vdwg.mxu0
        %2500 = vmatpush.msra.mxu0 0.0
        %2501 = vmatpush.msra.mxu0 0.0
        %2502 = vmatpush.msra.mxu0 0.0
        %2503 = vmatpush.msra.mxu0 0.0
        %2504 = vmatpush.msra.mxu0 0.0
        %2505 = vmatpush.msra.mxu0 0.0
        %2506 = vmatpush.msra.mxu0 0.0
        %2507 = vmatpush.msra.mxu0 0.0
        %2508 = vmatpush.msra.mxu0 0.0
        %2509 = vmatpush.msra.mxu0 0.0
        %2510 = vmatpush.msra.mxu0 0.0
        %2511 = vmatpush.msra.mxu0 0.0
        %2512 = vmatpush.msra.mxu0 %v2451
        %2513 = vmatpush.msra.mxu0 %v2449
        %2514 = vmatpush.msra.mxu0 %v2447
        %2515 = vmatpush.msra.mxu0 %v2445
        %2516 = vmatmul.f32.gmra.mxu0 %v2463
        %v2517 = vpop.f32.mrf.mxu0
        %v2518 = vadd.f32 0.0, %v2517
        %2519 = vmatmul.f32.gmra.mxu0 %v2465
        %v2520 = vpop.f32.mrf.mxu0
        %v2521 = vadd.f32 0.0, %v2520
        %2522 = vmatmul.f32.gmra.mxu0 %v2467
        %v2523 = vpop.f32.mrf.mxu0
        %v2524 = vadd.f32 0.0, %v2523
        %2525 = vmatmul.f32.gmra.mxu0 %v2469
        %v2526 = vpop.f32.mrf.mxu0
        %v2527 = vadd.f32 0.0, %v2526
        %2528 = vdwg.mxu0
        %v2529 = vsel %vm645, %v2432, 0
        %v2531 = vsel %vm645, %v2433, 0
        %v2533 = vsel %vm645, %v2434, 0
        %v2535 = vsel %vm645, %v2435, 0
        %2537 = vmatpush.msra.mxu0 0.0
        %2538 = vmatpush.msra.mxu0 0.0
        %2539 = vmatpush.msra.mxu0 0.0
        %2540 = vmatpush.msra.mxu0 0.0
        %2541 = vmatpush.msra.mxu0 0.0
        %2542 = vmatpush.msra.mxu0 0.0
        %2543 = vmatpush.msra.mxu0 0.0
        %2544 = vmatpush.msra.mxu0 0.0
        %2545 = vmatpush.msra.mxu0 0.0
        %2546 = vmatpush.msra.mxu0 0.0
        %2547 = vmatpush.msra.mxu0 0.0
        %2548 = vmatpush.msra.mxu0 0.0
        %2549 = vmatpush.msra.mxu0 %v2442
        %2550 = vmatpush.msra.mxu0 %v2440
        %2551 = vmatpush.msra.mxu0 %v2438
        %2552 = vmatpush.msra.mxu0 %v2436
        %2553 = vmatmul.f32.gmra.mxu0 %v2529
        %v2554 = vpop.f32.mrf.mxu0
        %v2555 = vadd.f32 %v2489, %v2554
        %2556 = vmatmul.f32.gmra.mxu0 %v2531
        %v2557 = vpop.f32.mrf.mxu0
        %v2558 = vadd.f32 %v2492, %v2557
        %2559 = vmatmul.f32.gmra.mxu0 %v2533
        %v2560 = vpop.f32.mrf.mxu0
        %v2561 = vadd.f32 %v2495, %v2560
        %2562 = vmatmul.f32.gmra.mxu0 %v2535
        %v2563 = vpop.f32.mrf.mxu0
        %v2564 = vadd.f32 %v2498, %v2563
        %2565 = vdwg.mxu0
        %2566 = vmatpush.msra.mxu0 0.0
        %2567 = vmatpush.msra.mxu0 0.0
        %2568 = vmatpush.msra.mxu0 0.0
        %2569 = vmatpush.msra.mxu0 0.0
        %2570 = vmatpush.msra.mxu0 0.0
        %2571 = vmatpush.msra.mxu0 0.0
        %2572 = vmatpush.msra.mxu0 0.0
        %2573 = vmatpush.msra.mxu0 0.0
        %2574 = vmatpush.msra.mxu0 0.0
        %2575 = vmatpush.msra.mxu0 0.0
        %2576 = vmatpush.msra.mxu0 0.0
        %2577 = vmatpush.msra.mxu0 0.0
        %2578 = vmatpush.msra.mxu0 %v2443
        %2579 = vmatpush.msra.mxu0 %v2441
        %2580 = vmatpush.msra.mxu0 %v2439
        %2581 = vmatpush.msra.mxu0 %v2437
        %2582 = vmatmul.f32.gmra.mxu0 %v2529
        %v2583 = vpop.f32.mrf.mxu0
        %v2584 = vadd.f32 %v2518, %v2583
        %2585 = vmatmul.f32.gmra.mxu0 %v2531
        %v2586 = vpop.f32.mrf.mxu0
        %v2587 = vadd.f32 %v2521, %v2586
        %2588 = vmatmul.f32.gmra.mxu0 %v2533
        %v2589 = vpop.f32.mrf.mxu0
        %v2590 = vadd.f32 %v2524, %v2589
        %2591 = vmatmul.f32.gmra.mxu0 %v2535
        %v2592 = vpop.f32.mrf.mxu0
        %v2593 = vadd.f32 %v2527, %v2592
        %2594 = vdwg.mxu0
        %v2595 = vld [vmem:[%s778] sm:$0xff]
        %v2596 = vld [vmem:[%s778 + $0x8] sm:$0xff]
        %v2597 = vld [vmem:[%s778 + $0x10] sm:$0xff]
        %v2598 = vld [vmem:[%s778 + $0x18] sm:$0xff]
        %v2599 = vld [vmem:[%s778 + $0x20] sm:$0xff]
        %v2600 = vld [vmem:[%s778 + $0x28] sm:$0xff]
        %v2601 = vld [vmem:[%s778 + $0x30] sm:$0xff]
        %v2602 = vld [vmem:[%s778 + $0x38] sm:$0xff]
        %v2603 = vrot.slane %v2432, 2
        %v2604 = vrot.slane %v2433, 2
        %v2605 = vsel %vm787, %v2603, %v2604
        %v2606 = vrot.slane %v2434, 2
        %v2607 = vsel %vm787, %v2604, %v2606
        %v2608 = vrot.slane %v2435, 2
        %v2609 = vsel %vm787, %v2606, %v2608
        %v2610 = vsel %vm645, %v2605, 0
        %v2612 = vsel %vm645, %v2607, 0
        %v2614 = vsel %vm645, %v2609, 0
        %v2616 = vsel %vm645, %v2608, 0
        %2618 = vmatpush.msra.mxu0 0.0
        %2619 = vmatpush.msra.mxu0 0.0
        %2620 = vmatpush.msra.mxu0 0.0
        %2621 = vmatpush.msra.mxu0 0.0
        %2622 = vmatpush.msra.mxu0 0.0
        %2623 = vmatpush.msra.mxu0 0.0
        %2624 = vmatpush.msra.mxu0 0.0
        %2625 = vmatpush.msra.mxu0 0.0
        %2626 = vmatpush.msra.mxu0 0.0
        %2627 = vmatpush.msra.mxu0 0.0
        %2628 = vmatpush.msra.mxu0 0.0
        %2629 = vmatpush.msra.mxu0 0.0
        %2630 = vmatpush.msra.mxu0 %v2601
        %2631 = vmatpush.msra.mxu0 %v2599
        %2632 = vmatpush.msra.mxu0 %v2597
        %2633 = vmatpush.msra.mxu0 %v2595
        %2634 = vmatmul.f32.gmra.mxu0 %v2610
        %v2635 = vpop.f32.mrf.mxu0
        %v2636 = vadd.f32 0.0, %v2635
        %2637 = vmatmul.f32.gmra.mxu0 %v2612
        %v2638 = vpop.f32.mrf.mxu0
        %v2639 = vadd.f32 0.0, %v2638
        %2640 = vmatmul.f32.gmra.mxu0 %v2614
        %v2641 = vpop.f32.mrf.mxu0
        %v2642 = vadd.f32 0.0, %v2641
        %2643 = vmatmul.f32.gmra.mxu0 %v2616
        %v2644 = vpop.f32.mrf.mxu0
        %v2645 = vadd.f32 0.0, %v2644
        %2646 = vdwg.mxu0
        %2647 = vmatpush.msra.mxu0 0.0
        %2648 = vmatpush.msra.mxu0 0.0
        %2649 = vmatpush.msra.mxu0 0.0
        %2650 = vmatpush.msra.mxu0 0.0
        %2651 = vmatpush.msra.mxu0 0.0
        %2652 = vmatpush.msra.mxu0 0.0
        %2653 = vmatpush.msra.mxu0 0.0
        %2654 = vmatpush.msra.mxu0 0.0
        %2655 = vmatpush.msra.mxu0 0.0
        %2656 = vmatpush.msra.mxu0 0.0
        %2657 = vmatpush.msra.mxu0 0.0
        %2658 = vmatpush.msra.mxu0 0.0
        %2659 = vmatpush.msra.mxu0 %v2602
        %2660 = vmatpush.msra.mxu0 %v2600
        %2661 = vmatpush.msra.mxu0 %v2598
        %2662 = vmatpush.msra.mxu0 %v2596
        %2663 = vmatmul.f32.gmra.mxu0 %v2610
        %v2664 = vpop.f32.mrf.mxu0
        %v2665 = vadd.f32 0.0, %v2664
        %2666 = vmatmul.f32.gmra.mxu0 %v2612
        %v2667 = vpop.f32.mrf.mxu0
        %v2668 = vadd.f32 0.0, %v2667
        %2669 = vmatmul.f32.gmra.mxu0 %v2614
        %v2670 = vpop.f32.mrf.mxu0
        %v2671 = vadd.f32 0.0, %v2670
        %2672 = vmatmul.f32.gmra.mxu0 %v2616
        %v2673 = vpop.f32.mrf.mxu0
        %v2674 = vadd.f32 0.0, %v2673
        %2675 = vdwg.mxu0
        %v2676 = vadd.f32 %v2555, %v2636
        %v2677 = vadd.f32 %v2584, %v2665
        %v2678 = vadd.f32 %v2558, %v2639
        %v2679 = vadd.f32 %v2587, %v2668
        %v2680 = vadd.f32 %v2561, %v2642
        %v2681 = vadd.f32 %v2590, %v2671
        %v2682 = vadd.f32 %v2564, %v2645
        %v2683 = vadd.f32 %v2593, %v2674
        %v2684 = vld [vmem:[#allocation6] sm:$0x3]
        %v2686 = vperm.slane %v2684, 0
        %v2687 = vperm.slane %v2684, 1
        %v2690 = vadd.f32 %v2676, %v2686
        %v2691 = vadd.f32 %v2677, %v2687
        %v2692 = vadd.f32 %v2678, %v2686
        %v2693 = vadd.f32 %v2679, %v2687
        %v2694 = vadd.f32 %v2680, %v2686
        %v2695 = vadd.f32 %v2681, %v2687
        %v2696 = vadd.f32 %v2682, %v2686
        %v2697 = vadd.f32 %v2683, %v2687
        %v2698 = vmax.f32 %v2690, 0.0
        %v2699 = vmax.f32 %v2691, 0.0
        %v2700 = vmax.f32 %v2692, 0.0
        %v2701 = vmax.f32 %v2693, 0.0
        %v2702 = vmax.f32 %v2694, 0.0
        %v2703 = vmax.f32 %v2695, 0.0
        %v2704 = vmax.f32 %v2696, 0.0
        %v2705 = vmax.f32 %v2697, 0.0
        %v2714 = vrot.slane %v2698, 1
        %v2715 = vrot.slane %v2700, 1
        %v2716 = vsel %vm637, %v2714, %v2715
        %v2717 = vrot.slane %v2699, 1
        %v2718 = vrot.slane %v2701, 1
        %v2719 = vsel %vm637, %v2717, %v2718
        %v2720 = vrot.slane %v2702, 1
        %v2721 = vsel %vm637, %v2715, %v2720
        %v2722 = vrot.slane %v2703, 1
        %v2723 = vsel %vm637, %v2718, %v2722
        %v2724 = vrot.slane %v2704, 1
        %v2725 = vsel %vm637, %v2720, %v2724
        %v2726 = vrot.slane %v2705, 1
        %v2727 = vsel %vm637, %v2722, %v2726
        %v2736 = vmax.f32 %v2698, %v2716
        %v2737 = vmax.f32 %v2699, %v2719
        %v2738 = vmax.f32 %v2700, %v2721
        %v2739 = vmax.f32 %v2701, %v2723
        %v2740 = vmax.f32 %v2702, %v2725
        %v2741 = vmax.f32 %v2703, %v2727
        %v2742 = vmax.f32 %v2704, %v2724
        %v2743 = vmax.f32 %v2705, %v2726
        %v2744 = vld [vmem:[%s5] sm:$0xff]
        %v2745 = vld [vmem:[%s5 + $0x8] sm:$0x7f]
        %v2747 = vsel %vm931, %v2744, 0
        %v2750 = vsel %vm931, %v2745, 0
        %v2753 = vsel %vm938, %v2742, 0
        %v2756 = vsel %vm938, %v2743, 0
        %2758 = vmatpush.msra.mxu0 0.0
        %2759 = vmatpush.msra.mxu0 0.0
        %2760 = vmatpush.msra.mxu0 0.0
        %2761 = vmatpush.msra.mxu0 0.0
        %2762 = vmatpush.msra.mxu0 0.0
        %2763 = vmatpush.msra.mxu0 0.0
        %2764 = vmatpush.msra.mxu0 0.0
        %2765 = vmatpush.msra.mxu0 0.0
        %2766 = vmatpush.msra.mxu0 0.0
        %2767 = vmatpush.msra.mxu0 0.0
        %2768 = vmatpush.msra.mxu0 0.0
        %2769 = vmatpush.msra.mxu0 0.0
        %2770 = vmatpush.msra.mxu0 %v2753
        %2771 = vmatpush.msra.mxu0 %v2740
        %2772 = vmatpush.msra.mxu0 %v2738
        %2773 = vmatpush.msra.mxu0 %v2736
        %2774 = vmatmul.f32.gmra.mxu0 %v2747
        %v2775 = vpop.f32.mrf.mxu0
        %v2776 = vadd.f32 0.0, %v2775
        %2777 = vmatmul.f32.gmra.mxu0 %v2750
        %v2778 = vpop.f32.mrf.mxu0
        %v2779 = vadd.f32 0.0, %v2778
        %2780 = vdwg.mxu0
        %2781 = vmatpush.msra.mxu0 0.0
        %2782 = vmatpush.msra.mxu0 0.0
        %2783 = vmatpush.msra.mxu0 0.0
        %2784 = vmatpush.msra.mxu0 0.0
        %2785 = vmatpush.msra.mxu0 0.0
        %2786 = vmatpush.msra.mxu0 0.0
        %2787 = vmatpush.msra.mxu0 0.0
        %2788 = vmatpush.msra.mxu0 0.0
        %2789 = vmatpush.msra.mxu0 0.0
        %2790 = vmatpush.msra.mxu0 0.0
        %2791 = vmatpush.msra.mxu0 0.0
        %2792 = vmatpush.msra.mxu0 0.0
        %2793 = vmatpush.msra.mxu0 %v2756
        %2794 = vmatpush.msra.mxu0 %v2741
        %2795 = vmatpush.msra.mxu0 %v2739
        %2796 = vmatpush.msra.mxu0 %v2737
        %2797 = vmatmul.f32.gmra.mxu0 %v2747
        %v2798 = vpop.f32.mrf.mxu0
        %v2799 = vadd.f32 0.0, %v2798
        %2800 = vmatmul.f32.gmra.mxu0 %v2750
        %v2801 = vpop.f32.mrf.mxu0
        %v2802 = vadd.f32 0.0, %v2801
        %2803 = vdwg.mxu0
        %2808 = vrot.lane.b32.xlu0 %v2776, 127
        %v2809 = vpop.permute.xlu0 %2808
        %2810 = vrot.lane.b32.xlu0 %v2799, 127
        %v2811 = vpop.permute.xlu0 %2810
        %2812 = vrot.lane.b32.xlu0 %v2779, 127
        %v2813 = vpop.permute.xlu0 %2812
        %2814 = vrot.lane.b32.xlu0 %v2802, 127
        %v2815 = vpop.permute.xlu0 %2814
        %v2816 = vsel %vm1003, %v2809, %v2811
        %v2817 = vsel %vm1003, %v2813, %v2815
        %v2822 = vmax.f32 %v2776, %v2816
        %v2823 = vmax.f32 %v2799, %v2811
        %v2824 = vmax.f32 %v2779, %v2817
        %v2825 = vmax.f32 %v2802, %v2815
        %v2826 = vld [vmem:[%s6] sm:$0xff]
        %v2827 = vld [vmem:[%s6 + $0x8] sm:$0xff]
        %v2828 = vld [vmem:[%s6 + $0x10] sm:$0xff]
        %v2829 = vld [vmem:[%s6 + $0x18] sm:$0xff]
        %v2830 = vld [vmem:[%s6 + $0x20] sm:$0xff]
        %v2831 = vld [vmem:[%s6 + $0x28] sm:$0xff]
        %v2832 = vld [vmem:[%s6 + $0x30] sm:$0xff]
        %v2833 = vld [vmem:[%s6 + $0x38] sm:$0xff]
        %v2834 = vld [vmem:[%s6 + $0x40] sm:$0xff]
        %v2835 = vld [vmem:[%s6 + $0x48] sm:$0xff]
        %v2836 = vld [vmem:[%s6 + $0x50] sm:$0xff]
        %v2837 = vld [vmem:[%s6 + $0x58] sm:$0xff]
        %v2838 = vld [vmem:[%s6 + $0x60] sm:$0xff]
        %v2839 = vld [vmem:[%s6 + $0x68] sm:$0xff]
        %v2840 = vld [vmem:[%s6 + $0x70] sm:$0xff]
        %v2841 = vld [vmem:[%s6 + $0x78] sm:$0xff]
        %v2842 = vld [vmem:[%s6 + $0x80] sm:$0xff]
        %v2843 = vld [vmem:[%s6 + $0x88] sm:$0xff]
        %v2844 = vld [vmem:[%s6 + $0x90] sm:$0xff]
        %v2845 = vld [vmem:[%s6 + $0x98] sm:$0xff]
        %v2846 = vld [vmem:[%s6 + $0xa0] sm:$0xff]
        %v2847 = vld [vmem:[%s6 + $0xa8] sm:$0xff]
        %v2848 = vld [vmem:[%s6 + $0xb0] sm:$0x7]
        %v2850 = vsel %vm1037, %v2823, 0
        %v2853 = vsel %vm1037, %v2825, 0
        %v2856 = vsel %vm1044, %v2848, 0
        %2858 = vmatpush.msra.mxu0 %v2841
        %2859 = vmatpush.msra.mxu0 %v2840
        %2860 = vmatpush.msra.mxu0 %v2839
        %2861 = vmatpush.msra.mxu0 %v2838
        %2862 = vmatpush.msra.mxu0 %v2837
        %2863 = vmatpush.msra.mxu0 %v2836
        %2864 = vmatpush.msra.mxu0 %v2835
        %2865 = vmatpush.msra.mxu0 %v2834
        %2866 = vmatpush.msra.mxu0 %v2833
        %2867 = vmatpush.msra.mxu0 %v2832
        %2868 = vmatpush.msra.mxu0 %v2831
        %2869 = vmatpush.msra.mxu0 %v2830
        %2870 = vmatpush.msra.mxu0 %v2829
        %2871 = vmatpush.msra.mxu0 %v2828
        %2872 = vmatpush.msra.mxu0 %v2827
        %2873 = vmatpush.msra.mxu0 %v2826
        %2874 = vmatmul.f32.gmra.mxu0 %v2822
        %v2875 = vpop.f32.mrf.mxu0
        %v2876 = vadd.f32 0.0, %v2875
        %2877 = vmatmul.f32.gmra.mxu0 %v2824
        %v2878 = vpop.f32.mrf.mxu0
        %v2879 = vadd.f32 0.0, %v2878
        %2880 = vdwg.mxu0
        %2881 = vmatpush.msra.mxu0 0.0
        %2882 = vmatpush.msra.mxu0 0.0
        %2883 = vmatpush.msra.mxu0 0.0
        %2884 = vmatpush.msra.mxu0 0.0
        %2885 = vmatpush.msra.mxu0 0.0
        %2886 = vmatpush.msra.mxu0 0.0
        %2887 = vmatpush.msra.mxu0 0.0
        %2888 = vmatpush.msra.mxu0 0.0
        %2889 = vmatpush.msra.mxu0 0.0
        %2890 = vmatpush.msra.mxu0 %v2856
        %2891 = vmatpush.msra.mxu0 %v2847
        %2892 = vmatpush.msra.mxu0 %v2846
        %2893 = vmatpush.msra.mxu0 %v2845
        %2894 = vmatpush.msra.mxu0 %v2844
        %2895 = vmatpush.msra.mxu0 %v2843
        %2896 = vmatpush.msra.mxu0 %v2842
        %2897 = vmatmul.f32.gmra.mxu0 %v2850
        %v2898 = vpop.f32.mrf.mxu0
        %v2899 = vadd.f32 %v2876, %v2898
        %2900 = vmatmul.f32.gmra.mxu0 %v2853
        %v2901 = vpop.f32.mrf.mxu0
        %v2902 = vadd.f32 %v2879, %v2901
        %2903 = vdwg.mxu0
        %v2904 = vld [vmem:[#allocation8] sm:$0xff]
        %v2905 = vld [vmem:[#allocation8 + $0x8] sm:$0xff]
        %v2906 = vld [vmem:[#allocation8 + $0x10] sm:$0xff]
        %v2907 = vld [vmem:[#allocation8 + $0x18] sm:$0xff]
        %v2908 = vld [vmem:[#allocation8 + $0x20] sm:$0xff]
        %v2909 = vld [vmem:[#allocation8 + $0x28] sm:$0xff]
        %v2910 = vld [vmem:[#allocation8 + $0x30] sm:$0xff]
        %v2911 = vld [vmem:[#allocation8 + $0x38] sm:$0xff]
        %v2912 = vld [vmem:[#allocation8 + $0x40] sm:$0xff]
        %v2913 = vld [vmem:[#allocation8 + $0x48] sm:$0xff]
        %v2914 = vld [vmem:[#allocation8 + $0x50] sm:$0xff]
        %v2915 = vld [vmem:[#allocation8 + $0x58] sm:$0xff]
        %v2916 = vld [vmem:[#allocation8 + $0x60] sm:$0xff]
        %v2917 = vld [vmem:[#allocation8 + $0x68] sm:$0xff]
        %v2918 = vld [vmem:[#allocation8 + $0x70] sm:$0xff]
        %v2919 = vld [vmem:[#allocation8 + $0x78] sm:$0xff]
        %v2920 = vld [vmem:[#allocation8 + $0x80] sm:$0xff]
        %v2921 = vld [vmem:[#allocation8 + $0x88] sm:$0xff]
        %v2922 = vld [vmem:[#allocation8 + $0x90] sm:$0xff]
        %v2923 = vld [vmem:[#allocation8 + $0x98] sm:$0xff]
        %v2924 = vld [vmem:[#allocation8 + $0xa0] sm:$0xff]
        %v2925 = vld [vmem:[#allocation8 + $0xa8] sm:$0xff]
        %v2926 = vld [vmem:[#allocation8 + $0xb0] sm:$0x3]
        %v2927 = vld [vmem:[#allocation8 + $0xb8] sm:$0x3]
        %v2928 = vld [vmem:[%s1118] sm:$0xff]
        %v2929 = vld [vmem:[%s1118 + $0x8] sm:$0xff]
        %v2930 = vld [vmem:[%s1118 + $0x10] sm:$0xff]
        %v2931 = vld [vmem:[%s1118 + $0x18] sm:$0xff]
        %v2932 = vld [vmem:[%s1118 + $0x20] sm:$0xff]
        %v2933 = vld [vmem:[%s1118 + $0x28] sm:$0xff]
        %v2934 = vld [vmem:[%s1118 + $0x30] sm:$0xff]
        %v2935 = vld [vmem:[%s1118 + $0x38] sm:$0xff]
        %v2936 = vld [vmem:[%s1118 + $0x40] sm:$0xff]
        %v2937 = vld [vmem:[%s1118 + $0x48] sm:$0xff]
        %v2938 = vld [vmem:[%s1118 + $0x50] sm:$0xff]
        %v2939 = vld [vmem:[%s1118 + $0x58] sm:$0xff]
        %v2940 = vld [vmem:[%s1118 + $0x60] sm:$0xff]
        %v2941 = vld [vmem:[%s1118 + $0x68] sm:$0xff]
        %v2942 = vld [vmem:[%s1118 + $0x70] sm:$0xff]
        %v2943 = vld [vmem:[%s1118 + $0x78] sm:$0xff]
        %v2944 = vld [vmem:[%s1118 + $0x80] sm:$0xff]
        %v2945 = vld [vmem:[%s1118 + $0x88] sm:$0xff]
        %v2946 = vld [vmem:[%s1118 + $0x90] sm:$0xff]
        %v2947 = vld [vmem:[%s1118 + $0x98] sm:$0xff]
        %v2948 = vld [vmem:[%s1118 + $0xa0] sm:$0xff]
        %v2949 = vld [vmem:[%s1118 + $0xa8] sm:$0xff]
        %v2950 = vld [vmem:[%s1118 + $0xb0] sm:$0x3]
        %v2951 = vld [vmem:[%s1118 + $0xb8] sm:$0x3]
        %v2954 = vrot.slane %v2899, 1
        %v2955 = vrot.slane %v2902, 1
        %v2956 = vsel %vm637, %v2954, %v2955
        %v2957 = vsel %vm1148, %v2956, 0
        %v2959 = vsel %vm1148, %v2955, 0
        %v2962 = vsel %vm1153, %v2950, 0
        %v2965 = vsel %vm1153, %v2951, 0
        %2967 = vmatpush.msra.mxu0 0.0
        %2968 = vmatpush.msra.mxu0 0.0
        %2969 = vmatpush.msra.mxu0 0.0
        %2970 = vmatpush.msra.mxu0 0.0
        %2971 = vmatpush.msra.mxu0 %v2962
        %2972 = vmatpush.msra.mxu0 %v2948
        %2973 = vmatpush.msra.mxu0 %v2946
        %2974 = vmatpush.msra.mxu0 %v2944
        %2975 = vmatpush.msra.mxu0 %v2942
        %2976 = vmatpush.msra.mxu0 %v2940
        %2977 = vmatpush.msra.mxu0 %v2938
        %2978 = vmatpush.msra.mxu0 %v2936
        %2979 = vmatpush.msra.mxu0 %v2934
        %2980 = vmatpush.msra.mxu0 %v2932
        %2981 = vmatpush.msra.mxu0 %v2930
        %2982 = vmatpush.msra.mxu0 %v2928
        %2983 = vmatmul.f32.gmra.mxu0 %v2957
        %v2984 = vpop.f32.mrf.mxu0
        %v2985 = vadd.f32 0.0, %v2984
        %2986 = vmatmul.f32.gmra.mxu0 %v2959
        %v2987 = vpop.f32.mrf.mxu0
        %v2988 = vadd.f32 0.0, %v2987
        %2989 = vdwg.mxu0
        %2990 = vmatpush.msra.mxu0 0.0
        %2991 = vmatpush.msra.mxu0 0.0
        %2992 = vmatpush.msra.mxu0 0.0
        %2993 = vmatpush.msra.mxu0 0.0
        %2994 = vmatpush.msra.mxu0 %v2965
        %2995 = vmatpush.msra.mxu0 %v2949
        %2996 = vmatpush.msra.mxu0 %v2947
        %2997 = vmatpush.msra.mxu0 %v2945
        %2998 = vmatpush.msra.mxu0 %v2943
        %2999 = vmatpush.msra.mxu0 %v2941
        %3000 = vmatpush.msra.mxu0 %v2939
        %3001 = vmatpush.msra.mxu0 %v2937
        %3002 = vmatpush.msra.mxu0 %v2935
        %3003 = vmatpush.msra.mxu0 %v2933
        %3004 = vmatpush.msra.mxu0 %v2931
        %3005 = vmatpush.msra.mxu0 %v2929
        %3006 = vmatmul.f32.gmra.mxu0 %v2957
        %v3007 = vpop.f32.mrf.mxu0
        %v3008 = vadd.f32 0.0, %v3007
        %3009 = vmatmul.f32.gmra.mxu0 %v2959
        %v3010 = vpop.f32.mrf.mxu0
        %v3011 = vadd.f32 0.0, %v3010
        %3012 = vdwg.mxu0
        %v3013 = vsel %vm1148, %v2899, 0
        %v3015 = vsel %vm1148, %v2902, 0
        %v3018 = vsel %vm1153, %v2926, 0
        %v3021 = vsel %vm1153, %v2927, 0
        %3023 = vmatpush.msra.mxu0 0.0
        %3024 = vmatpush.msra.mxu0 0.0
        %3025 = vmatpush.msra.mxu0 0.0
        %3026 = vmatpush.msra.mxu0 0.0
        %3027 = vmatpush.msra.mxu0 %v3018
        %3028 = vmatpush.msra.mxu0 %v2924
        %3029 = vmatpush.msra.mxu0 %v2922
        %3030 = vmatpush.msra.mxu0 %v2920
        %3031 = vmatpush.msra.mxu0 %v2918
        %3032 = vmatpush.msra.mxu0 %v2916
        %3033 = vmatpush.msra.mxu0 %v2914
        %3034 = vmatpush.msra.mxu0 %v2912
        %3035 = vmatpush.msra.mxu0 %v2910
        %3036 = vmatpush.msra.mxu0 %v2908
        %3037 = vmatpush.msra.mxu0 %v2906
        %3038 = vmatpush.msra.mxu0 %v2904
        %3039 = vmatmul.f32.gmra.mxu0 %v3013
        %v3040 = vpop.f32.mrf.mxu0
        %v3041 = vadd.f32 %v2985, %v3040
        %3042 = vmatmul.f32.gmra.mxu0 %v3015
        %v3043 = vpop.f32.mrf.mxu0
        %v3044 = vadd.f32 %v2988, %v3043
        %3045 = vdwg.mxu0
        %3046 = vmatpush.msra.mxu0 0.0
        %3047 = vmatpush.msra.mxu0 0.0
        %3048 = vmatpush.msra.mxu0 0.0
        %3049 = vmatpush.msra.mxu0 0.0
        %3050 = vmatpush.msra.mxu0 %v3021
        %3051 = vmatpush.msra.mxu0 %v2925
        %3052 = vmatpush.msra.mxu0 %v2923
        %3053 = vmatpush.msra.mxu0 %v2921
        %3054 = vmatpush.msra.mxu0 %v2919
        %3055 = vmatpush.msra.mxu0 %v2917
        %3056 = vmatpush.msra.mxu0 %v2915
        %3057 = vmatpush.msra.mxu0 %v2913
        %3058 = vmatpush.msra.mxu0 %v2911
        %3059 = vmatpush.msra.mxu0 %v2909
        %3060 = vmatpush.msra.mxu0 %v2907
        %3061 = vmatpush.msra.mxu0 %v2905
        %3062 = vmatmul.f32.gmra.mxu0 %v3013
        %v3063 = vpop.f32.mrf.mxu0
        %v3064 = vadd.f32 %v3008, %v3063
        %3065 = vmatmul.f32.gmra.mxu0 %v3015
        %v3066 = vpop.f32.mrf.mxu0
        %v3067 = vadd.f32 %v3011, %v3066
        %3068 = vdwg.mxu0
        %v3069 = vld [vmem:[%s1262] sm:$0xff]
        %v3070 = vld [vmem:[%s1262 + $0x8] sm:$0xff]
        %v3071 = vld [vmem:[%s1262 + $0x10] sm:$0xff]
        %v3072 = vld [vmem:[%s1262 + $0x18] sm:$0xff]
        %v3073 = vld [vmem:[%s1262 + $0x20] sm:$0xff]
        %v3074 = vld [vmem:[%s1262 + $0x28] sm:$0xff]
        %v3075 = vld [vmem:[%s1262 + $0x30] sm:$0xff]
        %v3076 = vld [vmem:[%s1262 + $0x38] sm:$0xff]
        %v3077 = vld [vmem:[%s1262 + $0x40] sm:$0xff]
        %v3078 = vld [vmem:[%s1262 + $0x48] sm:$0xff]
        %v3079 = vld [vmem:[%s1262 + $0x50] sm:$0xff]
        %v3080 = vld [vmem:[%s1262 + $0x58] sm:$0xff]
        %v3081 = vld [vmem:[%s1262 + $0x60] sm:$0xff]
        %v3082 = vld [vmem:[%s1262 + $0x68] sm:$0xff]
        %v3083 = vld [vmem:[%s1262 + $0x70] sm:$0xff]
        %v3084 = vld [vmem:[%s1262 + $0x78] sm:$0xff]
        %v3085 = vld [vmem:[%s1262 + $0x80] sm:$0xff]
        %v3086 = vld [vmem:[%s1262 + $0x88] sm:$0xff]
        %v3087 = vld [vmem:[%s1262 + $0x90] sm:$0xff]
        %v3088 = vld [vmem:[%s1262 + $0x98] sm:$0xff]
        %v3089 = vld [vmem:[%s1262 + $0xa0] sm:$0xff]
        %v3090 = vld [vmem:[%s1262 + $0xa8] sm:$0xff]
        %v3091 = vld [vmem:[%s1262 + $0xb0] sm:$0x3]
        %v3092 = vld [vmem:[%s1262 + $0xb8] sm:$0x3]
        %v3093 = vrot.slane %v2899, 2
        %v3094 = vrot.slane %v2902, 2
        %v3095 = vsel %vm787, %v3093, %v3094
        %v3096 = vsel %vm1148, %v3095, 0
        %v3098 = vsel %vm1148, %v3094, 0
        %v3101 = vsel %vm1153, %v3091, 0
        %v3104 = vsel %vm1153, %v3092, 0
        %3106 = vmatpush.msra.mxu0 0.0
        %3107 = vmatpush.msra.mxu0 0.0
        %3108 = vmatpush.msra.mxu0 0.0
        %3109 = vmatpush.msra.mxu0 0.0
        %3110 = vmatpush.msra.mxu0 %v3101
        %3111 = vmatpush.msra.mxu0 %v3089
        %3112 = vmatpush.msra.mxu0 %v3087
        %3113 = vmatpush.msra.mxu0 %v3085
        %3114 = vmatpush.msra.mxu0 %v3083
        %3115 = vmatpush.msra.mxu0 %v3081
        %3116 = vmatpush.msra.mxu0 %v3079
        %3117 = vmatpush.msra.mxu0 %v3077
        %3118 = vmatpush.msra.mxu0 %v3075
        %3119 = vmatpush.msra.mxu0 %v3073
        %3120 = vmatpush.msra.mxu0 %v3071
        %3121 = vmatpush.msra.mxu0 %v3069
        %3122 = vmatmul.f32.gmra.mxu0 %v3096
        %v3123 = vpop.f32.mrf.mxu0
        %v3124 = vadd.f32 0.0, %v3123
        %3125 = vmatmul.f32.gmra.mxu0 %v3098
        %v3126 = vpop.f32.mrf.mxu0
        %v3127 = vadd.f32 0.0, %v3126
        %3128 = vdwg.mxu0
        %3129 = vmatpush.msra.mxu0 0.0
        %3130 = vmatpush.msra.mxu0 0.0
        %3131 = vmatpush.msra.mxu0 0.0
        %3132 = vmatpush.msra.mxu0 0.0
        %3133 = vmatpush.msra.mxu0 %v3104
        %3134 = vmatpush.msra.mxu0 %v3090
        %3135 = vmatpush.msra.mxu0 %v3088
        %3136 = vmatpush.msra.mxu0 %v3086
        %3137 = vmatpush.msra.mxu0 %v3084
        %3138 = vmatpush.msra.mxu0 %v3082
        %3139 = vmatpush.msra.mxu0 %v3080
        %3140 = vmatpush.msra.mxu0 %v3078
        %3141 = vmatpush.msra.mxu0 %v3076
        %3142 = vmatpush.msra.mxu0 %v3074
        %3143 = vmatpush.msra.mxu0 %v3072
        %3144 = vmatpush.msra.mxu0 %v3070
        %3145 = vmatmul.f32.gmra.mxu0 %v3096
        %v3146 = vpop.f32.mrf.mxu0
        %v3147 = vadd.f32 0.0, %v3146
        %3148 = vmatmul.f32.gmra.mxu0 %v3098
        %v3149 = vpop.f32.mrf.mxu0
        %v3150 = vadd.f32 0.0, %v3149
        %3151 = vdwg.mxu0
        %v3152 = vadd.f32 %v3041, %v3124
        %v3153 = vadd.f32 %v3064, %v3147
        %v3154 = vadd.f32 %v3044, %v3127
        %v3155 = vadd.f32 %v3067, %v3150
        %v3156 = vld [vmem:[#allocation9] sm:$0x3]
        %v3158 = vperm.slane %v3156, 0
        %v3159 = vperm.slane %v3156, 1
        %v3162 = vadd.f32 %v3152, %v3158
        %v3163 = vadd.f32 %v3153, %v3159
        %v3164 = vadd.f32 %v3154, %v3158
        %v3165 = vadd.f32 %v3155, %v3159
        %v3166 = vmax.f32 %v3162, 0.0
        %v3167 = vmax.f32 %v3163, 0.0
        %v3168 = vmax.f32 %v3164, 0.0
        %v3169 = vmax.f32 %v3165, 0.0
        %v3174 = vrot.slane %v3166, 1
        %v3175 = vrot.slane %v3168, 1
        %v3176 = vsel %vm637, %v3174, %v3175
        %v3177 = vrot.slane %v3167, 1
        %v3178 = vrot.slane %v3169, 1
        %v3179 = vsel %vm637, %v3177, %v3178
        %v3184 = vmax.f32 %v3166, %v3176
        %v3185 = vmax.f32 %v3167, %v3179
        %v3186 = vmax.f32 %v3168, %v3175
        %v3187 = vmax.f32 %v3169, %v3178
        %v3188 = vld [vmem:[%s7] sm:$0x3f]
        %v3190 = vsel %vm1383, %v3188, 0
        %v3193 = vsel %vm1387, %v3186, 0
        %v3196 = vsel %vm1387, %v3187, 0
        %3198 = vmatpush.msra.mxu0 0.0
        %3199 = vmatpush.msra.mxu0 0.0
        %3200 = vmatpush.msra.mxu0 0.0
        %3201 = vmatpush.msra.mxu0 0.0
        %3202 = vmatpush.msra.mxu0 0.0
        %3203 = vmatpush.msra.mxu0 0.0
        %3204 = vmatpush.msra.mxu0 0.0
        %3205 = vmatpush.msra.mxu0 0.0
        %3206 = vmatpush.msra.mxu0 0.0
        %3207 = vmatpush.msra.mxu0 0.0
        %3208 = vmatpush.msra.mxu0 0.0
        %3209 = vmatpush.msra.mxu0 0.0
        %3210 = vmatpush.msra.mxu0 0.0
        %3211 = vmatpush.msra.mxu0 0.0
        %3212 = vmatpush.msra.mxu0 %v3193
        %3213 = vmatpush.msra.mxu0 %v3184
        %3214 = vmatmul.f32.gmra.mxu0 %v3190
        %v3215 = vpop.f32.mrf.mxu0
        %v3216 = vadd.f32 0.0, %v3215
        %3217 = vdwg.mxu0
        %3218 = vmatpush.msra.mxu0 0.0
        %3219 = vmatpush.msra.mxu0 0.0
        %3220 = vmatpush.msra.mxu0 0.0
        %3221 = vmatpush.msra.mxu0 0.0
        %3222 = vmatpush.msra.mxu0 0.0
        %3223 = vmatpush.msra.mxu0 0.0
        %3224 = vmatpush.msra.mxu0 0.0
        %3225 = vmatpush.msra.mxu0 0.0
        %3226 = vmatpush.msra.mxu0 0.0
        %3227 = vmatpush.msra.mxu0 0.0
        %3228 = vmatpush.msra.mxu0 0.0
        %3229 = vmatpush.msra.mxu0 0.0
        %3230 = vmatpush.msra.mxu0 0.0
        %3231 = vmatpush.msra.mxu0 0.0
        %3232 = vmatpush.msra.mxu0 %v3196
        %3233 = vmatpush.msra.mxu0 %v3185
        %3234 = vmatmul.f32.gmra.mxu0 %v3190
        %v3235 = vpop.f32.mrf.mxu0
        %v3236 = vadd.f32 0.0, %v3235
        %3237 = vdwg.mxu0
        %3240 = vrot.lane.b32.xlu0 %v3216, 127
        %v3241 = vpop.permute.xlu0 %3240
        %3242 = vrot.lane.b32.xlu0 %v3236, 127
        %v3243 = vpop.permute.xlu0 %3242
        %v3244 = vsel %vm1003, %v3241, %v3243
        %v3247 = vmax.f32 %v3216, %v3244
        %v3248 = vmax.f32 %v3236, %v3243
        %v3249 = vld [vmem:[%s8] sm:$0xff]
        %v3250 = vld [vmem:[%s8 + $0x8] sm:$0xff]
        %v3251 = vld [vmem:[%s8 + $0x10] sm:$0xff]
        %v3252 = vld [vmem:[%s8 + $0x18] sm:$0xff]
        %v3253 = vld [vmem:[%s8 + $0x20] sm:$0xff]
        %v3254 = vld [vmem:[%s8 + $0x28] sm:$0xff]
        %v3255 = vld [vmem:[%s8 + $0x30] sm:$0xff]
        %v3256 = vld [vmem:[%s8 + $0x38] sm:$0xff]
        %v3257 = vld [vmem:[%s8 + $0x40] sm:$0xff]
        %v3258 = vld [vmem:[%s8 + $0x48] sm:$0xff]
        %v3259 = vld [vmem:[%s8 + $0x50] sm:$0xff]
        %v3260 = vld [vmem:[%s8 + $0x58] sm:$0xff]
        %v3261 = vld [vmem:[%s8 + $0x60] sm:$0xff]
        %v3262 = vld [vmem:[%s8 + $0x68] sm:$0xff]
        %v3263 = vld [vmem:[%s8 + $0x70] sm:$0xff]
        %v3264 = vld [vmem:[%s8 + $0x78] sm:$0xff]
        %v3265 = vld [vmem:[%s8 + $0x80] sm:$0xff]
        %v3266 = vld [vmem:[%s8 + $0x88] sm:$0xff]
        %v3267 = vld [vmem:[%s8 + $0x90] sm:$0xff]
        %v3268 = vld [vmem:[%s8 + $0x98] sm:$0xff]
        %v3269 = vld [vmem:[%s8 + $0xa0] sm:$0xff]
        %v3270 = vld [vmem:[%s8 + $0xa8] sm:$0xff]
        %v3271 = vld [vmem:[%s8 + $0xb0] sm:$0xff]
        %v3272 = vld [vmem:[%s8 + $0xb8] sm:$0xff]
        %v3273 = vld [vmem:[%s8 + $0xc0] sm:$0xff]
        %v3274 = vld [vmem:[%s8 + $0xc8] sm:$0x7f]
        %v3276 = vsel %vm1471, %v3248, 0
        %v3279 = vsel %vm637, %v3274, 0
        %3281 = vmatpush.msra.mxu0 %v3264
        %3282 = vmatpush.msra.mxu0 %v3263
        %3283 = vmatpush.msra.mxu0 %v3262
        %3284 = vmatpush.msra.mxu0 %v3261
        %3285 = vmatpush.msra.mxu0 %v3260
        %3286 = vmatpush.msra.mxu0 %v3259
        %3287 = vmatpush.msra.mxu0 %v3258
        %3288 = vmatpush.msra.mxu0 %v3257
        %3289 = vmatpush.msra.mxu0 %v3256
        %3290 = vmatpush.msra.mxu0 %v3255
        %3291 = vmatpush.msra.mxu0 %v3254
        %3292 = vmatpush.msra.mxu0 %v3253
        %3293 = vmatpush.msra.mxu0 %v3252
        %3294 = vmatpush.msra.mxu0 %v3251
        %3295 = vmatpush.msra.mxu0 %v3250
        %3296 = vmatpush.msra.mxu0 %v3249
        %3297 = vmatmul.f32.gmra.mxu0 %v3247
        %v3298 = vpop.f32.mrf.mxu0
        %v3299 = vadd.f32 0.0, %v3298
        %3300 = vdwg.mxu0
        %3301 = vmatpush.msra.mxu0 0.0
        %3302 = vmatpush.msra.mxu0 0.0
        %3303 = vmatpush.msra.mxu0 0.0
        %3304 = vmatpush.msra.mxu0 0.0
        %3305 = vmatpush.msra.mxu0 0.0
        %3306 = vmatpush.msra.mxu0 0.0
        %3307 = vmatpush.msra.mxu0 %v3279
        %3308 = vmatpush.msra.mxu0 %v3273
        %3309 = vmatpush.msra.mxu0 %v3272
        %3310 = vmatpush.msra.mxu0 %v3271
        %3311 = vmatpush.msra.mxu0 %v3270
        %3312 = vmatpush.msra.mxu0 %v3269
        %3313 = vmatpush.msra.mxu0 %v3268
        %3314 = vmatpush.msra.mxu0 %v3267
        %3315 = vmatpush.msra.mxu0 %v3266
        %3316 = vmatpush.msra.mxu0 %v3265
        %3317 = vmatmul.f32.gmra.mxu0 %v3276
        %v3318 = vpop.f32.mrf.mxu0
        %v3319 = vadd.f32 %v3299, %v3318
        %3320 = vdwg.mxu0
        %3321 = vst.msk [vmem:[#allocation2 + $0x2] sm:$0x1] %vm1518, %v3319
        %3322 = vst.msk [vmem:[%s1520 + $0x1] sm:$0x2] %vm1521, %v3319
        %3323 = vst.msk [vmem:[%s1523] sm:$0x4] %vm1524, %v3319
        %3324 = vst.msk [vmem:[%s1526 - $0x1] sm:$0x8] %vm1527, %v3319
        %3325 = vst.msk [vmem:[%s1529 - $0x2] sm:$0x10] %vm1530, %v3319
        %3326 = vst.msk [vmem:[%s1532 - $0x3] sm:$0x20] %vm1533, %v3319
        %s3327 = scalar_lea.vmem %s533, 96 [#allocation3]
        %v3328 = vld [vmem:[%s3327] sm:$0xff]
        %v3329 = vld [vmem:[%s3327 + $0x8] sm:$0xff]
        %v3330 = vld [vmem:[%s3327 + $0x10] sm:$0xff]
        %v3331 = vld [vmem:[%s3327 + $0x18] sm:$0xff]
        %v3332 = vld [vmem:[%s1] sm:$0xff]
        %v3333 = vld [vmem:[%s1 + $0x8] sm:$0xff]
        %v3334 = vld [vmem:[%s1 + $0x10] sm:$0xff]
        %v3335 = vld [vmem:[%s1 + $0x18] sm:$0xff]
        %v3336 = vld [vmem:[%s1 + $0x20] sm:$0xff]
        %v3337 = vld [vmem:[%s1 + $0x28] sm:$0xff]
        %v3338 = vld [vmem:[%s1 + $0x30] sm:$0xff]
        %v3339 = vld [vmem:[%s1 + $0x38] sm:$0xff]
        %v3340 = vld [vmem:[%s624] sm:$0xff]
        %v3341 = vld [vmem:[%s624 + $0x8] sm:$0xff]
        %v3342 = vld [vmem:[%s624 + $0x10] sm:$0xff]
        %v3343 = vld [vmem:[%s624 + $0x18] sm:$0xff]
        %v3344 = vld [vmem:[%s624 + $0x20] sm:$0xff]
        %v3345 = vld [vmem:[%s624 + $0x28] sm:$0xff]
        %v3346 = vld [vmem:[%s624 + $0x30] sm:$0xff]
        %v3347 = vld [vmem:[%s624 + $0x38] sm:$0xff]
        %v3352 = vrot.slane %v3328, 1
        %v3353 = vrot.slane %v3329, 1
        %v3354 = vsel %vm637, %v3352, %v3353
        %v3355 = vrot.slane %v3330, 1
        %v3356 = vsel %vm637, %v3353, %v3355
        %v3357 = vrot.slane %v3331, 1
        %v3358 = vsel %vm637, %v3355, %v3357
        %v3359 = vsel %vm645, %v3354, 0
        %v3361 = vsel %vm645, %v3356, 0
        %v3363 = vsel %vm645, %v3358, 0
        %v3365 = vsel %vm645, %v3357, 0
        %3367 = vmatpush.msra.mxu0 0.0
        %3368 = vmatpush.msra.mxu0 0.0
        %3369 = vmatpush.msra.mxu0 0.0
        %3370 = vmatpush.msra.mxu0 0.0
        %3371 = vmatpush.msra.mxu0 0.0
        %3372 = vmatpush.msra.mxu0 0.0
        %3373 = vmatpush.msra.mxu0 0.0
        %3374 = vmatpush.msra.mxu0 0.0
        %3375 = vmatpush.msra.mxu0 0.0
        %3376 = vmatpush.msra.mxu0 0.0
        %3377 = vmatpush.msra.mxu0 0.0
        %3378 = vmatpush.msra.mxu0 0.0
        %3379 = vmatpush.msra.mxu0 %v3346
        %3380 = vmatpush.msra.mxu0 %v3344
        %3381 = vmatpush.msra.mxu0 %v3342
        %3382 = vmatpush.msra.mxu0 %v3340
        %3383 = vmatmul.f32.gmra.mxu0 %v3359
        %v3384 = vpop.f32.mrf.mxu0
        %v3385 = vadd.f32 0.0, %v3384
        %3386 = vmatmul.f32.gmra.mxu0 %v3361
        %v3387 = vpop.f32.mrf.mxu0
        %v3388 = vadd.f32 0.0, %v3387
        %3389 = vmatmul.f32.gmra.mxu0 %v3363
        %v3390 = vpop.f32.mrf.mxu0
        %v3391 = vadd.f32 0.0, %v3390
        %3392 = vmatmul.f32.gmra.mxu0 %v3365
        %v3393 = vpop.f32.mrf.mxu0
        %v3394 = vadd.f32 0.0, %v3393
        %3395 = vdwg.mxu0
        %3396 = vmatpush.msra.mxu0 0.0
        %3397 = vmatpush.msra.mxu0 0.0
        %3398 = vmatpush.msra.mxu0 0.0
        %3399 = vmatpush.msra.mxu0 0.0
        %3400 = vmatpush.msra.mxu0 0.0
        %3401 = vmatpush.msra.mxu0 0.0
        %3402 = vmatpush.msra.mxu0 0.0
        %3403 = vmatpush.msra.mxu0 0.0
        %3404 = vmatpush.msra.mxu0 0.0
        %3405 = vmatpush.msra.mxu0 0.0
        %3406 = vmatpush.msra.mxu0 0.0
        %3407 = vmatpush.msra.mxu0 0.0
        %3408 = vmatpush.msra.mxu0 %v3347
        %3409 = vmatpush.msra.mxu0 %v3345
        %3410 = vmatpush.msra.mxu0 %v3343
        %3411 = vmatpush.msra.mxu0 %v3341
        %3412 = vmatmul.f32.gmra.mxu0 %v3359
        %v3413 = vpop.f32.mrf.mxu0
        %v3414 = vadd.f32 0.0, %v3413
        %3415 = vmatmul.f32.gmra.mxu0 %v3361
        %v3416 = vpop.f32.mrf.mxu0
        %v3417 = vadd.f32 0.0, %v3416
        %3418 = vmatmul.f32.gmra.mxu0 %v3363
        %v3419 = vpop.f32.mrf.mxu0
        %v3420 = vadd.f32 0.0, %v3419
        %3421 = vmatmul.f32.gmra.mxu0 %v3365
        %v3422 = vpop.f32.mrf.mxu0
        %v3423 = vadd.f32 0.0, %v3422
        %3424 = vdwg.mxu0
        %v3425 = vsel %vm645, %v3328, 0
        %v3427 = vsel %vm645, %v3329, 0
        %v3429 = vsel %vm645, %v3330, 0
        %v3431 = vsel %vm645, %v3331, 0
        %3433 = vmatpush.msra.mxu0 0.0
        %3434 = vmatpush.msra.mxu0 0.0
        %3435 = vmatpush.msra.mxu0 0.0
        %3436 = vmatpush.msra.mxu0 0.0
        %3437 = vmatpush.msra.mxu0 0.0
        %3438 = vmatpush.msra.mxu0 0.0
        %3439 = vmatpush.msra.mxu0 0.0
        %3440 = vmatpush.msra.mxu0 0.0
        %3441 = vmatpush.msra.mxu0 0.0
        %3442 = vmatpush.msra.mxu0 0.0
        %3443 = vmatpush.msra.mxu0 0.0
        %3444 = vmatpush.msra.mxu0 0.0
        %3445 = vmatpush.msra.mxu0 %v3338
        %3446 = vmatpush.msra.mxu0 %v3336
        %3447 = vmatpush.msra.mxu0 %v3334
        %3448 = vmatpush.msra.mxu0 %v3332
        %3449 = vmatmul.f32.gmra.mxu0 %v3425
        %v3450 = vpop.f32.mrf.mxu0
        %v3451 = vadd.f32 %v3385, %v3450
        %3452 = vmatmul.f32.gmra.mxu0 %v3427
        %v3453 = vpop.f32.mrf.mxu0
        %v3454 = vadd.f32 %v3388, %v3453
        %3455 = vmatmul.f32.gmra.mxu0 %v3429
        %v3456 = vpop.f32.mrf.mxu0
        %v3457 = vadd.f32 %v3391, %v3456
        %3458 = vmatmul.f32.gmra.mxu0 %v3431
        %v3459 = vpop.f32.mrf.mxu0
        %v3460 = vadd.f32 %v3394, %v3459
        %3461 = vdwg.mxu0
        %3462 = vmatpush.msra.mxu0 0.0
        %3463 = vmatpush.msra.mxu0 0.0
        %3464 = vmatpush.msra.mxu0 0.0
        %3465 = vmatpush.msra.mxu0 0.0
        %3466 = vmatpush.msra.mxu0 0.0
        %3467 = vmatpush.msra.mxu0 0.0
        %3468 = vmatpush.msra.mxu0 0.0
        %3469 = vmatpush.msra.mxu0 0.0
        %3470 = vmatpush.msra.mxu0 0.0
        %3471 = vmatpush.msra.mxu0 0.0
        %3472 = vmatpush.msra.mxu0 0.0
        %3473 = vmatpush.msra.mxu0 0.0
        %3474 = vmatpush.msra.mxu0 %v3339
        %3475 = vmatpush.msra.mxu0 %v3337
        %3476 = vmatpush.msra.mxu0 %v3335
        %3477 = vmatpush.msra.mxu0 %v3333
        %3478 = vmatmul.f32.gmra.mxu0 %v3425
        %v3479 = vpop.f32.mrf.mxu0
        %v3480 = vadd.f32 %v3414, %v3479
        %3481 = vmatmul.f32.gmra.mxu0 %v3427
        %v3482 = vpop.f32.mrf.mxu0
        %v3483 = vadd.f32 %v3417, %v3482
        %3484 = vmatmul.f32.gmra.mxu0 %v3429
        %v3485 = vpop.f32.mrf.mxu0
        %v3486 = vadd.f32 %v3420, %v3485
        %3487 = vmatmul.f32.gmra.mxu0 %v3431
        %v3488 = vpop.f32.mrf.mxu0
        %v3489 = vadd.f32 %v3423, %v3488
        %3490 = vdwg.mxu0
        %v3491 = vld [vmem:[%s778] sm:$0xff]
        %v3492 = vld [vmem:[%s778 + $0x8] sm:$0xff]
        %v3493 = vld [vmem:[%s778 + $0x10] sm:$0xff]
        %v3494 = vld [vmem:[%s778 + $0x18] sm:$0xff]
        %v3495 = vld [vmem:[%s778 + $0x20] sm:$0xff]
        %v3496 = vld [vmem:[%s778 + $0x28] sm:$0xff]
        %v3497 = vld [vmem:[%s778 + $0x30] sm:$0xff]
        %v3498 = vld [vmem:[%s778 + $0x38] sm:$0xff]
        %v3499 = vrot.slane %v3328, 2
        %v3500 = vrot.slane %v3329, 2
        %v3501 = vsel %vm787, %v3499, %v3500
        %v3502 = vrot.slane %v3330, 2
        %v3503 = vsel %vm787, %v3500, %v3502
        %v3504 = vrot.slane %v3331, 2
        %v3505 = vsel %vm787, %v3502, %v3504
        %v3506 = vsel %vm645, %v3501, 0
        %v3508 = vsel %vm645, %v3503, 0
        %v3510 = vsel %vm645, %v3505, 0
        %v3512 = vsel %vm645, %v3504, 0
        %3514 = vmatpush.msra.mxu0 0.0
        %3515 = vmatpush.msra.mxu0 0.0
        %3516 = vmatpush.msra.mxu0 0.0
        %3517 = vmatpush.msra.mxu0 0.0
        %3518 = vmatpush.msra.mxu0 0.0
        %3519 = vmatpush.msra.mxu0 0.0
        %3520 = vmatpush.msra.mxu0 0.0
        %3521 = vmatpush.msra.mxu0 0.0
        %3522 = vmatpush.msra.mxu0 0.0
        %3523 = vmatpush.msra.mxu0 0.0
        %3524 = vmatpush.msra.mxu0 0.0
        %3525 = vmatpush.msra.mxu0 0.0
        %3526 = vmatpush.msra.mxu0 %v3497
        %3527 = vmatpush.msra.mxu0 %v3495
        %3528 = vmatpush.msra.mxu0 %v3493
        %3529 = vmatpush.msra.mxu0 %v3491
        %3530 = vmatmul.f32.gmra.mxu0 %v3506
        %v3531 = vpop.f32.mrf.mxu0
        %v3532 = vadd.f32 0.0, %v3531
        %3533 = vmatmul.f32.gmra.mxu0 %v3508
        %v3534 = vpop.f32.mrf.mxu0
        %v3535 = vadd.f32 0.0, %v3534
        %3536 = vmatmul.f32.gmra.mxu0 %v3510
        %v3537 = vpop.f32.mrf.mxu0
        %v3538 = vadd.f32 0.0, %v3537
        %3539 = vmatmul.f32.gmra.mxu0 %v3512
        %v3540 = vpop.f32.mrf.mxu0
        %v3541 = vadd.f32 0.0, %v3540
        %3542 = vdwg.mxu0
        %3543 = vmatpush.msra.mxu0 0.0
        %3544 = vmatpush.msra.mxu0 0.0
        %3545 = vmatpush.msra.mxu0 0.0
        %3546 = vmatpush.msra.mxu0 0.0
        %3547 = vmatpush.msra.mxu0 0.0
        %3548 = vmatpush.msra.mxu0 0.0
        %3549 = vmatpush.msra.mxu0 0.0
        %3550 = vmatpush.msra.mxu0 0.0
        %3551 = vmatpush.msra.mxu0 0.0
        %3552 = vmatpush.msra.mxu0 0.0
        %3553 = vmatpush.msra.mxu0 0.0
        %3554 = vmatpush.msra.mxu0 0.0
        %3555 = vmatpush.msra.mxu0 %v3498
        %3556 = vmatpush.msra.mxu0 %v3496
        %3557 = vmatpush.msra.mxu0 %v3494
        %3558 = vmatpush.msra.mxu0 %v3492
        %3559 = vmatmul.f32.gmra.mxu0 %v3506
        %v3560 = vpop.f32.mrf.mxu0
        %v3561 = vadd.f32 0.0, %v3560
        %3562 = vmatmul.f32.gmra.mxu0 %v3508
        %v3563 = vpop.f32.mrf.mxu0
        %v3564 = vadd.f32 0.0, %v3563
        %3565 = vmatmul.f32.gmra.mxu0 %v3510
        %v3566 = vpop.f32.mrf.mxu0
        %v3567 = vadd.f32 0.0, %v3566
        %3568 = vmatmul.f32.gmra.mxu0 %v3512
        %v3569 = vpop.f32.mrf.mxu0
        %v3570 = vadd.f32 0.0, %v3569
        %3571 = vdwg.mxu0
        %v3572 = vadd.f32 %v3451, %v3532
        %v3573 = vadd.f32 %v3480, %v3561
        %v3574 = vadd.f32 %v3454, %v3535
        %v3575 = vadd.f32 %v3483, %v3564
        %v3576 = vadd.f32 %v3457, %v3538
        %v3577 = vadd.f32 %v3486, %v3567
        %v3578 = vadd.f32 %v3460, %v3541
        %v3579 = vadd.f32 %v3489, %v3570
        %v3580 = vld [vmem:[#allocation6] sm:$0x3]
        %v3582 = vperm.slane %v3580, 0
        %v3583 = vperm.slane %v3580, 1
        %v3586 = vadd.f32 %v3572, %v3582
        %v3587 = vadd.f32 %v3573, %v3583
        %v3588 = vadd.f32 %v3574, %v3582
        %v3589 = vadd.f32 %v3575, %v3583
        %v3590 = vadd.f32 %v3576, %v3582
        %v3591 = vadd.f32 %v3577, %v3583
        %v3592 = vadd.f32 %v3578, %v3582
        %v3593 = vadd.f32 %v3579, %v3583
        %v3594 = vmax.f32 %v3586, 0.0
        %v3595 = vmax.f32 %v3587, 0.0
        %v3596 = vmax.f32 %v3588, 0.0
        %v3597 = vmax.f32 %v3589, 0.0
        %v3598 = vmax.f32 %v3590, 0.0
        %v3599 = vmax.f32 %v3591, 0.0
        %v3600 = vmax.f32 %v3592, 0.0
        %v3601 = vmax.f32 %v3593, 0.0
        %v3610 = vrot.slane %v3594, 1
        %v3611 = vrot.slane %v3596, 1
        %v3612 = vsel %vm637, %v3610, %v3611
        %v3613 = vrot.slane %v3595, 1
        %v3614 = vrot.slane %v3597, 1
        %v3615 = vsel %vm637, %v3613, %v3614
        %v3616 = vrot.slane %v3598, 1
        %v3617 = vsel %vm637, %v3611, %v3616
        %v3618 = vrot.slane %v3599, 1
        %v3619 = vsel %vm637, %v3614, %v3618
        %v3620 = vrot.slane %v3600, 1
        %v3621 = vsel %vm637, %v3616, %v3620
        %v3622 = vrot.slane %v3601, 1
        %v3623 = vsel %vm637, %v3618, %v3622
        %v3632 = vmax.f32 %v3594, %v3612
        %v3633 = vmax.f32 %v3595, %v3615
        %v3634 = vmax.f32 %v3596, %v3617
        %v3635 = vmax.f32 %v3597, %v3619
        %v3636 = vmax.f32 %v3598, %v3621
        %v3637 = vmax.f32 %v3599, %v3623
        %v3638 = vmax.f32 %v3600, %v3620
        %v3639 = vmax.f32 %v3601, %v3622
        %v3640 = vld [vmem:[%s5] sm:$0xff]
        %v3641 = vld [vmem:[%s5 + $0x8] sm:$0x7f]
        %v3643 = vsel %vm931, %v3640, 0
        %v3646 = vsel %vm931, %v3641, 0
        %v3649 = vsel %vm938, %v3638, 0
        %v3652 = vsel %vm938, %v3639, 0
        %3654 = vmatpush.msra.mxu0 0.0
        %3655 = vmatpush.msra.mxu0 0.0
        %3656 = vmatpush.msra.mxu0 0.0
        %3657 = vmatpush.msra.mxu0 0.0
        %3658 = vmatpush.msra.mxu0 0.0
        %3659 = vmatpush.msra.mxu0 0.0
        %3660 = vmatpush.msra.mxu0 0.0
        %3661 = vmatpush.msra.mxu0 0.0
        %3662 = vmatpush.msra.mxu0 0.0
        %3663 = vmatpush.msra.mxu0 0.0
        %3664 = vmatpush.msra.mxu0 0.0
        %3665 = vmatpush.msra.mxu0 0.0
        %3666 = vmatpush.msra.mxu0 %v3649
        %3667 = vmatpush.msra.mxu0 %v3636
        %3668 = vmatpush.msra.mxu0 %v3634
        %3669 = vmatpush.msra.mxu0 %v3632
        %3670 = vmatmul.f32.gmra.mxu0 %v3643
        %v3671 = vpop.f32.mrf.mxu0
        %v3672 = vadd.f32 0.0, %v3671
        %3673 = vmatmul.f32.gmra.mxu0 %v3646
        %v3674 = vpop.f32.mrf.mxu0
        %v3675 = vadd.f32 0.0, %v3674
        %3676 = vdwg.mxu0
        %3677 = vmatpush.msra.mxu0 0.0
        %3678 = vmatpush.msra.mxu0 0.0
        %3679 = vmatpush.msra.mxu0 0.0
        %3680 = vmatpush.msra.mxu0 0.0
        %3681 = vmatpush.msra.mxu0 0.0
        %3682 = vmatpush.msra.mxu0 0.0
        %3683 = vmatpush.msra.mxu0 0.0
        %3684 = vmatpush.msra.mxu0 0.0
        %3685 = vmatpush.msra.mxu0 0.0
        %3686 = vmatpush.msra.mxu0 0.0
        %3687 = vmatpush.msra.mxu0 0.0
        %3688 = vmatpush.msra.mxu0 0.0
        %3689 = vmatpush.msra.mxu0 %v3652
        %3690 = vmatpush.msra.mxu0 %v3637
        %3691 = vmatpush.msra.mxu0 %v3635
        %3692 = vmatpush.msra.mxu0 %v3633
        %3693 = vmatmul.f32.gmra.mxu0 %v3643
        %v3694 = vpop.f32.mrf.mxu0
        %v3695 = vadd.f32 0.0, %v3694
        %3696 = vmatmul.f32.gmra.mxu0 %v3646
        %v3697 = vpop.f32.mrf.mxu0
        %v3698 = vadd.f32 0.0, %v3697
        %3699 = vdwg.mxu0
        %3704 = vrot.lane.b32.xlu0 %v3672, 127
        %v3705 = vpop.permute.xlu0 %3704
        %3706 = vrot.lane.b32.xlu0 %v3695, 127
        %v3707 = vpop.permute.xlu0 %3706
        %3708 = vrot.lane.b32.xlu0 %v3675, 127
        %v3709 = vpop.permute.xlu0 %3708
        %3710 = vrot.lane.b32.xlu0 %v3698, 127
        %v3711 = vpop.permute.xlu0 %3710
        %v3712 = vsel %vm1003, %v3705, %v3707
        %v3713 = vsel %vm1003, %v3709, %v3711
        %v3718 = vmax.f32 %v3672, %v3712
        %v3719 = vmax.f32 %v3695, %v3707
        %v3720 = vmax.f32 %v3675, %v3713
        %v3721 = vmax.f32 %v3698, %v3711
        %v3722 = vld [vmem:[%s6] sm:$0xff]
        %v3723 = vld [vmem:[%s6 + $0x8] sm:$0xff]
        %v3724 = vld [vmem:[%s6 + $0x10] sm:$0xff]
        %v3725 = vld [vmem:[%s6 + $0x18] sm:$0xff]
        %v3726 = vld [vmem:[%s6 + $0x20] sm:$0xff]
        %v3727 = vld [vmem:[%s6 + $0x28] sm:$0xff]
        %v3728 = vld [vmem:[%s6 + $0x30] sm:$0xff]
        %v3729 = vld [vmem:[%s6 + $0x38] sm:$0xff]
        %v3730 = vld [vmem:[%s6 + $0x40] sm:$0xff]
        %v3731 = vld [vmem:[%s6 + $0x48] sm:$0xff]
        %v3732 = vld [vmem:[%s6 + $0x50] sm:$0xff]
        %v3733 = vld [vmem:[%s6 + $0x58] sm:$0xff]
        %v3734 = vld [vmem:[%s6 + $0x60] sm:$0xff]
        %v3735 = vld [vmem:[%s6 + $0x68] sm:$0xff]
        %v3736 = vld [vmem:[%s6 + $0x70] sm:$0xff]
        %v3737 = vld [vmem:[%s6 + $0x78] sm:$0xff]
        %v3738 = vld [vmem:[%s6 + $0x80] sm:$0xff]
        %v3739 = vld [vmem:[%s6 + $0x88] sm:$0xff]
        %v3740 = vld [vmem:[%s6 + $0x90] sm:$0xff]
        %v3741 = vld [vmem:[%s6 + $0x98] sm:$0xff]
        %v3742 = vld [vmem:[%s6 + $0xa0] sm:$0xff]
        %v3743 = vld [vmem:[%s6 + $0xa8] sm:$0xff]
        %v3744 = vld [vmem:[%s6 + $0xb0] sm:$0x7]
        %v3746 = vsel %vm1037, %v3719, 0
        %v3749 = vsel %vm1037, %v3721, 0
        %v3752 = vsel %vm1044, %v3744, 0
        %3754 = vmatpush.msra.mxu0 %v3737
        %3755 = vmatpush.msra.mxu0 %v3736
        %3756 = vmatpush.msra.mxu0 %v3735
        %3757 = vmatpush.msra.mxu0 %v3734
        %3758 = vmatpush.msra.mxu0 %v3733
        %3759 = vmatpush.msra.mxu0 %v3732
        %3760 = vmatpush.msra.mxu0 %v3731
        %3761 = vmatpush.msra.mxu0 %v3730
        %3762 = vmatpush.msra.mxu0 %v3729
        %3763 = vmatpush.msra.mxu0 %v3728
        %3764 = vmatpush.msra.mxu0 %v3727
        %3765 = vmatpush.msra.mxu0 %v3726
        %3766 = vmatpush.msra.mxu0 %v3725
        %3767 = vmatpush.msra.mxu0 %v3724
        %3768 = vmatpush.msra.mxu0 %v3723
        %3769 = vmatpush.msra.mxu0 %v3722
        %3770 = vmatmul.f32.gmra.mxu0 %v3718
        %v3771 = vpop.f32.mrf.mxu0
        %v3772 = vadd.f32 0.0, %v3771
        %3773 = vmatmul.f32.gmra.mxu0 %v3720
        %v3774 = vpop.f32.mrf.mxu0
        %v3775 = vadd.f32 0.0, %v3774
        %3776 = vdwg.mxu0
        %3777 = vmatpush.msra.mxu0 0.0
        %3778 = vmatpush.msra.mxu0 0.0
        %3779 = vmatpush.msra.mxu0 0.0
        %3780 = vmatpush.msra.mxu0 0.0
        %3781 = vmatpush.msra.mxu0 0.0
        %3782 = vmatpush.msra.mxu0 0.0
        %3783 = vmatpush.msra.mxu0 0.0
        %3784 = vmatpush.msra.mxu0 0.0
        %3785 = vmatpush.msra.mxu0 0.0
        %3786 = vmatpush.msra.mxu0 %v3752
        %3787 = vmatpush.msra.mxu0 %v3743
        %3788 = vmatpush.msra.mxu0 %v3742
        %3789 = vmatpush.msra.mxu0 %v3741
        %3790 = vmatpush.msra.mxu0 %v3740
        %3791 = vmatpush.msra.mxu0 %v3739
        %3792 = vmatpush.msra.mxu0 %v3738
        %3793 = vmatmul.f32.gmra.mxu0 %v3746
        %v3794 = vpop.f32.mrf.mxu0
        %v3795 = vadd.f32 %v3772, %v3794
        %3796 = vmatmul.f32.gmra.mxu0 %v3749
        %v3797 = vpop.f32.mrf.mxu0
        %v3798 = vadd.f32 %v3775, %v3797
        %3799 = vdwg.mxu0
        %v3800 = vld [vmem:[#allocation8] sm:$0xff]
        %v3801 = vld [vmem:[#allocation8 + $0x8] sm:$0xff]
        %v3802 = vld [vmem:[#allocation8 + $0x10] sm:$0xff]
        %v3803 = vld [vmem:[#allocation8 + $0x18] sm:$0xff]
        %v3804 = vld [vmem:[#allocation8 + $0x20] sm:$0xff]
        %v3805 = vld [vmem:[#allocation8 + $0x28] sm:$0xff]
        %v3806 = vld [vmem:[#allocation8 + $0x30] sm:$0xff]
        %v3807 = vld [vmem:[#allocation8 + $0x38] sm:$0xff]
        %v3808 = vld [vmem:[#allocation8 + $0x40] sm:$0xff]
        %v3809 = vld [vmem:[#allocation8 + $0x48] sm:$0xff]
        %v3810 = vld [vmem:[#allocation8 + $0x50] sm:$0xff]
        %v3811 = vld [vmem:[#allocation8 + $0x58] sm:$0xff]
        %v3812 = vld [vmem:[#allocation8 + $0x60] sm:$0xff]
        %v3813 = vld [vmem:[#allocation8 + $0x68] sm:$0xff]
        %v3814 = vld [vmem:[#allocation8 + $0x70] sm:$0xff]
        %v3815 = vld [vmem:[#allocation8 + $0x78] sm:$0xff]
        %v3816 = vld [vmem:[#allocation8 + $0x80] sm:$0xff]
        %v3817 = vld [vmem:[#allocation8 + $0x88] sm:$0xff]
        %v3818 = vld [vmem:[#allocation8 + $0x90] sm:$0xff]
        %v3819 = vld [vmem:[#allocation8 + $0x98] sm:$0xff]
        %v3820 = vld [vmem:[#allocation8 + $0xa0] sm:$0xff]
        %v3821 = vld [vmem:[#allocation8 + $0xa8] sm:$0xff]
        %v3822 = vld [vmem:[#allocation8 + $0xb0] sm:$0x3]
        %v3823 = vld [vmem:[#allocation8 + $0xb8] sm:$0x3]
        %v3824 = vld [vmem:[%s1118] sm:$0xff]
        %v3825 = vld [vmem:[%s1118 + $0x8] sm:$0xff]
        %v3826 = vld [vmem:[%s1118 + $0x10] sm:$0xff]
        %v3827 = vld [vmem:[%s1118 + $0x18] sm:$0xff]
        %v3828 = vld [vmem:[%s1118 + $0x20] sm:$0xff]
        %v3829 = vld [vmem:[%s1118 + $0x28] sm:$0xff]
        %v3830 = vld [vmem:[%s1118 + $0x30] sm:$0xff]
        %v3831 = vld [vmem:[%s1118 + $0x38] sm:$0xff]
        %v3832 = vld [vmem:[%s1118 + $0x40] sm:$0xff]
        %v3833 = vld [vmem:[%s1118 + $0x48] sm:$0xff]
        %v3834 = vld [vmem:[%s1118 + $0x50] sm:$0xff]
        %v3835 = vld [vmem:[%s1118 + $0x58] sm:$0xff]
        %v3836 = vld [vmem:[%s1118 + $0x60] sm:$0xff]
        %v3837 = vld [vmem:[%s1118 + $0x68] sm:$0xff]
        %v3838 = vld [vmem:[%s1118 + $0x70] sm:$0xff]
        %v3839 = vld [vmem:[%s1118 + $0x78] sm:$0xff]
        %v3840 = vld [vmem:[%s1118 + $0x80] sm:$0xff]
        %v3841 = vld [vmem:[%s1118 + $0x88] sm:$0xff]
        %v3842 = vld [vmem:[%s1118 + $0x90] sm:$0xff]
        %v3843 = vld [vmem:[%s1118 + $0x98] sm:$0xff]
        %v3844 = vld [vmem:[%s1118 + $0xa0] sm:$0xff]
        %v3845 = vld [vmem:[%s1118 + $0xa8] sm:$0xff]
        %v3846 = vld [vmem:[%s1118 + $0xb0] sm:$0x3]
        %v3847 = vld [vmem:[%s1118 + $0xb8] sm:$0x3]
        %v3850 = vrot.slane %v3795, 1
        %v3851 = vrot.slane %v3798, 1
        %v3852 = vsel %vm637, %v3850, %v3851
        %v3853 = vsel %vm1148, %v3852, 0
        %v3855 = vsel %vm1148, %v3851, 0
        %v3858 = vsel %vm1153, %v3846, 0
        %v3861 = vsel %vm1153, %v3847, 0
        %3863 = vmatpush.msra.mxu0 0.0
        %3864 = vmatpush.msra.mxu0 0.0
        %3865 = vmatpush.msra.mxu0 0.0
        %3866 = vmatpush.msra.mxu0 0.0
        %3867 = vmatpush.msra.mxu0 %v3858
        %3868 = vmatpush.msra.mxu0 %v3844
        %3869 = vmatpush.msra.mxu0 %v3842
        %3870 = vmatpush.msra.mxu0 %v3840
        %3871 = vmatpush.msra.mxu0 %v3838
        %3872 = vmatpush.msra.mxu0 %v3836
        %3873 = vmatpush.msra.mxu0 %v3834
        %3874 = vmatpush.msra.mxu0 %v3832
        %3875 = vmatpush.msra.mxu0 %v3830
        %3876 = vmatpush.msra.mxu0 %v3828
        %3877 = vmatpush.msra.mxu0 %v3826
        %3878 = vmatpush.msra.mxu0 %v3824
        %3879 = vmatmul.f32.gmra.mxu0 %v3853
        %v3880 = vpop.f32.mrf.mxu0
        %v3881 = vadd.f32 0.0, %v3880
        %3882 = vmatmul.f32.gmra.mxu0 %v3855
        %v3883 = vpop.f32.mrf.mxu0
        %v3884 = vadd.f32 0.0, %v3883
        %3885 = vdwg.mxu0
        %3886 = vmatpush.msra.mxu0 0.0
        %3887 = vmatpush.msra.mxu0 0.0
        %3888 = vmatpush.msra.mxu0 0.0
        %3889 = vmatpush.msra.mxu0 0.0
        %3890 = vmatpush.msra.mxu0 %v3861
        %3891 = vmatpush.msra.mxu0 %v3845
        %3892 = vmatpush.msra.mxu0 %v3843
        %3893 = vmatpush.msra.mxu0 %v3841
        %3894 = vmatpush.msra.mxu0 %v3839
        %3895 = vmatpush.msra.mxu0 %v3837
        %3896 = vmatpush.msra.mxu0 %v3835
        %3897 = vmatpush.msra.mxu0 %v3833
        %3898 = vmatpush.msra.mxu0 %v3831
        %3899 = vmatpush.msra.mxu0 %v3829
        %3900 = vmatpush.msra.mxu0 %v3827
        %3901 = vmatpush.msra.mxu0 %v3825
        %3902 = vmatmul.f32.gmra.mxu0 %v3853
        %v3903 = vpop.f32.mrf.mxu0
        %v3904 = vadd.f32 0.0, %v3903
        %3905 = vmatmul.f32.gmra.mxu0 %v3855
        %v3906 = vpop.f32.mrf.mxu0
        %v3907 = vadd.f32 0.0, %v3906
        %3908 = vdwg.mxu0
        %v3909 = vsel %vm1148, %v3795, 0
        %v3911 = vsel %vm1148, %v3798, 0
        %v3914 = vsel %vm1153, %v3822, 0
        %v3917 = vsel %vm1153, %v3823, 0
        %3919 = vmatpush.msra.mxu0 0.0
        %3920 = vmatpush.msra.mxu0 0.0
        %3921 = vmatpush.msra.mxu0 0.0
        %3922 = vmatpush.msra.mxu0 0.0
        %3923 = vmatpush.msra.mxu0 %v3914
        %3924 = vmatpush.msra.mxu0 %v3820
        %3925 = vmatpush.msra.mxu0 %v3818
        %3926 = vmatpush.msra.mxu0 %v3816
        %3927 = vmatpush.msra.mxu0 %v3814
        %3928 = vmatpush.msra.mxu0 %v3812
        %3929 = vmatpush.msra.mxu0 %v3810
        %3930 = vmatpush.msra.mxu0 %v3808
        %3931 = vmatpush.msra.mxu0 %v3806
        %3932 = vmatpush.msra.mxu0 %v3804
        %3933 = vmatpush.msra.mxu0 %v3802
        %3934 = vmatpush.msra.mxu0 %v3800
        %3935 = vmatmul.f32.gmra.mxu0 %v3909
        %v3936 = vpop.f32.mrf.mxu0
        %v3937 = vadd.f32 %v3881, %v3936
        %3938 = vmatmul.f32.gmra.mxu0 %v3911
        %v3939 = vpop.f32.mrf.mxu0
        %v3940 = vadd.f32 %v3884, %v3939
        %3941 = vdwg.mxu0
        %3942 = vmatpush.msra.mxu0 0.0
        %3943 = vmatpush.msra.mxu0 0.0
        %3944 = vmatpush.msra.mxu0 0.0
        %3945 = vmatpush.msra.mxu0 0.0
        %3946 = vmatpush.msra.mxu0 %v3917
        %3947 = vmatpush.msra.mxu0 %v3821
        %3948 = vmatpush.msra.mxu0 %v3819
        %3949 = vmatpush.msra.mxu0 %v3817
        %3950 = vmatpush.msra.mxu0 %v3815
        %3951 = vmatpush.msra.mxu0 %v3813
        %3952 = vmatpush.msra.mxu0 %v3811
        %3953 = vmatpush.msra.mxu0 %v3809
        %3954 = vmatpush.msra.mxu0 %v3807
        %3955 = vmatpush.msra.mxu0 %v3805
        %3956 = vmatpush.msra.mxu0 %v3803
        %3957 = vmatpush.msra.mxu0 %v3801
        %3958 = vmatmul.f32.gmra.mxu0 %v3909
        %v3959 = vpop.f32.mrf.mxu0
        %v3960 = vadd.f32 %v3904, %v3959
        %3961 = vmatmul.f32.gmra.mxu0 %v3911
        %v3962 = vpop.f32.mrf.mxu0
        %v3963 = vadd.f32 %v3907, %v3962
        %3964 = vdwg.mxu0
        %v3965 = vld [vmem:[%s1262] sm:$0xff]
        %v3966 = vld [vmem:[%s1262 + $0x8] sm:$0xff]
        %v3967 = vld [vmem:[%s1262 + $0x10] sm:$0xff]
        %v3968 = vld [vmem:[%s1262 + $0x18] sm:$0xff]
        %v3969 = vld [vmem:[%s1262 + $0x20] sm:$0xff]
        %v3970 = vld [vmem:[%s1262 + $0x28] sm:$0xff]
        %v3971 = vld [vmem:[%s1262 + $0x30] sm:$0xff]
        %v3972 = vld [vmem:[%s1262 + $0x38] sm:$0xff]
        %v3973 = vld [vmem:[%s1262 + $0x40] sm:$0xff]
        %v3974 = vld [vmem:[%s1262 + $0x48] sm:$0xff]
        %v3975 = vld [vmem:[%s1262 + $0x50] sm:$0xff]
        %v3976 = vld [vmem:[%s1262 + $0x58] sm:$0xff]
        %v3977 = vld [vmem:[%s1262 + $0x60] sm:$0xff]
        %v3978 = vld [vmem:[%s1262 + $0x68] sm:$0xff]
        %v3979 = vld [vmem:[%s1262 + $0x70] sm:$0xff]
        %v3980 = vld [vmem:[%s1262 + $0x78] sm:$0xff]
        %v3981 = vld [vmem:[%s1262 + $0x80] sm:$0xff]
        %v3982 = vld [vmem:[%s1262 + $0x88] sm:$0xff]
        %v3983 = vld [vmem:[%s1262 + $0x90] sm:$0xff]
        %v3984 = vld [vmem:[%s1262 + $0x98] sm:$0xff]
        %v3985 = vld [vmem:[%s1262 + $0xa0] sm:$0xff]
        %v3986 = vld [vmem:[%s1262 + $0xa8] sm:$0xff]
        %v3987 = vld [vmem:[%s1262 + $0xb0] sm:$0x3]
        %v3988 = vld [vmem:[%s1262 + $0xb8] sm:$0x3]
        %v3989 = vrot.slane %v3795, 2
        %v3990 = vrot.slane %v3798, 2
        %v3991 = vsel %vm787, %v3989, %v3990
        %v3992 = vsel %vm1148, %v3991, 0
        %v3994 = vsel %vm1148, %v3990, 0
        %v3997 = vsel %vm1153, %v3987, 0
        %v4000 = vsel %vm1153, %v3988, 0
        %4002 = vmatpush.msra.mxu0 0.0
        %4003 = vmatpush.msra.mxu0 0.0
        %4004 = vmatpush.msra.mxu0 0.0
        %4005 = vmatpush.msra.mxu0 0.0
        %4006 = vmatpush.msra.mxu0 %v3997
        %4007 = vmatpush.msra.mxu0 %v3985
        %4008 = vmatpush.msra.mxu0 %v3983
        %4009 = vmatpush.msra.mxu0 %v3981
        %4010 = vmatpush.msra.mxu0 %v3979
        %4011 = vmatpush.msra.mxu0 %v3977
        %4012 = vmatpush.msra.mxu0 %v3975
        %4013 = vmatpush.msra.mxu0 %v3973
        %4014 = vmatpush.msra.mxu0 %v3971
        %4015 = vmatpush.msra.mxu0 %v3969
        %4016 = vmatpush.msra.mxu0 %v3967
        %4017 = vmatpush.msra.mxu0 %v3965
        %4018 = vmatmul.f32.gmra.mxu0 %v3992
        %v4019 = vpop.f32.mrf.mxu0
        %v4020 = vadd.f32 0.0, %v4019
        %4021 = vmatmul.f32.gmra.mxu0 %v3994
        %v4022 = vpop.f32.mrf.mxu0
        %v4023 = vadd.f32 0.0, %v4022
        %4024 = vdwg.mxu0
        %4025 = vmatpush.msra.mxu0 0.0
        %4026 = vmatpush.msra.mxu0 0.0
        %4027 = vmatpush.msra.mxu0 0.0
        %4028 = vmatpush.msra.mxu0 0.0
        %4029 = vmatpush.msra.mxu0 %v4000
        %4030 = vmatpush.msra.mxu0 %v3986
        %4031 = vmatpush.msra.mxu0 %v3984
        %4032 = vmatpush.msra.mxu0 %v3982
        %4033 = vmatpush.msra.mxu0 %v3980
        %4034 = vmatpush.msra.mxu0 %v3978
        %4035 = vmatpush.msra.mxu0 %v3976
        %4036 = vmatpush.msra.mxu0 %v3974
        %4037 = vmatpush.msra.mxu0 %v3972
        %4038 = vmatpush.msra.mxu0 %v3970
        %4039 = vmatpush.msra.mxu0 %v3968
        %4040 = vmatpush.msra.mxu0 %v3966
        %4041 = vmatmul.f32.gmra.mxu0 %v3992
        %v4042 = vpop.f32.mrf.mxu0
        %v4043 = vadd.f32 0.0, %v4042
        %4044 = vmatmul.f32.gmra.mxu0 %v3994
        %v4045 = vpop.f32.mrf.mxu0
        %v4046 = vadd.f32 0.0, %v4045
        %4047 = vdwg.mxu0
        %v4048 = vadd.f32 %v3937, %v4020
        %v4049 = vadd.f32 %v3960, %v4043
        %v4050 = vadd.f32 %v3940, %v4023
        %v4051 = vadd.f32 %v3963, %v4046
        %v4052 = vld [vmem:[#allocation9] sm:$0x3]
        %v4054 = vperm.slane %v4052, 0
        %v4055 = vperm.slane %v4052, 1
        %v4058 = vadd.f32 %v4048, %v4054
        %v4059 = vadd.f32 %v4049, %v4055
        %v4060 = vadd.f32 %v4050, %v4054
        %v4061 = vadd.f32 %v4051, %v4055
        %v4062 = vmax.f32 %v4058, 0.0
        %v4063 = vmax.f32 %v4059, 0.0
        %v4064 = vmax.f32 %v4060, 0.0
        %v4065 = vmax.f32 %v4061, 0.0
        %v4070 = vrot.slane %v4062, 1
        %v4071 = vrot.slane %v4064, 1
        %v4072 = vsel %vm637, %v4070, %v4071
        %v4073 = vrot.slane %v4063, 1
        %v4074 = vrot.slane %v4065, 1
        %v4075 = vsel %vm637, %v4073, %v4074
        %v4080 = vmax.f32 %v4062, %v4072
        %v4081 = vmax.f32 %v4063, %v4075
        %v4082 = vmax.f32 %v4064, %v4071
        %v4083 = vmax.f32 %v4065, %v4074
        %v4084 = vld [vmem:[%s7] sm:$0x3f]
        %v4086 = vsel %vm1383, %v4084, 0
        %v4089 = vsel %vm1387, %v4082, 0
        %v4092 = vsel %vm1387, %v4083, 0
        %4094 = vmatpush.msra.mxu0 0.0
        %4095 = vmatpush.msra.mxu0 0.0
        %4096 = vmatpush.msra.mxu0 0.0
        %4097 = vmatpush.msra.mxu0 0.0
        %4098 = vmatpush.msra.mxu0 0.0
        %4099 = vmatpush.msra.mxu0 0.0
        %4100 = vmatpush.msra.mxu0 0.0
        %4101 = vmatpush.msra.mxu0 0.0
        %4102 = vmatpush.msra.mxu0 0.0
        %4103 = vmatpush.msra.mxu0 0.0
        %4104 = vmatpush.msra.mxu0 0.0
        %4105 = vmatpush.msra.mxu0 0.0
        %4106 = vmatpush.msra.mxu0 0.0
        %4107 = vmatpush.msra.mxu0 0.0
        %4108 = vmatpush.msra.mxu0 %v4089
        %4109 = vmatpush.msra.mxu0 %v4080
        %4110 = vmatmul.f32.gmra.mxu0 %v4086
        %v4111 = vpop.f32.mrf.mxu0
        %v4112 = vadd.f32 0.0, %v4111
        %4113 = vdwg.mxu0
        %4114 = vmatpush.msra.mxu0 0.0
        %4115 = vmatpush.msra.mxu0 0.0
        %4116 = vmatpush.msra.mxu0 0.0
        %4117 = vmatpush.msra.mxu0 0.0
        %4118 = vmatpush.msra.mxu0 0.0
        %4119 = vmatpush.msra.mxu0 0.0
        %4120 = vmatpush.msra.mxu0 0.0
        %4121 = vmatpush.msra.mxu0 0.0
        %4122 = vmatpush.msra.mxu0 0.0
        %4123 = vmatpush.msra.mxu0 0.0
        %4124 = vmatpush.msra.mxu0 0.0
        %4125 = vmatpush.msra.mxu0 0.0
        %4126 = vmatpush.msra.mxu0 0.0
        %4127 = vmatpush.msra.mxu0 0.0
        %4128 = vmatpush.msra.mxu0 %v4092
        %4129 = vmatpush.msra.mxu0 %v4081
        %4130 = vmatmul.f32.gmra.mxu0 %v4086
        %v4131 = vpop.f32.mrf.mxu0
        %v4132 = vadd.f32 0.0, %v4131
        %4133 = vdwg.mxu0
        %4136 = vrot.lane.b32.xlu0 %v4112, 127
        %v4137 = vpop.permute.xlu0 %4136
        %4138 = vrot.lane.b32.xlu0 %v4132, 127
        %v4139 = vpop.permute.xlu0 %4138
        %v4140 = vsel %vm1003, %v4137, %v4139
        %v4143 = vmax.f32 %v4112, %v4140
        %v4144 = vmax.f32 %v4132, %v4139
        %v4145 = vld [vmem:[%s8] sm:$0xff]
        %v4146 = vld [vmem:[%s8 + $0x8] sm:$0xff]
        %v4147 = vld [vmem:[%s8 + $0x10] sm:$0xff]
        %v4148 = vld [vmem:[%s8 + $0x18] sm:$0xff]
        %v4149 = vld [vmem:[%s8 + $0x20] sm:$0xff]
        %v4150 = vld [vmem:[%s8 + $0x28] sm:$0xff]
        %v4151 = vld [vmem:[%s8 + $0x30] sm:$0xff]
        %v4152 = vld [vmem:[%s8 + $0x38] sm:$0xff]
        %v4153 = vld [vmem:[%s8 + $0x40] sm:$0xff]
        %v4154 = vld [vmem:[%s8 + $0x48] sm:$0xff]
        %v4155 = vld [vmem:[%s8 + $0x50] sm:$0xff]
        %v4156 = vld [vmem:[%s8 + $0x58] sm:$0xff]
        %v4157 = vld [vmem:[%s8 + $0x60] sm:$0xff]
        %v4158 = vld [vmem:[%s8 + $0x68] sm:$0xff]
        %v4159 = vld [vmem:[%s8 + $0x70] sm:$0xff]
        %v4160 = vld [vmem:[%s8 + $0x78] sm:$0xff]
        %v4161 = vld [vmem:[%s8 + $0x80] sm:$0xff]
        %v4162 = vld [vmem:[%s8 + $0x88] sm:$0xff]
        %v4163 = vld [vmem:[%s8 + $0x90] sm:$0xff]
        %v4164 = vld [vmem:[%s8 + $0x98] sm:$0xff]
        %v4165 = vld [vmem:[%s8 + $0xa0] sm:$0xff]
        %v4166 = vld [vmem:[%s8 + $0xa8] sm:$0xff]
        %v4167 = vld [vmem:[%s8 + $0xb0] sm:$0xff]
        %v4168 = vld [vmem:[%s8 + $0xb8] sm:$0xff]
        %v4169 = vld [vmem:[%s8 + $0xc0] sm:$0xff]
        %v4170 = vld [vmem:[%s8 + $0xc8] sm:$0x7f]
        %v4172 = vsel %vm1471, %v4144, 0
        %v4175 = vsel %vm637, %v4170, 0
        %4177 = vmatpush.msra.mxu0 %v4160
        %4178 = vmatpush.msra.mxu0 %v4159
        %4179 = vmatpush.msra.mxu0 %v4158
        %4180 = vmatpush.msra.mxu0 %v4157
        %4181 = vmatpush.msra.mxu0 %v4156
        %4182 = vmatpush.msra.mxu0 %v4155
        %4183 = vmatpush.msra.mxu0 %v4154
        %4184 = vmatpush.msra.mxu0 %v4153
        %4185 = vmatpush.msra.mxu0 %v4152
        %4186 = vmatpush.msra.mxu0 %v4151
        %4187 = vmatpush.msra.mxu0 %v4150
        %4188 = vmatpush.msra.mxu0 %v4149
        %4189 = vmatpush.msra.mxu0 %v4148
        %4190 = vmatpush.msra.mxu0 %v4147
        %4191 = vmatpush.msra.mxu0 %v4146
        %4192 = vmatpush.msra.mxu0 %v4145
        %4193 = vmatmul.f32.gmra.mxu0 %v4143
        %v4194 = vpop.f32.mrf.mxu0
        %v4195 = vadd.f32 0.0, %v4194
        %4196 = vdwg.mxu0
        %4197 = vmatpush.msra.mxu0 0.0
        %4198 = vmatpush.msra.mxu0 0.0
        %4199 = vmatpush.msra.mxu0 0.0
        %4200 = vmatpush.msra.mxu0 0.0
        %4201 = vmatpush.msra.mxu0 0.0
        %4202 = vmatpush.msra.mxu0 0.0
        %4203 = vmatpush.msra.mxu0 %v4175
        %4204 = vmatpush.msra.mxu0 %v4169
        %4205 = vmatpush.msra.mxu0 %v4168
        %4206 = vmatpush.msra.mxu0 %v4167
        %4207 = vmatpush.msra.mxu0 %v4166
        %4208 = vmatpush.msra.mxu0 %v4165
        %4209 = vmatpush.msra.mxu0 %v4164
        %4210 = vmatpush.msra.mxu0 %v4163
        %4211 = vmatpush.msra.mxu0 %v4162
        %4212 = vmatpush.msra.mxu0 %v4161
        %4213 = vmatmul.f32.gmra.mxu0 %v4172
        %v4214 = vpop.f32.mrf.mxu0
        %v4215 = vadd.f32 %v4195, %v4214
        %4216 = vdwg.mxu0
        %4217 = vst.msk [vmem:[#allocation2 + $0x3] sm:$0x1] %vm1518, %v4215
        %4218 = vst.msk [vmem:[%s1520 + $0x2] sm:$0x2] %vm1521, %v4215
        %4219 = vst.msk [vmem:[%s1523 + $0x1] sm:$0x4] %vm1524, %v4215
        %4220 = vst.msk [vmem:[%s1526] sm:$0x8] %vm1527, %v4215
        %4221 = vst.msk [vmem:[%s1529 - $0x1] sm:$0x10] %vm1530, %v4215
        %4222 = vst.msk [vmem:[%s1532 - $0x2] sm:$0x20] %vm1533, %v4215
        %s4223 = scalar_lea.vmem %s533, 128 [#allocation3]
        %v4224 = vld [vmem:[%s4223] sm:$0xff]
        %v4225 = vld [vmem:[%s4223 + $0x8] sm:$0xff]
        %v4226 = vld [vmem:[%s4223 + $0x10] sm:$0xff]
        %v4227 = vld [vmem:[%s4223 + $0x18] sm:$0xff]
        %v4228 = vld [vmem:[%s1] sm:$0xff]
        %v4229 = vld [vmem:[%s1 + $0x8] sm:$0xff]
        %v4230 = vld [vmem:[%s1 + $0x10] sm:$0xff]
        %v4231 = vld [vmem:[%s1 + $0x18] sm:$0xff]
        %v4232 = vld [vmem:[%s1 + $0x20] sm:$0xff]
        %v4233 = vld [vmem:[%s1 + $0x28] sm:$0xff]
        %v4234 = vld [vmem:[%s1 + $0x30] sm:$0xff]
        %v4235 = vld [vmem:[%s1 + $0x38] sm:$0xff]
        %v4236 = vld [vmem:[%s624] sm:$0xff]
        %v4237 = vld [vmem:[%s624 + $0x8] sm:$0xff]
        %v4238 = vld [vmem:[%s624 + $0x10] sm:$0xff]
        %v4239 = vld [vmem:[%s624 + $0x18] sm:$0xff]
        %v4240 = vld [vmem:[%s624 + $0x20] sm:$0xff]
        %v4241 = vld [vmem:[%s624 + $0x28] sm:$0xff]
        %v4242 = vld [vmem:[%s624 + $0x30] sm:$0xff]
        %v4243 = vld [vmem:[%s624 + $0x38] sm:$0xff]
        %v4248 = vrot.slane %v4224, 1
        %v4249 = vrot.slane %v4225, 1
        %v4250 = vsel %vm637, %v4248, %v4249
        %v4251 = vrot.slane %v4226, 1
        %v4252 = vsel %vm637, %v4249, %v4251
        %v4253 = vrot.slane %v4227, 1
        %v4254 = vsel %vm637, %v4251, %v4253
        %v4255 = vsel %vm645, %v4250, 0
        %v4257 = vsel %vm645, %v4252, 0
        %v4259 = vsel %vm645, %v4254, 0
        %v4261 = vsel %vm645, %v4253, 0
        %4263 = vmatpush.msra.mxu0 0.0
        %4264 = vmatpush.msra.mxu0 0.0
        %4265 = vmatpush.msra.mxu0 0.0
        %4266 = vmatpush.msra.mxu0 0.0
        %4267 = vmatpush.msra.mxu0 0.0
        %4268 = vmatpush.msra.mxu0 0.0
        %4269 = vmatpush.msra.mxu0 0.0
        %4270 = vmatpush.msra.mxu0 0.0
        %4271 = vmatpush.msra.mxu0 0.0
        %4272 = vmatpush.msra.mxu0 0.0
        %4273 = vmatpush.msra.mxu0 0.0
        %4274 = vmatpush.msra.mxu0 0.0
        %4275 = vmatpush.msra.mxu0 %v4242
        %4276 = vmatpush.msra.mxu0 %v4240
        %4277 = vmatpush.msra.mxu0 %v4238
        %4278 = vmatpush.msra.mxu0 %v4236
        %4279 = vmatmul.f32.gmra.mxu0 %v4255
        %v4280 = vpop.f32.mrf.mxu0
        %v4281 = vadd.f32 0.0, %v4280
        %4282 = vmatmul.f32.gmra.mxu0 %v4257
        %v4283 = vpop.f32.mrf.mxu0
        %v4284 = vadd.f32 0.0, %v4283
        %4285 = vmatmul.f32.gmra.mxu0 %v4259
        %v4286 = vpop.f32.mrf.mxu0
        %v4287 = vadd.f32 0.0, %v4286
        %4288 = vmatmul.f32.gmra.mxu0 %v4261
        %v4289 = vpop.f32.mrf.mxu0
        %v4290 = vadd.f32 0.0, %v4289
        %4291 = vdwg.mxu0
        %4292 = vmatpush.msra.mxu0 0.0
        %4293 = vmatpush.msra.mxu0 0.0
        %4294 = vmatpush.msra.mxu0 0.0
        %4295 = vmatpush.msra.mxu0 0.0
        %4296 = vmatpush.msra.mxu0 0.0
        %4297 = vmatpush.msra.mxu0 0.0
        %4298 = vmatpush.msra.mxu0 0.0
        %4299 = vmatpush.msra.mxu0 0.0
        %4300 = vmatpush.msra.mxu0 0.0
        %4301 = vmatpush.msra.mxu0 0.0
        %4302 = vmatpush.msra.mxu0 0.0
        %4303 = vmatpush.msra.mxu0 0.0
        %4304 = vmatpush.msra.mxu0 %v4243
        %4305 = vmatpush.msra.mxu0 %v4241
        %4306 = vmatpush.msra.mxu0 %v4239
        %4307 = vmatpush.msra.mxu0 %v4237
        %4308 = vmatmul.f32.gmra.mxu0 %v4255
        %v4309 = vpop.f32.mrf.mxu0
        %v4310 = vadd.f32 0.0, %v4309
        %4311 = vmatmul.f32.gmra.mxu0 %v4257
        %v4312 = vpop.f32.mrf.mxu0
        %v4313 = vadd.f32 0.0, %v4312
        %4314 = vmatmul.f32.gmra.mxu0 %v4259
        %v4315 = vpop.f32.mrf.mxu0
        %v4316 = vadd.f32 0.0, %v4315
        %4317 = vmatmul.f32.gmra.mxu0 %v4261
        %v4318 = vpop.f32.mrf.mxu0
        %v4319 = vadd.f32 0.0, %v4318
        %4320 = vdwg.mxu0
        %v4321 = vsel %vm645, %v4224, 0
        %v4323 = vsel %vm645, %v4225, 0
        %v4325 = vsel %vm645, %v4226, 0
        %v4327 = vsel %vm645, %v4227, 0
        %4329 = vmatpush.msra.mxu0 0.0
        %4330 = vmatpush.msra.mxu0 0.0
        %4331 = vmatpush.msra.mxu0 0.0
        %4332 = vmatpush.msra.mxu0 0.0
        %4333 = vmatpush.msra.mxu0 0.0
        %4334 = vmatpush.msra.mxu0 0.0
        %4335 = vmatpush.msra.mxu0 0.0
        %4336 = vmatpush.msra.mxu0 0.0
        %4337 = vmatpush.msra.mxu0 0.0
        %4338 = vmatpush.msra.mxu0 0.0
        %4339 = vmatpush.msra.mxu0 0.0
        %4340 = vmatpush.msra.mxu0 0.0
        %4341 = vmatpush.msra.mxu0 %v4234
        %4342 = vmatpush.msra.mxu0 %v4232
        %4343 = vmatpush.msra.mxu0 %v4230
        %4344 = vmatpush.msra.mxu0 %v4228
        %4345 = vmatmul.f32.gmra.mxu0 %v4321
        %v4346 = vpop.f32.mrf.mxu0
        %v4347 = vadd.f32 %v4281, %v4346
        %4348 = vmatmul.f32.gmra.mxu0 %v4323
        %v4349 = vpop.f32.mrf.mxu0
        %v4350 = vadd.f32 %v4284, %v4349
        %4351 = vmatmul.f32.gmra.mxu0 %v4325
        %v4352 = vpop.f32.mrf.mxu0
        %v4353 = vadd.f32 %v4287, %v4352
        %4354 = vmatmul.f32.gmra.mxu0 %v4327
        %v4355 = vpop.f32.mrf.mxu0
        %v4356 = vadd.f32 %v4290, %v4355
        %4357 = vdwg.mxu0
        %4358 = vmatpush.msra.mxu0 0.0
        %4359 = vmatpush.msra.mxu0 0.0
        %4360 = vmatpush.msra.mxu0 0.0
        %4361 = vmatpush.msra.mxu0 0.0
        %4362 = vmatpush.msra.mxu0 0.0
        %4363 = vmatpush.msra.mxu0 0.0
        %4364 = vmatpush.msra.mxu0 0.0
        %4365 = vmatpush.msra.mxu0 0.0
        %4366 = vmatpush.msra.mxu0 0.0
        %4367 = vmatpush.msra.mxu0 0.0
        %4368 = vmatpush.msra.mxu0 0.0
        %4369 = vmatpush.msra.mxu0 0.0
        %4370 = vmatpush.msra.mxu0 %v4235
        %4371 = vmatpush.msra.mxu0 %v4233
        %4372 = vmatpush.msra.mxu0 %v4231
        %4373 = vmatpush.msra.mxu0 %v4229
        %4374 = vmatmul.f32.gmra.mxu0 %v4321
        %v4375 = vpop.f32.mrf.mxu0
        %v4376 = vadd.f32 %v4310, %v4375
        %4377 = vmatmul.f32.gmra.mxu0 %v4323
        %v4378 = vpop.f32.mrf.mxu0
        %v4379 = vadd.f32 %v4313, %v4378
        %4380 = vmatmul.f32.gmra.mxu0 %v4325
        %v4381 = vpop.f32.mrf.mxu0
        %v4382 = vadd.f32 %v4316, %v4381
        %4383 = vmatmul.f32.gmra.mxu0 %v4327
        %v4384 = vpop.f32.mrf.mxu0
        %v4385 = vadd.f32 %v4319, %v4384
        %4386 = vdwg.mxu0
        %v4387 = vld [vmem:[%s778] sm:$0xff]
        %v4388 = vld [vmem:[%s778 + $0x8] sm:$0xff]
        %v4389 = vld [vmem:[%s778 + $0x10] sm:$0xff]
        %v4390 = vld [vmem:[%s778 + $0x18] sm:$0xff]
        %v4391 = vld [vmem:[%s778 + $0x20] sm:$0xff]
        %v4392 = vld [vmem:[%s778 + $0x28] sm:$0xff]
        %v4393 = vld [vmem:[%s778 + $0x30] sm:$0xff]
        %v4394 = vld [vmem:[%s778 + $0x38] sm:$0xff]
        %v4395 = vrot.slane %v4224, 2
        %v4396 = vrot.slane %v4225, 2
        %v4397 = vsel %vm787, %v4395, %v4396
        %v4398 = vrot.slane %v4226, 2
        %v4399 = vsel %vm787, %v4396, %v4398
        %v4400 = vrot.slane %v4227, 2
        %v4401 = vsel %vm787, %v4398, %v4400
        %v4402 = vsel %vm645, %v4397, 0
        %v4404 = vsel %vm645, %v4399, 0
        %v4406 = vsel %vm645, %v4401, 0
        %v4408 = vsel %vm645, %v4400, 0
        %4410 = vmatpush.msra.mxu0 0.0
        %4411 = vmatpush.msra.mxu0 0.0
        %4412 = vmatpush.msra.mxu0 0.0
        %4413 = vmatpush.msra.mxu0 0.0
        %4414 = vmatpush.msra.mxu0 0.0
        %4415 = vmatpush.msra.mxu0 0.0
        %4416 = vmatpush.msra.mxu0 0.0
        %4417 = vmatpush.msra.mxu0 0.0
        %4418 = vmatpush.msra.mxu0 0.0
        %4419 = vmatpush.msra.mxu0 0.0
        %4420 = vmatpush.msra.mxu0 0.0
        %4421 = vmatpush.msra.mxu0 0.0
        %4422 = vmatpush.msra.mxu0 %v4393
        %4423 = vmatpush.msra.mxu0 %v4391
        %4424 = vmatpush.msra.mxu0 %v4389
        %4425 = vmatpush.msra.mxu0 %v4387
        %4426 = vmatmul.f32.gmra.mxu0 %v4402
        %v4427 = vpop.f32.mrf.mxu0
        %v4428 = vadd.f32 0.0, %v4427
        %4429 = vmatmul.f32.gmra.mxu0 %v4404
        %v4430 = vpop.f32.mrf.mxu0
        %v4431 = vadd.f32 0.0, %v4430
        %4432 = vmatmul.f32.gmra.mxu0 %v4406
        %v4433 = vpop.f32.mrf.mxu0
        %v4434 = vadd.f32 0.0, %v4433
        %4435 = vmatmul.f32.gmra.mxu0 %v4408
        %v4436 = vpop.f32.mrf.mxu0
        %v4437 = vadd.f32 0.0, %v4436
        %4438 = vdwg.mxu0
        %4439 = vmatpush.msra.mxu0 0.0
        %4440 = vmatpush.msra.mxu0 0.0
        %4441 = vmatpush.msra.mxu0 0.0
        %4442 = vmatpush.msra.mxu0 0.0
        %4443 = vmatpush.msra.mxu0 0.0
        %4444 = vmatpush.msra.mxu0 0.0
        %4445 = vmatpush.msra.mxu0 0.0
        %4446 = vmatpush.msra.mxu0 0.0
        %4447 = vmatpush.msra.mxu0 0.0
        %4448 = vmatpush.msra.mxu0 0.0
        %4449 = vmatpush.msra.mxu0 0.0
        %4450 = vmatpush.msra.mxu0 0.0
        %4451 = vmatpush.msra.mxu0 %v4394
        %4452 = vmatpush.msra.mxu0 %v4392
        %4453 = vmatpush.msra.mxu0 %v4390
        %4454 = vmatpush.msra.mxu0 %v4388
        %4455 = vmatmul.f32.gmra.mxu0 %v4402
        %v4456 = vpop.f32.mrf.mxu0
        %v4457 = vadd.f32 0.0, %v4456
        %4458 = vmatmul.f32.gmra.mxu0 %v4404
        %v4459 = vpop.f32.mrf.mxu0
        %v4460 = vadd.f32 0.0, %v4459
        %4461 = vmatmul.f32.gmra.mxu0 %v4406
        %v4462 = vpop.f32.mrf.mxu0
        %v4463 = vadd.f32 0.0, %v4462
        %4464 = vmatmul.f32.gmra.mxu0 %v4408
        %v4465 = vpop.f32.mrf.mxu0
        %v4466 = vadd.f32 0.0, %v4465
        %4467 = vdwg.mxu0
        %v4468 = vadd.f32 %v4347, %v4428
        %v4469 = vadd.f32 %v4376, %v4457
        %v4470 = vadd.f32 %v4350, %v4431
        %v4471 = vadd.f32 %v4379, %v4460
        %v4472 = vadd.f32 %v4353, %v4434
        %v4473 = vadd.f32 %v4382, %v4463
        %v4474 = vadd.f32 %v4356, %v4437
        %v4475 = vadd.f32 %v4385, %v4466
        %v4476 = vld [vmem:[#allocation6] sm:$0x3]
        %v4478 = vperm.slane %v4476, 0
        %v4479 = vperm.slane %v4476, 1
        %v4482 = vadd.f32 %v4468, %v4478
        %v4483 = vadd.f32 %v4469, %v4479
        %v4484 = vadd.f32 %v4470, %v4478
        %v4485 = vadd.f32 %v4471, %v4479
        %v4486 = vadd.f32 %v4472, %v4478
        %v4487 = vadd.f32 %v4473, %v4479
        %v4488 = vadd.f32 %v4474, %v4478
        %v4489 = vadd.f32 %v4475, %v4479
        %v4490 = vmax.f32 %v4482, 0.0
        %v4491 = vmax.f32 %v4483, 0.0
        %v4492 = vmax.f32 %v4484, 0.0
        %v4493 = vmax.f32 %v4485, 0.0
        %v4494 = vmax.f32 %v4486, 0.0
        %v4495 = vmax.f32 %v4487, 0.0
        %v4496 = vmax.f32 %v4488, 0.0
        %v4497 = vmax.f32 %v4489, 0.0
        %v4506 = vrot.slane %v4490, 1
        %v4507 = vrot.slane %v4492, 1
        %v4508 = vsel %vm637, %v4506, %v4507
        %v4509 = vrot.slane %v4491, 1
        %v4510 = vrot.slane %v4493, 1
        %v4511 = vsel %vm637, %v4509, %v4510
        %v4512 = vrot.slane %v4494, 1
        %v4513 = vsel %vm637, %v4507, %v4512
        %v4514 = vrot.slane %v4495, 1
        %v4515 = vsel %vm637, %v4510, %v4514
        %v4516 = vrot.slane %v4496, 1
        %v4517 = vsel %vm637, %v4512, %v4516
        %v4518 = vrot.slane %v4497, 1
        %v4519 = vsel %vm637, %v4514, %v4518
        %v4528 = vmax.f32 %v4490, %v4508
        %v4529 = vmax.f32 %v4491, %v4511
        %v4530 = vmax.f32 %v4492, %v4513
        %v4531 = vmax.f32 %v4493, %v4515
        %v4532 = vmax.f32 %v4494, %v4517
        %v4533 = vmax.f32 %v4495, %v4519
        %v4534 = vmax.f32 %v4496, %v4516
        %v4535 = vmax.f32 %v4497, %v4518
        %v4536 = vld [vmem:[%s5] sm:$0xff]
        %v4537 = vld [vmem:[%s5 + $0x8] sm:$0x7f]
        %v4539 = vsel %vm931, %v4536, 0
        %v4542 = vsel %vm931, %v4537, 0
        %v4545 = vsel %vm938, %v4534, 0
        %v4548 = vsel %vm938, %v4535, 0
        %4550 = vmatpush.msra.mxu0 0.0
        %4551 = vmatpush.msra.mxu0 0.0
        %4552 = vmatpush.msra.mxu0 0.0
        %4553 = vmatpush.msra.mxu0 0.0
        %4554 = vmatpush.msra.mxu0 0.0
        %4555 = vmatpush.msra.mxu0 0.0
        %4556 = vmatpush.msra.mxu0 0.0
        %4557 = vmatpush.msra.mxu0 0.0
        %4558 = vmatpush.msra.mxu0 0.0
        %4559 = vmatpush.msra.mxu0 0.0
        %4560 = vmatpush.msra.mxu0 0.0
        %4561 = vmatpush.msra.mxu0 0.0
        %4562 = vmatpush.msra.mxu0 %v4545
        %4563 = vmatpush.msra.mxu0 %v4532
        %4564 = vmatpush.msra.mxu0 %v4530
        %4565 = vmatpush.msra.mxu0 %v4528
        %4566 = vmatmul.f32.gmra.mxu0 %v4539
        %v4567 = vpop.f32.mrf.mxu0
        %v4568 = vadd.f32 0.0, %v4567
        %4569 = vmatmul.f32.gmra.mxu0 %v4542
        %v4570 = vpop.f32.mrf.mxu0
        %v4571 = vadd.f32 0.0, %v4570
        %4572 = vdwg.mxu0
        %4573 = vmatpush.msra.mxu0 0.0
        %4574 = vmatpush.msra.mxu0 0.0
        %4575 = vmatpush.msra.mxu0 0.0
        %4576 = vmatpush.msra.mxu0 0.0
        %4577 = vmatpush.msra.mxu0 0.0
        %4578 = vmatpush.msra.mxu0 0.0
        %4579 = vmatpush.msra.mxu0 0.0
        %4580 = vmatpush.msra.mxu0 0.0
        %4581 = vmatpush.msra.mxu0 0.0
        %4582 = vmatpush.msra.mxu0 0.0
        %4583 = vmatpush.msra.mxu0 0.0
        %4584 = vmatpush.msra.mxu0 0.0
        %4585 = vmatpush.msra.mxu0 %v4548
        %4586 = vmatpush.msra.mxu0 %v4533
        %4587 = vmatpush.msra.mxu0 %v4531
        %4588 = vmatpush.msra.mxu0 %v4529
        %4589 = vmatmul.f32.gmra.mxu0 %v4539
        %v4590 = vpop.f32.mrf.mxu0
        %v4591 = vadd.f32 0.0, %v4590
        %4592 = vmatmul.f32.gmra.mxu0 %v4542
        %v4593 = vpop.f32.mrf.mxu0
        %v4594 = vadd.f32 0.0, %v4593
        %4595 = vdwg.mxu0
        %4600 = vrot.lane.b32.xlu0 %v4568, 127
        %v4601 = vpop.permute.xlu0 %4600
        %4602 = vrot.lane.b32.xlu0 %v4591, 127
        %v4603 = vpop.permute.xlu0 %4602
        %4604 = vrot.lane.b32.xlu0 %v4571, 127
        %v4605 = vpop.permute.xlu0 %4604
        %4606 = vrot.lane.b32.xlu0 %v4594, 127
        %v4607 = vpop.permute.xlu0 %4606
        %v4608 = vsel %vm1003, %v4601, %v4603
        %v4609 = vsel %vm1003, %v4605, %v4607
        %v4614 = vmax.f32 %v4568, %v4608
        %v4615 = vmax.f32 %v4591, %v4603
        %v4616 = vmax.f32 %v4571, %v4609
        %v4617 = vmax.f32 %v4594, %v4607
        %v4618 = vld [vmem:[%s6] sm:$0xff]
        %v4619 = vld [vmem:[%s6 + $0x8] sm:$0xff]
        %v4620 = vld [vmem:[%s6 + $0x10] sm:$0xff]
        %v4621 = vld [vmem:[%s6 + $0x18] sm:$0xff]
        %v4622 = vld [vmem:[%s6 + $0x20] sm:$0xff]
        %v4623 = vld [vmem:[%s6 + $0x28] sm:$0xff]
        %v4624 = vld [vmem:[%s6 + $0x30] sm:$0xff]
        %v4625 = vld [vmem:[%s6 + $0x38] sm:$0xff]
        %v4626 = vld [vmem:[%s6 + $0x40] sm:$0xff]
        %v4627 = vld [vmem:[%s6 + $0x48] sm:$0xff]
        %v4628 = vld [vmem:[%s6 + $0x50] sm:$0xff]
        %v4629 = vld [vmem:[%s6 + $0x58] sm:$0xff]
        %v4630 = vld [vmem:[%s6 + $0x60] sm:$0xff]
        %v4631 = vld [vmem:[%s6 + $0x68] sm:$0xff]
        %v4632 = vld [vmem:[%s6 + $0x70] sm:$0xff]
        %v4633 = vld [vmem:[%s6 + $0x78] sm:$0xff]
        %v4634 = vld [vmem:[%s6 + $0x80] sm:$0xff]
        %v4635 = vld [vmem:[%s6 + $0x88] sm:$0xff]
        %v4636 = vld [vmem:[%s6 + $0x90] sm:$0xff]
        %v4637 = vld [vmem:[%s6 + $0x98] sm:$0xff]
        %v4638 = vld [vmem:[%s6 + $0xa0] sm:$0xff]
        %v4639 = vld [vmem:[%s6 + $0xa8] sm:$0xff]
        %v4640 = vld [vmem:[%s6 + $0xb0] sm:$0x7]
        %v4642 = vsel %vm1037, %v4615, 0
        %v4645 = vsel %vm1037, %v4617, 0
        %v4648 = vsel %vm1044, %v4640, 0
        %4650 = vmatpush.msra.mxu0 %v4633
        %4651 = vmatpush.msra.mxu0 %v4632
        %4652 = vmatpush.msra.mxu0 %v4631
        %4653 = vmatpush.msra.mxu0 %v4630
        %4654 = vmatpush.msra.mxu0 %v4629
        %4655 = vmatpush.msra.mxu0 %v4628
        %4656 = vmatpush.msra.mxu0 %v4627
        %4657 = vmatpush.msra.mxu0 %v4626
        %4658 = vmatpush.msra.mxu0 %v4625
        %4659 = vmatpush.msra.mxu0 %v4624
        %4660 = vmatpush.msra.mxu0 %v4623
        %4661 = vmatpush.msra.mxu0 %v4622
        %4662 = vmatpush.msra.mxu0 %v4621
        %4663 = vmatpush.msra.mxu0 %v4620
        %4664 = vmatpush.msra.mxu0 %v4619
        %4665 = vmatpush.msra.mxu0 %v4618
        %4666 = vmatmul.f32.gmra.mxu0 %v4614
        %v4667 = vpop.f32.mrf.mxu0
        %v4668 = vadd.f32 0.0, %v4667
        %4669 = vmatmul.f32.gmra.mxu0 %v4616
        %v4670 = vpop.f32.mrf.mxu0
        %v4671 = vadd.f32 0.0, %v4670
        %4672 = vdwg.mxu0
        %4673 = vmatpush.msra.mxu0 0.0
        %4674 = vmatpush.msra.mxu0 0.0
        %4675 = vmatpush.msra.mxu0 0.0
        %4676 = vmatpush.msra.mxu0 0.0
        %4677 = vmatpush.msra.mxu0 0.0
        %4678 = vmatpush.msra.mxu0 0.0
        %4679 = vmatpush.msra.mxu0 0.0
        %4680 = vmatpush.msra.mxu0 0.0
        %4681 = vmatpush.msra.mxu0 0.0
        %4682 = vmatpush.msra.mxu0 %v4648
        %4683 = vmatpush.msra.mxu0 %v4639
        %4684 = vmatpush.msra.mxu0 %v4638
        %4685 = vmatpush.msra.mxu0 %v4637
        %4686 = vmatpush.msra.mxu0 %v4636
        %4687 = vmatpush.msra.mxu0 %v4635
        %4688 = vmatpush.msra.mxu0 %v4634
        %4689 = vmatmul.f32.gmra.mxu0 %v4642
        %v4690 = vpop.f32.mrf.mxu0
        %v4691 = vadd.f32 %v4668, %v4690
        %4692 = vmatmul.f32.gmra.mxu0 %v4645
        %v4693 = vpop.f32.mrf.mxu0
        %v4694 = vadd.f32 %v4671, %v4693
        %4695 = vdwg.mxu0
        %v4696 = vld [vmem:[#allocation8] sm:$0xff]
        %v4697 = vld [vmem:[#allocation8 + $0x8] sm:$0xff]
        %v4698 = vld [vmem:[#allocation8 + $0x10] sm:$0xff]
        %v4699 = vld [vmem:[#allocation8 + $0x18] sm:$0xff]
        %v4700 = vld [vmem:[#allocation8 + $0x20] sm:$0xff]
        %v4701 = vld [vmem:[#allocation8 + $0x28] sm:$0xff]
        %v4702 = vld [vmem:[#allocation8 + $0x30] sm:$0xff]
        %v4703 = vld [vmem:[#allocation8 + $0x38] sm:$0xff]
        %v4704 = vld [vmem:[#allocation8 + $0x40] sm:$0xff]
        %v4705 = vld [vmem:[#allocation8 + $0x48] sm:$0xff]
        %v4706 = vld [vmem:[#allocation8 + $0x50] sm:$0xff]
        %v4707 = vld [vmem:[#allocation8 + $0x58] sm:$0xff]
        %v4708 = vld [vmem:[#allocation8 + $0x60] sm:$0xff]
        %v4709 = vld [vmem:[#allocation8 + $0x68] sm:$0xff]
        %v4710 = vld [vmem:[#allocation8 + $0x70] sm:$0xff]
        %v4711 = vld [vmem:[#allocation8 + $0x78] sm:$0xff]
        %v4712 = vld [vmem:[#allocation8 + $0x80] sm:$0xff]
        %v4713 = vld [vmem:[#allocation8 + $0x88] sm:$0xff]
        %v4714 = vld [vmem:[#allocation8 + $0x90] sm:$0xff]
        %v4715 = vld [vmem:[#allocation8 + $0x98] sm:$0xff]
        %v4716 = vld [vmem:[#allocation8 + $0xa0] sm:$0xff]
        %v4717 = vld [vmem:[#allocation8 + $0xa8] sm:$0xff]
        %v4718 = vld [vmem:[#allocation8 + $0xb0] sm:$0x3]
        %v4719 = vld [vmem:[#allocation8 + $0xb8] sm:$0x3]
        %v4720 = vld [vmem:[%s1118] sm:$0xff]
        %v4721 = vld [vmem:[%s1118 + $0x8] sm:$0xff]
        %v4722 = vld [vmem:[%s1118 + $0x10] sm:$0xff]
        %v4723 = vld [vmem:[%s1118 + $0x18] sm:$0xff]
        %v4724 = vld [vmem:[%s1118 + $0x20] sm:$0xff]
        %v4725 = vld [vmem:[%s1118 + $0x28] sm:$0xff]
        %v4726 = vld [vmem:[%s1118 + $0x30] sm:$0xff]
        %v4727 = vld [vmem:[%s1118 + $0x38] sm:$0xff]
        %v4728 = vld [vmem:[%s1118 + $0x40] sm:$0xff]
        %v4729 = vld [vmem:[%s1118 + $0x48] sm:$0xff]
        %v4730 = vld [vmem:[%s1118 + $0x50] sm:$0xff]
        %v4731 = vld [vmem:[%s1118 + $0x58] sm:$0xff]
        %v4732 = vld [vmem:[%s1118 + $0x60] sm:$0xff]
        %v4733 = vld [vmem:[%s1118 + $0x68] sm:$0xff]
        %v4734 = vld [vmem:[%s1118 + $0x70] sm:$0xff]
        %v4735 = vld [vmem:[%s1118 + $0x78] sm:$0xff]
        %v4736 = vld [vmem:[%s1118 + $0x80] sm:$0xff]
        %v4737 = vld [vmem:[%s1118 + $0x88] sm:$0xff]
        %v4738 = vld [vmem:[%s1118 + $0x90] sm:$0xff]
        %v4739 = vld [vmem:[%s1118 + $0x98] sm:$0xff]
        %v4740 = vld [vmem:[%s1118 + $0xa0] sm:$0xff]
        %v4741 = vld [vmem:[%s1118 + $0xa8] sm:$0xff]
        %v4742 = vld [vmem:[%s1118 + $0xb0] sm:$0x3]
        %v4743 = vld [vmem:[%s1118 + $0xb8] sm:$0x3]
        %v4746 = vrot.slane %v4691, 1
        %v4747 = vrot.slane %v4694, 1
        %v4748 = vsel %vm637, %v4746, %v4747
        %v4749 = vsel %vm1148, %v4748, 0
        %v4751 = vsel %vm1148, %v4747, 0
        %v4754 = vsel %vm1153, %v4742, 0
        %v4757 = vsel %vm1153, %v4743, 0
        %4759 = vmatpush.msra.mxu0 0.0
        %4760 = vmatpush.msra.mxu0 0.0
        %4761 = vmatpush.msra.mxu0 0.0
        %4762 = vmatpush.msra.mxu0 0.0
        %4763 = vmatpush.msra.mxu0 %v4754
        %4764 = vmatpush.msra.mxu0 %v4740
        %4765 = vmatpush.msra.mxu0 %v4738
        %4766 = vmatpush.msra.mxu0 %v4736
        %4767 = vmatpush.msra.mxu0 %v4734
        %4768 = vmatpush.msra.mxu0 %v4732
        %4769 = vmatpush.msra.mxu0 %v4730
        %4770 = vmatpush.msra.mxu0 %v4728
        %4771 = vmatpush.msra.mxu0 %v4726
        %4772 = vmatpush.msra.mxu0 %v4724
        %4773 = vmatpush.msra.mxu0 %v4722
        %4774 = vmatpush.msra.mxu0 %v4720
        %4775 = vmatmul.f32.gmra.mxu0 %v4749
        %v4776 = vpop.f32.mrf.mxu0
        %v4777 = vadd.f32 0.0, %v4776
        %4778 = vmatmul.f32.gmra.mxu0 %v4751
        %v4779 = vpop.f32.mrf.mxu0
        %v4780 = vadd.f32 0.0, %v4779
        %4781 = vdwg.mxu0
        %4782 = vmatpush.msra.mxu0 0.0
        %4783 = vmatpush.msra.mxu0 0.0
        %4784 = vmatpush.msra.mxu0 0.0
        %4785 = vmatpush.msra.mxu0 0.0
        %4786 = vmatpush.msra.mxu0 %v4757
        %4787 = vmatpush.msra.mxu0 %v4741
        %4788 = vmatpush.msra.mxu0 %v4739
        %4789 = vmatpush.msra.mxu0 %v4737
        %4790 = vmatpush.msra.mxu0 %v4735
        %4791 = vmatpush.msra.mxu0 %v4733
        %4792 = vmatpush.msra.mxu0 %v4731
        %4793 = vmatpush.msra.mxu0 %v4729
        %4794 = vmatpush.msra.mxu0 %v4727
        %4795 = vmatpush.msra.mxu0 %v4725
        %4796 = vmatpush.msra.mxu0 %v4723
        %4797 = vmatpush.msra.mxu0 %v4721
        %4798 = vmatmul.f32.gmra.mxu0 %v4749
        %v4799 = vpop.f32.mrf.mxu0
        %v4800 = vadd.f32 0.0, %v4799
        %4801 = vmatmul.f32.gmra.mxu0 %v4751
        %v4802 = vpop.f32.mrf.mxu0
        %v4803 = vadd.f32 0.0, %v4802
        %4804 = vdwg.mxu0
        %v4805 = vsel %vm1148, %v4691, 0
        %v4807 = vsel %vm1148, %v4694, 0
        %v4810 = vsel %vm1153, %v4718, 0
        %v4813 = vsel %vm1153, %v4719, 0
        %4815 = vmatpush.msra.mxu0 0.0
        %4816 = vmatpush.msra.mxu0 0.0
        %4817 = vmatpush.msra.mxu0 0.0
        %4818 = vmatpush.msra.mxu0 0.0
        %4819 = vmatpush.msra.mxu0 %v4810
        %4820 = vmatpush.msra.mxu0 %v4716
        %4821 = vmatpush.msra.mxu0 %v4714
        %4822 = vmatpush.msra.mxu0 %v4712
        %4823 = vmatpush.msra.mxu0 %v4710
        %4824 = vmatpush.msra.mxu0 %v4708
        %4825 = vmatpush.msra.mxu0 %v4706
        %4826 = vmatpush.msra.mxu0 %v4704
        %4827 = vmatpush.msra.mxu0 %v4702
        %4828 = vmatpush.msra.mxu0 %v4700
        %4829 = vmatpush.msra.mxu0 %v4698
        %4830 = vmatpush.msra.mxu0 %v4696
        %4831 = vmatmul.f32.gmra.mxu0 %v4805
        %v4832 = vpop.f32.mrf.mxu0
        %v4833 = vadd.f32 %v4777, %v4832
        %4834 = vmatmul.f32.gmra.mxu0 %v4807
        %v4835 = vpop.f32.mrf.mxu0
        %v4836 = vadd.f32 %v4780, %v4835
        %4837 = vdwg.mxu0
        %4838 = vmatpush.msra.mxu0 0.0
        %4839 = vmatpush.msra.mxu0 0.0
        %4840 = vmatpush.msra.mxu0 0.0
        %4841 = vmatpush.msra.mxu0 0.0
        %4842 = vmatpush.msra.mxu0 %v4813
        %4843 = vmatpush.msra.mxu0 %v4717
        %4844 = vmatpush.msra.mxu0 %v4715
        %4845 = vmatpush.msra.mxu0 %v4713
        %4846 = vmatpush.msra.mxu0 %v4711
        %4847 = vmatpush.msra.mxu0 %v4709
        %4848 = vmatpush.msra.mxu0 %v4707
        %4849 = vmatpush.msra.mxu0 %v4705
        %4850 = vmatpush.msra.mxu0 %v4703
        %4851 = vmatpush.msra.mxu0 %v4701
        %4852 = vmatpush.msra.mxu0 %v4699
        %4853 = vmatpush.msra.mxu0 %v4697
        %4854 = vmatmul.f32.gmra.mxu0 %v4805
        %v4855 = vpop.f32.mrf.mxu0
        %v4856 = vadd.f32 %v4800, %v4855
        %4857 = vmatmul.f32.gmra.mxu0 %v4807
        %v4858 = vpop.f32.mrf.mxu0
        %v4859 = vadd.f32 %v4803, %v4858
        %4860 = vdwg.mxu0
        %v4861 = vld [vmem:[%s1262] sm:$0xff]
        %v4862 = vld [vmem:[%s1262 + $0x8] sm:$0xff]
        %v4863 = vld [vmem:[%s1262 + $0x10] sm:$0xff]
        %v4864 = vld [vmem:[%s1262 + $0x18] sm:$0xff]
        %v4865 = vld [vmem:[%s1262 + $0x20] sm:$0xff]
        %v4866 = vld [vmem:[%s1262 + $0x28] sm:$0xff]
        %v4867 = vld [vmem:[%s1262 + $0x30] sm:$0xff]
        %v4868 = vld [vmem:[%s1262 + $0x38] sm:$0xff]
        %v4869 = vld [vmem:[%s1262 + $0x40] sm:$0xff]
        %v4870 = vld [vmem:[%s1262 + $0x48] sm:$0xff]
        %v4871 = vld [vmem:[%s1262 + $0x50] sm:$0xff]
        %v4872 = vld [vmem:[%s1262 + $0x58] sm:$0xff]
        %v4873 = vld [vmem:[%s1262 + $0x60] sm:$0xff]
        %v4874 = vld [vmem:[%s1262 + $0x68] sm:$0xff]
        %v4875 = vld [vmem:[%s1262 + $0x70] sm:$0xff]
        %v4876 = vld [vmem:[%s1262 + $0x78] sm:$0xff]
        %v4877 = vld [vmem:[%s1262 + $0x80] sm:$0xff]
        %v4878 = vld [vmem:[%s1262 + $0x88] sm:$0xff]
        %v4879 = vld [vmem:[%s1262 + $0x90] sm:$0xff]
        %v4880 = vld [vmem:[%s1262 + $0x98] sm:$0xff]
        %v4881 = vld [vmem:[%s1262 + $0xa0] sm:$0xff]
        %v4882 = vld [vmem:[%s1262 + $0xa8] sm:$0xff]
        %v4883 = vld [vmem:[%s1262 + $0xb0] sm:$0x3]
        %v4884 = vld [vmem:[%s1262 + $0xb8] sm:$0x3]
        %v4885 = vrot.slane %v4691, 2
        %v4886 = vrot.slane %v4694, 2
        %v4887 = vsel %vm787, %v4885, %v4886
        %v4888 = vsel %vm1148, %v4887, 0
        %v4890 = vsel %vm1148, %v4886, 0
        %v4893 = vsel %vm1153, %v4883, 0
        %v4896 = vsel %vm1153, %v4884, 0
        %4898 = vmatpush.msra.mxu0 0.0
        %4899 = vmatpush.msra.mxu0 0.0
        %4900 = vmatpush.msra.mxu0 0.0
        %4901 = vmatpush.msra.mxu0 0.0
        %4902 = vmatpush.msra.mxu0 %v4893
        %4903 = vmatpush.msra.mxu0 %v4881
        %4904 = vmatpush.msra.mxu0 %v4879
        %4905 = vmatpush.msra.mxu0 %v4877
        %4906 = vmatpush.msra.mxu0 %v4875
        %4907 = vmatpush.msra.mxu0 %v4873
        %4908 = vmatpush.msra.mxu0 %v4871
        %4909 = vmatpush.msra.mxu0 %v4869
        %4910 = vmatpush.msra.mxu0 %v4867
        %4911 = vmatpush.msra.mxu0 %v4865
        %4912 = vmatpush.msra.mxu0 %v4863
        %4913 = vmatpush.msra.mxu0 %v4861
        %4914 = vmatmul.f32.gmra.mxu0 %v4888
        %v4915 = vpop.f32.mrf.mxu0
        %v4916 = vadd.f32 0.0, %v4915
        %4917 = vmatmul.f32.gmra.mxu0 %v4890
        %v4918 = vpop.f32.mrf.mxu0
        %v4919 = vadd.f32 0.0, %v4918
        %4920 = vdwg.mxu0
        %4921 = vmatpush.msra.mxu0 0.0
        %4922 = vmatpush.msra.mxu0 0.0
        %4923 = vmatpush.msra.mxu0 0.0
        %4924 = vmatpush.msra.mxu0 0.0
        %4925 = vmatpush.msra.mxu0 %v4896
        %4926 = vmatpush.msra.mxu0 %v4882
        %4927 = vmatpush.msra.mxu0 %v4880
        %4928 = vmatpush.msra.mxu0 %v4878
        %4929 = vmatpush.msra.mxu0 %v4876
        %4930 = vmatpush.msra.mxu0 %v4874
        %4931 = vmatpush.msra.mxu0 %v4872
        %4932 = vmatpush.msra.mxu0 %v4870
        %4933 = vmatpush.msra.mxu0 %v4868
        %4934 = vmatpush.msra.mxu0 %v4866
        %4935 = vmatpush.msra.mxu0 %v4864
        %4936 = vmatpush.msra.mxu0 %v4862
        %4937 = vmatmul.f32.gmra.mxu0 %v4888
        %v4938 = vpop.f32.mrf.mxu0
        %v4939 = vadd.f32 0.0, %v4938
        %4940 = vmatmul.f32.gmra.mxu0 %v4890
        %v4941 = vpop.f32.mrf.mxu0
        %v4942 = vadd.f32 0.0, %v4941
        %4943 = vdwg.mxu0
        %v4944 = vadd.f32 %v4833, %v4916
        %v4945 = vadd.f32 %v4856, %v4939
        %v4946 = vadd.f32 %v4836, %v4919
        %v4947 = vadd.f32 %v4859, %v4942
        %v4948 = vld [vmem:[#allocation9] sm:$0x3]
        %v4950 = vperm.slane %v4948, 0
        %v4951 = vperm.slane %v4948, 1
        %v4954 = vadd.f32 %v4944, %v4950
        %v4955 = vadd.f32 %v4945, %v4951
        %v4956 = vadd.f32 %v4946, %v4950
        %v4957 = vadd.f32 %v4947, %v4951
        %v4958 = vmax.f32 %v4954, 0.0
        %v4959 = vmax.f32 %v4955, 0.0
        %v4960 = vmax.f32 %v4956, 0.0
        %v4961 = vmax.f32 %v4957, 0.0
        %v4966 = vrot.slane %v4958, 1
        %v4967 = vrot.slane %v4960, 1
        %v4968 = vsel %vm637, %v4966, %v4967
        %v4969 = vrot.slane %v4959, 1
        %v4970 = vrot.slane %v4961, 1
        %v4971 = vsel %vm637, %v4969, %v4970
        %v4976 = vmax.f32 %v4958, %v4968
        %v4977 = vmax.f32 %v4959, %v4971
        %v4978 = vmax.f32 %v4960, %v4967
        %v4979 = vmax.f32 %v4961, %v4970
        %v4980 = vld [vmem:[%s7] sm:$0x3f]
        %v4982 = vsel %vm1383, %v4980, 0
        %v4985 = vsel %vm1387, %v4978, 0
        %v4988 = vsel %vm1387, %v4979, 0
        %4990 = vmatpush.msra.mxu0 0.0
        %4991 = vmatpush.msra.mxu0 0.0
        %4992 = vmatpush.msra.mxu0 0.0
        %4993 = vmatpush.msra.mxu0 0.0
        %4994 = vmatpush.msra.mxu0 0.0
        %4995 = vmatpush.msra.mxu0 0.0
        %4996 = vmatpush.msra.mxu0 0.0
        %4997 = vmatpush.msra.mxu0 0.0
        %4998 = vmatpush.msra.mxu0 0.0
        %4999 = vmatpush.msra.mxu0 0.0
        %5000 = vmatpush.msra.mxu0 0.0
        %5001 = vmatpush.msra.mxu0 0.0
        %5002 = vmatpush.msra.mxu0 0.0
        %5003 = vmatpush.msra.mxu0 0.0
        %5004 = vmatpush.msra.mxu0 %v4985
        %5005 = vmatpush.msra.mxu0 %v4976
        %5006 = vmatmul.f32.gmra.mxu0 %v4982
        %v5007 = vpop.f32.mrf.mxu0
        %v5008 = vadd.f32 0.0, %v5007
        %5009 = vdwg.mxu0
        %5010 = vmatpush.msra.mxu0 0.0
        %5011 = vmatpush.msra.mxu0 0.0
        %5012 = vmatpush.msra.mxu0 0.0
        %5013 = vmatpush.msra.mxu0 0.0
        %5014 = vmatpush.msra.mxu0 0.0
        %5015 = vmatpush.msra.mxu0 0.0
        %5016 = vmatpush.msra.mxu0 0.0
        %5017 = vmatpush.msra.mxu0 0.0
        %5018 = vmatpush.msra.mxu0 0.0
        %5019 = vmatpush.msra.mxu0 0.0
        %5020 = vmatpush.msra.mxu0 0.0
        %5021 = vmatpush.msra.mxu0 0.0
        %5022 = vmatpush.msra.mxu0 0.0
        %5023 = vmatpush.msra.mxu0 0.0
        %5024 = vmatpush.msra.mxu0 %v4988
        %5025 = vmatpush.msra.mxu0 %v4977
        %5026 = vmatmul.f32.gmra.mxu0 %v4982
        %v5027 = vpop.f32.mrf.mxu0
        %v5028 = vadd.f32 0.0, %v5027
        %5029 = vdwg.mxu0
        %5032 = vrot.lane.b32.xlu0 %v5008, 127
        %v5033 = vpop.permute.xlu0 %5032
        %5034 = vrot.lane.b32.xlu0 %v5028, 127
        %v5035 = vpop.permute.xlu0 %5034
        %v5036 = vsel %vm1003, %v5033, %v5035
        %v5039 = vmax.f32 %v5008, %v5036
        %v5040 = vmax.f32 %v5028, %v5035
        %v5041 = vld [vmem:[%s8] sm:$0xff]
        %v5042 = vld [vmem:[%s8 + $0x8] sm:$0xff]
        %v5043 = vld [vmem:[%s8 + $0x10] sm:$0xff]
        %v5044 = vld [vmem:[%s8 + $0x18] sm:$0xff]
        %v5045 = vld [vmem:[%s8 + $0x20] sm:$0xff]
        %v5046 = vld [vmem:[%s8 + $0x28] sm:$0xff]
        %v5047 = vld [vmem:[%s8 + $0x30] sm:$0xff]
        %v5048 = vld [vmem:[%s8 + $0x38] sm:$0xff]
        %v5049 = vld [vmem:[%s8 + $0x40] sm:$0xff]
        %v5050 = vld [vmem:[%s8 + $0x48] sm:$0xff]
        %v5051 = vld [vmem:[%s8 + $0x50] sm:$0xff]
        %v5052 = vld [vmem:[%s8 + $0x58] sm:$0xff]
        %v5053 = vld [vmem:[%s8 + $0x60] sm:$0xff]
        %v5054 = vld [vmem:[%s8 + $0x68] sm:$0xff]
        %v5055 = vld [vmem:[%s8 + $0x70] sm:$0xff]
        %v5056 = vld [vmem:[%s8 + $0x78] sm:$0xff]
        %v5057 = vld [vmem:[%s8 + $0x80] sm:$0xff]
        %v5058 = vld [vmem:[%s8 + $0x88] sm:$0xff]
        %v5059 = vld [vmem:[%s8 + $0x90] sm:$0xff]
        %v5060 = vld [vmem:[%s8 + $0x98] sm:$0xff]
        %v5061 = vld [vmem:[%s8 + $0xa0] sm:$0xff]
        %v5062 = vld [vmem:[%s8 + $0xa8] sm:$0xff]
        %v5063 = vld [vmem:[%s8 + $0xb0] sm:$0xff]
        %v5064 = vld [vmem:[%s8 + $0xb8] sm:$0xff]
        %v5065 = vld [vmem:[%s8 + $0xc0] sm:$0xff]
        %v5066 = vld [vmem:[%s8 + $0xc8] sm:$0x7f]
        %v5068 = vsel %vm1471, %v5040, 0
        %v5071 = vsel %vm637, %v5066, 0
        %5073 = vmatpush.msra.mxu0 %v5056
        %5074 = vmatpush.msra.mxu0 %v5055
        %5075 = vmatpush.msra.mxu0 %v5054
        %5076 = vmatpush.msra.mxu0 %v5053
        %5077 = vmatpush.msra.mxu0 %v5052
        %5078 = vmatpush.msra.mxu0 %v5051
        %5079 = vmatpush.msra.mxu0 %v5050
        %5080 = vmatpush.msra.mxu0 %v5049
        %5081 = vmatpush.msra.mxu0 %v5048
        %5082 = vmatpush.msra.mxu0 %v5047
        %5083 = vmatpush.msra.mxu0 %v5046
        %5084 = vmatpush.msra.mxu0 %v5045
        %5085 = vmatpush.msra.mxu0 %v5044
        %5086 = vmatpush.msra.mxu0 %v5043
        %5087 = vmatpush.msra.mxu0 %v5042
        %5088 = vmatpush.msra.mxu0 %v5041
        %5089 = vmatmul.f32.gmra.mxu0 %v5039
        %v5090 = vpop.f32.mrf.mxu0
        %v5091 = vadd.f32 0.0, %v5090
        %5092 = vdwg.mxu0
        %5093 = vmatpush.msra.mxu0 0.0
        %5094 = vmatpush.msra.mxu0 0.0
        %5095 = vmatpush.msra.mxu0 0.0
        %5096 = vmatpush.msra.mxu0 0.0
        %5097 = vmatpush.msra.mxu0 0.0
        %5098 = vmatpush.msra.mxu0 0.0
        %5099 = vmatpush.msra.mxu0 %v5071
        %5100 = vmatpush.msra.mxu0 %v5065
        %5101 = vmatpush.msra.mxu0 %v5064
        %5102 = vmatpush.msra.mxu0 %v5063
        %5103 = vmatpush.msra.mxu0 %v5062
        %5104 = vmatpush.msra.mxu0 %v5061
        %5105 = vmatpush.msra.mxu0 %v5060
        %5106 = vmatpush.msra.mxu0 %v5059
        %5107 = vmatpush.msra.mxu0 %v5058
        %5108 = vmatpush.msra.mxu0 %v5057
        %5109 = vmatmul.f32.gmra.mxu0 %v5068
        %v5110 = vpop.f32.mrf.mxu0
        %v5111 = vadd.f32 %v5091, %v5110
        %5112 = vdwg.mxu0
        %5113 = vst.msk [vmem:[#allocation2 + $0x4] sm:$0x1] %vm1518, %v5111
        %5114 = vst.msk [vmem:[%s1520 + $0x3] sm:$0x2] %vm1521, %v5111
        %5115 = vst.msk [vmem:[%s1523 + $0x2] sm:$0x4] %vm1524, %v5111
        %5116 = vst.msk [vmem:[%s1526 + $0x1] sm:$0x8] %vm1527, %v5111
        %5117 = vst.msk [vmem:[%s1529] sm:$0x10] %vm1530, %v5111
        %5118 = vst.msk [vmem:[%s1532 - $0x1] sm:$0x20] %vm1533, %v5111
        %s5119 = scalar_lea.vmem %s533, 160 [#allocation3]
        %v5120 = vld [vmem:[%s5119] sm:$0xff]
        %v5121 = vld [vmem:[%s5119 + $0x8] sm:$0xff]
        %v5122 = vld [vmem:[%s5119 + $0x10] sm:$0xff]
        %v5123 = vld [vmem:[%s5119 + $0x18] sm:$0xff]
        %v5124 = vld [vmem:[%s1] sm:$0xff]
        %v5125 = vld [vmem:[%s1 + $0x8] sm:$0xff]
        %v5126 = vld [vmem:[%s1 + $0x10] sm:$0xff]
        %v5127 = vld [vmem:[%s1 + $0x18] sm:$0xff]
        %v5128 = vld [vmem:[%s1 + $0x20] sm:$0xff]
        %v5129 = vld [vmem:[%s1 + $0x28] sm:$0xff]
        %v5130 = vld [vmem:[%s1 + $0x30] sm:$0xff]
        %v5131 = vld [vmem:[%s1 + $0x38] sm:$0xff]
        %v5132 = vld [vmem:[%s624] sm:$0xff]
        %v5133 = vld [vmem:[%s624 + $0x8] sm:$0xff]
        %v5134 = vld [vmem:[%s624 + $0x10] sm:$0xff]
        %v5135 = vld [vmem:[%s624 + $0x18] sm:$0xff]
        %v5136 = vld [vmem:[%s624 + $0x20] sm:$0xff]
        %v5137 = vld [vmem:[%s624 + $0x28] sm:$0xff]
        %v5138 = vld [vmem:[%s624 + $0x30] sm:$0xff]
        %v5139 = vld [vmem:[%s624 + $0x38] sm:$0xff]
        %v5144 = vrot.slane %v5120, 1
        %v5145 = vrot.slane %v5121, 1
        %v5146 = vsel %vm637, %v5144, %v5145
        %v5147 = vrot.slane %v5122, 1
        %v5148 = vsel %vm637, %v5145, %v5147
        %v5149 = vrot.slane %v5123, 1
        %v5150 = vsel %vm637, %v5147, %v5149
        %v5151 = vsel %vm645, %v5146, 0
        %v5153 = vsel %vm645, %v5148, 0
        %v5155 = vsel %vm645, %v5150, 0
        %v5157 = vsel %vm645, %v5149, 0
        %5159 = vmatpush.msra.mxu0 0.0
        %5160 = vmatpush.msra.mxu0 0.0
        %5161 = vmatpush.msra.mxu0 0.0
        %5162 = vmatpush.msra.mxu0 0.0
        %5163 = vmatpush.msra.mxu0 0.0
        %5164 = vmatpush.msra.mxu0 0.0
        %5165 = vmatpush.msra.mxu0 0.0
        %5166 = vmatpush.msra.mxu0 0.0
        %5167 = vmatpush.msra.mxu0 0.0
        %5168 = vmatpush.msra.mxu0 0.0
        %5169 = vmatpush.msra.mxu0 0.0
        %5170 = vmatpush.msra.mxu0 0.0
        %5171 = vmatpush.msra.mxu0 %v5138
        %5172 = vmatpush.msra.mxu0 %v5136
        %5173 = vmatpush.msra.mxu0 %v5134
        %5174 = vmatpush.msra.mxu0 %v5132
        %5175 = vmatmul.f32.gmra.mxu0 %v5151
        %v5176 = vpop.f32.mrf.mxu0
        %v5177 = vadd.f32 0.0, %v5176
        %5178 = vmatmul.f32.gmra.mxu0 %v5153
        %v5179 = vpop.f32.mrf.mxu0
        %v5180 = vadd.f32 0.0, %v5179
        %5181 = vmatmul.f32.gmra.mxu0 %v5155
        %v5182 = vpop.f32.mrf.mxu0
        %v5183 = vadd.f32 0.0, %v5182
        %5184 = vmatmul.f32.gmra.mxu0 %v5157
        %v5185 = vpop.f32.mrf.mxu0
        %v5186 = vadd.f32 0.0, %v5185
        %5187 = vdwg.mxu0
        %5188 = vmatpush.msra.mxu0 0.0
        %5189 = vmatpush.msra.mxu0 0.0
        %5190 = vmatpush.msra.mxu0 0.0
        %5191 = vmatpush.msra.mxu0 0.0
        %5192 = vmatpush.msra.mxu0 0.0
        %5193 = vmatpush.msra.mxu0 0.0
        %5194 = vmatpush.msra.mxu0 0.0
        %5195 = vmatpush.msra.mxu0 0.0
        %5196 = vmatpush.msra.mxu0 0.0
        %5197 = vmatpush.msra.mxu0 0.0
        %5198 = vmatpush.msra.mxu0 0.0
        %5199 = vmatpush.msra.mxu0 0.0
        %5200 = vmatpush.msra.mxu0 %v5139
        %5201 = vmatpush.msra.mxu0 %v5137
        %5202 = vmatpush.msra.mxu0 %v5135
        %5203 = vmatpush.msra.mxu0 %v5133
        %5204 = vmatmul.f32.gmra.mxu0 %v5151
        %v5205 = vpop.f32.mrf.mxu0
        %v5206 = vadd.f32 0.0, %v5205
        %5207 = vmatmul.f32.gmra.mxu0 %v5153
        %v5208 = vpop.f32.mrf.mxu0
        %v5209 = vadd.f32 0.0, %v5208
        %5210 = vmatmul.f32.gmra.mxu0 %v5155
        %v5211 = vpop.f32.mrf.mxu0
        %v5212 = vadd.f32 0.0, %v5211
        %5213 = vmatmul.f32.gmra.mxu0 %v5157
        %v5214 = vpop.f32.mrf.mxu0
        %v5215 = vadd.f32 0.0, %v5214
        %5216 = vdwg.mxu0
        %v5217 = vsel %vm645, %v5120, 0
        %v5219 = vsel %vm645, %v5121, 0
        %v5221 = vsel %vm645, %v5122, 0
        %v5223 = vsel %vm645, %v5123, 0
        %5225 = vmatpush.msra.mxu0 0.0
        %5226 = vmatpush.msra.mxu0 0.0
        %5227 = vmatpush.msra.mxu0 0.0
        %5228 = vmatpush.msra.mxu0 0.0
        %5229 = vmatpush.msra.mxu0 0.0
        %5230 = vmatpush.msra.mxu0 0.0
        %5231 = vmatpush.msra.mxu0 0.0
        %5232 = vmatpush.msra.mxu0 0.0
        %5233 = vmatpush.msra.mxu0 0.0
        %5234 = vmatpush.msra.mxu0 0.0
        %5235 = vmatpush.msra.mxu0 0.0
        %5236 = vmatpush.msra.mxu0 0.0
        %5237 = vmatpush.msra.mxu0 %v5130
        %5238 = vmatpush.msra.mxu0 %v5128
        %5239 = vmatpush.msra.mxu0 %v5126
        %5240 = vmatpush.msra.mxu0 %v5124
        %5241 = vmatmul.f32.gmra.mxu0 %v5217
        %v5242 = vpop.f32.mrf.mxu0
        %v5243 = vadd.f32 %v5177, %v5242
        %5244 = vmatmul.f32.gmra.mxu0 %v5219
        %v5245 = vpop.f32.mrf.mxu0
        %v5246 = vadd.f32 %v5180, %v5245
        %5247 = vmatmul.f32.gmra.mxu0 %v5221
        %v5248 = vpop.f32.mrf.mxu0
        %v5249 = vadd.f32 %v5183, %v5248
        %5250 = vmatmul.f32.gmra.mxu0 %v5223
        %v5251 = vpop.f32.mrf.mxu0
        %v5252 = vadd.f32 %v5186, %v5251
        %5253 = vdwg.mxu0
        %5254 = vmatpush.msra.mxu0 0.0
        %5255 = vmatpush.msra.mxu0 0.0
        %5256 = vmatpush.msra.mxu0 0.0
        %5257 = vmatpush.msra.mxu0 0.0
        %5258 = vmatpush.msra.mxu0 0.0
        %5259 = vmatpush.msra.mxu0 0.0
        %5260 = vmatpush.msra.mxu0 0.0
        %5261 = vmatpush.msra.mxu0 0.0
        %5262 = vmatpush.msra.mxu0 0.0
        %5263 = vmatpush.msra.mxu0 0.0
        %5264 = vmatpush.msra.mxu0 0.0
        %5265 = vmatpush.msra.mxu0 0.0
        %5266 = vmatpush.msra.mxu0 %v5131
        %5267 = vmatpush.msra.mxu0 %v5129
        %5268 = vmatpush.msra.mxu0 %v5127
        %5269 = vmatpush.msra.mxu0 %v5125
        %5270 = vmatmul.f32.gmra.mxu0 %v5217
        %v5271 = vpop.f32.mrf.mxu0
        %v5272 = vadd.f32 %v5206, %v5271
        %5273 = vmatmul.f32.gmra.mxu0 %v5219
        %v5274 = vpop.f32.mrf.mxu0
        %v5275 = vadd.f32 %v5209, %v5274
        %5276 = vmatmul.f32.gmra.mxu0 %v5221
        %v5277 = vpop.f32.mrf.mxu0
        %v5278 = vadd.f32 %v5212, %v5277
        %5279 = vmatmul.f32.gmra.mxu0 %v5223
        %v5280 = vpop.f32.mrf.mxu0
        %v5281 = vadd.f32 %v5215, %v5280
        %5282 = vdwg.mxu0
        %v5283 = vld [vmem:[%s778] sm:$0xff]
        %v5284 = vld [vmem:[%s778 + $0x8] sm:$0xff]
        %v5285 = vld [vmem:[%s778 + $0x10] sm:$0xff]
        %v5286 = vld [vmem:[%s778 + $0x18] sm:$0xff]
        %v5287 = vld [vmem:[%s778 + $0x20] sm:$0xff]
        %v5288 = vld [vmem:[%s778 + $0x28] sm:$0xff]
        %v5289 = vld [vmem:[%s778 + $0x30] sm:$0xff]
        %v5290 = vld [vmem:[%s778 + $0x38] sm:$0xff]
        %v5291 = vrot.slane %v5120, 2
        %v5292 = vrot.slane %v5121, 2
        %v5293 = vsel %vm787, %v5291, %v5292
        %v5294 = vrot.slane %v5122, 2
        %v5295 = vsel %vm787, %v5292, %v5294
        %v5296 = vrot.slane %v5123, 2
        %v5297 = vsel %vm787, %v5294, %v5296
        %v5298 = vsel %vm645, %v5293, 0
        %v5300 = vsel %vm645, %v5295, 0
        %v5302 = vsel %vm645, %v5297, 0
        %v5304 = vsel %vm645, %v5296, 0
        %5306 = vmatpush.msra.mxu0 0.0
        %5307 = vmatpush.msra.mxu0 0.0
        %5308 = vmatpush.msra.mxu0 0.0
        %5309 = vmatpush.msra.mxu0 0.0
        %5310 = vmatpush.msra.mxu0 0.0
        %5311 = vmatpush.msra.mxu0 0.0
        %5312 = vmatpush.msra.mxu0 0.0
        %5313 = vmatpush.msra.mxu0 0.0
        %5314 = vmatpush.msra.mxu0 0.0
        %5315 = vmatpush.msra.mxu0 0.0
        %5316 = vmatpush.msra.mxu0 0.0
        %5317 = vmatpush.msra.mxu0 0.0
        %5318 = vmatpush.msra.mxu0 %v5289
        %5319 = vmatpush.msra.mxu0 %v5287
        %5320 = vmatpush.msra.mxu0 %v5285
        %5321 = vmatpush.msra.mxu0 %v5283
        %5322 = vmatmul.f32.gmra.mxu0 %v5298
        %v5323 = vpop.f32.mrf.mxu0
        %v5324 = vadd.f32 0.0, %v5323
        %5325 = vmatmul.f32.gmra.mxu0 %v5300
        %v5326 = vpop.f32.mrf.mxu0
        %v5327 = vadd.f32 0.0, %v5326
        %5328 = vmatmul.f32.gmra.mxu0 %v5302
        %v5329 = vpop.f32.mrf.mxu0
        %v5330 = vadd.f32 0.0, %v5329
        %5331 = vmatmul.f32.gmra.mxu0 %v5304
        %v5332 = vpop.f32.mrf.mxu0
        %v5333 = vadd.f32 0.0, %v5332
        %5334 = vdwg.mxu0
        %5335 = vmatpush.msra.mxu0 0.0
        %5336 = vmatpush.msra.mxu0 0.0
        %5337 = vmatpush.msra.mxu0 0.0
        %5338 = vmatpush.msra.mxu0 0.0
        %5339 = vmatpush.msra.mxu0 0.0
        %5340 = vmatpush.msra.mxu0 0.0
        %5341 = vmatpush.msra.mxu0 0.0
        %5342 = vmatpush.msra.mxu0 0.0
        %5343 = vmatpush.msra.mxu0 0.0
        %5344 = vmatpush.msra.mxu0 0.0
        %5345 = vmatpush.msra.mxu0 0.0
        %5346 = vmatpush.msra.mxu0 0.0
        %5347 = vmatpush.msra.mxu0 %v5290
        %5348 = vmatpush.msra.mxu0 %v5288
        %5349 = vmatpush.msra.mxu0 %v5286
        %5350 = vmatpush.msra.mxu0 %v5284
        %5351 = vmatmul.f32.gmra.mxu0 %v5298
        %v5352 = vpop.f32.mrf.mxu0
        %v5353 = vadd.f32 0.0, %v5352
        %5354 = vmatmul.f32.gmra.mxu0 %v5300
        %v5355 = vpop.f32.mrf.mxu0
        %v5356 = vadd.f32 0.0, %v5355
        %5357 = vmatmul.f32.gmra.mxu0 %v5302
        %v5358 = vpop.f32.mrf.mxu0
        %v5359 = vadd.f32 0.0, %v5358
        %5360 = vmatmul.f32.gmra.mxu0 %v5304
        %v5361 = vpop.f32.mrf.mxu0
        %v5362 = vadd.f32 0.0, %v5361
        %5363 = vdwg.mxu0
        %v5364 = vadd.f32 %v5243, %v5324
        %v5365 = vadd.f32 %v5272, %v5353
        %v5366 = vadd.f32 %v5246, %v5327
        %v5367 = vadd.f32 %v5275, %v5356
        %v5368 = vadd.f32 %v5249, %v5330
        %v5369 = vadd.f32 %v5278, %v5359
        %v5370 = vadd.f32 %v5252, %v5333
        %v5371 = vadd.f32 %v5281, %v5362
        %v5372 = vld [vmem:[#allocation6] sm:$0x3]
        %v5374 = vperm.slane %v5372, 0
        %v5375 = vperm.slane %v5372, 1
        %v5378 = vadd.f32 %v5364, %v5374
        %v5379 = vadd.f32 %v5365, %v5375
        %v5380 = vadd.f32 %v5366, %v5374
        %v5381 = vadd.f32 %v5367, %v5375
        %v5382 = vadd.f32 %v5368, %v5374
        %v5383 = vadd.f32 %v5369, %v5375
        %v5384 = vadd.f32 %v5370, %v5374
        %v5385 = vadd.f32 %v5371, %v5375
        %v5386 = vmax.f32 %v5378, 0.0
        %v5387 = vmax.f32 %v5379, 0.0
        %v5388 = vmax.f32 %v5380, 0.0
        %v5389 = vmax.f32 %v5381, 0.0
        %v5390 = vmax.f32 %v5382, 0.0
        %v5391 = vmax.f32 %v5383, 0.0
        %v5392 = vmax.f32 %v5384, 0.0
        %v5393 = vmax.f32 %v5385, 0.0
        %v5402 = vrot.slane %v5386, 1
        %v5403 = vrot.slane %v5388, 1
        %v5404 = vsel %vm637, %v5402, %v5403
        %v5405 = vrot.slane %v5387, 1
        %v5406 = vrot.slane %v5389, 1
        %v5407 = vsel %vm637, %v5405, %v5406
        %v5408 = vrot.slane %v5390, 1
        %v5409 = vsel %vm637, %v5403, %v5408
        %v5410 = vrot.slane %v5391, 1
        %v5411 = vsel %vm637, %v5406, %v5410
        %v5412 = vrot.slane %v5392, 1
        %v5413 = vsel %vm637, %v5408, %v5412
        %v5414 = vrot.slane %v5393, 1
        %v5415 = vsel %vm637, %v5410, %v5414
        %v5424 = vmax.f32 %v5386, %v5404
        %v5425 = vmax.f32 %v5387, %v5407
        %v5426 = vmax.f32 %v5388, %v5409
        %v5427 = vmax.f32 %v5389, %v5411
        %v5428 = vmax.f32 %v5390, %v5413
        %v5429 = vmax.f32 %v5391, %v5415
        %v5430 = vmax.f32 %v5392, %v5412
        %v5431 = vmax.f32 %v5393, %v5414
        %v5432 = vld [vmem:[%s5] sm:$0xff]
        %v5433 = vld [vmem:[%s5 + $0x8] sm:$0x7f]
        %v5435 = vsel %vm931, %v5432, 0
        %v5438 = vsel %vm931, %v5433, 0
        %v5441 = vsel %vm938, %v5430, 0
        %v5444 = vsel %vm938, %v5431, 0
        %5446 = vmatpush.msra.mxu0 0.0
        %5447 = vmatpush.msra.mxu0 0.0
        %5448 = vmatpush.msra.mxu0 0.0
        %5449 = vmatpush.msra.mxu0 0.0
        %5450 = vmatpush.msra.mxu0 0.0
        %5451 = vmatpush.msra.mxu0 0.0
        %5452 = vmatpush.msra.mxu0 0.0
        %5453 = vmatpush.msra.mxu0 0.0
        %5454 = vmatpush.msra.mxu0 0.0
        %5455 = vmatpush.msra.mxu0 0.0
        %5456 = vmatpush.msra.mxu0 0.0
        %5457 = vmatpush.msra.mxu0 0.0
        %5458 = vmatpush.msra.mxu0 %v5441
        %5459 = vmatpush.msra.mxu0 %v5428
        %5460 = vmatpush.msra.mxu0 %v5426
        %5461 = vmatpush.msra.mxu0 %v5424
        %5462 = vmatmul.f32.gmra.mxu0 %v5435
        %v5463 = vpop.f32.mrf.mxu0
        %v5464 = vadd.f32 0.0, %v5463
        %5465 = vmatmul.f32.gmra.mxu0 %v5438
        %v5466 = vpop.f32.mrf.mxu0
        %v5467 = vadd.f32 0.0, %v5466
        %5468 = vdwg.mxu0
        %5469 = vmatpush.msra.mxu0 0.0
        %5470 = vmatpush.msra.mxu0 0.0
        %5471 = vmatpush.msra.mxu0 0.0
        %5472 = vmatpush.msra.mxu0 0.0
        %5473 = vmatpush.msra.mxu0 0.0
        %5474 = vmatpush.msra.mxu0 0.0
        %5475 = vmatpush.msra.mxu0 0.0
        %5476 = vmatpush.msra.mxu0 0.0
        %5477 = vmatpush.msra.mxu0 0.0
        %5478 = vmatpush.msra.mxu0 0.0
        %5479 = vmatpush.msra.mxu0 0.0
        %5480 = vmatpush.msra.mxu0 0.0
        %5481 = vmatpush.msra.mxu0 %v5444
        %5482 = vmatpush.msra.mxu0 %v5429
        %5483 = vmatpush.msra.mxu0 %v5427
        %5484 = vmatpush.msra.mxu0 %v5425
        %5485 = vmatmul.f32.gmra.mxu0 %v5435
        %v5486 = vpop.f32.mrf.mxu0
        %v5487 = vadd.f32 0.0, %v5486
        %5488 = vmatmul.f32.gmra.mxu0 %v5438
        %v5489 = vpop.f32.mrf.mxu0
        %v5490 = vadd.f32 0.0, %v5489
        %5491 = vdwg.mxu0
        %5496 = vrot.lane.b32.xlu0 %v5464, 127
        %v5497 = vpop.permute.xlu0 %5496
        %5498 = vrot.lane.b32.xlu0 %v5487, 127
        %v5499 = vpop.permute.xlu0 %5498
        %5500 = vrot.lane.b32.xlu0 %v5467, 127
        %v5501 = vpop.permute.xlu0 %5500
        %5502 = vrot.lane.b32.xlu0 %v5490, 127
        %v5503 = vpop.permute.xlu0 %5502
        %v5504 = vsel %vm1003, %v5497, %v5499
        %v5505 = vsel %vm1003, %v5501, %v5503
        %v5510 = vmax.f32 %v5464, %v5504
        %v5511 = vmax.f32 %v5487, %v5499
        %v5512 = vmax.f32 %v5467, %v5505
        %v5513 = vmax.f32 %v5490, %v5503
        %v5514 = vld [vmem:[%s6] sm:$0xff]
        %v5515 = vld [vmem:[%s6 + $0x8] sm:$0xff]
        %v5516 = vld [vmem:[%s6 + $0x10] sm:$0xff]
        %v5517 = vld [vmem:[%s6 + $0x18] sm:$0xff]
        %v5518 = vld [vmem:[%s6 + $0x20] sm:$0xff]
        %v5519 = vld [vmem:[%s6 + $0x28] sm:$0xff]
        %v5520 = vld [vmem:[%s6 + $0x30] sm:$0xff]
        %v5521 = vld [vmem:[%s6 + $0x38] sm:$0xff]
        %v5522 = vld [vmem:[%s6 + $0x40] sm:$0xff]
        %v5523 = vld [vmem:[%s6 + $0x48] sm:$0xff]
        %v5524 = vld [vmem:[%s6 + $0x50] sm:$0xff]
        %v5525 = vld [vmem:[%s6 + $0x58] sm:$0xff]
        %v5526 = vld [vmem:[%s6 + $0x60] sm:$0xff]
        %v5527 = vld [vmem:[%s6 + $0x68] sm:$0xff]
        %v5528 = vld [vmem:[%s6 + $0x70] sm:$0xff]
        %v5529 = vld [vmem:[%s6 + $0x78] sm:$0xff]
        %v5530 = vld [vmem:[%s6 + $0x80] sm:$0xff]
        %v5531 = vld [vmem:[%s6 + $0x88] sm:$0xff]
        %v5532 = vld [vmem:[%s6 + $0x90] sm:$0xff]
        %v5533 = vld [vmem:[%s6 + $0x98] sm:$0xff]
        %v5534 = vld [vmem:[%s6 + $0xa0] sm:$0xff]
        %v5535 = vld [vmem:[%s6 + $0xa8] sm:$0xff]
        %v5536 = vld [vmem:[%s6 + $0xb0] sm:$0x7]
        %v5538 = vsel %vm1037, %v5511, 0
        %v5541 = vsel %vm1037, %v5513, 0
        %v5544 = vsel %vm1044, %v5536, 0
        %5546 = vmatpush.msra.mxu0 %v5529
        %5547 = vmatpush.msra.mxu0 %v5528
        %5548 = vmatpush.msra.mxu0 %v5527
        %5549 = vmatpush.msra.mxu0 %v5526
        %5550 = vmatpush.msra.mxu0 %v5525
        %5551 = vmatpush.msra.mxu0 %v5524
        %5552 = vmatpush.msra.mxu0 %v5523
        %5553 = vmatpush.msra.mxu0 %v5522
        %5554 = vmatpush.msra.mxu0 %v5521
        %5555 = vmatpush.msra.mxu0 %v5520
        %5556 = vmatpush.msra.mxu0 %v5519
        %5557 = vmatpush.msra.mxu0 %v5518
        %5558 = vmatpush.msra.mxu0 %v5517
        %5559 = vmatpush.msra.mxu0 %v5516
        %5560 = vmatpush.msra.mxu0 %v5515
        %5561 = vmatpush.msra.mxu0 %v5514
        %5562 = vmatmul.f32.gmra.mxu0 %v5510
        %v5563 = vpop.f32.mrf.mxu0
        %v5564 = vadd.f32 0.0, %v5563
        %5565 = vmatmul.f32.gmra.mxu0 %v5512
        %v5566 = vpop.f32.mrf.mxu0
        %v5567 = vadd.f32 0.0, %v5566
        %5568 = vdwg.mxu0
        %5569 = vmatpush.msra.mxu0 0.0
        %5570 = vmatpush.msra.mxu0 0.0
        %5571 = vmatpush.msra.mxu0 0.0
        %5572 = vmatpush.msra.mxu0 0.0
        %5573 = vmatpush.msra.mxu0 0.0
        %5574 = vmatpush.msra.mxu0 0.0
        %5575 = vmatpush.msra.mxu0 0.0
        %5576 = vmatpush.msra.mxu0 0.0
        %5577 = vmatpush.msra.mxu0 0.0
        %5578 = vmatpush.msra.mxu0 %v5544
        %5579 = vmatpush.msra.mxu0 %v5535
        %5580 = vmatpush.msra.mxu0 %v5534
        %5581 = vmatpush.msra.mxu0 %v5533
        %5582 = vmatpush.msra.mxu0 %v5532
        %5583 = vmatpush.msra.mxu0 %v5531
        %5584 = vmatpush.msra.mxu0 %v5530
        %5585 = vmatmul.f32.gmra.mxu0 %v5538
        %v5586 = vpop.f32.mrf.mxu0
        %v5587 = vadd.f32 %v5564, %v5586
        %5588 = vmatmul.f32.gmra.mxu0 %v5541
        %v5589 = vpop.f32.mrf.mxu0
        %v5590 = vadd.f32 %v5567, %v5589
        %5591 = vdwg.mxu0
        %v5592 = vld [vmem:[#allocation8] sm:$0xff]
        %v5593 = vld [vmem:[#allocation8 + $0x8] sm:$0xff]
        %v5594 = vld [vmem:[#allocation8 + $0x10] sm:$0xff]
        %v5595 = vld [vmem:[#allocation8 + $0x18] sm:$0xff]
        %v5596 = vld [vmem:[#allocation8 + $0x20] sm:$0xff]
        %v5597 = vld [vmem:[#allocation8 + $0x28] sm:$0xff]
        %v5598 = vld [vmem:[#allocation8 + $0x30] sm:$0xff]
        %v5599 = vld [vmem:[#allocation8 + $0x38] sm:$0xff]
        %v5600 = vld [vmem:[#allocation8 + $0x40] sm:$0xff]
        %v5601 = vld [vmem:[#allocation8 + $0x48] sm:$0xff]
        %v5602 = vld [vmem:[#allocation8 + $0x50] sm:$0xff]
        %v5603 = vld [vmem:[#allocation8 + $0x58] sm:$0xff]
        %v5604 = vld [vmem:[#allocation8 + $0x60] sm:$0xff]
        %v5605 = vld [vmem:[#allocation8 + $0x68] sm:$0xff]
        %v5606 = vld [vmem:[#allocation8 + $0x70] sm:$0xff]
        %v5607 = vld [vmem:[#allocation8 + $0x78] sm:$0xff]
        %v5608 = vld [vmem:[#allocation8 + $0x80] sm:$0xff]
        %v5609 = vld [vmem:[#allocation8 + $0x88] sm:$0xff]
        %v5610 = vld [vmem:[#allocation8 + $0x90] sm:$0xff]
        %v5611 = vld [vmem:[#allocation8 + $0x98] sm:$0xff]
        %v5612 = vld [vmem:[#allocation8 + $0xa0] sm:$0xff]
        %v5613 = vld [vmem:[#allocation8 + $0xa8] sm:$0xff]
        %v5614 = vld [vmem:[#allocation8 + $0xb0] sm:$0x3]
        %v5615 = vld [vmem:[#allocation8 + $0xb8] sm:$0x3]
        %v5616 = vld [vmem:[%s1118] sm:$0xff]
        %v5617 = vld [vmem:[%s1118 + $0x8] sm:$0xff]
        %v5618 = vld [vmem:[%s1118 + $0x10] sm:$0xff]
        %v5619 = vld [vmem:[%s1118 + $0x18] sm:$0xff]
        %v5620 = vld [vmem:[%s1118 + $0x20] sm:$0xff]
        %v5621 = vld [vmem:[%s1118 + $0x28] sm:$0xff]
        %v5622 = vld [vmem:[%s1118 + $0x30] sm:$0xff]
        %v5623 = vld [vmem:[%s1118 + $0x38] sm:$0xff]
        %v5624 = vld [vmem:[%s1118 + $0x40] sm:$0xff]
        %v5625 = vld [vmem:[%s1118 + $0x48] sm:$0xff]
        %v5626 = vld [vmem:[%s1118 + $0x50] sm:$0xff]
        %v5627 = vld [vmem:[%s1118 + $0x58] sm:$0xff]
        %v5628 = vld [vmem:[%s1118 + $0x60] sm:$0xff]
        %v5629 = vld [vmem:[%s1118 + $0x68] sm:$0xff]
        %v5630 = vld [vmem:[%s1118 + $0x70] sm:$0xff]
        %v5631 = vld [vmem:[%s1118 + $0x78] sm:$0xff]
        %v5632 = vld [vmem:[%s1118 + $0x80] sm:$0xff]
        %v5633 = vld [vmem:[%s1118 + $0x88] sm:$0xff]
        %v5634 = vld [vmem:[%s1118 + $0x90] sm:$0xff]
        %v5635 = vld [vmem:[%s1118 + $0x98] sm:$0xff]
        %v5636 = vld [vmem:[%s1118 + $0xa0] sm:$0xff]
        %v5637 = vld [vmem:[%s1118 + $0xa8] sm:$0xff]
        %v5638 = vld [vmem:[%s1118 + $0xb0] sm:$0x3]
        %v5639 = vld [vmem:[%s1118 + $0xb8] sm:$0x3]
        %v5642 = vrot.slane %v5587, 1
        %v5643 = vrot.slane %v5590, 1
        %v5644 = vsel %vm637, %v5642, %v5643
        %v5645 = vsel %vm1148, %v5644, 0
        %v5647 = vsel %vm1148, %v5643, 0
        %v5650 = vsel %vm1153, %v5638, 0
        %v5653 = vsel %vm1153, %v5639, 0
        %5655 = vmatpush.msra.mxu0 0.0
        %5656 = vmatpush.msra.mxu0 0.0
        %5657 = vmatpush.msra.mxu0 0.0
        %5658 = vmatpush.msra.mxu0 0.0
        %5659 = vmatpush.msra.mxu0 %v5650
        %5660 = vmatpush.msra.mxu0 %v5636
        %5661 = vmatpush.msra.mxu0 %v5634
        %5662 = vmatpush.msra.mxu0 %v5632
        %5663 = vmatpush.msra.mxu0 %v5630
        %5664 = vmatpush.msra.mxu0 %v5628
        %5665 = vmatpush.msra.mxu0 %v5626
        %5666 = vmatpush.msra.mxu0 %v5624
        %5667 = vmatpush.msra.mxu0 %v5622
        %5668 = vmatpush.msra.mxu0 %v5620
        %5669 = vmatpush.msra.mxu0 %v5618
        %5670 = vmatpush.msra.mxu0 %v5616
        %5671 = vmatmul.f32.gmra.mxu0 %v5645
        %v5672 = vpop.f32.mrf.mxu0
        %v5673 = vadd.f32 0.0, %v5672
        %5674 = vmatmul.f32.gmra.mxu0 %v5647
        %v5675 = vpop.f32.mrf.mxu0
        %v5676 = vadd.f32 0.0, %v5675
        %5677 = vdwg.mxu0
        %5678 = vmatpush.msra.mxu0 0.0
        %5679 = vmatpush.msra.mxu0 0.0
        %5680 = vmatpush.msra.mxu0 0.0
        %5681 = vmatpush.msra.mxu0 0.0
        %5682 = vmatpush.msra.mxu0 %v5653
        %5683 = vmatpush.msra.mxu0 %v5637
        %5684 = vmatpush.msra.mxu0 %v5635
        %5685 = vmatpush.msra.mxu0 %v5633
        %5686 = vmatpush.msra.mxu0 %v5631
        %5687 = vmatpush.msra.mxu0 %v5629
        %5688 = vmatpush.msra.mxu0 %v5627
        %5689 = vmatpush.msra.mxu0 %v5625
        %5690 = vmatpush.msra.mxu0 %v5623
        %5691 = vmatpush.msra.mxu0 %v5621
        %5692 = vmatpush.msra.mxu0 %v5619
        %5693 = vmatpush.msra.mxu0 %v5617
        %5694 = vmatmul.f32.gmra.mxu0 %v5645
        %v5695 = vpop.f32.mrf.mxu0
        %v5696 = vadd.f32 0.0, %v5695
        %5697 = vmatmul.f32.gmra.mxu0 %v5647
        %v5698 = vpop.f32.mrf.mxu0
        %v5699 = vadd.f32 0.0, %v5698
        %5700 = vdwg.mxu0
        %v5701 = vsel %vm1148, %v5587, 0
        %v5703 = vsel %vm1148, %v5590, 0
        %v5706 = vsel %vm1153, %v5614, 0
        %v5709 = vsel %vm1153, %v5615, 0
        %5711 = vmatpush.msra.mxu0 0.0
        %5712 = vmatpush.msra.mxu0 0.0
        %5713 = vmatpush.msra.mxu0 0.0
        %5714 = vmatpush.msra.mxu0 0.0
        %5715 = vmatpush.msra.mxu0 %v5706
        %5716 = vmatpush.msra.mxu0 %v5612
        %5717 = vmatpush.msra.mxu0 %v5610
        %5718 = vmatpush.msra.mxu0 %v5608
        %5719 = vmatpush.msra.mxu0 %v5606
        %5720 = vmatpush.msra.mxu0 %v5604
        %5721 = vmatpush.msra.mxu0 %v5602
        %5722 = vmatpush.msra.mxu0 %v5600
        %5723 = vmatpush.msra.mxu0 %v5598
        %5724 = vmatpush.msra.mxu0 %v5596
        %5725 = vmatpush.msra.mxu0 %v5594
        %5726 = vmatpush.msra.mxu0 %v5592
        %5727 = vmatmul.f32.gmra.mxu0 %v5701
        %v5728 = vpop.f32.mrf.mxu0
        %v5729 = vadd.f32 %v5673, %v5728
        %5730 = vmatmul.f32.gmra.mxu0 %v5703
        %v5731 = vpop.f32.mrf.mxu0
        %v5732 = vadd.f32 %v5676, %v5731
        %5733 = vdwg.mxu0
        %5734 = vmatpush.msra.mxu0 0.0
        %5735 = vmatpush.msra.mxu0 0.0
        %5736 = vmatpush.msra.mxu0 0.0
        %5737 = vmatpush.msra.mxu0 0.0
        %5738 = vmatpush.msra.mxu0 %v5709
        %5739 = vmatpush.msra.mxu0 %v5613
        %5740 = vmatpush.msra.mxu0 %v5611
        %5741 = vmatpush.msra.mxu0 %v5609
        %5742 = vmatpush.msra.mxu0 %v5607
        %5743 = vmatpush.msra.mxu0 %v5605
        %5744 = vmatpush.msra.mxu0 %v5603
        %5745 = vmatpush.msra.mxu0 %v5601
        %5746 = vmatpush.msra.mxu0 %v5599
        %5747 = vmatpush.msra.mxu0 %v5597
        %5748 = vmatpush.msra.mxu0 %v5595
        %5749 = vmatpush.msra.mxu0 %v5593
        %5750 = vmatmul.f32.gmra.mxu0 %v5701
        %v5751 = vpop.f32.mrf.mxu0
        %v5752 = vadd.f32 %v5696, %v5751
        %5753 = vmatmul.f32.gmra.mxu0 %v5703
        %v5754 = vpop.f32.mrf.mxu0
        %v5755 = vadd.f32 %v5699, %v5754
        %5756 = vdwg.mxu0
        %v5757 = vld [vmem:[%s1262] sm:$0xff]
        %v5758 = vld [vmem:[%s1262 + $0x8] sm:$0xff]
        %v5759 = vld [vmem:[%s1262 + $0x10] sm:$0xff]
        %v5760 = vld [vmem:[%s1262 + $0x18] sm:$0xff]
        %v5761 = vld [vmem:[%s1262 + $0x20] sm:$0xff]
        %v5762 = vld [vmem:[%s1262 + $0x28] sm:$0xff]
        %v5763 = vld [vmem:[%s1262 + $0x30] sm:$0xff]
        %v5764 = vld [vmem:[%s1262 + $0x38] sm:$0xff]
        %v5765 = vld [vmem:[%s1262 + $0x40] sm:$0xff]
        %v5766 = vld [vmem:[%s1262 + $0x48] sm:$0xff]
        %v5767 = vld [vmem:[%s1262 + $0x50] sm:$0xff]
        %v5768 = vld [vmem:[%s1262 + $0x58] sm:$0xff]
        %v5769 = vld [vmem:[%s1262 + $0x60] sm:$0xff]
        %v5770 = vld [vmem:[%s1262 + $0x68] sm:$0xff]
        %v5771 = vld [vmem:[%s1262 + $0x70] sm:$0xff]
        %v5772 = vld [vmem:[%s1262 + $0x78] sm:$0xff]
        %v5773 = vld [vmem:[%s1262 + $0x80] sm:$0xff]
        %v5774 = vld [vmem:[%s1262 + $0x88] sm:$0xff]
        %v5775 = vld [vmem:[%s1262 + $0x90] sm:$0xff]
        %v5776 = vld [vmem:[%s1262 + $0x98] sm:$0xff]
        %v5777 = vld [vmem:[%s1262 + $0xa0] sm:$0xff]
        %v5778 = vld [vmem:[%s1262 + $0xa8] sm:$0xff]
        %v5779 = vld [vmem:[%s1262 + $0xb0] sm:$0x3]
        %v5780 = vld [vmem:[%s1262 + $0xb8] sm:$0x3]
        %v5781 = vrot.slane %v5587, 2
        %v5782 = vrot.slane %v5590, 2
        %v5783 = vsel %vm787, %v5781, %v5782
        %v5784 = vsel %vm1148, %v5783, 0
        %v5786 = vsel %vm1148, %v5782, 0
        %v5789 = vsel %vm1153, %v5779, 0
        %v5792 = vsel %vm1153, %v5780, 0
        %5794 = vmatpush.msra.mxu0 0.0
        %5795 = vmatpush.msra.mxu0 0.0
        %5796 = vmatpush.msra.mxu0 0.0
        %5797 = vmatpush.msra.mxu0 0.0
        %5798 = vmatpush.msra.mxu0 %v5789
        %5799 = vmatpush.msra.mxu0 %v5777
        %5800 = vmatpush.msra.mxu0 %v5775
        %5801 = vmatpush.msra.mxu0 %v5773
        %5802 = vmatpush.msra.mxu0 %v5771
        %5803 = vmatpush.msra.mxu0 %v5769
        %5804 = vmatpush.msra.mxu0 %v5767
        %5805 = vmatpush.msra.mxu0 %v5765
        %5806 = vmatpush.msra.mxu0 %v5763
        %5807 = vmatpush.msra.mxu0 %v5761
        %5808 = vmatpush.msra.mxu0 %v5759
        %5809 = vmatpush.msra.mxu0 %v5757
        %5810 = vmatmul.f32.gmra.mxu0 %v5784
        %v5811 = vpop.f32.mrf.mxu0
        %v5812 = vadd.f32 0.0, %v5811
        %5813 = vmatmul.f32.gmra.mxu0 %v5786
        %v5814 = vpop.f32.mrf.mxu0
        %v5815 = vadd.f32 0.0, %v5814
        %5816 = vdwg.mxu0
        %5817 = vmatpush.msra.mxu0 0.0
        %5818 = vmatpush.msra.mxu0 0.0
        %5819 = vmatpush.msra.mxu0 0.0
        %5820 = vmatpush.msra.mxu0 0.0
        %5821 = vmatpush.msra.mxu0 %v5792
        %5822 = vmatpush.msra.mxu0 %v5778
        %5823 = vmatpush.msra.mxu0 %v5776
        %5824 = vmatpush.msra.mxu0 %v5774
        %5825 = vmatpush.msra.mxu0 %v5772
        %5826 = vmatpush.msra.mxu0 %v5770
        %5827 = vmatpush.msra.mxu0 %v5768
        %5828 = vmatpush.msra.mxu0 %v5766
        %5829 = vmatpush.msra.mxu0 %v5764
        %5830 = vmatpush.msra.mxu0 %v5762
        %5831 = vmatpush.msra.mxu0 %v5760
        %5832 = vmatpush.msra.mxu0 %v5758
        %5833 = vmatmul.f32.gmra.mxu0 %v5784
        %v5834 = vpop.f32.mrf.mxu0
        %v5835 = vadd.f32 0.0, %v5834
        %5836 = vmatmul.f32.gmra.mxu0 %v5786
        %v5837 = vpop.f32.mrf.mxu0
        %v5838 = vadd.f32 0.0, %v5837
        %5839 = vdwg.mxu0
        %v5840 = vadd.f32 %v5729, %v5812
        %v5841 = vadd.f32 %v5752, %v5835
        %v5842 = vadd.f32 %v5732, %v5815
        %v5843 = vadd.f32 %v5755, %v5838
        %v5844 = vld [vmem:[#allocation9] sm:$0x3]
        %v5846 = vperm.slane %v5844, 0
        %v5847 = vperm.slane %v5844, 1
        %v5850 = vadd.f32 %v5840, %v5846
        %v5851 = vadd.f32 %v5841, %v5847
        %v5852 = vadd.f32 %v5842, %v5846
        %v5853 = vadd.f32 %v5843, %v5847
        %v5854 = vmax.f32 %v5850, 0.0
        %v5855 = vmax.f32 %v5851, 0.0
        %v5856 = vmax.f32 %v5852, 0.0
        %v5857 = vmax.f32 %v5853, 0.0
        %v5862 = vrot.slane %v5854, 1
        %v5863 = vrot.slane %v5856, 1
        %v5864 = vsel %vm637, %v5862, %v5863
        %v5865 = vrot.slane %v5855, 1
        %v5866 = vrot.slane %v5857, 1
        %v5867 = vsel %vm637, %v5865, %v5866
        %v5872 = vmax.f32 %v5854, %v5864
        %v5873 = vmax.f32 %v5855, %v5867
        %v5874 = vmax.f32 %v5856, %v5863
        %v5875 = vmax.f32 %v5857, %v5866
        %v5876 = vld [vmem:[%s7] sm:$0x3f]
        %v5878 = vsel %vm1383, %v5876, 0
        %v5881 = vsel %vm1387, %v5874, 0
        %v5884 = vsel %vm1387, %v5875, 0
        %5886 = vmatpush.msra.mxu0 0.0
        %5887 = vmatpush.msra.mxu0 0.0
        %5888 = vmatpush.msra.mxu0 0.0
        %5889 = vmatpush.msra.mxu0 0.0
        %5890 = vmatpush.msra.mxu0 0.0
        %5891 = vmatpush.msra.mxu0 0.0
        %5892 = vmatpush.msra.mxu0 0.0
        %5893 = vmatpush.msra.mxu0 0.0
        %5894 = vmatpush.msra.mxu0 0.0
        %5895 = vmatpush.msra.mxu0 0.0
        %5896 = vmatpush.msra.mxu0 0.0
        %5897 = vmatpush.msra.mxu0 0.0
        %5898 = vmatpush.msra.mxu0 0.0
        %5899 = vmatpush.msra.mxu0 0.0
        %5900 = vmatpush.msra.mxu0 %v5881
        %5901 = vmatpush.msra.mxu0 %v5872
        %5902 = vmatmul.f32.gmra.mxu0 %v5878
        %v5903 = vpop.f32.mrf.mxu0
        %v5904 = vadd.f32 0.0, %v5903
        %5905 = vdwg.mxu0
        %5906 = vmatpush.msra.mxu0 0.0
        %5907 = vmatpush.msra.mxu0 0.0
        %5908 = vmatpush.msra.mxu0 0.0
        %5909 = vmatpush.msra.mxu0 0.0
        %5910 = vmatpush.msra.mxu0 0.0
        %5911 = vmatpush.msra.mxu0 0.0
        %5912 = vmatpush.msra.mxu0 0.0
        %5913 = vmatpush.msra.mxu0 0.0
        %5914 = vmatpush.msra.mxu0 0.0
        %5915 = vmatpush.msra.mxu0 0.0
        %5916 = vmatpush.msra.mxu0 0.0
        %5917 = vmatpush.msra.mxu0 0.0
        %5918 = vmatpush.msra.mxu0 0.0
        %5919 = vmatpush.msra.mxu0 0.0
        %5920 = vmatpush.msra.mxu0 %v5884
        %5921 = vmatpush.msra.mxu0 %v5873
        %5922 = vmatmul.f32.gmra.mxu0 %v5878
        %v5923 = vpop.f32.mrf.mxu0
        %v5924 = vadd.f32 0.0, %v5923
        %5925 = vdwg.mxu0
        %5928 = vrot.lane.b32.xlu0 %v5904, 127
        %v5929 = vpop.permute.xlu0 %5928
        %5930 = vrot.lane.b32.xlu0 %v5924, 127
        %v5931 = vpop.permute.xlu0 %5930
        %v5932 = vsel %vm1003, %v5929, %v5931
        %v5935 = vmax.f32 %v5904, %v5932
        %v5936 = vmax.f32 %v5924, %v5931
        %v5937 = vld [vmem:[%s8] sm:$0xff]
        %v5938 = vld [vmem:[%s8 + $0x8] sm:$0xff]
        %v5939 = vld [vmem:[%s8 + $0x10] sm:$0xff]
        %v5940 = vld [vmem:[%s8 + $0x18] sm:$0xff]
        %v5941 = vld [vmem:[%s8 + $0x20] sm:$0xff]
        %v5942 = vld [vmem:[%s8 + $0x28] sm:$0xff]
        %v5943 = vld [vmem:[%s8 + $0x30] sm:$0xff]
        %v5944 = vld [vmem:[%s8 + $0x38] sm:$0xff]
        %v5945 = vld [vmem:[%s8 + $0x40] sm:$0xff]
        %v5946 = vld [vmem:[%s8 + $0x48] sm:$0xff]
        %v5947 = vld [vmem:[%s8 + $0x50] sm:$0xff]
        %v5948 = vld [vmem:[%s8 + $0x58] sm:$0xff]
        %v5949 = vld [vmem:[%s8 + $0x60] sm:$0xff]
        %v5950 = vld [vmem:[%s8 + $0x68] sm:$0xff]
        %v5951 = vld [vmem:[%s8 + $0x70] sm:$0xff]
        %v5952 = vld [vmem:[%s8 + $0x78] sm:$0xff]
        %v5953 = vld [vmem:[%s8 + $0x80] sm:$0xff]
        %v5954 = vld [vmem:[%s8 + $0x88] sm:$0xff]
        %v5955 = vld [vmem:[%s8 + $0x90] sm:$0xff]
        %v5956 = vld [vmem:[%s8 + $0x98] sm:$0xff]
        %v5957 = vld [vmem:[%s8 + $0xa0] sm:$0xff]
        %v5958 = vld [vmem:[%s8 + $0xa8] sm:$0xff]
        %v5959 = vld [vmem:[%s8 + $0xb0] sm:$0xff]
        %v5960 = vld [vmem:[%s8 + $0xb8] sm:$0xff]
        %v5961 = vld [vmem:[%s8 + $0xc0] sm:$0xff]
        %v5962 = vld [vmem:[%s8 + $0xc8] sm:$0x7f]
        %v5964 = vsel %vm1471, %v5936, 0
        %v5967 = vsel %vm637, %v5962, 0
        %5969 = vmatpush.msra.mxu0 %v5952
        %5970 = vmatpush.msra.mxu0 %v5951
        %5971 = vmatpush.msra.mxu0 %v5950
        %5972 = vmatpush.msra.mxu0 %v5949
        %5973 = vmatpush.msra.mxu0 %v5948
        %5974 = vmatpush.msra.mxu0 %v5947
        %5975 = vmatpush.msra.mxu0 %v5946
        %5976 = vmatpush.msra.mxu0 %v5945
        %5977 = vmatpush.msra.mxu0 %v5944
        %5978 = vmatpush.msra.mxu0 %v5943
        %5979 = vmatpush.msra.mxu0 %v5942
        %5980 = vmatpush.msra.mxu0 %v5941
        %5981 = vmatpush.msra.mxu0 %v5940
        %5982 = vmatpush.msra.mxu0 %v5939
        %5983 = vmatpush.msra.mxu0 %v5938
        %5984 = vmatpush.msra.mxu0 %v5937
        %5985 = vmatmul.f32.gmra.mxu0 %v5935
        %v5986 = vpop.f32.mrf.mxu0
        %v5987 = vadd.f32 0.0, %v5986
        %5988 = vdwg.mxu0
        %5989 = vmatpush.msra.mxu0 0.0
        %5990 = vmatpush.msra.mxu0 0.0
        %5991 = vmatpush.msra.mxu0 0.0
        %5992 = vmatpush.msra.mxu0 0.0
        %5993 = vmatpush.msra.mxu0 0.0
        %5994 = vmatpush.msra.mxu0 0.0
        %5995 = vmatpush.msra.mxu0 %v5967
        %5996 = vmatpush.msra.mxu0 %v5961
        %5997 = vmatpush.msra.mxu0 %v5960
        %5998 = vmatpush.msra.mxu0 %v5959
        %5999 = vmatpush.msra.mxu0 %v5958
        %6000 = vmatpush.msra.mxu0 %v5957
        %6001 = vmatpush.msra.mxu0 %v5956
        %6002 = vmatpush.msra.mxu0 %v5955
        %6003 = vmatpush.msra.mxu0 %v5954
        %6004 = vmatpush.msra.mxu0 %v5953
        %6005 = vmatmul.f32.gmra.mxu0 %v5964
        %v6006 = vpop.f32.mrf.mxu0
        %v6007 = vadd.f32 %v5987, %v6006
        %6008 = vdwg.mxu0
        %6009 = vst.msk [vmem:[#allocation2 + $0x5] sm:$0x1] %vm1518, %v6007
        %6010 = vst.msk [vmem:[%s1520 + $0x4] sm:$0x2] %vm1521, %v6007
        %6011 = vst.msk [vmem:[%s1523 + $0x3] sm:$0x4] %vm1524, %v6007
        %6012 = vst.msk [vmem:[%s1526 + $0x2] sm:$0x8] %vm1527, %v6007
        %6013 = vst.msk [vmem:[%s1529 + $0x1] sm:$0x10] %vm1530, %v6007
        %6014 = vst.msk [vmem:[%s1532] sm:$0x20] %vm1533, %v6007
        %s6015 = scalar_lea.vmem %s533, 192 [#allocation3]
        %v6016 = vld [vmem:[%s6015] sm:$0xff]
        %v6017 = vld [vmem:[%s6015 + $0x8] sm:$0xff]
        %v6018 = vld [vmem:[%s6015 + $0x10] sm:$0xff]
        %v6019 = vld [vmem:[%s6015 + $0x18] sm:$0xff]
        %v6020 = vld [vmem:[%s1] sm:$0xff]
        %v6021 = vld [vmem:[%s1 + $0x8] sm:$0xff]
        %v6022 = vld [vmem:[%s1 + $0x10] sm:$0xff]
        %v6023 = vld [vmem:[%s1 + $0x18] sm:$0xff]
        %v6024 = vld [vmem:[%s1 + $0x20] sm:$0xff]
        %v6025 = vld [vmem:[%s1 + $0x28] sm:$0xff]
        %v6026 = vld [vmem:[%s1 + $0x30] sm:$0xff]
        %v6027 = vld [vmem:[%s1 + $0x38] sm:$0xff]
        %v6028 = vld [vmem:[%s624] sm:$0xff]
        %v6029 = vld [vmem:[%s624 + $0x8] sm:$0xff]
        %v6030 = vld [vmem:[%s624 + $0x10] sm:$0xff]
        %v6031 = vld [vmem:[%s624 + $0x18] sm:$0xff]
        %v6032 = vld [vmem:[%s624 + $0x20] sm:$0xff]
        %v6033 = vld [vmem:[%s624 + $0x28] sm:$0xff]
        %v6034 = vld [vmem:[%s624 + $0x30] sm:$0xff]
        %v6035 = vld [vmem:[%s624 + $0x38] sm:$0xff]
        %v6040 = vrot.slane %v6016, 1
        %v6041 = vrot.slane %v6017, 1
        %v6042 = vsel %vm637, %v6040, %v6041
        %v6043 = vrot.slane %v6018, 1
        %v6044 = vsel %vm637, %v6041, %v6043
        %v6045 = vrot.slane %v6019, 1
        %v6046 = vsel %vm637, %v6043, %v6045
        %v6047 = vsel %vm645, %v6042, 0
        %v6049 = vsel %vm645, %v6044, 0
        %v6051 = vsel %vm645, %v6046, 0
        %v6053 = vsel %vm645, %v6045, 0
        %6055 = vmatpush.msra.mxu0 0.0
        %6056 = vmatpush.msra.mxu0 0.0
        %6057 = vmatpush.msra.mxu0 0.0
        %6058 = vmatpush.msra.mxu0 0.0
        %6059 = vmatpush.msra.mxu0 0.0
        %6060 = vmatpush.msra.mxu0 0.0
        %6061 = vmatpush.msra.mxu0 0.0
        %6062 = vmatpush.msra.mxu0 0.0
        %6063 = vmatpush.msra.mxu0 0.0
        %6064 = vmatpush.msra.mxu0 0.0
        %6065 = vmatpush.msra.mxu0 0.0
        %6066 = vmatpush.msra.mxu0 0.0
        %6067 = vmatpush.msra.mxu0 %v6034
        %6068 = vmatpush.msra.mxu0 %v6032
        %6069 = vmatpush.msra.mxu0 %v6030
        %6070 = vmatpush.msra.mxu0 %v6028
        %6071 = vmatmul.f32.gmra.mxu0 %v6047
        %v6072 = vpop.f32.mrf.mxu0
        %v6073 = vadd.f32 0.0, %v6072
        %6074 = vmatmul.f32.gmra.mxu0 %v6049
        %v6075 = vpop.f32.mrf.mxu0
        %v6076 = vadd.f32 0.0, %v6075
        %6077 = vmatmul.f32.gmra.mxu0 %v6051
        %v6078 = vpop.f32.mrf.mxu0
        %v6079 = vadd.f32 0.0, %v6078
        %6080 = vmatmul.f32.gmra.mxu0 %v6053
        %v6081 = vpop.f32.mrf.mxu0
        %v6082 = vadd.f32 0.0, %v6081
        %6083 = vdwg.mxu0
        %6084 = vmatpush.msra.mxu0 0.0
        %6085 = vmatpush.msra.mxu0 0.0
        %6086 = vmatpush.msra.mxu0 0.0
        %6087 = vmatpush.msra.mxu0 0.0
        %6088 = vmatpush.msra.mxu0 0.0
        %6089 = vmatpush.msra.mxu0 0.0
        %6090 = vmatpush.msra.mxu0 0.0
        %6091 = vmatpush.msra.mxu0 0.0
        %6092 = vmatpush.msra.mxu0 0.0
        %6093 = vmatpush.msra.mxu0 0.0
        %6094 = vmatpush.msra.mxu0 0.0
        %6095 = vmatpush.msra.mxu0 0.0
        %6096 = vmatpush.msra.mxu0 %v6035
        %6097 = vmatpush.msra.mxu0 %v6033
        %6098 = vmatpush.msra.mxu0 %v6031
        %6099 = vmatpush.msra.mxu0 %v6029
        %6100 = vmatmul.f32.gmra.mxu0 %v6047
        %v6101 = vpop.f32.mrf.mxu0
        %v6102 = vadd.f32 0.0, %v6101
        %6103 = vmatmul.f32.gmra.mxu0 %v6049
        %v6104 = vpop.f32.mrf.mxu0
        %v6105 = vadd.f32 0.0, %v6104
        %6106 = vmatmul.f32.gmra.mxu0 %v6051
        %v6107 = vpop.f32.mrf.mxu0
        %v6108 = vadd.f32 0.0, %v6107
        %6109 = vmatmul.f32.gmra.mxu0 %v6053
        %v6110 = vpop.f32.mrf.mxu0
        %v6111 = vadd.f32 0.0, %v6110
        %6112 = vdwg.mxu0
        %v6113 = vsel %vm645, %v6016, 0
        %v6115 = vsel %vm645, %v6017, 0
        %v6117 = vsel %vm645, %v6018, 0
        %v6119 = vsel %vm645, %v6019, 0
        %6121 = vmatpush.msra.mxu0 0.0
        %6122 = vmatpush.msra.mxu0 0.0
        %6123 = vmatpush.msra.mxu0 0.0
        %6124 = vmatpush.msra.mxu0 0.0
        %6125 = vmatpush.msra.mxu0 0.0
        %6126 = vmatpush.msra.mxu0 0.0
        %6127 = vmatpush.msra.mxu0 0.0
        %6128 = vmatpush.msra.mxu0 0.0
        %6129 = vmatpush.msra.mxu0 0.0
        %6130 = vmatpush.msra.mxu0 0.0
        %6131 = vmatpush.msra.mxu0 0.0
        %6132 = vmatpush.msra.mxu0 0.0
        %6133 = vmatpush.msra.mxu0 %v6026
        %6134 = vmatpush.msra.mxu0 %v6024
        %6135 = vmatpush.msra.mxu0 %v6022
        %6136 = vmatpush.msra.mxu0 %v6020
        %6137 = vmatmul.f32.gmra.mxu0 %v6113
        %v6138 = vpop.f32.mrf.mxu0
        %v6139 = vadd.f32 %v6073, %v6138
        %6140 = vmatmul.f32.gmra.mxu0 %v6115
        %v6141 = vpop.f32.mrf.mxu0
        %v6142 = vadd.f32 %v6076, %v6141
        %6143 = vmatmul.f32.gmra.mxu0 %v6117
        %v6144 = vpop.f32.mrf.mxu0
        %v6145 = vadd.f32 %v6079, %v6144
        %6146 = vmatmul.f32.gmra.mxu0 %v6119
        %v6147 = vpop.f32.mrf.mxu0
        %v6148 = vadd.f32 %v6082, %v6147
        %6149 = vdwg.mxu0
        %6150 = vmatpush.msra.mxu0 0.0
        %6151 = vmatpush.msra.mxu0 0.0
        %6152 = vmatpush.msra.mxu0 0.0
        %6153 = vmatpush.msra.mxu0 0.0
        %6154 = vmatpush.msra.mxu0 0.0
        %6155 = vmatpush.msra.mxu0 0.0
        %6156 = vmatpush.msra.mxu0 0.0
        %6157 = vmatpush.msra.mxu0 0.0
        %6158 = vmatpush.msra.mxu0 0.0
        %6159 = vmatpush.msra.mxu0 0.0
        %6160 = vmatpush.msra.mxu0 0.0
        %6161 = vmatpush.msra.mxu0 0.0
        %6162 = vmatpush.msra.mxu0 %v6027
        %6163 = vmatpush.msra.mxu0 %v6025
        %6164 = vmatpush.msra.mxu0 %v6023
        %6165 = vmatpush.msra.mxu0 %v6021
        %6166 = vmatmul.f32.gmra.mxu0 %v6113
        %v6167 = vpop.f32.mrf.mxu0
        %v6168 = vadd.f32 %v6102, %v6167
        %6169 = vmatmul.f32.gmra.mxu0 %v6115
        %v6170 = vpop.f32.mrf.mxu0
        %v6171 = vadd.f32 %v6105, %v6170
        %6172 = vmatmul.f32.gmra.mxu0 %v6117
        %v6173 = vpop.f32.mrf.mxu0
        %v6174 = vadd.f32 %v6108, %v6173
        %6175 = vmatmul.f32.gmra.mxu0 %v6119
        %v6176 = vpop.f32.mrf.mxu0
        %v6177 = vadd.f32 %v6111, %v6176
        %6178 = vdwg.mxu0
        %v6179 = vld [vmem:[%s778] sm:$0xff]
        %v6180 = vld [vmem:[%s778 + $0x8] sm:$0xff]
        %v6181 = vld [vmem:[%s778 + $0x10] sm:$0xff]
        %v6182 = vld [vmem:[%s778 + $0x18] sm:$0xff]
        %v6183 = vld [vmem:[%s778 + $0x20] sm:$0xff]
        %v6184 = vld [vmem:[%s778 + $0x28] sm:$0xff]
        %v6185 = vld [vmem:[%s778 + $0x30] sm:$0xff]
        %v6186 = vld [vmem:[%s778 + $0x38] sm:$0xff]
        %v6187 = vrot.slane %v6016, 2
        %v6188 = vrot.slane %v6017, 2
        %v6189 = vsel %vm787, %v6187, %v6188
        %v6190 = vrot.slane %v6018, 2
        %v6191 = vsel %vm787, %v6188, %v6190
        %v6192 = vrot.slane %v6019, 2
        %v6193 = vsel %vm787, %v6190, %v6192
        %v6194 = vsel %vm645, %v6189, 0
        %v6196 = vsel %vm645, %v6191, 0
        %v6198 = vsel %vm645, %v6193, 0
        %v6200 = vsel %vm645, %v6192, 0
        %6202 = vmatpush.msra.mxu0 0.0
        %6203 = vmatpush.msra.mxu0 0.0
        %6204 = vmatpush.msra.mxu0 0.0
        %6205 = vmatpush.msra.mxu0 0.0
        %6206 = vmatpush.msra.mxu0 0.0
        %6207 = vmatpush.msra.mxu0 0.0
        %6208 = vmatpush.msra.mxu0 0.0
        %6209 = vmatpush.msra.mxu0 0.0
        %6210 = vmatpush.msra.mxu0 0.0
        %6211 = vmatpush.msra.mxu0 0.0
        %6212 = vmatpush.msra.mxu0 0.0
        %6213 = vmatpush.msra.mxu0 0.0
        %6214 = vmatpush.msra.mxu0 %v6185
        %6215 = vmatpush.msra.mxu0 %v6183
        %6216 = vmatpush.msra.mxu0 %v6181
        %6217 = vmatpush.msra.mxu0 %v6179
        %6218 = vmatmul.f32.gmra.mxu0 %v6194
        %v6219 = vpop.f32.mrf.mxu0
        %v6220 = vadd.f32 0.0, %v6219
        %6221 = vmatmul.f32.gmra.mxu0 %v6196
        %v6222 = vpop.f32.mrf.mxu0
        %v6223 = vadd.f32 0.0, %v6222
        %6224 = vmatmul.f32.gmra.mxu0 %v6198
        %v6225 = vpop.f32.mrf.mxu0
        %v6226 = vadd.f32 0.0, %v6225
        %6227 = vmatmul.f32.gmra.mxu0 %v6200
        %v6228 = vpop.f32.mrf.mxu0
        %v6229 = vadd.f32 0.0, %v6228
        %6230 = vdwg.mxu0
        %6231 = vmatpush.msra.mxu0 0.0
        %6232 = vmatpush.msra.mxu0 0.0
        %6233 = vmatpush.msra.mxu0 0.0
        %6234 = vmatpush.msra.mxu0 0.0
        %6235 = vmatpush.msra.mxu0 0.0
        %6236 = vmatpush.msra.mxu0 0.0
        %6237 = vmatpush.msra.mxu0 0.0
        %6238 = vmatpush.msra.mxu0 0.0
        %6239 = vmatpush.msra.mxu0 0.0
        %6240 = vmatpush.msra.mxu0 0.0
        %6241 = vmatpush.msra.mxu0 0.0
        %6242 = vmatpush.msra.mxu0 0.0
        %6243 = vmatpush.msra.mxu0 %v6186
        %6244 = vmatpush.msra.mxu0 %v6184
        %6245 = vmatpush.msra.mxu0 %v6182
        %6246 = vmatpush.msra.mxu0 %v6180
        %6247 = vmatmul.f32.gmra.mxu0 %v6194
        %v6248 = vpop.f32.mrf.mxu0
        %v6249 = vadd.f32 0.0, %v6248
        %6250 = vmatmul.f32.gmra.mxu0 %v6196
        %v6251 = vpop.f32.mrf.mxu0
        %v6252 = vadd.f32 0.0, %v6251
        %6253 = vmatmul.f32.gmra.mxu0 %v6198
        %v6254 = vpop.f32.mrf.mxu0
        %v6255 = vadd.f32 0.0, %v6254
        %6256 = vmatmul.f32.gmra.mxu0 %v6200
        %v6257 = vpop.f32.mrf.mxu0
        %v6258 = vadd.f32 0.0, %v6257
        %6259 = vdwg.mxu0
        %v6260 = vadd.f32 %v6139, %v6220
        %v6261 = vadd.f32 %v6168, %v6249
        %v6262 = vadd.f32 %v6142, %v6223
        %v6263 = vadd.f32 %v6171, %v6252
        %v6264 = vadd.f32 %v6145, %v6226
        %v6265 = vadd.f32 %v6174, %v6255
        %v6266 = vadd.f32 %v6148, %v6229
        %v6267 = vadd.f32 %v6177, %v6258
        %v6268 = vld [vmem:[#allocation6] sm:$0x3]
        %v6270 = vperm.slane %v6268, 0
        %v6271 = vperm.slane %v6268, 1
        %v6274 = vadd.f32 %v6260, %v6270
        %v6275 = vadd.f32 %v6261, %v6271
        %v6276 = vadd.f32 %v6262, %v6270
        %v6277 = vadd.f32 %v6263, %v6271
        %v6278 = vadd.f32 %v6264, %v6270
        %v6279 = vadd.f32 %v6265, %v6271
        %v6280 = vadd.f32 %v6266, %v6270
        %v6281 = vadd.f32 %v6267, %v6271
        %v6282 = vmax.f32 %v6274, 0.0
        %v6283 = vmax.f32 %v6275, 0.0
        %v6284 = vmax.f32 %v6276, 0.0
        %v6285 = vmax.f32 %v6277, 0.0
        %v6286 = vmax.f32 %v6278, 0.0
        %v6287 = vmax.f32 %v6279, 0.0
        %v6288 = vmax.f32 %v6280, 0.0
        %v6289 = vmax.f32 %v6281, 0.0
        %v6298 = vrot.slane %v6282, 1
        %v6299 = vrot.slane %v6284, 1
        %v6300 = vsel %vm637, %v6298, %v6299
        %v6301 = vrot.slane %v6283, 1
        %v6302 = vrot.slane %v6285, 1
        %v6303 = vsel %vm637, %v6301, %v6302
        %v6304 = vrot.slane %v6286, 1
        %v6305 = vsel %vm637, %v6299, %v6304
        %v6306 = vrot.slane %v6287, 1
        %v6307 = vsel %vm637, %v6302, %v6306
        %v6308 = vrot.slane %v6288, 1
        %v6309 = vsel %vm637, %v6304, %v6308
        %v6310 = vrot.slane %v6289, 1
        %v6311 = vsel %vm637, %v6306, %v6310
        %v6320 = vmax.f32 %v6282, %v6300
        %v6321 = vmax.f32 %v6283, %v6303
        %v6322 = vmax.f32 %v6284, %v6305
        %v6323 = vmax.f32 %v6285, %v6307
        %v6324 = vmax.f32 %v6286, %v6309
        %v6325 = vmax.f32 %v6287, %v6311
        %v6326 = vmax.f32 %v6288, %v6308
        %v6327 = vmax.f32 %v6289, %v6310
        %v6328 = vld [vmem:[%s5] sm:$0xff]
        %v6329 = vld [vmem:[%s5 + $0x8] sm:$0x7f]
        %v6331 = vsel %vm931, %v6328, 0
        %v6334 = vsel %vm931, %v6329, 0
        %v6337 = vsel %vm938, %v6326, 0
        %v6340 = vsel %vm938, %v6327, 0
        %6342 = vmatpush.msra.mxu0 0.0
        %6343 = vmatpush.msra.mxu0 0.0
        %6344 = vmatpush.msra.mxu0 0.0
        %6345 = vmatpush.msra.mxu0 0.0
        %6346 = vmatpush.msra.mxu0 0.0
        %6347 = vmatpush.msra.mxu0 0.0
        %6348 = vmatpush.msra.mxu0 0.0
        %6349 = vmatpush.msra.mxu0 0.0
        %6350 = vmatpush.msra.mxu0 0.0
        %6351 = vmatpush.msra.mxu0 0.0
        %6352 = vmatpush.msra.mxu0 0.0
        %6353 = vmatpush.msra.mxu0 0.0
        %6354 = vmatpush.msra.mxu0 %v6337
        %6355 = vmatpush.msra.mxu0 %v6324
        %6356 = vmatpush.msra.mxu0 %v6322
        %6357 = vmatpush.msra.mxu0 %v6320
        %6358 = vmatmul.f32.gmra.mxu0 %v6331
        %v6359 = vpop.f32.mrf.mxu0
        %v6360 = vadd.f32 0.0, %v6359
        %6361 = vmatmul.f32.gmra.mxu0 %v6334
        %v6362 = vpop.f32.mrf.mxu0
        %v6363 = vadd.f32 0.0, %v6362
        %6364 = vdwg.mxu0
        %6365 = vmatpush.msra.mxu0 0.0
        %6366 = vmatpush.msra.mxu0 0.0
        %6367 = vmatpush.msra.mxu0 0.0
        %6368 = vmatpush.msra.mxu0 0.0
        %6369 = vmatpush.msra.mxu0 0.0
        %6370 = vmatpush.msra.mxu0 0.0
        %6371 = vmatpush.msra.mxu0 0.0
        %6372 = vmatpush.msra.mxu0 0.0
        %6373 = vmatpush.msra.mxu0 0.0
        %6374 = vmatpush.msra.mxu0 0.0
        %6375 = vmatpush.msra.mxu0 0.0
        %6376 = vmatpush.msra.mxu0 0.0
        %6377 = vmatpush.msra.mxu0 %v6340
        %6378 = vmatpush.msra.mxu0 %v6325
        %6379 = vmatpush.msra.mxu0 %v6323
        %6380 = vmatpush.msra.mxu0 %v6321
        %6381 = vmatmul.f32.gmra.mxu0 %v6331
        %v6382 = vpop.f32.mrf.mxu0
        %v6383 = vadd.f32 0.0, %v6382
        %6384 = vmatmul.f32.gmra.mxu0 %v6334
        %v6385 = vpop.f32.mrf.mxu0
        %v6386 = vadd.f32 0.0, %v6385
        %6387 = vdwg.mxu0
        %6392 = vrot.lane.b32.xlu0 %v6360, 127
        %v6393 = vpop.permute.xlu0 %6392
        %6394 = vrot.lane.b32.xlu0 %v6383, 127
        %v6395 = vpop.permute.xlu0 %6394
        %6396 = vrot.lane.b32.xlu0 %v6363, 127
        %v6397 = vpop.permute.xlu0 %6396
        %6398 = vrot.lane.b32.xlu0 %v6386, 127
        %v6399 = vpop.permute.xlu0 %6398
        %v6400 = vsel %vm1003, %v6393, %v6395
        %v6401 = vsel %vm1003, %v6397, %v6399
        %v6406 = vmax.f32 %v6360, %v6400
        %v6407 = vmax.f32 %v6383, %v6395
        %v6408 = vmax.f32 %v6363, %v6401
        %v6409 = vmax.f32 %v6386, %v6399
        %v6410 = vld [vmem:[%s6] sm:$0xff]
        %v6411 = vld [vmem:[%s6 + $0x8] sm:$0xff]
        %v6412 = vld [vmem:[%s6 + $0x10] sm:$0xff]
        %v6413 = vld [vmem:[%s6 + $0x18] sm:$0xff]
        %v6414 = vld [vmem:[%s6 + $0x20] sm:$0xff]
        %v6415 = vld [vmem:[%s6 + $0x28] sm:$0xff]
        %v6416 = vld [vmem:[%s6 + $0x30] sm:$0xff]
        %v6417 = vld [vmem:[%s6 + $0x38] sm:$0xff]
        %v6418 = vld [vmem:[%s6 + $0x40] sm:$0xff]
        %v6419 = vld [vmem:[%s6 + $0x48] sm:$0xff]
        %v6420 = vld [vmem:[%s6 + $0x50] sm:$0xff]
        %v6421 = vld [vmem:[%s6 + $0x58] sm:$0xff]
        %v6422 = vld [vmem:[%s6 + $0x60] sm:$0xff]
        %v6423 = vld [vmem:[%s6 + $0x68] sm:$0xff]
        %v6424 = vld [vmem:[%s6 + $0x70] sm:$0xff]
        %v6425 = vld [vmem:[%s6 + $0x78] sm:$0xff]
        %v6426 = vld [vmem:[%s6 + $0x80] sm:$0xff]
        %v6427 = vld [vmem:[%s6 + $0x88] sm:$0xff]
        %v6428 = vld [vmem:[%s6 + $0x90] sm:$0xff]
        %v6429 = vld [vmem:[%s6 + $0x98] sm:$0xff]
        %v6430 = vld [vmem:[%s6 + $0xa0] sm:$0xff]
        %v6431 = vld [vmem:[%s6 + $0xa8] sm:$0xff]
        %v6432 = vld [vmem:[%s6 + $0xb0] sm:$0x7]
        %v6434 = vsel %vm1037, %v6407, 0
        %v6437 = vsel %vm1037, %v6409, 0
        %v6440 = vsel %vm1044, %v6432, 0
        %6442 = vmatpush.msra.mxu0 %v6425
        %6443 = vmatpush.msra.mxu0 %v6424
        %6444 = vmatpush.msra.mxu0 %v6423
        %6445 = vmatpush.msra.mxu0 %v6422
        %6446 = vmatpush.msra.mxu0 %v6421
        %6447 = vmatpush.msra.mxu0 %v6420
        %6448 = vmatpush.msra.mxu0 %v6419
        %6449 = vmatpush.msra.mxu0 %v6418
        %6450 = vmatpush.msra.mxu0 %v6417
        %6451 = vmatpush.msra.mxu0 %v6416
        %6452 = vmatpush.msra.mxu0 %v6415
        %6453 = vmatpush.msra.mxu0 %v6414
        %6454 = vmatpush.msra.mxu0 %v6413
        %6455 = vmatpush.msra.mxu0 %v6412
        %6456 = vmatpush.msra.mxu0 %v6411
        %6457 = vmatpush.msra.mxu0 %v6410
        %6458 = vmatmul.f32.gmra.mxu0 %v6406
        %v6459 = vpop.f32.mrf.mxu0
        %v6460 = vadd.f32 0.0, %v6459
        %6461 = vmatmul.f32.gmra.mxu0 %v6408
        %v6462 = vpop.f32.mrf.mxu0
        %v6463 = vadd.f32 0.0, %v6462
        %6464 = vdwg.mxu0
        %6465 = vmatpush.msra.mxu0 0.0
        %6466 = vmatpush.msra.mxu0 0.0
        %6467 = vmatpush.msra.mxu0 0.0
        %6468 = vmatpush.msra.mxu0 0.0
        %6469 = vmatpush.msra.mxu0 0.0
        %6470 = vmatpush.msra.mxu0 0.0
        %6471 = vmatpush.msra.mxu0 0.0
        %6472 = vmatpush.msra.mxu0 0.0
        %6473 = vmatpush.msra.mxu0 0.0
        %6474 = vmatpush.msra.mxu0 %v6440
        %6475 = vmatpush.msra.mxu0 %v6431
        %6476 = vmatpush.msra.mxu0 %v6430
        %6477 = vmatpush.msra.mxu0 %v6429
        %6478 = vmatpush.msra.mxu0 %v6428
        %6479 = vmatpush.msra.mxu0 %v6427
        %6480 = vmatpush.msra.mxu0 %v6426
        %6481 = vmatmul.f32.gmra.mxu0 %v6434
        %v6482 = vpop.f32.mrf.mxu0
        %v6483 = vadd.f32 %v6460, %v6482
        %6484 = vmatmul.f32.gmra.mxu0 %v6437
        %v6485 = vpop.f32.mrf.mxu0
        %v6486 = vadd.f32 %v6463, %v6485
        %6487 = vdwg.mxu0
        %v6488 = vld [vmem:[#allocation8] sm:$0xff]
        %v6489 = vld [vmem:[#allocation8 + $0x8] sm:$0xff]
        %v6490 = vld [vmem:[#allocation8 + $0x10] sm:$0xff]
        %v6491 = vld [vmem:[#allocation8 + $0x18] sm:$0xff]
        %v6492 = vld [vmem:[#allocation8 + $0x20] sm:$0xff]
        %v6493 = vld [vmem:[#allocation8 + $0x28] sm:$0xff]
        %v6494 = vld [vmem:[#allocation8 + $0x30] sm:$0xff]
        %v6495 = vld [vmem:[#allocation8 + $0x38] sm:$0xff]
        %v6496 = vld [vmem:[#allocation8 + $0x40] sm:$0xff]
        %v6497 = vld [vmem:[#allocation8 + $0x48] sm:$0xff]
        %v6498 = vld [vmem:[#allocation8 + $0x50] sm:$0xff]
        %v6499 = vld [vmem:[#allocation8 + $0x58] sm:$0xff]
        %v6500 = vld [vmem:[#allocation8 + $0x60] sm:$0xff]
        %v6501 = vld [vmem:[#allocation8 + $0x68] sm:$0xff]
        %v6502 = vld [vmem:[#allocation8 + $0x70] sm:$0xff]
        %v6503 = vld [vmem:[#allocation8 + $0x78] sm:$0xff]
        %v6504 = vld [vmem:[#allocation8 + $0x80] sm:$0xff]
        %v6505 = vld [vmem:[#allocation8 + $0x88] sm:$0xff]
        %v6506 = vld [vmem:[#allocation8 + $0x90] sm:$0xff]
        %v6507 = vld [vmem:[#allocation8 + $0x98] sm:$0xff]
        %v6508 = vld [vmem:[#allocation8 + $0xa0] sm:$0xff]
        %v6509 = vld [vmem:[#allocation8 + $0xa8] sm:$0xff]
        %v6510 = vld [vmem:[#allocation8 + $0xb0] sm:$0x3]
        %v6511 = vld [vmem:[#allocation8 + $0xb8] sm:$0x3]
        %v6512 = vld [vmem:[%s1118] sm:$0xff]
        %v6513 = vld [vmem:[%s1118 + $0x8] sm:$0xff]
        %v6514 = vld [vmem:[%s1118 + $0x10] sm:$0xff]
        %v6515 = vld [vmem:[%s1118 + $0x18] sm:$0xff]
        %v6516 = vld [vmem:[%s1118 + $0x20] sm:$0xff]
        %v6517 = vld [vmem:[%s1118 + $0x28] sm:$0xff]
        %v6518 = vld [vmem:[%s1118 + $0x30] sm:$0xff]
        %v6519 = vld [vmem:[%s1118 + $0x38] sm:$0xff]
        %v6520 = vld [vmem:[%s1118 + $0x40] sm:$0xff]
        %v6521 = vld [vmem:[%s1118 + $0x48] sm:$0xff]
        %v6522 = vld [vmem:[%s1118 + $0x50] sm:$0xff]
        %v6523 = vld [vmem:[%s1118 + $0x58] sm:$0xff]
        %v6524 = vld [vmem:[%s1118 + $0x60] sm:$0xff]
        %v6525 = vld [vmem:[%s1118 + $0x68] sm:$0xff]
        %v6526 = vld [vmem:[%s1118 + $0x70] sm:$0xff]
        %v6527 = vld [vmem:[%s1118 + $0x78] sm:$0xff]
        %v6528 = vld [vmem:[%s1118 + $0x80] sm:$0xff]
        %v6529 = vld [vmem:[%s1118 + $0x88] sm:$0xff]
        %v6530 = vld [vmem:[%s1118 + $0x90] sm:$0xff]
        %v6531 = vld [vmem:[%s1118 + $0x98] sm:$0xff]
        %v6532 = vld [vmem:[%s1118 + $0xa0] sm:$0xff]
        %v6533 = vld [vmem:[%s1118 + $0xa8] sm:$0xff]
        %v6534 = vld [vmem:[%s1118 + $0xb0] sm:$0x3]
        %v6535 = vld [vmem:[%s1118 + $0xb8] sm:$0x3]
        %v6538 = vrot.slane %v6483, 1
        %v6539 = vrot.slane %v6486, 1
        %v6540 = vsel %vm637, %v6538, %v6539
        %v6541 = vsel %vm1148, %v6540, 0
        %v6543 = vsel %vm1148, %v6539, 0
        %v6546 = vsel %vm1153, %v6534, 0
        %v6549 = vsel %vm1153, %v6535, 0
        %6551 = vmatpush.msra.mxu0 0.0
        %6552 = vmatpush.msra.mxu0 0.0
        %6553 = vmatpush.msra.mxu0 0.0
        %6554 = vmatpush.msra.mxu0 0.0
        %6555 = vmatpush.msra.mxu0 %v6546
        %6556 = vmatpush.msra.mxu0 %v6532
        %6557 = vmatpush.msra.mxu0 %v6530
        %6558 = vmatpush.msra.mxu0 %v6528
        %6559 = vmatpush.msra.mxu0 %v6526
        %6560 = vmatpush.msra.mxu0 %v6524
        %6561 = vmatpush.msra.mxu0 %v6522
        %6562 = vmatpush.msra.mxu0 %v6520
        %6563 = vmatpush.msra.mxu0 %v6518
        %6564 = vmatpush.msra.mxu0 %v6516
        %6565 = vmatpush.msra.mxu0 %v6514
        %6566 = vmatpush.msra.mxu0 %v6512
        %6567 = vmatmul.f32.gmra.mxu0 %v6541
        %v6568 = vpop.f32.mrf.mxu0
        %v6569 = vadd.f32 0.0, %v6568
        %6570 = vmatmul.f32.gmra.mxu0 %v6543
        %v6571 = vpop.f32.mrf.mxu0
        %v6572 = vadd.f32 0.0, %v6571
        %6573 = vdwg.mxu0
        %6574 = vmatpush.msra.mxu0 0.0
        %6575 = vmatpush.msra.mxu0 0.0
        %6576 = vmatpush.msra.mxu0 0.0
        %6577 = vmatpush.msra.mxu0 0.0
        %6578 = vmatpush.msra.mxu0 %v6549
        %6579 = vmatpush.msra.mxu0 %v6533
        %6580 = vmatpush.msra.mxu0 %v6531
        %6581 = vmatpush.msra.mxu0 %v6529
        %6582 = vmatpush.msra.mxu0 %v6527
        %6583 = vmatpush.msra.mxu0 %v6525
        %6584 = vmatpush.msra.mxu0 %v6523
        %6585 = vmatpush.msra.mxu0 %v6521
        %6586 = vmatpush.msra.mxu0 %v6519
        %6587 = vmatpush.msra.mxu0 %v6517
        %6588 = vmatpush.msra.mxu0 %v6515
        %6589 = vmatpush.msra.mxu0 %v6513
        %6590 = vmatmul.f32.gmra.mxu0 %v6541
        %v6591 = vpop.f32.mrf.mxu0
        %v6592 = vadd.f32 0.0, %v6591
        %6593 = vmatmul.f32.gmra.mxu0 %v6543
        %v6594 = vpop.f32.mrf.mxu0
        %v6595 = vadd.f32 0.0, %v6594
        %6596 = vdwg.mxu0
        %v6597 = vsel %vm1148, %v6483, 0
        %v6599 = vsel %vm1148, %v6486, 0
        %v6602 = vsel %vm1153, %v6510, 0
        %v6605 = vsel %vm1153, %v6511, 0
        %6607 = vmatpush.msra.mxu0 0.0
        %6608 = vmatpush.msra.mxu0 0.0
        %6609 = vmatpush.msra.mxu0 0.0
        %6610 = vmatpush.msra.mxu0 0.0
        %6611 = vmatpush.msra.mxu0 %v6602
        %6612 = vmatpush.msra.mxu0 %v6508
        %6613 = vmatpush.msra.mxu0 %v6506
        %6614 = vmatpush.msra.mxu0 %v6504
        %6615 = vmatpush.msra.mxu0 %v6502
        %6616 = vmatpush.msra.mxu0 %v6500
        %6617 = vmatpush.msra.mxu0 %v6498
        %6618 = vmatpush.msra.mxu0 %v6496
        %6619 = vmatpush.msra.mxu0 %v6494
        %6620 = vmatpush.msra.mxu0 %v6492
        %6621 = vmatpush.msra.mxu0 %v6490
        %6622 = vmatpush.msra.mxu0 %v6488
        %6623 = vmatmul.f32.gmra.mxu0 %v6597
        %v6624 = vpop.f32.mrf.mxu0
        %v6625 = vadd.f32 %v6569, %v6624
        %6626 = vmatmul.f32.gmra.mxu0 %v6599
        %v6627 = vpop.f32.mrf.mxu0
        %v6628 = vadd.f32 %v6572, %v6627
        %6629 = vdwg.mxu0
        %6630 = vmatpush.msra.mxu0 0.0
        %6631 = vmatpush.msra.mxu0 0.0
        %6632 = vmatpush.msra.mxu0 0.0
        %6633 = vmatpush.msra.mxu0 0.0
        %6634 = vmatpush.msra.mxu0 %v6605
        %6635 = vmatpush.msra.mxu0 %v6509
        %6636 = vmatpush.msra.mxu0 %v6507
        %6637 = vmatpush.msra.mxu0 %v6505
        %6638 = vmatpush.msra.mxu0 %v6503
        %6639 = vmatpush.msra.mxu0 %v6501
        %6640 = vmatpush.msra.mxu0 %v6499
        %6641 = vmatpush.msra.mxu0 %v6497
        %6642 = vmatpush.msra.mxu0 %v6495
        %6643 = vmatpush.msra.mxu0 %v6493
        %6644 = vmatpush.msra.mxu0 %v6491
        %6645 = vmatpush.msra.mxu0 %v6489
        %6646 = vmatmul.f32.gmra.mxu0 %v6597
        %v6647 = vpop.f32.mrf.mxu0
        %v6648 = vadd.f32 %v6592, %v6647
        %6649 = vmatmul.f32.gmra.mxu0 %v6599
        %v6650 = vpop.f32.mrf.mxu0
        %v6651 = vadd.f32 %v6595, %v6650
        %6652 = vdwg.mxu0
        %v6653 = vld [vmem:[%s1262] sm:$0xff]
        %v6654 = vld [vmem:[%s1262 + $0x8] sm:$0xff]
        %v6655 = vld [vmem:[%s1262 + $0x10] sm:$0xff]
        %v6656 = vld [vmem:[%s1262 + $0x18] sm:$0xff]
        %v6657 = vld [vmem:[%s1262 + $0x20] sm:$0xff]
        %v6658 = vld [vmem:[%s1262 + $0x28] sm:$0xff]
        %v6659 = vld [vmem:[%s1262 + $0x30] sm:$0xff]
        %v6660 = vld [vmem:[%s1262 + $0x38] sm:$0xff]
        %v6661 = vld [vmem:[%s1262 + $0x40] sm:$0xff]
        %v6662 = vld [vmem:[%s1262 + $0x48] sm:$0xff]
        %v6663 = vld [vmem:[%s1262 + $0x50] sm:$0xff]
        %v6664 = vld [vmem:[%s1262 + $0x58] sm:$0xff]
        %v6665 = vld [vmem:[%s1262 + $0x60] sm:$0xff]
        %v6666 = vld [vmem:[%s1262 + $0x68] sm:$0xff]
        %v6667 = vld [vmem:[%s1262 + $0x70] sm:$0xff]
        %v6668 = vld [vmem:[%s1262 + $0x78] sm:$0xff]
        %v6669 = vld [vmem:[%s1262 + $0x80] sm:$0xff]
        %v6670 = vld [vmem:[%s1262 + $0x88] sm:$0xff]
        %v6671 = vld [vmem:[%s1262 + $0x90] sm:$0xff]
        %v6672 = vld [vmem:[%s1262 + $0x98] sm:$0xff]
        %v6673 = vld [vmem:[%s1262 + $0xa0] sm:$0xff]
        %v6674 = vld [vmem:[%s1262 + $0xa8] sm:$0xff]
        %v6675 = vld [vmem:[%s1262 + $0xb0] sm:$0x3]
        %v6676 = vld [vmem:[%s1262 + $0xb8] sm:$0x3]
        %v6677 = vrot.slane %v6483, 2
        %v6678 = vrot.slane %v6486, 2
        %v6679 = vsel %vm787, %v6677, %v6678
        %v6680 = vsel %vm1148, %v6679, 0
        %v6682 = vsel %vm1148, %v6678, 0
        %v6685 = vsel %vm1153, %v6675, 0
        %v6688 = vsel %vm1153, %v6676, 0
        %6690 = vmatpush.msra.mxu0 0.0
        %6691 = vmatpush.msra.mxu0 0.0
        %6692 = vmatpush.msra.mxu0 0.0
        %6693 = vmatpush.msra.mxu0 0.0
        %6694 = vmatpush.msra.mxu0 %v6685
        %6695 = vmatpush.msra.mxu0 %v6673
        %6696 = vmatpush.msra.mxu0 %v6671
        %6697 = vmatpush.msra.mxu0 %v6669
        %6698 = vmatpush.msra.mxu0 %v6667
        %6699 = vmatpush.msra.mxu0 %v6665
        %6700 = vmatpush.msra.mxu0 %v6663
        %6701 = vmatpush.msra.mxu0 %v6661
        %6702 = vmatpush.msra.mxu0 %v6659
        %6703 = vmatpush.msra.mxu0 %v6657
        %6704 = vmatpush.msra.mxu0 %v6655
        %6705 = vmatpush.msra.mxu0 %v6653
        %6706 = vmatmul.f32.gmra.mxu0 %v6680
        %v6707 = vpop.f32.mrf.mxu0
        %v6708 = vadd.f32 0.0, %v6707
        %6709 = vmatmul.f32.gmra.mxu0 %v6682
        %v6710 = vpop.f32.mrf.mxu0
        %v6711 = vadd.f32 0.0, %v6710
        %6712 = vdwg.mxu0
        %6713 = vmatpush.msra.mxu0 0.0
        %6714 = vmatpush.msra.mxu0 0.0
        %6715 = vmatpush.msra.mxu0 0.0
        %6716 = vmatpush.msra.mxu0 0.0
        %6717 = vmatpush.msra.mxu0 %v6688
        %6718 = vmatpush.msra.mxu0 %v6674
        %6719 = vmatpush.msra.mxu0 %v6672
        %6720 = vmatpush.msra.mxu0 %v6670
        %6721 = vmatpush.msra.mxu0 %v6668
        %6722 = vmatpush.msra.mxu0 %v6666
        %6723 = vmatpush.msra.mxu0 %v6664
        %6724 = vmatpush.msra.mxu0 %v6662
        %6725 = vmatpush.msra.mxu0 %v6660
        %6726 = vmatpush.msra.mxu0 %v6658
        %6727 = vmatpush.msra.mxu0 %v6656
        %6728 = vmatpush.msra.mxu0 %v6654
        %6729 = vmatmul.f32.gmra.mxu0 %v6680
        %v6730 = vpop.f32.mrf.mxu0
        %v6731 = vadd.f32 0.0, %v6730
        %6732 = vmatmul.f32.gmra.mxu0 %v6682
        %v6733 = vpop.f32.mrf.mxu0
        %v6734 = vadd.f32 0.0, %v6733
        %6735 = vdwg.mxu0
        %v6736 = vadd.f32 %v6625, %v6708
        %v6737 = vadd.f32 %v6648, %v6731
        %v6738 = vadd.f32 %v6628, %v6711
        %v6739 = vadd.f32 %v6651, %v6734
        %v6740 = vld [vmem:[#allocation9] sm:$0x3]
        %v6742 = vperm.slane %v6740, 0
        %v6743 = vperm.slane %v6740, 1
        %v6746 = vadd.f32 %v6736, %v6742
        %v6747 = vadd.f32 %v6737, %v6743
        %v6748 = vadd.f32 %v6738, %v6742
        %v6749 = vadd.f32 %v6739, %v6743
        %v6750 = vmax.f32 %v6746, 0.0
        %v6751 = vmax.f32 %v6747, 0.0
        %v6752 = vmax.f32 %v6748, 0.0
        %v6753 = vmax.f32 %v6749, 0.0
        %v6758 = vrot.slane %v6750, 1
        %v6759 = vrot.slane %v6752, 1
        %v6760 = vsel %vm637, %v6758, %v6759
        %v6761 = vrot.slane %v6751, 1
        %v6762 = vrot.slane %v6753, 1
        %v6763 = vsel %vm637, %v6761, %v6762
        %v6768 = vmax.f32 %v6750, %v6760
        %v6769 = vmax.f32 %v6751, %v6763
        %v6770 = vmax.f32 %v6752, %v6759
        %v6771 = vmax.f32 %v6753, %v6762
        %v6772 = vld [vmem:[%s7] sm:$0x3f]
        %v6774 = vsel %vm1383, %v6772, 0
        %v6777 = vsel %vm1387, %v6770, 0
        %v6780 = vsel %vm1387, %v6771, 0
        %6782 = vmatpush.msra.mxu0 0.0
        %6783 = vmatpush.msra.mxu0 0.0
        %6784 = vmatpush.msra.mxu0 0.0
        %6785 = vmatpush.msra.mxu0 0.0
        %6786 = vmatpush.msra.mxu0 0.0
        %6787 = vmatpush.msra.mxu0 0.0
        %6788 = vmatpush.msra.mxu0 0.0
        %6789 = vmatpush.msra.mxu0 0.0
        %6790 = vmatpush.msra.mxu0 0.0
        %6791 = vmatpush.msra.mxu0 0.0
        %6792 = vmatpush.msra.mxu0 0.0
        %6793 = vmatpush.msra.mxu0 0.0
        %6794 = vmatpush.msra.mxu0 0.0
        %6795 = vmatpush.msra.mxu0 0.0
        %6796 = vmatpush.msra.mxu0 %v6777
        %6797 = vmatpush.msra.mxu0 %v6768
        %6798 = vmatmul.f32.gmra.mxu0 %v6774
        %v6799 = vpop.f32.mrf.mxu0
        %v6800 = vadd.f32 0.0, %v6799
        %6801 = vdwg.mxu0
        %6802 = vmatpush.msra.mxu0 0.0
        %6803 = vmatpush.msra.mxu0 0.0
        %6804 = vmatpush.msra.mxu0 0.0
        %6805 = vmatpush.msra.mxu0 0.0
        %6806 = vmatpush.msra.mxu0 0.0
        %6807 = vmatpush.msra.mxu0 0.0
        %6808 = vmatpush.msra.mxu0 0.0
        %6809 = vmatpush.msra.mxu0 0.0
        %6810 = vmatpush.msra.mxu0 0.0
        %6811 = vmatpush.msra.mxu0 0.0
        %6812 = vmatpush.msra.mxu0 0.0
        %6813 = vmatpush.msra.mxu0 0.0
        %6814 = vmatpush.msra.mxu0 0.0
        %6815 = vmatpush.msra.mxu0 0.0
        %6816 = vmatpush.msra.mxu0 %v6780
        %6817 = vmatpush.msra.mxu0 %v6769
        %6818 = vmatmul.f32.gmra.mxu0 %v6774
        %v6819 = vpop.f32.mrf.mxu0
        %v6820 = vadd.f32 0.0, %v6819
        %6821 = vdwg.mxu0
        %6824 = vrot.lane.b32.xlu0 %v6800, 127
        %v6825 = vpop.permute.xlu0 %6824
        %6826 = vrot.lane.b32.xlu0 %v6820, 127
        %v6827 = vpop.permute.xlu0 %6826
        %v6828 = vsel %vm1003, %v6825, %v6827
        %v6831 = vmax.f32 %v6800, %v6828
        %v6832 = vmax.f32 %v6820, %v6827
        %v6833 = vld [vmem:[%s8] sm:$0xff]
        %v6834 = vld [vmem:[%s8 + $0x8] sm:$0xff]
        %v6835 = vld [vmem:[%s8 + $0x10] sm:$0xff]
        %v6836 = vld [vmem:[%s8 + $0x18] sm:$0xff]
        %v6837 = vld [vmem:[%s8 + $0x20] sm:$0xff]
        %v6838 = vld [vmem:[%s8 + $0x28] sm:$0xff]
        %v6839 = vld [vmem:[%s8 + $0x30] sm:$0xff]
        %v6840 = vld [vmem:[%s8 + $0x38] sm:$0xff]
        %v6841 = vld [vmem:[%s8 + $0x40] sm:$0xff]
        %v6842 = vld [vmem:[%s8 + $0x48] sm:$0xff]
        %v6843 = vld [vmem:[%s8 + $0x50] sm:$0xff]
        %v6844 = vld [vmem:[%s8 + $0x58] sm:$0xff]
        %v6845 = vld [vmem:[%s8 + $0x60] sm:$0xff]
        %v6846 = vld [vmem:[%s8 + $0x68] sm:$0xff]
        %v6847 = vld [vmem:[%s8 + $0x70] sm:$0xff]
        %v6848 = vld [vmem:[%s8 + $0x78] sm:$0xff]
        %v6849 = vld [vmem:[%s8 + $0x80] sm:$0xff]
        %v6850 = vld [vmem:[%s8 + $0x88] sm:$0xff]
        %v6851 = vld [vmem:[%s8 + $0x90] sm:$0xff]
        %v6852 = vld [vmem:[%s8 + $0x98] sm:$0xff]
        %v6853 = vld [vmem:[%s8 + $0xa0] sm:$0xff]
        %v6854 = vld [vmem:[%s8 + $0xa8] sm:$0xff]
        %v6855 = vld [vmem:[%s8 + $0xb0] sm:$0xff]
        %v6856 = vld [vmem:[%s8 + $0xb8] sm:$0xff]
        %v6857 = vld [vmem:[%s8 + $0xc0] sm:$0xff]
        %v6858 = vld [vmem:[%s8 + $0xc8] sm:$0x7f]
        %v6860 = vsel %vm1471, %v6832, 0
        %v6863 = vsel %vm637, %v6858, 0
        %6865 = vmatpush.msra.mxu0 %v6848
        %6866 = vmatpush.msra.mxu0 %v6847
        %6867 = vmatpush.msra.mxu0 %v6846
        %6868 = vmatpush.msra.mxu0 %v6845
        %6869 = vmatpush.msra.mxu0 %v6844
        %6870 = vmatpush.msra.mxu0 %v6843
        %6871 = vmatpush.msra.mxu0 %v6842
        %6872 = vmatpush.msra.mxu0 %v6841
        %6873 = vmatpush.msra.mxu0 %v6840
        %6874 = vmatpush.msra.mxu0 %v6839
        %6875 = vmatpush.msra.mxu0 %v6838
        %6876 = vmatpush.msra.mxu0 %v6837
        %6877 = vmatpush.msra.mxu0 %v6836
        %6878 = vmatpush.msra.mxu0 %v6835
        %6879 = vmatpush.msra.mxu0 %v6834
        %6880 = vmatpush.msra.mxu0 %v6833
        %6881 = vmatmul.f32.gmra.mxu0 %v6831
        %v6882 = vpop.f32.mrf.mxu0
        %v6883 = vadd.f32 0.0, %v6882
        %6884 = vdwg.mxu0
        %6885 = vmatpush.msra.mxu0 0.0
        %6886 = vmatpush.msra.mxu0 0.0
        %6887 = vmatpush.msra.mxu0 0.0
        %6888 = vmatpush.msra.mxu0 0.0
        %6889 = vmatpush.msra.mxu0 0.0
        %6890 = vmatpush.msra.mxu0 0.0
        %6891 = vmatpush.msra.mxu0 %v6863
        %6892 = vmatpush.msra.mxu0 %v6857
        %6893 = vmatpush.msra.mxu0 %v6856
        %6894 = vmatpush.msra.mxu0 %v6855
        %6895 = vmatpush.msra.mxu0 %v6854
        %6896 = vmatpush.msra.mxu0 %v6853
        %6897 = vmatpush.msra.mxu0 %v6852
        %6898 = vmatpush.msra.mxu0 %v6851
        %6899 = vmatpush.msra.mxu0 %v6850
        %6900 = vmatpush.msra.mxu0 %v6849
        %6901 = vmatmul.f32.gmra.mxu0 %v6860
        %v6902 = vpop.f32.mrf.mxu0
        %v6903 = vadd.f32 %v6883, %v6902
        %6904 = vdwg.mxu0
        %6905 = vst.msk [vmem:[#allocation2 + $0x6] sm:$0x1] %vm1518, %v6903
        %6906 = vst.msk [vmem:[%s1520 + $0x5] sm:$0x2] %vm1521, %v6903
        %6907 = vst.msk [vmem:[%s1523 + $0x4] sm:$0x4] %vm1524, %v6903
        %6908 = vst.msk [vmem:[%s1526 + $0x3] sm:$0x8] %vm1527, %v6903
        %6909 = vst.msk [vmem:[%s1529 + $0x2] sm:$0x10] %vm1530, %v6903
        %6910 = vst.msk [vmem:[%s1532 + $0x1] sm:$0x20] %vm1533, %v6903
        %s6911 = scalar_lea.vmem %s533, 224 [#allocation3]
        %v6912 = vld [vmem:[%s6911] sm:$0xff]
        %v6913 = vld [vmem:[%s6911 + $0x8] sm:$0xff]
        %v6914 = vld [vmem:[%s6911 + $0x10] sm:$0xff]
        %v6915 = vld [vmem:[%s6911 + $0x18] sm:$0xff]
        %v6916 = vld [vmem:[%s1] sm:$0xff]
        %v6917 = vld [vmem:[%s1 + $0x8] sm:$0xff]
        %v6918 = vld [vmem:[%s1 + $0x10] sm:$0xff]
        %v6919 = vld [vmem:[%s1 + $0x18] sm:$0xff]
        %v6920 = vld [vmem:[%s1 + $0x20] sm:$0xff]
        %v6921 = vld [vmem:[%s1 + $0x28] sm:$0xff]
        %v6922 = vld [vmem:[%s1 + $0x30] sm:$0xff]
        %v6923 = vld [vmem:[%s1 + $0x38] sm:$0xff]
        %v6924 = vld [vmem:[%s624] sm:$0xff]
        %v6925 = vld [vmem:[%s624 + $0x8] sm:$0xff]
        %v6926 = vld [vmem:[%s624 + $0x10] sm:$0xff]
        %v6927 = vld [vmem:[%s624 + $0x18] sm:$0xff]
        %v6928 = vld [vmem:[%s624 + $0x20] sm:$0xff]
        %v6929 = vld [vmem:[%s624 + $0x28] sm:$0xff]
        %v6930 = vld [vmem:[%s624 + $0x30] sm:$0xff]
        %v6931 = vld [vmem:[%s624 + $0x38] sm:$0xff]
        %v6936 = vrot.slane %v6912, 1
        %v6937 = vrot.slane %v6913, 1
        %v6938 = vsel %vm637, %v6936, %v6937
        %v6939 = vrot.slane %v6914, 1
        %v6940 = vsel %vm637, %v6937, %v6939
        %v6941 = vrot.slane %v6915, 1
        %v6942 = vsel %vm637, %v6939, %v6941
        %v6943 = vsel %vm645, %v6938, 0
        %v6945 = vsel %vm645, %v6940, 0
        %v6947 = vsel %vm645, %v6942, 0
        %v6949 = vsel %vm645, %v6941, 0
        %6951 = vmatpush.msra.mxu0 0.0
        %6952 = vmatpush.msra.mxu0 0.0
        %6953 = vmatpush.msra.mxu0 0.0
        %6954 = vmatpush.msra.mxu0 0.0
        %6955 = vmatpush.msra.mxu0 0.0
        %6956 = vmatpush.msra.mxu0 0.0
        %6957 = vmatpush.msra.mxu0 0.0
        %6958 = vmatpush.msra.mxu0 0.0
        %6959 = vmatpush.msra.mxu0 0.0
        %6960 = vmatpush.msra.mxu0 0.0
        %6961 = vmatpush.msra.mxu0 0.0
        %6962 = vmatpush.msra.mxu0 0.0
        %6963 = vmatpush.msra.mxu0 %v6930
        %6964 = vmatpush.msra.mxu0 %v6928
        %6965 = vmatpush.msra.mxu0 %v6926
        %6966 = vmatpush.msra.mxu0 %v6924
        %6967 = vmatmul.f32.gmra.mxu0 %v6943
        %v6968 = vpop.f32.mrf.mxu0
        %v6969 = vadd.f32 0.0, %v6968
        %6970 = vmatmul.f32.gmra.mxu0 %v6945
        %v6971 = vpop.f32.mrf.mxu0
        %v6972 = vadd.f32 0.0, %v6971
        %6973 = vmatmul.f32.gmra.mxu0 %v6947
        %v6974 = vpop.f32.mrf.mxu0
        %v6975 = vadd.f32 0.0, %v6974
        %6976 = vmatmul.f32.gmra.mxu0 %v6949
        %v6977 = vpop.f32.mrf.mxu0
        %v6978 = vadd.f32 0.0, %v6977
        %6979 = vdwg.mxu0
        %6980 = vmatpush.msra.mxu0 0.0
        %6981 = vmatpush.msra.mxu0 0.0
        %6982 = vmatpush.msra.mxu0 0.0
        %6983 = vmatpush.msra.mxu0 0.0
        %6984 = vmatpush.msra.mxu0 0.0
        %6985 = vmatpush.msra.mxu0 0.0
        %6986 = vmatpush.msra.mxu0 0.0
        %6987 = vmatpush.msra.mxu0 0.0
        %6988 = vmatpush.msra.mxu0 0.0
        %6989 = vmatpush.msra.mxu0 0.0
        %6990 = vmatpush.msra.mxu0 0.0
        %6991 = vmatpush.msra.mxu0 0.0
        %6992 = vmatpush.msra.mxu0 %v6931
        %6993 = vmatpush.msra.mxu0 %v6929
        %6994 = vmatpush.msra.mxu0 %v6927
        %6995 = vmatpush.msra.mxu0 %v6925
        %6996 = vmatmul.f32.gmra.mxu0 %v6943
        %v6997 = vpop.f32.mrf.mxu0
        %v6998 = vadd.f32 0.0, %v6997
        %6999 = vmatmul.f32.gmra.mxu0 %v6945
        %v7000 = vpop.f32.mrf.mxu0
        %v7001 = vadd.f32 0.0, %v7000
        %7002 = vmatmul.f32.gmra.mxu0 %v6947
        %v7003 = vpop.f32.mrf.mxu0
        %v7004 = vadd.f32 0.0, %v7003
        %7005 = vmatmul.f32.gmra.mxu0 %v6949
        %v7006 = vpop.f32.mrf.mxu0
        %v7007 = vadd.f32 0.0, %v7006
        %7008 = vdwg.mxu0
        %v7009 = vsel %vm645, %v6912, 0
        %v7011 = vsel %vm645, %v6913, 0
        %v7013 = vsel %vm645, %v6914, 0
        %v7015 = vsel %vm645, %v6915, 0
        %7017 = vmatpush.msra.mxu0 0.0
        %7018 = vmatpush.msra.mxu0 0.0
        %7019 = vmatpush.msra.mxu0 0.0
        %7020 = vmatpush.msra.mxu0 0.0
        %7021 = vmatpush.msra.mxu0 0.0
        %7022 = vmatpush.msra.mxu0 0.0
        %7023 = vmatpush.msra.mxu0 0.0
        %7024 = vmatpush.msra.mxu0 0.0
        %7025 = vmatpush.msra.mxu0 0.0
        %7026 = vmatpush.msra.mxu0 0.0
        %7027 = vmatpush.msra.mxu0 0.0
        %7028 = vmatpush.msra.mxu0 0.0
        %7029 = vmatpush.msra.mxu0 %v6922
        %7030 = vmatpush.msra.mxu0 %v6920
        %7031 = vmatpush.msra.mxu0 %v6918
        %7032 = vmatpush.msra.mxu0 %v6916
        %7033 = vmatmul.f32.gmra.mxu0 %v7009
        %v7034 = vpop.f32.mrf.mxu0
        %v7035 = vadd.f32 %v6969, %v7034
        %7036 = vmatmul.f32.gmra.mxu0 %v7011
        %v7037 = vpop.f32.mrf.mxu0
        %v7038 = vadd.f32 %v6972, %v7037
        %7039 = vmatmul.f32.gmra.mxu0 %v7013
        %v7040 = vpop.f32.mrf.mxu0
        %v7041 = vadd.f32 %v6975, %v7040
        %7042 = vmatmul.f32.gmra.mxu0 %v7015
        %v7043 = vpop.f32.mrf.mxu0
        %v7044 = vadd.f32 %v6978, %v7043
        %7045 = vdwg.mxu0
        %7046 = vmatpush.msra.mxu0 0.0
        %7047 = vmatpush.msra.mxu0 0.0
        %7048 = vmatpush.msra.mxu0 0.0
        %7049 = vmatpush.msra.mxu0 0.0
        %7050 = vmatpush.msra.mxu0 0.0
        %7051 = vmatpush.msra.mxu0 0.0
        %7052 = vmatpush.msra.mxu0 0.0
        %7053 = vmatpush.msra.mxu0 0.0
        %7054 = vmatpush.msra.mxu0 0.0
        %7055 = vmatpush.msra.mxu0 0.0
        %7056 = vmatpush.msra.mxu0 0.0
        %7057 = vmatpush.msra.mxu0 0.0
        %7058 = vmatpush.msra.mxu0 %v6923
        %7059 = vmatpush.msra.mxu0 %v6921
        %7060 = vmatpush.msra.mxu0 %v6919
        %7061 = vmatpush.msra.mxu0 %v6917
        %7062 = vmatmul.f32.gmra.mxu0 %v7009
        %v7063 = vpop.f32.mrf.mxu0
        %v7064 = vadd.f32 %v6998, %v7063
        %7065 = vmatmul.f32.gmra.mxu0 %v7011
        %v7066 = vpop.f32.mrf.mxu0
        %v7067 = vadd.f32 %v7001, %v7066
        %7068 = vmatmul.f32.gmra.mxu0 %v7013
        %v7069 = vpop.f32.mrf.mxu0
        %v7070 = vadd.f32 %v7004, %v7069
        %7071 = vmatmul.f32.gmra.mxu0 %v7015
        %v7072 = vpop.f32.mrf.mxu0
        %v7073 = vadd.f32 %v7007, %v7072
        %7074 = vdwg.mxu0
        %v7075 = vld [vmem:[%s778] sm:$0xff]
        %v7076 = vld [vmem:[%s778 + $0x8] sm:$0xff]
        %v7077 = vld [vmem:[%s778 + $0x10] sm:$0xff]
        %v7078 = vld [vmem:[%s778 + $0x18] sm:$0xff]
        %v7079 = vld [vmem:[%s778 + $0x20] sm:$0xff]
        %v7080 = vld [vmem:[%s778 + $0x28] sm:$0xff]
        %v7081 = vld [vmem:[%s778 + $0x30] sm:$0xff]
        %v7082 = vld [vmem:[%s778 + $0x38] sm:$0xff]
        %v7083 = vrot.slane %v6912, 2
        %v7084 = vrot.slane %v6913, 2
        %v7085 = vsel %vm787, %v7083, %v7084
        %v7086 = vrot.slane %v6914, 2
        %v7087 = vsel %vm787, %v7084, %v7086
        %v7088 = vrot.slane %v6915, 2
        %v7089 = vsel %vm787, %v7086, %v7088
        %v7090 = vsel %vm645, %v7085, 0
        %v7092 = vsel %vm645, %v7087, 0
        %v7094 = vsel %vm645, %v7089, 0
        %v7096 = vsel %vm645, %v7088, 0
        %7098 = vmatpush.msra.mxu0 0.0
        %7099 = vmatpush.msra.mxu0 0.0
        %7100 = vmatpush.msra.mxu0 0.0
        %7101 = vmatpush.msra.mxu0 0.0
        %7102 = vmatpush.msra.mxu0 0.0
        %7103 = vmatpush.msra.mxu0 0.0
        %7104 = vmatpush.msra.mxu0 0.0
        %7105 = vmatpush.msra.mxu0 0.0
        %7106 = vmatpush.msra.mxu0 0.0
        %7107 = vmatpush.msra.mxu0 0.0
        %7108 = vmatpush.msra.mxu0 0.0
        %7109 = vmatpush.msra.mxu0 0.0
        %7110 = vmatpush.msra.mxu0 %v7081
        %7111 = vmatpush.msra.mxu0 %v7079
        %7112 = vmatpush.msra.mxu0 %v7077
        %7113 = vmatpush.msra.mxu0 %v7075
        %7114 = vmatmul.f32.gmra.mxu0 %v7090
        %v7115 = vpop.f32.mrf.mxu0
        %v7116 = vadd.f32 0.0, %v7115
        %7117 = vmatmul.f32.gmra.mxu0 %v7092
        %v7118 = vpop.f32.mrf.mxu0
        %v7119 = vadd.f32 0.0, %v7118
        %7120 = vmatmul.f32.gmra.mxu0 %v7094
        %v7121 = vpop.f32.mrf.mxu0
        %v7122 = vadd.f32 0.0, %v7121
        %7123 = vmatmul.f32.gmra.mxu0 %v7096
        %v7124 = vpop.f32.mrf.mxu0
        %v7125 = vadd.f32 0.0, %v7124
        %7126 = vdwg.mxu0
        %7127 = vmatpush.msra.mxu0 0.0
        %7128 = vmatpush.msra.mxu0 0.0
        %7129 = vmatpush.msra.mxu0 0.0
        %7130 = vmatpush.msra.mxu0 0.0
        %7131 = vmatpush.msra.mxu0 0.0
        %7132 = vmatpush.msra.mxu0 0.0
        %7133 = vmatpush.msra.mxu0 0.0
        %7134 = vmatpush.msra.mxu0 0.0
        %7135 = vmatpush.msra.mxu0 0.0
        %7136 = vmatpush.msra.mxu0 0.0
        %7137 = vmatpush.msra.mxu0 0.0
        %7138 = vmatpush.msra.mxu0 0.0
        %7139 = vmatpush.msra.mxu0 %v7082
        %7140 = vmatpush.msra.mxu0 %v7080
        %7141 = vmatpush.msra.mxu0 %v7078
        %7142 = vmatpush.msra.mxu0 %v7076
        %7143 = vmatmul.f32.gmra.mxu0 %v7090
        %v7144 = vpop.f32.mrf.mxu0
        %v7145 = vadd.f32 0.0, %v7144
        %7146 = vmatmul.f32.gmra.mxu0 %v7092
        %v7147 = vpop.f32.mrf.mxu0
        %v7148 = vadd.f32 0.0, %v7147
        %7149 = vmatmul.f32.gmra.mxu0 %v7094
        %v7150 = vpop.f32.mrf.mxu0
        %v7151 = vadd.f32 0.0, %v7150
        %7152 = vmatmul.f32.gmra.mxu0 %v7096
        %v7153 = vpop.f32.mrf.mxu0
        %v7154 = vadd.f32 0.0, %v7153
        %7155 = vdwg.mxu0
        %v7156 = vadd.f32 %v7035, %v7116
        %v7157 = vadd.f32 %v7064, %v7145
        %v7158 = vadd.f32 %v7038, %v7119
        %v7159 = vadd.f32 %v7067, %v7148
        %v7160 = vadd.f32 %v7041, %v7122
        %v7161 = vadd.f32 %v7070, %v7151
        %v7162 = vadd.f32 %v7044, %v7125
        %v7163 = vadd.f32 %v7073, %v7154
        %v7164 = vld [vmem:[#allocation6] sm:$0x3]
        %v7166 = vperm.slane %v7164, 0
        %v7167 = vperm.slane %v7164, 1
        %v7170 = vadd.f32 %v7156, %v7166
        %v7171 = vadd.f32 %v7157, %v7167
        %v7172 = vadd.f32 %v7158, %v7166
        %v7173 = vadd.f32 %v7159, %v7167
        %v7174 = vadd.f32 %v7160, %v7166
        %v7175 = vadd.f32 %v7161, %v7167
        %v7176 = vadd.f32 %v7162, %v7166
        %v7177 = vadd.f32 %v7163, %v7167
        %v7178 = vmax.f32 %v7170, 0.0
        %v7179 = vmax.f32 %v7171, 0.0
        %v7180 = vmax.f32 %v7172, 0.0
        %v7181 = vmax.f32 %v7173, 0.0
        %v7182 = vmax.f32 %v7174, 0.0
        %v7183 = vmax.f32 %v7175, 0.0
        %v7184 = vmax.f32 %v7176, 0.0
        %v7185 = vmax.f32 %v7177, 0.0
        %v7194 = vrot.slane %v7178, 1
        %v7195 = vrot.slane %v7180, 1
        %v7196 = vsel %vm637, %v7194, %v7195
        %v7197 = vrot.slane %v7179, 1
        %v7198 = vrot.slane %v7181, 1
        %v7199 = vsel %vm637, %v7197, %v7198
        %v7200 = vrot.slane %v7182, 1
        %v7201 = vsel %vm637, %v7195, %v7200
        %v7202 = vrot.slane %v7183, 1
        %v7203 = vsel %vm637, %v7198, %v7202
        %v7204 = vrot.slane %v7184, 1
        %v7205 = vsel %vm637, %v7200, %v7204
        %v7206 = vrot.slane %v7185, 1
        %v7207 = vsel %vm637, %v7202, %v7206
        %v7216 = vmax.f32 %v7178, %v7196
        %v7217 = vmax.f32 %v7179, %v7199
        %v7218 = vmax.f32 %v7180, %v7201
        %v7219 = vmax.f32 %v7181, %v7203
        %v7220 = vmax.f32 %v7182, %v7205
        %v7221 = vmax.f32 %v7183, %v7207
        %v7222 = vmax.f32 %v7184, %v7204
        %v7223 = vmax.f32 %v7185, %v7206
        %v7224 = vld [vmem:[%s5] sm:$0xff]
        %v7225 = vld [vmem:[%s5 + $0x8] sm:$0x7f]
        %v7227 = vsel %vm931, %v7224, 0
        %v7230 = vsel %vm931, %v7225, 0
        %v7233 = vsel %vm938, %v7222, 0
        %v7236 = vsel %vm938, %v7223, 0
        %7238 = vmatpush.msra.mxu0 0.0
        %7239 = vmatpush.msra.mxu0 0.0
        %7240 = vmatpush.msra.mxu0 0.0
        %7241 = vmatpush.msra.mxu0 0.0
        %7242 = vmatpush.msra.mxu0 0.0
        %7243 = vmatpush.msra.mxu0 0.0
        %7244 = vmatpush.msra.mxu0 0.0
        %7245 = vmatpush.msra.mxu0 0.0
        %7246 = vmatpush.msra.mxu0 0.0
        %7247 = vmatpush.msra.mxu0 0.0
        %7248 = vmatpush.msra.mxu0 0.0
        %7249 = vmatpush.msra.mxu0 0.0
        %7250 = vmatpush.msra.mxu0 %v7233
        %7251 = vmatpush.msra.mxu0 %v7220
        %7252 = vmatpush.msra.mxu0 %v7218
        %7253 = vmatpush.msra.mxu0 %v7216
        %7254 = vmatmul.f32.gmra.mxu0 %v7227
        %v7255 = vpop.f32.mrf.mxu0
        %v7256 = vadd.f32 0.0, %v7255
        %7257 = vmatmul.f32.gmra.mxu0 %v7230
        %v7258 = vpop.f32.mrf.mxu0
        %v7259 = vadd.f32 0.0, %v7258
        %7260 = vdwg.mxu0
        %7261 = vmatpush.msra.mxu0 0.0
        %7262 = vmatpush.msra.mxu0 0.0
        %7263 = vmatpush.msra.mxu0 0.0
        %7264 = vmatpush.msra.mxu0 0.0
        %7265 = vmatpush.msra.mxu0 0.0
        %7266 = vmatpush.msra.mxu0 0.0
        %7267 = vmatpush.msra.mxu0 0.0
        %7268 = vmatpush.msra.mxu0 0.0
        %7269 = vmatpush.msra.mxu0 0.0
        %7270 = vmatpush.msra.mxu0 0.0
        %7271 = vmatpush.msra.mxu0 0.0
        %7272 = vmatpush.msra.mxu0 0.0
        %7273 = vmatpush.msra.mxu0 %v7236
        %7274 = vmatpush.msra.mxu0 %v7221
        %7275 = vmatpush.msra.mxu0 %v7219
        %7276 = vmatpush.msra.mxu0 %v7217
        %7277 = vmatmul.f32.gmra.mxu0 %v7227
        %v7278 = vpop.f32.mrf.mxu0
        %v7279 = vadd.f32 0.0, %v7278
        %7280 = vmatmul.f32.gmra.mxu0 %v7230
        %v7281 = vpop.f32.mrf.mxu0
        %v7282 = vadd.f32 0.0, %v7281
        %7283 = vdwg.mxu0
        %7288 = vrot.lane.b32.xlu0 %v7256, 127
        %v7289 = vpop.permute.xlu0 %7288
        %7290 = vrot.lane.b32.xlu0 %v7279, 127
        %v7291 = vpop.permute.xlu0 %7290
        %7292 = vrot.lane.b32.xlu0 %v7259, 127
        %v7293 = vpop.permute.xlu0 %7292
        %7294 = vrot.lane.b32.xlu0 %v7282, 127
        %v7295 = vpop.permute.xlu0 %7294
        %v7296 = vsel %vm1003, %v7289, %v7291
        %v7297 = vsel %vm1003, %v7293, %v7295
        %v7302 = vmax.f32 %v7256, %v7296
        %v7303 = vmax.f32 %v7279, %v7291
        %v7304 = vmax.f32 %v7259, %v7297
        %v7305 = vmax.f32 %v7282, %v7295
        %v7306 = vld [vmem:[%s6] sm:$0xff]
        %v7307 = vld [vmem:[%s6 + $0x8] sm:$0xff]
        %v7308 = vld [vmem:[%s6 + $0x10] sm:$0xff]
        %v7309 = vld [vmem:[%s6 + $0x18] sm:$0xff]
        %v7310 = vld [vmem:[%s6 + $0x20] sm:$0xff]
        %v7311 = vld [vmem:[%s6 + $0x28] sm:$0xff]
        %v7312 = vld [vmem:[%s6 + $0x30] sm:$0xff]
        %v7313 = vld [vmem:[%s6 + $0x38] sm:$0xff]
        %v7314 = vld [vmem:[%s6 + $0x40] sm:$0xff]
        %v7315 = vld [vmem:[%s6 + $0x48] sm:$0xff]
        %v7316 = vld [vmem:[%s6 + $0x50] sm:$0xff]
        %v7317 = vld [vmem:[%s6 + $0x58] sm:$0xff]
        %v7318 = vld [vmem:[%s6 + $0x60] sm:$0xff]
        %v7319 = vld [vmem:[%s6 + $0x68] sm:$0xff]
        %v7320 = vld [vmem:[%s6 + $0x70] sm:$0xff]
        %v7321 = vld [vmem:[%s6 + $0x78] sm:$0xff]
        %v7322 = vld [vmem:[%s6 + $0x80] sm:$0xff]
        %v7323 = vld [vmem:[%s6 + $0x88] sm:$0xff]
        %v7324 = vld [vmem:[%s6 + $0x90] sm:$0xff]
        %v7325 = vld [vmem:[%s6 + $0x98] sm:$0xff]
        %v7326 = vld [vmem:[%s6 + $0xa0] sm:$0xff]
        %v7327 = vld [vmem:[%s6 + $0xa8] sm:$0xff]
        %v7328 = vld [vmem:[%s6 + $0xb0] sm:$0x7]
        %v7330 = vsel %vm1037, %v7303, 0
        %v7333 = vsel %vm1037, %v7305, 0
        %v7336 = vsel %vm1044, %v7328, 0
        %7338 = vmatpush.msra.mxu0 %v7321
        %7339 = vmatpush.msra.mxu0 %v7320
        %7340 = vmatpush.msra.mxu0 %v7319
        %7341 = vmatpush.msra.mxu0 %v7318
        %7342 = vmatpush.msra.mxu0 %v7317
        %7343 = vmatpush.msra.mxu0 %v7316
        %7344 = vmatpush.msra.mxu0 %v7315
        %7345 = vmatpush.msra.mxu0 %v7314
        %7346 = vmatpush.msra.mxu0 %v7313
        %7347 = vmatpush.msra.mxu0 %v7312
        %7348 = vmatpush.msra.mxu0 %v7311
        %7349 = vmatpush.msra.mxu0 %v7310
        %7350 = vmatpush.msra.mxu0 %v7309
        %7351 = vmatpush.msra.mxu0 %v7308
        %7352 = vmatpush.msra.mxu0 %v7307
        %7353 = vmatpush.msra.mxu0 %v7306
        %7354 = vmatmul.f32.gmra.mxu0 %v7302
        %v7355 = vpop.f32.mrf.mxu0
        %v7356 = vadd.f32 0.0, %v7355
        %7357 = vmatmul.f32.gmra.mxu0 %v7304
        %v7358 = vpop.f32.mrf.mxu0
        %v7359 = vadd.f32 0.0, %v7358
        %7360 = vdwg.mxu0
        %7361 = vmatpush.msra.mxu0 0.0
        %7362 = vmatpush.msra.mxu0 0.0
        %7363 = vmatpush.msra.mxu0 0.0
        %7364 = vmatpush.msra.mxu0 0.0
        %7365 = vmatpush.msra.mxu0 0.0
        %7366 = vmatpush.msra.mxu0 0.0
        %7367 = vmatpush.msra.mxu0 0.0
        %7368 = vmatpush.msra.mxu0 0.0
        %7369 = vmatpush.msra.mxu0 0.0
        %7370 = vmatpush.msra.mxu0 %v7336
        %7371 = vmatpush.msra.mxu0 %v7327
        %7372 = vmatpush.msra.mxu0 %v7326
        %7373 = vmatpush.msra.mxu0 %v7325
        %7374 = vmatpush.msra.mxu0 %v7324
        %7375 = vmatpush.msra.mxu0 %v7323
        %7376 = vmatpush.msra.mxu0 %v7322
        %7377 = vmatmul.f32.gmra.mxu0 %v7330
        %v7378 = vpop.f32.mrf.mxu0
        %v7379 = vadd.f32 %v7356, %v7378
        %7380 = vmatmul.f32.gmra.mxu0 %v7333
        %v7381 = vpop.f32.mrf.mxu0
        %v7382 = vadd.f32 %v7359, %v7381
        %7383 = vdwg.mxu0
        %v7384 = vld [vmem:[#allocation8] sm:$0xff]
        %v7385 = vld [vmem:[#allocation8 + $0x8] sm:$0xff]
        %v7386 = vld [vmem:[#allocation8 + $0x10] sm:$0xff]
        %v7387 = vld [vmem:[#allocation8 + $0x18] sm:$0xff]
        %v7388 = vld [vmem:[#allocation8 + $0x20] sm:$0xff]
        %v7389 = vld [vmem:[#allocation8 + $0x28] sm:$0xff]
        %v7390 = vld [vmem:[#allocation8 + $0x30] sm:$0xff]
        %v7391 = vld [vmem:[#allocation8 + $0x38] sm:$0xff]
        %v7392 = vld [vmem:[#allocation8 + $0x40] sm:$0xff]
        %v7393 = vld [vmem:[#allocation8 + $0x48] sm:$0xff]
        %v7394 = vld [vmem:[#allocation8 + $0x50] sm:$0xff]
        %v7395 = vld [vmem:[#allocation8 + $0x58] sm:$0xff]
        %v7396 = vld [vmem:[#allocation8 + $0x60] sm:$0xff]
        %v7397 = vld [vmem:[#allocation8 + $0x68] sm:$0xff]
        %v7398 = vld [vmem:[#allocation8 + $0x70] sm:$0xff]
        %v7399 = vld [vmem:[#allocation8 + $0x78] sm:$0xff]
        %v7400 = vld [vmem:[#allocation8 + $0x80] sm:$0xff]
        %v7401 = vld [vmem:[#allocation8 + $0x88] sm:$0xff]
        %v7402 = vld [vmem:[#allocation8 + $0x90] sm:$0xff]
        %v7403 = vld [vmem:[#allocation8 + $0x98] sm:$0xff]
        %v7404 = vld [vmem:[#allocation8 + $0xa0] sm:$0xff]
        %v7405 = vld [vmem:[#allocation8 + $0xa8] sm:$0xff]
        %v7406 = vld [vmem:[#allocation8 + $0xb0] sm:$0x3]
        %v7407 = vld [vmem:[#allocation8 + $0xb8] sm:$0x3]
        %v7408 = vld [vmem:[%s1118] sm:$0xff]
        %v7409 = vld [vmem:[%s1118 + $0x8] sm:$0xff]
        %v7410 = vld [vmem:[%s1118 + $0x10] sm:$0xff]
        %v7411 = vld [vmem:[%s1118 + $0x18] sm:$0xff]
        %v7412 = vld [vmem:[%s1118 + $0x20] sm:$0xff]
        %v7413 = vld [vmem:[%s1118 + $0x28] sm:$0xff]
        %v7414 = vld [vmem:[%s1118 + $0x30] sm:$0xff]
        %v7415 = vld [vmem:[%s1118 + $0x38] sm:$0xff]
        %v7416 = vld [vmem:[%s1118 + $0x40] sm:$0xff]
        %v7417 = vld [vmem:[%s1118 + $0x48] sm:$0xff]
        %v7418 = vld [vmem:[%s1118 + $0x50] sm:$0xff]
        %v7419 = vld [vmem:[%s1118 + $0x58] sm:$0xff]
        %v7420 = vld [vmem:[%s1118 + $0x60] sm:$0xff]
        %v7421 = vld [vmem:[%s1118 + $0x68] sm:$0xff]
        %v7422 = vld [vmem:[%s1118 + $0x70] sm:$0xff]
        %v7423 = vld [vmem:[%s1118 + $0x78] sm:$0xff]
        %v7424 = vld [vmem:[%s1118 + $0x80] sm:$0xff]
        %v7425 = vld [vmem:[%s1118 + $0x88] sm:$0xff]
        %v7426 = vld [vmem:[%s1118 + $0x90] sm:$0xff]
        %v7427 = vld [vmem:[%s1118 + $0x98] sm:$0xff]
        %v7428 = vld [vmem:[%s1118 + $0xa0] sm:$0xff]
        %v7429 = vld [vmem:[%s1118 + $0xa8] sm:$0xff]
        %v7430 = vld [vmem:[%s1118 + $0xb0] sm:$0x3]
        %v7431 = vld [vmem:[%s1118 + $0xb8] sm:$0x3]
        %v7434 = vrot.slane %v7379, 1
        %v7435 = vrot.slane %v7382, 1
        %v7436 = vsel %vm637, %v7434, %v7435
        %v7437 = vsel %vm1148, %v7436, 0
        %v7439 = vsel %vm1148, %v7435, 0
        %v7442 = vsel %vm1153, %v7430, 0
        %v7445 = vsel %vm1153, %v7431, 0
        %7447 = vmatpush.msra.mxu0 0.0
        %7448 = vmatpush.msra.mxu0 0.0
        %7449 = vmatpush.msra.mxu0 0.0
        %7450 = vmatpush.msra.mxu0 0.0
        %7451 = vmatpush.msra.mxu0 %v7442
        %7452 = vmatpush.msra.mxu0 %v7428
        %7453 = vmatpush.msra.mxu0 %v7426
        %7454 = vmatpush.msra.mxu0 %v7424
        %7455 = vmatpush.msra.mxu0 %v7422
        %7456 = vmatpush.msra.mxu0 %v7420
        %7457 = vmatpush.msra.mxu0 %v7418
        %7458 = vmatpush.msra.mxu0 %v7416
        %7459 = vmatpush.msra.mxu0 %v7414
        %7460 = vmatpush.msra.mxu0 %v7412
        %7461 = vmatpush.msra.mxu0 %v7410
        %7462 = vmatpush.msra.mxu0 %v7408
        %7463 = vmatmul.f32.gmra.mxu0 %v7437
        %v7464 = vpop.f32.mrf.mxu0
        %v7465 = vadd.f32 0.0, %v7464
        %7466 = vmatmul.f32.gmra.mxu0 %v7439
        %v7467 = vpop.f32.mrf.mxu0
        %v7468 = vadd.f32 0.0, %v7467
        %7469 = vdwg.mxu0
        %7470 = vmatpush.msra.mxu0 0.0
        %7471 = vmatpush.msra.mxu0 0.0
        %7472 = vmatpush.msra.mxu0 0.0
        %7473 = vmatpush.msra.mxu0 0.0
        %7474 = vmatpush.msra.mxu0 %v7445
        %7475 = vmatpush.msra.mxu0 %v7429
        %7476 = vmatpush.msra.mxu0 %v7427
        %7477 = vmatpush.msra.mxu0 %v7425
        %7478 = vmatpush.msra.mxu0 %v7423
        %7479 = vmatpush.msra.mxu0 %v7421
        %7480 = vmatpush.msra.mxu0 %v7419
        %7481 = vmatpush.msra.mxu0 %v7417
        %7482 = vmatpush.msra.mxu0 %v7415
        %7483 = vmatpush.msra.mxu0 %v7413
        %7484 = vmatpush.msra.mxu0 %v7411
        %7485 = vmatpush.msra.mxu0 %v7409
        %7486 = vmatmul.f32.gmra.mxu0 %v7437
        %v7487 = vpop.f32.mrf.mxu0
        %v7488 = vadd.f32 0.0, %v7487
        %7489 = vmatmul.f32.gmra.mxu0 %v7439
        %v7490 = vpop.f32.mrf.mxu0
        %v7491 = vadd.f32 0.0, %v7490
        %7492 = vdwg.mxu0
        %v7493 = vsel %vm1148, %v7379, 0
        %v7495 = vsel %vm1148, %v7382, 0
        %v7498 = vsel %vm1153, %v7406, 0
        %v7501 = vsel %vm1153, %v7407, 0
        %7503 = vmatpush.msra.mxu0 0.0
        %7504 = vmatpush.msra.mxu0 0.0
        %7505 = vmatpush.msra.mxu0 0.0
        %7506 = vmatpush.msra.mxu0 0.0
        %7507 = vmatpush.msra.mxu0 %v7498
        %7508 = vmatpush.msra.mxu0 %v7404
        %7509 = vmatpush.msra.mxu0 %v7402
        %7510 = vmatpush.msra.mxu0 %v7400
        %7511 = vmatpush.msra.mxu0 %v7398
        %7512 = vmatpush.msra.mxu0 %v7396
        %7513 = vmatpush.msra.mxu0 %v7394
        %7514 = vmatpush.msra.mxu0 %v7392
        %7515 = vmatpush.msra.mxu0 %v7390
        %7516 = vmatpush.msra.mxu0 %v7388
        %7517 = vmatpush.msra.mxu0 %v7386
        %7518 = vmatpush.msra.mxu0 %v7384
        %7519 = vmatmul.f32.gmra.mxu0 %v7493
        %v7520 = vpop.f32.mrf.mxu0
        %v7521 = vadd.f32 %v7465, %v7520
        %7522 = vmatmul.f32.gmra.mxu0 %v7495
        %v7523 = vpop.f32.mrf.mxu0
        %v7524 = vadd.f32 %v7468, %v7523
        %7525 = vdwg.mxu0
        %7526 = vmatpush.msra.mxu0 0.0
        %7527 = vmatpush.msra.mxu0 0.0
        %7528 = vmatpush.msra.mxu0 0.0
        %7529 = vmatpush.msra.mxu0 0.0
        %7530 = vmatpush.msra.mxu0 %v7501
        %7531 = vmatpush.msra.mxu0 %v7405
        %7532 = vmatpush.msra.mxu0 %v7403
        %7533 = vmatpush.msra.mxu0 %v7401
        %7534 = vmatpush.msra.mxu0 %v7399
        %7535 = vmatpush.msra.mxu0 %v7397
        %7536 = vmatpush.msra.mxu0 %v7395
        %7537 = vmatpush.msra.mxu0 %v7393
        %7538 = vmatpush.msra.mxu0 %v7391
        %7539 = vmatpush.msra.mxu0 %v7389
        %7540 = vmatpush.msra.mxu0 %v7387
        %7541 = vmatpush.msra.mxu0 %v7385
        %7542 = vmatmul.f32.gmra.mxu0 %v7493
        %v7543 = vpop.f32.mrf.mxu0
        %v7544 = vadd.f32 %v7488, %v7543
        %7545 = vmatmul.f32.gmra.mxu0 %v7495
        %v7546 = vpop.f32.mrf.mxu0
        %v7547 = vadd.f32 %v7491, %v7546
        %7548 = vdwg.mxu0
        %v7549 = vld [vmem:[%s1262] sm:$0xff]
        %v7550 = vld [vmem:[%s1262 + $0x8] sm:$0xff]
        %v7551 = vld [vmem:[%s1262 + $0x10] sm:$0xff]
        %v7552 = vld [vmem:[%s1262 + $0x18] sm:$0xff]
        %v7553 = vld [vmem:[%s1262 + $0x20] sm:$0xff]
        %v7554 = vld [vmem:[%s1262 + $0x28] sm:$0xff]
        %v7555 = vld [vmem:[%s1262 + $0x30] sm:$0xff]
        %v7556 = vld [vmem:[%s1262 + $0x38] sm:$0xff]
        %v7557 = vld [vmem:[%s1262 + $0x40] sm:$0xff]
        %v7558 = vld [vmem:[%s1262 + $0x48] sm:$0xff]
        %v7559 = vld [vmem:[%s1262 + $0x50] sm:$0xff]
        %v7560 = vld [vmem:[%s1262 + $0x58] sm:$0xff]
        %v7561 = vld [vmem:[%s1262 + $0x60] sm:$0xff]
        %v7562 = vld [vmem:[%s1262 + $0x68] sm:$0xff]
        %v7563 = vld [vmem:[%s1262 + $0x70] sm:$0xff]
        %v7564 = vld [vmem:[%s1262 + $0x78] sm:$0xff]
        %v7565 = vld [vmem:[%s1262 + $0x80] sm:$0xff]
        %v7566 = vld [vmem:[%s1262 + $0x88] sm:$0xff]
        %v7567 = vld [vmem:[%s1262 + $0x90] sm:$0xff]
        %v7568 = vld [vmem:[%s1262 + $0x98] sm:$0xff]
        %v7569 = vld [vmem:[%s1262 + $0xa0] sm:$0xff]
        %v7570 = vld [vmem:[%s1262 + $0xa8] sm:$0xff]
        %v7571 = vld [vmem:[%s1262 + $0xb0] sm:$0x3]
        %v7572 = vld [vmem:[%s1262 + $0xb8] sm:$0x3]
        %v7573 = vrot.slane %v7379, 2
        %v7574 = vrot.slane %v7382, 2
        %v7575 = vsel %vm787, %v7573, %v7574
        %v7576 = vsel %vm1148, %v7575, 0
        %v7578 = vsel %vm1148, %v7574, 0
        %v7581 = vsel %vm1153, %v7571, 0
        %v7584 = vsel %vm1153, %v7572, 0
        %7586 = vmatpush.msra.mxu0 0.0
        %7587 = vmatpush.msra.mxu0 0.0
        %7588 = vmatpush.msra.mxu0 0.0
        %7589 = vmatpush.msra.mxu0 0.0
        %7590 = vmatpush.msra.mxu0 %v7581
        %7591 = vmatpush.msra.mxu0 %v7569
        %7592 = vmatpush.msra.mxu0 %v7567
        %7593 = vmatpush.msra.mxu0 %v7565
        %7594 = vmatpush.msra.mxu0 %v7563
        %7595 = vmatpush.msra.mxu0 %v7561
        %7596 = vmatpush.msra.mxu0 %v7559
        %7597 = vmatpush.msra.mxu0 %v7557
        %7598 = vmatpush.msra.mxu0 %v7555
        %7599 = vmatpush.msra.mxu0 %v7553
        %7600 = vmatpush.msra.mxu0 %v7551
        %7601 = vmatpush.msra.mxu0 %v7549
        %7602 = vmatmul.f32.gmra.mxu0 %v7576
        %v7603 = vpop.f32.mrf.mxu0
        %v7604 = vadd.f32 0.0, %v7603
        %7605 = vmatmul.f32.gmra.mxu0 %v7578
        %v7606 = vpop.f32.mrf.mxu0
        %v7607 = vadd.f32 0.0, %v7606
        %7608 = vdwg.mxu0
        %7609 = vmatpush.msra.mxu0 0.0
        %7610 = vmatpush.msra.mxu0 0.0
        %7611 = vmatpush.msra.mxu0 0.0
        %7612 = vmatpush.msra.mxu0 0.0
        %7613 = vmatpush.msra.mxu0 %v7584
        %7614 = vmatpush.msra.mxu0 %v7570
        %7615 = vmatpush.msra.mxu0 %v7568
        %7616 = vmatpush.msra.mxu0 %v7566
        %7617 = vmatpush.msra.mxu0 %v7564
        %7618 = vmatpush.msra.mxu0 %v7562
        %7619 = vmatpush.msra.mxu0 %v7560
        %7620 = vmatpush.msra.mxu0 %v7558
        %7621 = vmatpush.msra.mxu0 %v7556
        %7622 = vmatpush.msra.mxu0 %v7554
        %7623 = vmatpush.msra.mxu0 %v7552
        %7624 = vmatpush.msra.mxu0 %v7550
        %7625 = vmatmul.f32.gmra.mxu0 %v7576
        %v7626 = vpop.f32.mrf.mxu0
        %v7627 = vadd.f32 0.0, %v7626
        %7628 = vmatmul.f32.gmra.mxu0 %v7578
        %v7629 = vpop.f32.mrf.mxu0
        %v7630 = vadd.f32 0.0, %v7629
        %7631 = vdwg.mxu0
        %v7632 = vadd.f32 %v7521, %v7604
        %v7633 = vadd.f32 %v7544, %v7627
        %v7634 = vadd.f32 %v7524, %v7607
        %v7635 = vadd.f32 %v7547, %v7630
        %v7636 = vld [vmem:[#allocation9] sm:$0x3]
        %v7638 = vperm.slane %v7636, 0
        %v7639 = vperm.slane %v7636, 1
        %v7642 = vadd.f32 %v7632, %v7638
        %v7643 = vadd.f32 %v7633, %v7639
        %v7644 = vadd.f32 %v7634, %v7638
        %v7645 = vadd.f32 %v7635, %v7639
        %v7646 = vmax.f32 %v7642, 0.0
        %v7647 = vmax.f32 %v7643, 0.0
        %v7648 = vmax.f32 %v7644, 0.0
        %v7649 = vmax.f32 %v7645, 0.0
        %v7654 = vrot.slane %v7646, 1
        %v7655 = vrot.slane %v7648, 1
        %v7656 = vsel %vm637, %v7654, %v7655
        %v7657 = vrot.slane %v7647, 1
        %v7658 = vrot.slane %v7649, 1
        %v7659 = vsel %vm637, %v7657, %v7658
        %v7664 = vmax.f32 %v7646, %v7656
        %v7665 = vmax.f32 %v7647, %v7659
        %v7666 = vmax.f32 %v7648, %v7655
        %v7667 = vmax.f32 %v7649, %v7658
        %v7668 = vld [vmem:[%s7] sm:$0x3f]
        %v7670 = vsel %vm1383, %v7668, 0
        %v7673 = vsel %vm1387, %v7666, 0
        %v7676 = vsel %vm1387, %v7667, 0
        %7678 = vmatpush.msra.mxu0 0.0
        %7679 = vmatpush.msra.mxu0 0.0
        %7680 = vmatpush.msra.mxu0 0.0
        %7681 = vmatpush.msra.mxu0 0.0
        %7682 = vmatpush.msra.mxu0 0.0
        %7683 = vmatpush.msra.mxu0 0.0
        %7684 = vmatpush.msra.mxu0 0.0
        %7685 = vmatpush.msra.mxu0 0.0
        %7686 = vmatpush.msra.mxu0 0.0
        %7687 = vmatpush.msra.mxu0 0.0
        %7688 = vmatpush.msra.mxu0 0.0
        %7689 = vmatpush.msra.mxu0 0.0
        %7690 = vmatpush.msra.mxu0 0.0
        %7691 = vmatpush.msra.mxu0 0.0
        %7692 = vmatpush.msra.mxu0 %v7673
        %7693 = vmatpush.msra.mxu0 %v7664
        %7694 = vmatmul.f32.gmra.mxu0 %v7670
        %v7695 = vpop.f32.mrf.mxu0
        %v7696 = vadd.f32 0.0, %v7695
        %7697 = vdwg.mxu0
        %7698 = vmatpush.msra.mxu0 0.0
        %7699 = vmatpush.msra.mxu0 0.0
        %7700 = vmatpush.msra.mxu0 0.0
        %7701 = vmatpush.msra.mxu0 0.0
        %7702 = vmatpush.msra.mxu0 0.0
        %7703 = vmatpush.msra.mxu0 0.0
        %7704 = vmatpush.msra.mxu0 0.0
        %7705 = vmatpush.msra.mxu0 0.0
        %7706 = vmatpush.msra.mxu0 0.0
        %7707 = vmatpush.msra.mxu0 0.0
        %7708 = vmatpush.msra.mxu0 0.0
        %7709 = vmatpush.msra.mxu0 0.0
        %7710 = vmatpush.msra.mxu0 0.0
        %7711 = vmatpush.msra.mxu0 0.0
        %7712 = vmatpush.msra.mxu0 %v7676
        %7713 = vmatpush.msra.mxu0 %v7665
        %7714 = vmatmul.f32.gmra.mxu0 %v7670
        %v7715 = vpop.f32.mrf.mxu0
        %v7716 = vadd.f32 0.0, %v7715
        %7717 = vdwg.mxu0
        %7720 = vrot.lane.b32.xlu0 %v7696, 127
        %v7721 = vpop.permute.xlu0 %7720
        %7722 = vrot.lane.b32.xlu0 %v7716, 127
        %v7723 = vpop.permute.xlu0 %7722
        %v7724 = vsel %vm1003, %v7721, %v7723
        %v7727 = vmax.f32 %v7696, %v7724
        %v7728 = vmax.f32 %v7716, %v7723
        %v7729 = vld [vmem:[%s8] sm:$0xff]
        %v7730 = vld [vmem:[%s8 + $0x8] sm:$0xff]
        %v7731 = vld [vmem:[%s8 + $0x10] sm:$0xff]
        %v7732 = vld [vmem:[%s8 + $0x18] sm:$0xff]
        %v7733 = vld [vmem:[%s8 + $0x20] sm:$0xff]
        %v7734 = vld [vmem:[%s8 + $0x28] sm:$0xff]
        %v7735 = vld [vmem:[%s8 + $0x30] sm:$0xff]
        %v7736 = vld [vmem:[%s8 + $0x38] sm:$0xff]
        %v7737 = vld [vmem:[%s8 + $0x40] sm:$0xff]
        %v7738 = vld [vmem:[%s8 + $0x48] sm:$0xff]
        %v7739 = vld [vmem:[%s8 + $0x50] sm:$0xff]
        %v7740 = vld [vmem:[%s8 + $0x58] sm:$0xff]
        %v7741 = vld [vmem:[%s8 + $0x60] sm:$0xff]
        %v7742 = vld [vmem:[%s8 + $0x68] sm:$0xff]
        %v7743 = vld [vmem:[%s8 + $0x70] sm:$0xff]
        %v7744 = vld [vmem:[%s8 + $0x78] sm:$0xff]
        %v7745 = vld [vmem:[%s8 + $0x80] sm:$0xff]
        %v7746 = vld [vmem:[%s8 + $0x88] sm:$0xff]
        %v7747 = vld [vmem:[%s8 + $0x90] sm:$0xff]
        %v7748 = vld [vmem:[%s8 + $0x98] sm:$0xff]
        %v7749 = vld [vmem:[%s8 + $0xa0] sm:$0xff]
        %v7750 = vld [vmem:[%s8 + $0xa8] sm:$0xff]
        %v7751 = vld [vmem:[%s8 + $0xb0] sm:$0xff]
        %v7752 = vld [vmem:[%s8 + $0xb8] sm:$0xff]
        %v7753 = vld [vmem:[%s8 + $0xc0] sm:$0xff]
        %v7754 = vld [vmem:[%s8 + $0xc8] sm:$0x7f]
        %v7756 = vsel %vm1471, %v7728, 0
        %v7759 = vsel %vm637, %v7754, 0
        %7761 = vmatpush.msra.mxu0 %v7744
        %7762 = vmatpush.msra.mxu0 %v7743
        %7763 = vmatpush.msra.mxu0 %v7742
        %7764 = vmatpush.msra.mxu0 %v7741
        %7765 = vmatpush.msra.mxu0 %v7740
        %7766 = vmatpush.msra.mxu0 %v7739
        %7767 = vmatpush.msra.mxu0 %v7738
        %7768 = vmatpush.msra.mxu0 %v7737
        %7769 = vmatpush.msra.mxu0 %v7736
        %7770 = vmatpush.msra.mxu0 %v7735
        %7771 = vmatpush.msra.mxu0 %v7734
        %7772 = vmatpush.msra.mxu0 %v7733
        %7773 = vmatpush.msra.mxu0 %v7732
        %7774 = vmatpush.msra.mxu0 %v7731
        %7775 = vmatpush.msra.mxu0 %v7730
        %7776 = vmatpush.msra.mxu0 %v7729
        %7777 = vmatmul.f32.gmra.mxu0 %v7727
        %v7778 = vpop.f32.mrf.mxu0
        %v7779 = vadd.f32 0.0, %v7778
        %7780 = vdwg.mxu0
        %7781 = vmatpush.msra.mxu0 0.0
        %7782 = vmatpush.msra.mxu0 0.0
        %7783 = vmatpush.msra.mxu0 0.0
        %7784 = vmatpush.msra.mxu0 0.0
        %7785 = vmatpush.msra.mxu0 0.0
        %7786 = vmatpush.msra.mxu0 0.0
        %7787 = vmatpush.msra.mxu0 %v7759
        %7788 = vmatpush.msra.mxu0 %v7753
        %7789 = vmatpush.msra.mxu0 %v7752
        %7790 = vmatpush.msra.mxu0 %v7751
        %7791 = vmatpush.msra.mxu0 %v7750
        %7792 = vmatpush.msra.mxu0 %v7749
        %7793 = vmatpush.msra.mxu0 %v7748
        %7794 = vmatpush.msra.mxu0 %v7747
        %7795 = vmatpush.msra.mxu0 %v7746
        %7796 = vmatpush.msra.mxu0 %v7745
        %7797 = vmatmul.f32.gmra.mxu0 %v7756
        %v7798 = vpop.f32.mrf.mxu0
        %v7799 = vadd.f32 %v7779, %v7798
        %7800 = vdwg.mxu0
        %7801 = vst.msk [vmem:[#allocation2 + $0x7] sm:$0x1] %vm1518, %v7799
        %7802 = vst.msk [vmem:[%s1520 + $0x6] sm:$0x2] %vm1521, %v7799
        %7803 = vst.msk [vmem:[%s1523 + $0x5] sm:$0x4] %vm1524, %v7799
        %7804 = vst.msk [vmem:[%s1526 + $0x4] sm:$0x8] %vm1527, %v7799
        %7805 = vst.msk [vmem:[%s1529 + $0x3] sm:$0x10] %vm1530, %v7799
        %7806 = vst.msk [vmem:[%s1532 + $0x2] sm:$0x20] %vm1533, %v7799
        %v7807 = vld [vmem:[#allocation2] sm:$0xff]
        %v7808 = vld [vmem:[#allocation11] sm:$0xff]
        %v7809 = vld [vmem:[#allocation11 + $0x8] sm:$0xff]
        %v7810 = vld [vmem:[#allocation11 + $0x10] sm:$0xff]
        %v7811 = vld [vmem:[#allocation11 + $0x18] sm:$0xff]
        %v7812 = vld [vmem:[#allocation11 + $0x20] sm:$0xff]
        %v7813 = vld [vmem:[#allocation11 + $0x28] sm:$0xff]
        %v7814 = vld [vmem:[#allocation11 + $0x30] sm:$0xff]
        %v7815 = vld [vmem:[#allocation11 + $0x38] sm:$0xff]
        %v7816 = vld [vmem:[#allocation11 + $0x40] sm:$0xff]
        %v7817 = vld [vmem:[#allocation11 + $0x48] sm:$0xff]
        %v7818 = vld [vmem:[#allocation11 + $0x50] sm:$0xff]
        %v7819 = vld [vmem:[#allocation11 + $0x58] sm:$0xff]
        %v7820 = vld [vmem:[%s1520] sm:$0xff]
        %s7821 = scalar_lea.vmem [#allocation11], 96
        %v7822 = vld [vmem:[%s7821] sm:$0xff]
        %v7823 = vld [vmem:[%s7821 + $0x8] sm:$0xff]
        %v7824 = vld [vmem:[%s7821 + $0x10] sm:$0xff]
        %v7825 = vld [vmem:[%s7821 + $0x18] sm:$0xff]
        %v7826 = vld [vmem:[%s7821 + $0x20] sm:$0xff]
        %v7827 = vld [vmem:[%s7821 + $0x28] sm:$0xff]
        %v7828 = vld [vmem:[%s7821 + $0x30] sm:$0xff]
        %v7829 = vld [vmem:[%s7821 + $0x38] sm:$0xff]
        %v7830 = vld [vmem:[%s7821 + $0x40] sm:$0xff]
        %v7831 = vld [vmem:[%s7821 + $0x48] sm:$0xff]
        %v7832 = vld [vmem:[%s7821 + $0x50] sm:$0xff]
        %v7833 = vld [vmem:[%s7821 + $0x58] sm:$0xff]
        %vm7834 = vcmask 785408
        %v7836 = vsel %vm7834, %v7820, 0
        %7838 = vmatpush.msra.mxu0 0.0
        %7839 = vmatpush.msra.mxu0 0.0
        %7840 = vmatpush.msra.mxu0 0.0
        %7841 = vmatpush.msra.mxu0 0.0
        %7842 = vmatpush.msra.mxu0 %v7833
        %7843 = vmatpush.msra.mxu0 %v7832
        %7844 = vmatpush.msra.mxu0 %v7831
        %7845 = vmatpush.msra.mxu0 %v7830
        %7846 = vmatpush.msra.mxu0 %v7829
        %7847 = vmatpush.msra.mxu0 %v7828
        %7848 = vmatpush.msra.mxu0 %v7827
        %7849 = vmatpush.msra.mxu0 %v7826
        %7850 = vmatpush.msra.mxu0 %v7825
        %7851 = vmatpush.msra.mxu0 %v7824
        %7852 = vmatpush.msra.mxu0 %v7823
        %7853 = vmatpush.msra.mxu0 %v7822
        %7854 = vmatmul.f32.gmra.mxu0 %v7836
        %v7855 = vpop.f32.mrf.mxu0
        %v7856 = vadd.f32 0.0, %v7855
        %7857 = vdwg.mxu0
        %v7859 = vsel %vm7834, %v7807, 0
        %7861 = vmatpush.msra.mxu0 0.0
        %7862 = vmatpush.msra.mxu0 0.0
        %7863 = vmatpush.msra.mxu0 0.0
        %7864 = vmatpush.msra.mxu0 0.0
        %7865 = vmatpush.msra.mxu0 %v7819
        %7866 = vmatpush.msra.mxu0 %v7818
        %7867 = vmatpush.msra.mxu0 %v7817
        %7868 = vmatpush.msra.mxu0 %v7816
        %7869 = vmatpush.msra.mxu0 %v7815
        %7870 = vmatpush.msra.mxu0 %v7814
        %7871 = vmatpush.msra.mxu0 %v7813
        %7872 = vmatpush.msra.mxu0 %v7812
        %7873 = vmatpush.msra.mxu0 %v7811
        %7874 = vmatpush.msra.mxu0 %v7810
        %7875 = vmatpush.msra.mxu0 %v7809
        %7876 = vmatpush.msra.mxu0 %v7808
        %7877 = vmatmul.f32.gmra.mxu0 %v7859
        %v7878 = vpop.f32.mrf.mxu0
        %v7879 = vadd.f32 %v7856, %v7878
        %7880 = vdwg.mxu0
        %v7881 = vld [vmem:[%s1523] sm:$0xff]
        %s7882 = scalar_lea.vmem [#allocation11], 192
        %v7883 = vld [vmem:[%s7882] sm:$0xff]
        %v7884 = vld [vmem:[%s7882 + $0x8] sm:$0xff]
        %v7885 = vld [vmem:[%s7882 + $0x10] sm:$0xff]
        %v7886 = vld [vmem:[%s7882 + $0x18] sm:$0xff]
        %v7887 = vld [vmem:[%s7882 + $0x20] sm:$0xff]
        %v7888 = vld [vmem:[%s7882 + $0x28] sm:$0xff]
        %v7889 = vld [vmem:[%s7882 + $0x30] sm:$0xff]
        %v7890 = vld [vmem:[%s7882 + $0x38] sm:$0xff]
        %v7891 = vld [vmem:[%s7882 + $0x40] sm:$0xff]
        %v7892 = vld [vmem:[%s7882 + $0x48] sm:$0xff]
        %v7893 = vld [vmem:[%s7882 + $0x50] sm:$0xff]
        %v7894 = vld [vmem:[%s7882 + $0x58] sm:$0xff]
        %v7896 = vsel %vm7834, %v7881, 0
        %7898 = vmatpush.msra.mxu0 0.0
        %7899 = vmatpush.msra.mxu0 0.0
        %7900 = vmatpush.msra.mxu0 0.0
        %7901 = vmatpush.msra.mxu0 0.0
        %7902 = vmatpush.msra.mxu0 %v7894
        %7903 = vmatpush.msra.mxu0 %v7893
        %7904 = vmatpush.msra.mxu0 %v7892
        %7905 = vmatpush.msra.mxu0 %v7891
        %7906 = vmatpush.msra.mxu0 %v7890
        %7907 = vmatpush.msra.mxu0 %v7889
        %7908 = vmatpush.msra.mxu0 %v7888
        %7909 = vmatpush.msra.mxu0 %v7887
        %7910 = vmatpush.msra.mxu0 %v7886
        %7911 = vmatpush.msra.mxu0 %v7885
        %7912 = vmatpush.msra.mxu0 %v7884
        %7913 = vmatpush.msra.mxu0 %v7883
        %7914 = vmatmul.f32.gmra.mxu0 %v7896
        %v7915 = vpop.f32.mrf.mxu0
        %v7916 = vadd.f32 0.0, %v7915
        %7917 = vdwg.mxu0
        %v7918 = vadd.f32 %v7879, %v7916
        %v7919 = vld [vmem:[%s1526] sm:$0xff]
        %s7920 = scalar_lea.vmem [#allocation11], 288
        %v7921 = vld [vmem:[%s7920] sm:$0xff]
        %v7922 = vld [vmem:[%s7920 + $0x8] sm:$0xff]
        %v7923 = vld [vmem:[%s7920 + $0x10] sm:$0xff]
        %v7924 = vld [vmem:[%s7920 + $0x18] sm:$0xff]
        %v7925 = vld [vmem:[%s7920 + $0x20] sm:$0xff]
        %v7926 = vld [vmem:[%s7920 + $0x28] sm:$0xff]
        %v7927 = vld [vmem:[%s7920 + $0x30] sm:$0xff]
        %v7928 = vld [vmem:[%s7920 + $0x38] sm:$0xff]
        %v7929 = vld [vmem:[%s7920 + $0x40] sm:$0xff]
        %v7930 = vld [vmem:[%s7920 + $0x48] sm:$0xff]
        %v7931 = vld [vmem:[%s7920 + $0x50] sm:$0xff]
        %v7932 = vld [vmem:[%s7920 + $0x58] sm:$0xff]
        %v7934 = vsel %vm7834, %v7919, 0
        %7936 = vmatpush.msra.mxu0 0.0
        %7937 = vmatpush.msra.mxu0 0.0
        %7938 = vmatpush.msra.mxu0 0.0
        %7939 = vmatpush.msra.mxu0 0.0
        %7940 = vmatpush.msra.mxu0 %v7932
        %7941 = vmatpush.msra.mxu0 %v7931
        %7942 = vmatpush.msra.mxu0 %v7930
        %7943 = vmatpush.msra.mxu0 %v7929
        %7944 = vmatpush.msra.mxu0 %v7928
        %7945 = vmatpush.msra.mxu0 %v7927
        %7946 = vmatpush.msra.mxu0 %v7926
        %7947 = vmatpush.msra.mxu0 %v7925
        %7948 = vmatpush.msra.mxu0 %v7924
        %7949 = vmatpush.msra.mxu0 %v7923
        %7950 = vmatpush.msra.mxu0 %v7922
        %7951 = vmatpush.msra.mxu0 %v7921
        %7952 = vmatmul.f32.gmra.mxu0 %v7934
        %v7953 = vpop.f32.mrf.mxu0
        %v7954 = vadd.f32 0.0, %v7953
        %7955 = vdwg.mxu0
        %v7956 = vadd.f32 %v7918, %v7954
        %v7957 = vld [vmem:[%s1529] sm:$0xff]
        %s7958 = scalar_lea.vmem [#allocation11], 384
        %v7959 = vld [vmem:[%s7958] sm:$0xff]
        %v7960 = vld [vmem:[%s7958 + $0x8] sm:$0xff]
        %v7961 = vld [vmem:[%s7958 + $0x10] sm:$0xff]
        %v7962 = vld [vmem:[%s7958 + $0x18] sm:$0xff]
        %v7963 = vld [vmem:[%s7958 + $0x20] sm:$0xff]
        %v7964 = vld [vmem:[%s7958 + $0x28] sm:$0xff]
        %v7965 = vld [vmem:[%s7958 + $0x30] sm:$0xff]
        %v7966 = vld [vmem:[%s7958 + $0x38] sm:$0xff]
        %v7967 = vld [vmem:[%s7958 + $0x40] sm:$0xff]
        %v7968 = vld [vmem:[%s7958 + $0x48] sm:$0xff]
        %v7969 = vld [vmem:[%s7958 + $0x50] sm:$0xff]
        %v7970 = vld [vmem:[%s7958 + $0x58] sm:$0xff]
        %v7972 = vsel %vm7834, %v7957, 0
        %7974 = vmatpush.msra.mxu0 0.0
        %7975 = vmatpush.msra.mxu0 0.0
        %7976 = vmatpush.msra.mxu0 0.0
        %7977 = vmatpush.msra.mxu0 0.0
        %7978 = vmatpush.msra.mxu0 %v7970
        %7979 = vmatpush.msra.mxu0 %v7969
        %7980 = vmatpush.msra.mxu0 %v7968
        %7981 = vmatpush.msra.mxu0 %v7967
        %7982 = vmatpush.msra.mxu0 %v7966
        %7983 = vmatpush.msra.mxu0 %v7965
        %7984 = vmatpush.msra.mxu0 %v7964
        %7985 = vmatpush.msra.mxu0 %v7963
        %7986 = vmatpush.msra.mxu0 %v7962
        %7987 = vmatpush.msra.mxu0 %v7961
        %7988 = vmatpush.msra.mxu0 %v7960
        %7989 = vmatpush.msra.mxu0 %v7959
        %7990 = vmatmul.f32.gmra.mxu0 %v7972
        %v7991 = vpop.f32.mrf.mxu0
        %v7992 = vadd.f32 0.0, %v7991
        %7993 = vdwg.mxu0
        %v7994 = vadd.f32 %v7956, %v7992
        %v7995 = vld [vmem:[%s1532] sm:$0xff]
        %s7996 = scalar_lea.vmem [#allocation11], 480
        %v7997 = vld [vmem:[%s7996] sm:$0xff]
        %v7998 = vld [vmem:[%s7996 + $0x8] sm:$0xff]
        %v7999 = vld [vmem:[%s7996 + $0x10] sm:$0xff]
        %v8000 = vld [vmem:[%s7996 + $0x18] sm:$0xff]
        %v8001 = vld [vmem:[%s7996 + $0x20] sm:$0xff]
        %v8002 = vld [vmem:[%s7996 + $0x28] sm:$0xff]
        %v8003 = vld [vmem:[%s7996 + $0x30] sm:$0xff]
        %v8004 = vld [vmem:[%s7996 + $0x38] sm:$0xff]
        %v8005 = vld [vmem:[%s7996 + $0x40] sm:$0xff]
        %v8006 = vld [vmem:[%s7996 + $0x48] sm:$0xff]
        %v8007 = vld [vmem:[%s7996 + $0x50] sm:$0xff]
        %v8008 = vld [vmem:[%s7996 + $0x58] sm:$0xff]
        %v8010 = vsel %vm7834, %v7995, 0
        %8012 = vmatpush.msra.mxu0 0.0
        %8013 = vmatpush.msra.mxu0 0.0
        %8014 = vmatpush.msra.mxu0 0.0
        %8015 = vmatpush.msra.mxu0 0.0
        %8016 = vmatpush.msra.mxu0 %v8008
        %8017 = vmatpush.msra.mxu0 %v8007
        %8018 = vmatpush.msra.mxu0 %v8006
        %8019 = vmatpush.msra.mxu0 %v8005
        %8020 = vmatpush.msra.mxu0 %v8004
        %8021 = vmatpush.msra.mxu0 %v8003
        %8022 = vmatpush.msra.mxu0 %v8002
        %8023 = vmatpush.msra.mxu0 %v8001
        %8024 = vmatpush.msra.mxu0 %v8000
        %8025 = vmatpush.msra.mxu0 %v7999
        %8026 = vmatpush.msra.mxu0 %v7998
        %8027 = vmatpush.msra.mxu0 %v7997
        %8028 = vmatmul.f32.gmra.mxu0 %v8010
        %v8029 = vpop.f32.mrf.mxu0
        %v8030 = vadd.f32 0.0, %v8029
        %8031 = vdwg.mxu0
        %v8032 = vadd.f32 %v7994, %v8030
        %v8033 = vld [vmem:[%s10] sm:$0x1]
        %v8035 = vperm.slane %v8033, 0
        %v8037 = vadd.f32 %v8032, %v8035
        %v8038 = vmax.f32 %v8037, 0.0
        %v8039 = vld [vmem:[#allocation12] sm:$0xff]
        %v8040 = vld [vmem:[#allocation12 + $0x8] sm:$0xff]
        %v8041 = vld [vmem:[#allocation12 + $0x10] sm:$0xff]
        %v8042 = vld [vmem:[#allocation12 + $0x18] sm:$0xff]
        %v8043 = vld [vmem:[#allocation12 + $0x20] sm:$0xff]
        %v8044 = vld [vmem:[#allocation12 + $0x28] sm:$0xff]
        %v8045 = vld [vmem:[#allocation12 + $0x30] sm:$0xff]
        %v8046 = vld [vmem:[#allocation12 + $0x38] sm:$0xff]
        %v8047 = vld [vmem:[#allocation12 + $0x40] sm:$0xff]
        %v8048 = vld [vmem:[#allocation12 + $0x48] sm:$0xff]
        %v8049 = vld [vmem:[#allocation12 + $0x50] sm:$0xff]
        %v8050 = vld [vmem:[#allocation12 + $0x58] sm:$0xff]
        %v8051 = vld [vmem:[#allocation12 + $0x60] sm:$0xff]
        %v8052 = vld [vmem:[#allocation12 + $0x68] sm:$0xff]
        %v8053 = vld [vmem:[#allocation12 + $0x70] sm:$0xff]
        %v8054 = vld [vmem:[#allocation12 + $0x78] sm:$0xff]
        %v8055 = vld [vmem:[%s12] sm:$0x1]
        %v8057 = vperm.slane %v8055, 0
        %8059 = vmatpush.msra.mxu0 %v8054
        %8060 = vmatpush.msra.mxu0 %v8053
        %8061 = vmatpush.msra.mxu0 %v8052
        %8062 = vmatpush.msra.mxu0 %v8051
        %8063 = vmatpush.msra.mxu0 %v8050
        %8064 = vmatpush.msra.mxu0 %v8049
        %8065 = vmatpush.msra.mxu0 %v8048
        %8066 = vmatpush.msra.mxu0 %v8047
        %8067 = vmatpush.msra.mxu0 %v8046
        %8068 = vmatpush.msra.mxu0 %v8045
        %8069 = vmatpush.msra.mxu0 %v8044
        %8070 = vmatpush.msra.mxu0 %v8043
        %8071 = vmatpush.msra.mxu0 %v8042
        %8072 = vmatpush.msra.mxu0 %v8041
        %8073 = vmatpush.msra.mxu0 %v8040
        %8074 = vmatpush.msra.mxu0 %v8039
        %8075 = vmatmul.f32.gmra.mxu0 %v8038
        %v8076 = vpop.f32.mrf.mxu0
        %v8077 = vadd.f32 %v8057, %v8076
        %8078 = vdwg.mxu0
        %v8079 = vmax.f32 %v8077, 0.0
        %v8080 = vld [vmem:[#allocation14] sm:$0xff]
        %v8081 = vld [vmem:[#allocation14 + $0x8] sm:$0xff]
        %v8082 = vld [vmem:[#allocation14 + $0x10] sm:$0xff]
        %v8083 = vld [vmem:[#allocation14 + $0x18] sm:$0xff]
        %v8084 = vld [vmem:[#allocation14 + $0x20] sm:$0xff]
        %v8085 = vld [vmem:[#allocation14 + $0x28] sm:$0xff]
        %v8086 = vld [vmem:[#allocation14 + $0x30] sm:$0xff]
        %v8087 = vld [vmem:[#allocation14 + $0x38] sm:$0xff]
        %v8088 = vld [vmem:[#allocation14 + $0x40] sm:$0xff]
        %v8089 = vld [vmem:[#allocation14 + $0x48] sm:$0xff]
        %v8090 = vld [vmem:[#allocation14 + $0x50] sm:$0xff]
        %v8091 = vld [vmem:[#allocation14 + $0x58] sm:$0xff]
        %v8092 = vld [vmem:[#allocation14 + $0x60] sm:$0xff]
        %v8093 = vld [vmem:[#allocation14 + $0x68] sm:$0xff]
        %v8094 = vld [vmem:[#allocation14 + $0x70] sm:$0xff]
        %v8095 = vld [vmem:[#allocation14 + $0x78] sm:$0xff]
        %v8096 = vld [vmem:[%s14] sm:$0x1]
        %v8098 = vperm.slane %v8096, 0
        %8100 = vmatpush.msra.mxu0 %v8095
        %8101 = vmatpush.msra.mxu0 %v8094
        %8102 = vmatpush.msra.mxu0 %v8093
        %8103 = vmatpush.msra.mxu0 %v8092
        %8104 = vmatpush.msra.mxu0 %v8091
        %8105 = vmatpush.msra.mxu0 %v8090
        %8106 = vmatpush.msra.mxu0 %v8089
        %8107 = vmatpush.msra.mxu0 %v8088
        %8108 = vmatpush.msra.mxu0 %v8087
        %8109 = vmatpush.msra.mxu0 %v8086
        %8110 = vmatpush.msra.mxu0 %v8085
        %8111 = vmatpush.msra.mxu0 %v8084
        %8112 = vmatpush.msra.mxu0 %v8083
        %8113 = vmatpush.msra.mxu0 %v8082
        %8114 = vmatpush.msra.mxu0 %v8081
        %8115 = vmatpush.msra.mxu0 %v8080
        %8116 = vmatmul.f32.gmra.mxu0 %v8079
        %v8117 = vpop.f32.mrf.mxu0
        %v8118 = vadd.f32 %v8098, %v8117
        %8119 = vdwg.mxu0
        %8120 = vst [vmem:[%s610] sm:$0xff] %v8118
        %s8121 = sand.u32 %s363, 1
        %s8122 = scalar_lea.sflag [#allocation5], %s8121
        %s8123 = sand.u32 %s363, 1
        %s8124 = smul.addr %s8123, 8
        %s8125 = scalar_lea.vmem [#allocation15], %s8124
        // Predicated region
        $region109: #{net_forward.1} parent=79 // pred_check
          %p8126 = pneg %p373
        $region110: #{net_forward.1} parent=79 // pred_check_branch
          %8128 = sbr.rel (%p8126) target = $region112
        $region111: #{net_forward.1} parent=79 // pred_region
          %8130 = vsyncadd %s8122, 0
          %s8131 = smul.addr %s35, 8
          %s8132 = scalar_lea.hbm %s15, %s8131
          %s8134 = sshll.u32 %s8125, 4
          %s8135 = int_to_ptr.vmem [resolvable:$true] %s8134
          %s8136 = sshll.u32 %s8132, 4
          %s8137 = int_to_ptr.hbm [resolvable:$true] %s8136
          %8139 = dma.vmem_to_hbm [thread:$0]  %s8135, 128, %s8137, %s8122
        $region112: #{net_forward.1} parent=79 // pred_fallthru
          _
      $region80: #{net_forward.1} parent=5 // pred_fallthru
        _
      %p8140 = scmp.le.s32.totalorder 2, %s30
      // Predicated region
      $region113: #{net_forward.1} parent=5 // pred_check
        %p8141 = pneg %p8140
      $region114: #{net_forward.1} parent=5 // pred_check_branch
        %8143 = sbr.rel (%p8141) target = $region116
      $region115: #{net_forward.1} parent=5 // pred_region
        %s8144 = ssub.s32 %s30, 2
        // Predicated region
        $region117: #{net_forward.1} parent=115 // pred_check
          %p8145 = pneg %p379
        $region118: #{net_forward.1} parent=115 // pred_check_branch
          %8147 = sbr.rel (%p8145) target = $region120
        $region119: #{net_forward.1} parent=115 // pred_region
          %s8148 = sand.u32 %s364, 1
          %s8149 = scalar_lea.sflag [#allocation5], %s8148
          %s8150 = sand.u32 %s364, 1
          %s8151 = smul.addr %s8150, 8
          %s8152 = scalar_lea.vmem [#allocation15], %s8151
          %8154 = dma.done %s8149, 128
        $region120: #{net_forward.1} parent=115 // pred_fallthru
          _
      $region116: #{net_forward.1} parent=5 // pred_fallthru
        _
    $region6: #{net_forward.1} parent=1 // loop_footer
      %s34 = sadd.s32 1, %s30
    $region7: #{net_forward.1} parent=1 // loop_footer_branch
      %29 = sbr.rel target = $region3
    $region8: #{net_forward.1} parent=1 // loop_exit
      _
    %8155 = vsyncpa [#allocation4], 1
    %s8156 = scalar_lea.sflag [#allocation4], 1
    %8157 = vsyncpa %s8156, 1
    %8158 = vsyncpa [#allocation7], 1
    %8159 = vsyncpa [#allocation10], 1
    %8160 = vsyncpa [#allocation13], 1
    %8161 = vsyncpa [#allocation5], 1
    %s8162 = scalar_lea.sflag [#allocation5], 1
    %8163 = vsyncpa %s8162, 1

</llo_original>
